<compile_context>
chip_gen: v6e
topology: v6e:2x2x1
jax: 0.10.0
libtpu: 0.0.40
codegen_flags: <defaults>
</compile_context>

<pallas_src>
import math

import jax
import jax.numpy as jnp
from jax import lax
from jax.experimental import pallas as pl
from jax.experimental.pallas import tpu as pltpu


_BN_EPS = 1e-5
_INV_SQRT2 = 0.7071067811865476


# -----------------------------------------------------------------------------
# In-kernel GELU (exact erf form, f32 math; reciprocal on the EUP)
# -----------------------------------------------------------------------------
def _gelu(x):
    # erf via Abramowitz & Stegun 7.1.26 (|err| < ~1.5e-7), like torch GELU().
    z = x * _INV_SQRT2
    sign = jnp.where(z >= 0.0, 1.0, -1.0)
    az = jnp.abs(z)
    t = pl.reciprocal(1.0 + 0.3275911 * az, approx=True)
    poly = ((((1.061405429 * t - 1.453152027) * t + 1.421413741) * t
             - 0.284496736) * t + 0.254829592) * t
    erf = sign * (1.0 - poly * jnp.exp(-az * az))
    return 0.5 * x * (1.0 + erf)


# -----------------------------------------------------------------------------
# Kernel 1: one conv stage = 3x3/s2/p1 conv (+BN+GELU) + N fused 1x1 convs
# Input is the space-to-depth'd, padded activation S: (B, Ho+1, Wo+1, 4*Cin).
# Grid = (B,); one grid step processes a whole image, looping over output rows.
# -----------------------------------------------------------------------------
def _conv_stage_kernel(*refs):
    s_ref, wt_ref, b2_ref = refs[:3]          # S block, 4 tap weights, conv bias
    o_ref = refs[-1]
    post = refs[3:-1]                         # (w, b) pairs of fused 1x1 convs
    n_post = len(post) // 2
    ho, wo, _ = o_ref.shape
    wq = s_ref.shape[1]                       # = wo + 1

    def row_body(r, carry):
        r0 = s_ref[r]                         # (Wq, 4*Cin) bf16, S row i
        r1 = s_ref[r + 1]                     # (Wq, 4*Cin) bf16, S row i+1
        # Tap groups reading S[i, j] / S[i+1, j]  (aligned in j)
        c0 = jnp.dot(r0, wt_ref[0], preferred_element_type=jnp.float32)
        c0 = c0 + jnp.dot(r1, wt_ref[2], preferred_element_type=jnp.float32)
        # Tap groups reading S[i, j+1] / S[i+1, j+1]  (shifted by one cell)
        c1 = jnp.dot(r0, wt_ref[1], preferred_element_type=jnp.float32)
        c1 = c1 + jnp.dot(r1, wt_ref[3], preferred_element_type=jnp.float32)
        c1 = pltpu.roll(c1, shift=wq - 1, axis=0)   # c1[j] <- c1[j+1]
        y = _gelu(c0[:wo, :] + c1[:wo, :] + b2_ref[...])   # (Wo, Cout) f32
        # Chained 1x1 conv(s) (+BN+GELU) on the same row tile, kept in VMEM.
        for t in range(n_post):
            w = post[2 * t][...]
            b = post[2 * t + 1][...]
            y = _gelu(jnp.dot(y.astype(jnp.bfloat16), w,
                              preferred_element_type=jnp.float32) + b)
        o_ref[r] = y.astype(o_ref.dtype)
        return carry

    lax.fori_loop(0, ho, row_body, 0)


# -----------------------------------------------------------------------------
# Kernel 2: fused MLP (3 x Linear+GELU) + head (Linear), single pallas_call
# -----------------------------------------------------------------------------
def _mlp_head_kernel(*refs):
    x_ref, o_ref = refs[0], refs[-1]
    n_layers = (len(refs) - 2) // 2
    h = x_ref[...]                            # (B, D) bf16
    for t in range(n_layers):
        w = refs[1 + 2 * t][...]
        b = refs[2 + 2 * t][...]
        acc = jnp.dot(h, w, preferred_element_type=jnp.float32) + b
        if t < n_layers - 1:
            h = _gelu(acc).astype(jnp.bfloat16)
        else:
            o_ref[...] = acc.astype(o_ref.dtype)


# -----------------------------------------------------------------------------
# Glue: space-to-depth of the zero-padded activation, BN folding into weights
# -----------------------------------------------------------------------------
def _space_to_depth_padded(x):
    """x: (B,H,W,C) -> (B, H/2+1, W/2+1, 4C); channel order (dr, dc, c)."""
    B, H, W, C = x.shape
    Hq, Wq = H // 2 + 1, W // 2 + 1
    xp = jnp.pad(x, ((0, 0), (1, 1), (1, 1), (0, 0)))
    s = xp.reshape(B, Hq, 2, Wq, 2, C)
    s = jnp.transpose(s, (0, 1, 3, 2, 4, 5))
    return s.reshape(B, Hq, Wq, 4 * C)


def _bn_scale_shift(p):
    s = p["gamma"] * lax.rsqrt(p["var"] + _BN_EPS)
    return s, p["beta"] - p["mean"] * s


def _fuse_conv1x1_bn(p):
    s, t = _bn_scale_shift(p)
    w = p["w"][:, :, 0, 0]                                  # (Cout, Cin)
    wf = (jnp.transpose(w) * s[None, :]).astype(jnp.bfloat16)  # (Cin, Cout)
    bf = (p["b"] * s + t).astype(jnp.float32).reshape(1, -1)
    return wf, bf


def _fuse_conv3x3_bn(p):
    """Build the 4 space-to-depth tap matrices W00,W01,W10,W11 (4Cin, Cout)."""
    s, t = _bn_scale_shift(p)
    w = p["w"]                                              # (Cout, Cin, 3, 3)
    cout, cin = w.shape[0], w.shape[1]

    def tap(kh, kw):
        return jnp.transpose(w[:, :, kh, kw]) * s[None, :]  # (Cin, Cout)

    z = jnp.zeros((cin, cout), jnp.float32)
    w00 = jnp.concatenate([tap(0, 0), tap(0, 1), tap(1, 0), tap(1, 1)], 0)
    w01 = jnp.concatenate([tap(0, 2), z,         tap(1, 2), z        ], 0)
    w10 = jnp.concatenate([tap(2, 0), tap(2, 1), z,         z        ], 0)
    w11 = jnp.concatenate([tap(2, 2), z,         z,         z        ], 0)
    wt = jnp.stack([w00, w01, w10, w11], 0).astype(jnp.bfloat16)  # (4,4Cin,Cout)
    bf = (p["b"] * s + t).astype(jnp.float32).reshape(1, -1)
    return wt, bf


# -----------------------------------------------------------------------------
# pallas_call wrappers
# -----------------------------------------------------------------------------
def conv_stage(x_nhwc, conv3x3_p, post_1x1_ps):
    """[Conv3x3/s2/p1 + BN + GELU] followed by fused [Conv1x1 + BN + GELU]*N."""
    B, H, W, Cin = x_nhwc.shape
    Ho, Wo = H // 2, W // 2
    Hq, Wq = Ho + 1, Wo + 1

    s = _space_to_depth_padded(x_nhwc.astype(jnp.bfloat16))
    wt, b2 = _fuse_conv3x3_bn(conv3x3_p)
    post = [_fuse_conv1x1_bn(p) for p in post_1x1_ps]
    c_end = post[-1][0].shape[1] if post else wt.shape[2]

    args = [s, wt, b2]
    in_specs = [
        pl.BlockSpec((None, Hq, Wq, 4 * Cin), lambda b: (b, 0, 0, 0)),
        pl.BlockSpec(wt.shape, lambda b: (0, 0, 0)),
        pl.BlockSpec(b2.shape, lambda b: (0, 0)),
    ]
    for wf, bf in post:
        args += [wf, bf]
        in_specs.append(pl.BlockSpec(wf.shape, lambda b: (0, 0)))
        in_specs.append(pl.BlockSpec(bf.shape, lambda b: (0, 0)))

    return pl.pallas_call(
        _conv_stage_kernel,
        out_shape=jax.ShapeDtypeStruct((B, Ho, Wo, c_end), jnp.bfloat16),
        grid_spec=pltpu.PrefetchScalarGridSpec(
            num_scalar_prefetch=0,
            grid=(B,),
            in_specs=in_specs,
            out_specs=pl.BlockSpec((None, Ho, Wo, c_end),
                                   lambda b: (b, 0, 0, 0)),
        ),
        compiler_params=pltpu.CompilerParams(
            dimension_semantics=("parallel",)),
    )(*args)


def mlp_head(x, mlp_ps, head_p):
    B, D = x.shape
    layers = [(jnp.transpose(lp["w"]).astype(jnp.bfloat16),
               lp["b"].reshape(1, -1).astype(jnp.float32)) for lp in mlp_ps]
    layers.append((jnp.transpose(head_p["w"]).astype(jnp.bfloat16),
                   head_p["b"].reshape(1, -1).astype(jnp.float32)))
    n_out = layers[-1][0].shape[1]

    args = [x.astype(jnp.bfloat16)]
    in_specs = [pl.BlockSpec((B, D), lambda i: (0, 0))]
    for w, b in layers:
        args += [w, b]
        in_specs.append(pl.BlockSpec(w.shape, lambda i: (0, 0)))
        in_specs.append(pl.BlockSpec(b.shape, lambda i: (0, 0)))

    return pl.pallas_call(
        _mlp_head_kernel,
        out_shape=jax.ShapeDtypeStruct((B, n_out), jnp.float32),
        grid_spec=pltpu.PrefetchScalarGridSpec(
            num_scalar_prefetch=0,
            grid=(1,),
            in_specs=in_specs,
            out_specs=pl.BlockSpec((B, n_out), lambda i: (0, 0)),
        ),
        compiler_params=pltpu.CompilerParams(
            dimension_semantics=("arbitrary",)),
    )(*args)


# -----------------------------------------------------------------------------
# Parameter init (deterministic, synthetic) and forward pass
# -----------------------------------------------------------------------------
def _conv_bn_params(key, cin, cout, k):
    kw, kb, kg, kbt, km, kv = jax.random.split(key, 6)
    fan_in = cin * k * k
    return dict(
        w=jax.random.normal(kw, (cout, cin, k, k), jnp.float32) / math.sqrt(fan_in),
        b=0.1 * jax.random.normal(kb, (cout,), jnp.float32),
        gamma=1.0 + 0.1 * jax.random.normal(kg, (cout,), jnp.float32),
        beta=0.1 * jax.random.normal(kbt, (cout,), jnp.float32),
        mean=0.1 * jax.random.normal(km, (cout,), jnp.float32),
        var=1.0 + 0.1 * jax.random.uniform(kv, (cout,), jnp.float32),
    )


def _linear_params(key, cin, cout):
    kw, kb = jax.random.split(key)
    return dict(
        w=jax.random.normal(kw, (cout, cin), jnp.float32) / math.sqrt(cin),
        b=0.1 * jax.random.normal(kb, (cout,), jnp.float32),
    )


def init_params(key, input_channel, output_channel, modifier):
    icc = int(256 * modifier)    # initial_conv_channel
    imc = int(2048 * modifier)   # initial_mlp_channel
    head_c = int(256 * modifier)
    keys = jax.random.split(key, 14)
    params = {"conv_in": _conv_bn_params(keys[0], input_channel, icc, 3)}
    blocks, ki = [], 1
    for i in range(3):
        cin, cout = icc // 2 ** i, icc // 2 ** (i + 1)
        blocks.append(dict(
            c1=_conv_bn_params(keys[ki + 0], cin, cin, 1),
            c2=_conv_bn_params(keys[ki + 1], cin, cout, 3),
            c3=_conv_bn_params(keys[ki + 2], cout, cout, 1),
        ))
        ki += 3
    params["blocks"] = blocks
    mlp = []
    for i in range(3):
        mlp.append(_linear_params(keys[ki], imc // 2 ** i, imc // 2 ** (i + 1)))
        ki += 1
    params["mlp"] = mlp
    params["head"] = _linear_params(keys[ki], head_c, output_channel)
    return params


def simple_cnn_forward(params, x_nchw):
    x = jnp.transpose(x_nchw, (0, 2, 3, 1))                 # NCHW -> NHWC
    blk = params["blocks"]
    # Stage 0: conv_in (3x3/s2) + block0.c1 (1x1)
    x = conv_stage(x, params["conv_in"], [blk[0]["c1"]])
    # Stage 1: block0.c2 (3x3/s2) + block0.c3 + block1.c1
    x = conv_stage(x, blk[0]["c2"], [blk[0]["c3"], blk[1]["c1"]])
    # Stage 2: block1.c2 (3x3/s2) + block1.c3 + block2.c1
    x = conv_stage(x, blk[1]["c2"], [blk[1]["c3"], blk[2]["c1"]])
    # Stage 3: block2.c2 (3x3/s2) + block2.c3
    x = conv_stage(x, blk[2]["c2"], [blk[2]["c3"]])
    # torch Flatten on NCHW ordering, then fused MLP(3 layers) + head
    B = x.shape[0]
    x = jnp.transpose(x, (0, 3, 1, 2)).reshape(B, -1)
    return mlp_head(x, params["mlp"], params["head"])


if __name__ == "__main__":
    # Small instantiation consistent with the architecture:
    # input_channel=16, output_channel=147, modifier=0.25, spatial 128x128
    # (4 stride-2 convs -> 8x8; flatten dim 8*8*(256*m/8) = 2048*m = imc).
    IN_CH, OUT_CH, MOD = 16, 147, 0.25
    key = jax.random.PRNGKey(0)
    pkey, xkey = jax.random.split(key)
    params = init_params(pkey, IN_CH, OUT_CH, MOD)
    x = jax.random.normal(xkey, (2, IN_CH, 128, 128), dtype=jnp.float32)

    fwd = jax.jit(simple_cnn_forward)
    out = jax.block_until_ready(fwd(params, x))
    assert out.shape == (2, OUT_CH), out.shape
    assert jnp.all(jnp.isfinite(out))
    print("KERNEL_OK")
</pallas_src>

<mosaic_0001>
module attributes {stable_mosaic.version = 11 : i64} {
  func.func @_conv_stage_kernel(%arg0: i32, %arg1: memref<1x65x65x64xbf16, #tpu.memory_space<vmem>>, %arg2: memref<4x64x64xbf16, #tpu.memory_space<vmem>>, %arg3: memref<1x64xf32, #tpu.memory_space<vmem>>, %arg4: memref<64x64xbf16, #tpu.memory_space<vmem>>, %arg5: memref<1x64xf32, #tpu.memory_space<vmem>>, %arg6: memref<1x64x64x64xbf16, #tpu.memory_space<vmem>>) attributes {dimension_semantics = [#tpu.dimension_semantics<parallel>], iteration_bounds = array<i64: 2>, scalar_prefetch = 0 : i64, scratch_operands = 0 : i64, tpu.core_type = #tpu.core_type<tc>, window_params = [{transform_indices = @transform_0, window_bounds = array<i64: 1, 65, 65, 64>}, {pipeline_mode = #tpu.pipeline_mode<synchronous>, transform_indices = @transform_1, window_bounds = array<i64: 4, 64, 64>}, {pipeline_mode = #tpu.pipeline_mode<synchronous>, transform_indices = @transform_2, window_bounds = array<i64: 1, 64>}, {pipeline_mode = #tpu.pipeline_mode<synchronous>, transform_indices = @transform_3, window_bounds = array<i64: 64, 64>}, {pipeline_mode = #tpu.pipeline_mode<synchronous>, transform_indices = @transform_4, window_bounds = array<i64: 1, 64>}, {transform_indices = @transform_5, window_bounds = array<i64: 1, 64, 64, 64>}]} {
    %c0_i32 = arith.constant 0 : i32
    %c64_i32 = arith.constant 64 : i32
    %0 = arith.addi %c0_i32, %c64_i32 : i32
    %c1_i32 = arith.constant 1 : i32
    scf.for %arg7 = %c0_i32 to %0 step %c1_i32  : i32 {
      %c0 = arith.constant 0 : index
      %1 = arith.index_cast %arg7 : i32 to index
      %c0_1 = arith.constant 0 : index
      %c0_2 = arith.constant 0 : index
      %2 = vector.load %arg1[%c0, %1, %c0_1, %c0_2] : memref<1x65x65x64xbf16, #tpu.memory_space<vmem>>, vector<1x1x65x64xbf16>
      %3 = vector.shape_cast %2 : vector<1x1x65x64xbf16> to vector<65x64xbf16>
      %c1_i32_3 = arith.constant 1 : i32
      %4 = arith.addi %arg7, %c1_i32_3 : i32
      %c0_4 = arith.constant 0 : index
      %5 = arith.index_cast %4 : i32 to index
      %c0_5 = arith.constant 0 : index
      %c0_6 = arith.constant 0 : index
      %6 = vector.load %arg1[%c0_4, %5, %c0_5, %c0_6] : memref<1x65x65x64xbf16, #tpu.memory_space<vmem>>, vector<1x1x65x64xbf16>
      %7 = vector.shape_cast %6 : vector<1x1x65x64xbf16> to vector<65x64xbf16>
      %c0_7 = arith.constant 0 : index
      %c0_8 = arith.constant 0 : index
      %c0_9 = arith.constant 0 : index
      %8 = vector.load %arg2[%c0_7, %c0_8, %c0_9] : memref<4x64x64xbf16, #tpu.memory_space<vmem>>, vector<1x64x64xbf16>
      %9 = vector.shape_cast %8 : vector<1x64x64xbf16> to vector<64x64xbf16>
      %cst = arith.constant dense<0.000000e+00> : vector<65x64xf32>
      %10 = tpu.matmul %3, %9, %cst {dimension_numbers = #tpu.dot_dimension_numbers<[1], [0], [0], [1], [0, 0, 1, 1], [], []>} : vector<65x64xbf16>, vector<64x64xbf16>, vector<65x64xf32> -> vector<65x64xf32>
      %c2 = arith.constant 2 : index
      %c0_10 = arith.constant 0 : index
      %c0_11 = arith.constant 0 : index
      %11 = vector.load %arg2[%c2, %c0_10, %c0_11] : memref<4x64x64xbf16, #tpu.memory_space<vmem>>, vector<1x64x64xbf16>
      %12 = vector.shape_cast %11 : vector<1x64x64xbf16> to vector<64x64xbf16>
      %cst_12 = arith.constant dense<0.000000e+00> : vector<65x64xf32>
      %13 = tpu.matmul %7, %12, %cst_12 {dimension_numbers = #tpu.dot_dimension_numbers<[1], [0], [0], [1], [0, 0, 1, 1], [], []>} : vector<65x64xbf16>, vector<64x64xbf16>, vector<65x64xf32> -> vector<65x64xf32>
      %14 = arith.addf %10, %13 : vector<65x64xf32>
      %c1 = arith.constant 1 : index
      %c0_13 = arith.constant 0 : index
      %c0_14 = arith.constant 0 : index
      %15 = vector.load %arg2[%c1, %c0_13, %c0_14] : memref<4x64x64xbf16, #tpu.memory_space<vmem>>, vector<1x64x64xbf16>
      %16 = vector.shape_cast %15 : vector<1x64x64xbf16> to vector<64x64xbf16>
      %cst_15 = arith.constant dense<0.000000e+00> : vector<65x64xf32>
      %17 = tpu.matmul %3, %16, %cst_15 {dimension_numbers = #tpu.dot_dimension_numbers<[1], [0], [0], [1], [0, 0, 1, 1], [], []>} : vector<65x64xbf16>, vector<64x64xbf16>, vector<65x64xf32> -> vector<65x64xf32>
      %c3 = arith.constant 3 : index
      %c0_16 = arith.constant 0 : index
      %c0_17 = arith.constant 0 : index
      %18 = vector.load %arg2[%c3, %c0_16, %c0_17] : memref<4x64x64xbf16, #tpu.memory_space<vmem>>, vector<1x64x64xbf16>
      %19 = vector.shape_cast %18 : vector<1x64x64xbf16> to vector<64x64xbf16>
      %cst_18 = arith.constant dense<0.000000e+00> : vector<65x64xf32>
      %20 = tpu.matmul %7, %19, %cst_18 {dimension_numbers = #tpu.dot_dimension_numbers<[1], [0], [0], [1], [0, 0, 1, 1], [], []>} : vector<65x64xbf16>, vector<64x64xbf16>, vector<65x64xf32> -> vector<65x64xf32>
      %21 = arith.addf %17, %20 : vector<65x64xf32>
      %c64_i32_19 = arith.constant 64 : i32
      %22 = tpu.dynamic_rotate %21 by %c64_i32_19 dim 0 : vector<65x64xf32>, i32 -> vector<65x64xf32>
      %23 = vector.extract_strided_slice %14 {offsets = [0, 0], sizes = [64, 64], strides = [1, 1]} : vector<65x64xf32> to vector<64x64xf32>
      %24 = vector.extract_strided_slice %22 {offsets = [0, 0], sizes = [64, 64], strides = [1, 1]} : vector<65x64xf32> to vector<64x64xf32>
      %25 = arith.addf %23, %24 : vector<64x64xf32>
      %c0_20 = arith.constant 0 : index
      %c0_21 = arith.constant 0 : index
      %26 = vector.load %arg3[%c0_20, %c0_21] : memref<1x64xf32, #tpu.memory_space<vmem>>, vector<1x64xf32>
      %27 = vector.broadcast %26 : vector<1x64xf32> to vector<64x64xf32>
      %28 = arith.addf %25, %27 : vector<64x64xf32>
      %cst_22 = arith.constant 0.707106769 : f32
      %29 = vector.broadcast %cst_22 : f32 to vector<64x64xf32>
      %30 = arith.mulf %28, %29 : vector<64x64xf32>
      %cst_23 = arith.constant 0.000000e+00 : f32
      %31 = vector.broadcast %cst_23 : f32 to vector<64x64xf32>
      %32 = arith.cmpf oge, %30, %31 : vector<64x64xf32>
      %cst_24 = arith.constant 1.000000e+00 : f32
      %cst_25 = arith.constant -1.000000e+00 : f32
      %33 = vector.broadcast %cst_24 : f32 to vector<64x64xf32>
      %34 = vector.broadcast %cst_25 : f32 to vector<64x64xf32>
      %35 = arith.select %32, %33, %34 : vector<64x64xi1>, vector<64x64xf32>
      %36 = math.absf %30 : vector<64x64xf32>
      %cst_26 = arith.constant 0.327591091 : f32
      %37 = vector.broadcast %cst_26 : f32 to vector<64x64xf32>
      %38 = arith.mulf %37, %36 : vector<64x64xf32>
      %cst_27 = arith.constant 1.000000e+00 : f32
      %39 = vector.broadcast %cst_27 : f32 to vector<64x64xf32>
      %40 = arith.addf %39, %38 : vector<64x64xf32>
      %41 = tpu.reciprocal %40 {approx = true} : vector<64x64xf32> -> vector<64x64xf32>
      %cst_28 = arith.constant 1.06140542 : f32
      %42 = vector.broadcast %cst_28 : f32 to vector<64x64xf32>
      %43 = arith.mulf %42, %41 : vector<64x64xf32>
      %cst_29 = arith.constant 1.45315206 : f32
      %44 = vector.broadcast %cst_29 : f32 to vector<64x64xf32>
      %45 = arith.subf %43, %44 : vector<64x64xf32>
      %46 = arith.mulf %45, %41 : vector<64x64xf32>
      %cst_30 = arith.constant 1.42141378 : f32
      %47 = vector.broadcast %cst_30 : f32 to vector<64x64xf32>
      %48 = arith.addf %46, %47 : vector<64x64xf32>
      %49 = arith.mulf %48, %41 : vector<64x64xf32>
      %cst_31 = arith.constant 0.284496725 : f32
      %50 = vector.broadcast %cst_31 : f32 to vector<64x64xf32>
      %51 = arith.subf %49, %50 : vector<64x64xf32>
      %52 = arith.mulf %51, %41 : vector<64x64xf32>
      %cst_32 = arith.constant 0.254829586 : f32
      %53 = vector.broadcast %cst_32 : f32 to vector<64x64xf32>
      %54 = arith.addf %52, %53 : vector<64x64xf32>
      %55 = arith.mulf %54, %41 : vector<64x64xf32>
      %cst_33 = arith.constant 0.000000e+00 : f32
      %56 = vector.broadcast %cst_33 : f32 to vector<64x64xf32>
      %57 = arith.subf %56, %36 : vector<64x64xf32>
      %58 = arith.mulf %57, %36 : vector<64x64xf32>
      %59 = math.exp %58 : vector<64x64xf32>
      %60 = arith.mulf %55, %59 : vector<64x64xf32>
      %cst_34 = arith.constant 1.000000e+00 : f32
      %61 = vector.broadcast %cst_34 : f32 to vector<64x64xf32>
      %62 = arith.subf %61, %60 : vector<64x64xf32>
      %63 = arith.mulf %35, %62 : vector<64x64xf32>
      %cst_35 = arith.constant 5.000000e-01 : f32
      %64 = vector.broadcast %cst_35 : f32 to vector<64x64xf32>
      %65 = arith.mulf %64, %28 : vector<64x64xf32>
      %cst_36 = arith.constant 1.000000e+00 : f32
      %66 = vector.broadcast %cst_36 : f32 to vector<64x64xf32>
      %67 = arith.addf %66, %63 : vector<64x64xf32>
      %68 = arith.mulf %65, %67 : vector<64x64xf32>
      %c0_37 = arith.constant 0 : index
      %c0_38 = arith.constant 0 : index
      %69 = vector.load %arg4[%c0_37, %c0_38] : memref<64x64xbf16, #tpu.memory_space<vmem>>, vector<64x64xbf16>
      %c0_39 = arith.constant 0 : index
      %c0_40 = arith.constant 0 : index
      %70 = vector.load %arg5[%c0_39, %c0_40] : memref<1x64xf32, #tpu.memory_space<vmem>>, vector<1x64xf32>
      %71 = arith.truncf %68 : vector<64x64xf32> to vector<64x64xbf16>
      %cst_41 = arith.constant dense<0.000000e+00> : vector<64x64xf32>
      %72 = tpu.matmul %71, %69, %cst_41 {dimension_numbers = #tpu.dot_dimension_numbers<[1], [0], [0], [1], [0, 0, 1, 1], [], []>} : vector<64x64xbf16>, vector<64x64xbf16>, vector<64x64xf32> -> vector<64x64xf32>
      %73 = vector.broadcast %70 : vector<1x64xf32> to vector<64x64xf32>
      %74 = arith.addf %72, %73 : vector<64x64xf32>
      %cst_42 = arith.constant 0.707106769 : f32
      %75 = vector.broadcast %cst_42 : f32 to vector<64x64xf32>
      %76 = arith.mulf %74, %75 : vector<64x64xf32>
      %cst_43 = arith.constant 0.000000e+00 : f32
      %77 = vector.broadcast %cst_43 : f32 to vector<64x64xf32>
      %78 = arith.cmpf oge, %76, %77 : vector<64x64xf32>
      %cst_44 = arith.constant 1.000000e+00 : f32
      %cst_45 = arith.constant -1.000000e+00 : f32
      %79 = vector.broadcast %cst_44 : f32 to vector<64x64xf32>
      %80 = vector.broadcast %cst_45 : f32 to vector<64x64xf32>
      %81 = arith.select %78, %79, %80 : vector<64x64xi1>, vector<64x64xf32>
      %82 = math.absf %76 : vector<64x64xf32>
      %cst_46 = arith.constant 0.327591091 : f32
      %83 = vector.broadcast %cst_46 : f32 to vector<64x64xf32>
      %84 = arith.mulf %83, %82 : vector<64x64xf32>
      %cst_47 = arith.constant 1.000000e+00 : f32
      %85 = vector.broadcast %cst_47 : f32 to vector<64x64xf32>
      %86 = arith.addf %85, %84 : vector<64x64xf32>
      %87 = tpu.reciprocal %86 {approx = true} : vector<64x64xf32> -> vector<64x64xf32>
      %cst_48 = arith.constant 1.06140542 : f32
      %88 = vector.broadcast %cst_48 : f32 to vector<64x64xf32>
      %89 = arith.mulf %88, %87 : vector<64x64xf32>
      %cst_49 = arith.constant 1.45315206 : f32
      %90 = vector.broadcast %cst_49 : f32 to vector<64x64xf32>
      %91 = arith.subf %89, %90 : vector<64x64xf32>
      %92 = arith.mulf %91, %87 : vector<64x64xf32>
      %cst_50 = arith.constant 1.42141378 : f32
      %93 = vector.broadcast %cst_50 : f32 to vector<64x64xf32>
      %94 = arith.addf %92, %93 : vector<64x64xf32>
      %95 = arith.mulf %94, %87 : vector<64x64xf32>
      %cst_51 = arith.constant 0.284496725 : f32
      %96 = vector.broadcast %cst_51 : f32 to vector<64x64xf32>
      %97 = arith.subf %95, %96 : vector<64x64xf32>
      %98 = arith.mulf %97, %87 : vector<64x64xf32>
      %cst_52 = arith.constant 0.254829586 : f32
      %99 = vector.broadcast %cst_52 : f32 to vector<64x64xf32>
      %100 = arith.addf %98, %99 : vector<64x64xf32>
      %101 = arith.mulf %100, %87 : vector<64x64xf32>
      %cst_53 = arith.constant 0.000000e+00 : f32
      %102 = vector.broadcast %cst_53 : f32 to vector<64x64xf32>
      %103 = arith.subf %102, %82 : vector<64x64xf32>
      %104 = arith.mulf %103, %82 : vector<64x64xf32>
      %105 = math.exp %104 : vector<64x64xf32>
      %106 = arith.mulf %101, %105 : vector<64x64xf32>
      %cst_54 = arith.constant 1.000000e+00 : f32
      %107 = vector.broadcast %cst_54 : f32 to vector<64x64xf32>
      %108 = arith.subf %107, %106 : vector<64x64xf32>
      %109 = arith.mulf %81, %108 : vector<64x64xf32>
      %cst_55 = arith.constant 5.000000e-01 : f32
      %110 = vector.broadcast %cst_55 : f32 to vector<64x64xf32>
      %111 = arith.mulf %110, %74 : vector<64x64xf32>
      %cst_56 = arith.constant 1.000000e+00 : f32
      %112 = vector.broadcast %cst_56 : f32 to vector<64x64xf32>
      %113 = arith.addf %112, %109 : vector<64x64xf32>
      %114 = arith.mulf %111, %113 : vector<64x64xf32>
      %115 = arith.truncf %114 : vector<64x64xf32> to vector<64x64xbf16>
      %c0_57 = arith.constant 0 : index
      %116 = arith.index_cast %arg7 : i32 to index
      %c0_58 = arith.constant 0 : index
      %c0_59 = arith.constant 0 : index
      %117 = vector.load %arg6[%c0_57, %116, %c0_58, %c0_59] : memref<1x64x64x64xbf16, #tpu.memory_space<vmem>>, vector<1x1x64x64xbf16>
      %118 = vector.shape_cast %117 : vector<1x1x64x64xbf16> to vector<64x64xbf16>
      %119 = vector.shape_cast %115 : vector<64x64xbf16> to vector<1x1x64x64xbf16>
      tpu.vector_store %arg6[%c0_57, %116, %c0_58, %c0_59], %119 {strides = array<i32>} : memref<1x64x64x64xbf16, #tpu.memory_space<vmem>>, vector<1x1x64x64xbf16>,
    }
    %c64_i32_0 = arith.constant 64 : i32
    return
  }
  func.func @transform_0(%arg0: i32) -> (i32, i32, i32, i32) {
    %c0_i32 = arith.constant 0 : i32
    %c0_i32_0 = arith.constant 0 : i32
    %c0_i32_1 = arith.constant 0 : i32
    %c0_i32_2 = arith.constant 0 : i32
    return %arg0, %c0_i32, %c0_i32_0, %c0_i32_1 : i32, i32, i32, i32
  }
  func.func @transform_1(%arg0: i32) -> (i32, i32, i32) {
    %c0_i32 = arith.constant 0 : i32
    %c0_i32_0 = arith.constant 0 : i32
    %c0_i32_1 = arith.constant 0 : i32
    %c0_i32_2 = arith.constant 0 : i32
    return %c0_i32, %c0_i32_0, %c0_i32_1 : i32, i32, i32
  }
  func.func @transform_2(%arg0: i32) -> (i32, i32) {
    %c0_i32 = arith.constant 0 : i32
    %c0_i32_0 = arith.constant 0 : i32
    %c0_i32_1 = arith.constant 0 : i32
    return %c0_i32, %c0_i32_0 : i32, i32
  }
  func.func @transform_3(%arg0: i32) -> (i32, i32) {
    %c0_i32 = arith.constant 0 : i32
    %c0_i32_0 = arith.constant 0 : i32
    %c0_i32_1 = arith.constant 0 : i32
    return %c0_i32, %c0_i32_0 : i32, i32
  }
  func.func @transform_4(%arg0: i32) -> (i32, i32) {
    %c0_i32 = arith.constant 0 : i32
    %c0_i32_0 = arith.constant 0 : i32
    %c0_i32_1 = arith.constant 0 : i32
    return %c0_i32, %c0_i32_0 : i32, i32
  }
  func.func @transform_5(%arg0: i32) -> (i32, i32, i32, i32) {
    %c0_i32 = arith.constant 0 : i32
    %c0_i32_0 = arith.constant 0 : i32
    %c0_i32_1 = arith.constant 0 : i32
    %c0_i32_2 = arith.constant 0 : i32
    return %arg0, %c0_i32, %c0_i32_0, %c0_i32_1 : i32, i32, i32, i32
  }
}

module attributes {stable_mosaic.version = 11 : i64} {
  func.func @_conv_stage_kernel(%arg0: i32, %arg1: memref<1x33x33x256xbf16, #tpu.memory_space<vmem>>, %arg2: memref<4x256x32xbf16, #tpu.memory_space<vmem>>, %arg3: memref<1x32xf32, #tpu.memory_space<vmem>>, %arg4: memref<32x32xbf16, #tpu.memory_space<vmem>>, %arg5: memref<1x32xf32, #tpu.memory_space<vmem>>, %arg6: memref<32x32xbf16, #tpu.memory_space<vmem>>, %arg7: memref<1x32xf32, #tpu.memory_space<vmem>>, %arg8: memref<1x32x32x32xbf16, #tpu.memory_space<vmem>>) attributes {dimension_semantics = [#tpu.dimension_semantics<parallel>], iteration_bounds = array<i64: 2>, scalar_prefetch = 0 : i64, scratch_operands = 0 : i64, tpu.core_type = #tpu.core_type<tc>, window_params = [{transform_indices = @transform_0, window_bounds = array<i64: 1, 33, 33, 256>}, {pipeline_mode = #tpu.pipeline_mode<synchronous>, transform_indices = @transform_1, window_bounds = array<i64: 4, 256, 32>}, {pipeline_mode = #tpu.pipeline_mode<synchronous>, transform_indices = @transform_2, window_bounds = array<i64: 1, 32>}, {pipeline_mode = #tpu.pipeline_mode<synchronous>, transform_indices = @transform_3, window_bounds = array<i64: 32, 32>}, {pipeline_mode = #tpu.pipeline_mode<synchronous>, transform_indices = @transform_4, window_bounds = array<i64: 1, 32>}, {pipeline_mode = #tpu.pipeline_mode<synchronous>, transform_indices = @transform_5, window_bounds = array<i64: 32, 32>}, {pipeline_mode = #tpu.pipeline_mode<synchronous>, transform_indices = @transform_6, window_bounds = array<i64: 1, 32>}, {transform_indices = @transform_7, window_bounds = array<i64: 1, 32, 32, 32>}]} {
    %c0_i32 = arith.constant 0 : i32
    %c32_i32 = arith.constant 32 : i32
    %0 = arith.addi %c0_i32, %c32_i32 : i32
    %c1_i32 = arith.constant 1 : i32
    scf.for %arg9 = %c0_i32 to %0 step %c1_i32  : i32 {
      %c0 = arith.constant 0 : index
      %1 = arith.index_cast %arg9 : i32 to index
      %c0_1 = arith.constant 0 : index
      %c0_2 = arith.constant 0 : index
      %2 = vector.load %arg1[%c0, %1, %c0_1, %c0_2] : memref<1x33x33x256xbf16, #tpu.memory_space<vmem>>, vector<1x1x33x256xbf16>
      %3 = vector.shape_cast %2 : vector<1x1x33x256xbf16> to vector<33x256xbf16>
      %c1_i32_3 = arith.constant 1 : i32
      %4 = arith.addi %arg9, %c1_i32_3 : i32
      %c0_4 = arith.constant 0 : index
      %5 = arith.index_cast %4 : i32 to index
      %c0_5 = arith.constant 0 : index
      %c0_6 = arith.constant 0 : index
      %6 = vector.load %arg1[%c0_4, %5, %c0_5, %c0_6] : memref<1x33x33x256xbf16, #tpu.memory_space<vmem>>, vector<1x1x33x256xbf16>
      %7 = vector.shape_cast %6 : vector<1x1x33x256xbf16> to vector<33x256xbf16>
      %c0_7 = arith.constant 0 : index
      %c0_8 = arith.constant 0 : index
      %c0_9 = arith.constant 0 : index
      %8 = vector.load %arg2[%c0_7, %c0_8, %c0_9] : memref<4x256x32xbf16, #tpu.memory_space<vmem>>, vector<1x256x32xbf16>
      %9 = vector.shape_cast %8 : vector<1x256x32xbf16> to vector<256x32xbf16>
      %cst = arith.constant dense<0.000000e+00> : vector<33x32xf32>
      %10 = tpu.matmul %3, %9, %cst {dimension_numbers = #tpu.dot_dimension_numbers<[1], [0], [0], [1], [0, 0, 1, 1], [], []>} : vector<33x256xbf16>, vector<256x32xbf16>, vector<33x32xf32> -> vector<33x32xf32>
      %c2 = arith.constant 2 : index
      %c0_10 = arith.constant 0 : index
      %c0_11 = arith.constant 0 : index
      %11 = vector.load %arg2[%c2, %c0_10, %c0_11] : memref<4x256x32xbf16, #tpu.memory_space<vmem>>, vector<1x256x32xbf16>
      %12 = vector.shape_cast %11 : vector<1x256x32xbf16> to vector<256x32xbf16>
      %cst_12 = arith.constant dense<0.000000e+00> : vector<33x32xf32>
      %13 = tpu.matmul %7, %12, %cst_12 {dimension_numbers = #tpu.dot_dimension_numbers<[1], [0], [0], [1], [0, 0, 1, 1], [], []>} : vector<33x256xbf16>, vector<256x32xbf16>, vector<33x32xf32> -> vector<33x32xf32>
      %14 = arith.addf %10, %13 : vector<33x32xf32>
      %c1 = arith.constant 1 : index
      %c0_13 = arith.constant 0 : index
      %c0_14 = arith.constant 0 : index
      %15 = vector.load %arg2[%c1, %c0_13, %c0_14] : memref<4x256x32xbf16, #tpu.memory_space<vmem>>, vector<1x256x32xbf16>
      %16 = vector.shape_cast %15 : vector<1x256x32xbf16> to vector<256x32xbf16>
      %cst_15 = arith.constant dense<0.000000e+00> : vector<33x32xf32>
      %17 = tpu.matmul %3, %16, %cst_15 {dimension_numbers = #tpu.dot_dimension_numbers<[1], [0], [0], [1], [0, 0, 1, 1], [], []>} : vector<33x256xbf16>, vector<256x32xbf16>, vector<33x32xf32> -> vector<33x32xf32>
      %c3 = arith.constant 3 : index
      %c0_16 = arith.constant 0 : index
      %c0_17 = arith.constant 0 : index
      %18 = vector.load %arg2[%c3, %c0_16, %c0_17] : memref<4x256x32xbf16, #tpu.memory_space<vmem>>, vector<1x256x32xbf16>
      %19 = vector.shape_cast %18 : vector<1x256x32xbf16> to vector<256x32xbf16>
      %cst_18 = arith.constant dense<0.000000e+00> : vector<33x32xf32>
      %20 = tpu.matmul %7, %19, %cst_18 {dimension_numbers = #tpu.dot_dimension_numbers<[1], [0], [0], [1], [0, 0, 1, 1], [], []>} : vector<33x256xbf16>, vector<256x32xbf16>, vector<33x32xf32> -> vector<33x32xf32>
      %21 = arith.addf %17, %20 : vector<33x32xf32>
      %c32_i32_19 = arith.constant 32 : i32
      %22 = tpu.dynamic_rotate %21 by %c32_i32_19 dim 0 : vector<33x32xf32>, i32 -> vector<33x32xf32>
      %23 = vector.extract_strided_slice %14 {offsets = [0, 0], sizes = [32, 32], strides = [1, 1]} : vector<33x32xf32> to vector<32x32xf32>
      %24 = vector.extract_strided_slice %22 {offsets = [0, 0], sizes = [32, 32], strides = [1, 1]} : vector<33x32xf32> to vector<32x32xf32>
      %25 = arith.addf %23, %24 : vector<32x32xf32>
      %c0_20 = arith.constant 0 : index
      %c0_21 = arith.constant 0 : index
      %26 = vector.load %arg3[%c0_20, %c0_21] : memref<1x32xf32, #tpu.memory_space<vmem>>, vector<1x32xf32>
      %27 = vector.broadcast %26 : vector<1x32xf32> to vector<32x32xf32>
      %28 = arith.addf %25, %27 : vector<32x32xf32>
      %cst_22 = arith.constant 0.707106769 : f32
      %29 = vector.broadcast %cst_22 : f32 to vector<32x32xf32>
      %30 = arith.mulf %28, %29 : vector<32x32xf32>
      %cst_23 = arith.constant 0.000000e+00 : f32
      %31 = vector.broadcast %cst_23 : f32 to vector<32x32xf32>
      %32 = arith.cmpf oge, %30, %31 : vector<32x32xf32>
      %cst_24 = arith.constant 1.000000e+00 : f32
      %cst_25 = arith.constant -1.000000e+00 : f32
      %33 = vector.broadcast %cst_24 : f32 to vector<32x32xf32>
      %34 = vector.broadcast %cst_25 : f32 to vector<32x32xf32>
      %35 = arith.select %32, %33, %34 : vector<32x32xi1>, vector<32x32xf32>
      %36 = math.absf %30 : vector<32x32xf32>
      %cst_26 = arith.constant 0.327591091 : f32
      %37 = vector.broadcast %cst_26 : f32 to vector<32x32xf32>
      %38 = arith.mulf %37, %36 : vector<32x32xf32>
      %cst_27 = arith.constant 1.000000e+00 : f32
      %39 = vector.broadcast %cst_27 : f32 to vector<32x32xf32>
      %40 = arith.addf %39, %38 : vector<32x32xf32>
      %41 = tpu.reciprocal %40 {approx = true} : vector<32x32xf32> -> vector<32x32xf32>
      %cst_28 = arith.constant 1.06140542 : f32
      %42 = vector.broadcast %cst_28 : f32 to vector<32x32xf32>
      %43 = arith.mulf %42, %41 : vector<32x32xf32>
      %cst_29 = arith.constant 1.45315206 : f32
      %44 = vector.broadcast %cst_29 : f32 to vector<32x32xf32>
      %45 = arith.subf %43, %44 : vector<32x32xf32>
      %46 = arith.mulf %45, %41 : vector<32x32xf32>
      %cst_30 = arith.constant 1.42141378 : f32
      %47 = vector.broadcast %cst_30 : f32 to vector<32x32xf32>
      %48 = arith.addf %46, %47 : vector<32x32xf32>
      %49 = arith.mulf %48, %41 : vector<32x32xf32>
      %cst_31 = arith.constant 0.284496725 : f32
      %50 = vector.broadcast %cst_31 : f32 to vector<32x32xf32>
      %51 = arith.subf %49, %50 : vector<32x32xf32>
      %52 = arith.mulf %51, %41 : vector<32x32xf32>
      %cst_32 = arith.constant 0.254829586 : f32
      %53 = vector.broadcast %cst_32 : f32 to vector<32x32xf32>
      %54 = arith.addf %52, %53 : vector<32x32xf32>
      %55 = arith.mulf %54, %41 : vector<32x32xf32>
      %cst_33 = arith.constant 0.000000e+00 : f32
      %56 = vector.broadcast %cst_33 : f32 to vector<32x32xf32>
      %57 = arith.subf %56, %36 : vector<32x32xf32>
      %58 = arith.mulf %57, %36 : vector<32x32xf32>
      %59 = math.exp %58 : vector<32x32xf32>
      %60 = arith.mulf %55, %59 : vector<32x32xf32>
      %cst_34 = arith.constant 1.000000e+00 : f32
      %61 = vector.broadcast %cst_34 : f32 to vector<32x32xf32>
      %62 = arith.subf %61, %60 : vector<32x32xf32>
      %63 = arith.mulf %35, %62 : vector<32x32xf32>
      %cst_35 = arith.constant 5.000000e-01 : f32
      %64 = vector.broadcast %cst_35 : f32 to vector<32x32xf32>
      %65 = arith.mulf %64, %28 : vector<32x32xf32>
      %cst_36 = arith.constant 1.000000e+00 : f32
      %66 = vector.broadcast %cst_36 : f32 to vector<32x32xf32>
      %67 = arith.addf %66, %63 : vector<32x32xf32>
      %68 = arith.mulf %65, %67 : vector<32x32xf32>
      %c0_37 = arith.constant 0 : index
      %c0_38 = arith.constant 0 : index
      %69 = vector.load %arg4[%c0_37, %c0_38] : memref<32x32xbf16, #tpu.memory_space<vmem>>, vector<32x32xbf16>
      %c0_39 = arith.constant 0 : index
      %c0_40 = arith.constant 0 : index
      %70 = vector.load %arg5[%c0_39, %c0_40] : memref<1x32xf32, #tpu.memory_space<vmem>>, vector<1x32xf32>
      %71 = arith.truncf %68 : vector<32x32xf32> to vector<32x32xbf16>
      %cst_41 = arith.constant dense<0.000000e+00> : vector<32x32xf32>
      %72 = tpu.matmul %71, %69, %cst_41 {dimension_numbers = #tpu.dot_dimension_numbers<[1], [0], [0], [1], [0, 0, 1, 1], [], []>} : vector<32x32xbf16>, vector<32x32xbf16>, vector<32x32xf32> -> vector<32x32xf32>
      %73 = vector.broadcast %70 : vector<1x32xf32> to vector<32x32xf32>
      %74 = arith.addf %72, %73 : vector<32x32xf32>
      %cst_42 = arith.constant 0.707106769 : f32
      %75 = vector.broadcast %cst_42 : f32 to vector<32x32xf32>
      %76 = arith.mulf %74, %75 : vector<32x32xf32>
      %cst_43 = arith.constant 0.000000e+00 : f32
      %77 = vector.broadcast %cst_43 : f32 to vector<32x32xf32>
      %78 = arith.cmpf oge, %76, %77 : vector<32x32xf32>
      %cst_44 = arith.constant 1.000000e+00 : f32
      %cst_45 = arith.constant -1.000000e+00 : f32
      %79 = vector.broadcast %cst_44 : f32 to vector<32x32xf32>
      %80 = vector.broadcast %cst_45 : f32 to vector<32x32xf32>
      %81 = arith.select %78, %79, %80 : vector<32x32xi1>, vector<32x32xf32>
      %82 = math.absf %76 : vector<32x32xf32>
      %cst_46 = arith.constant 0.327591091 : f32
      %83 = vector.broadcast %cst_46 : f32 to vector<32x32xf32>
      %84 = arith.mulf %83, %82 : vector<32x32xf32>
      %cst_47 = arith.constant 1.000000e+00 : f32
      %85 = vector.broadcast %cst_47 : f32 to vector<32x32xf32>
      %86 = arith.addf %85, %84 : vector<32x32xf32>
      %87 = tpu.reciprocal %86 {approx = true} : vector<32x32xf32> -> vector<32x32xf32>
      %cst_48 = arith.constant 1.06140542 : f32
      %88 = vector.broadcast %cst_48 : f32 to vector<32x32xf32>
      %89 = arith.mulf %88, %87 : vector<32x32xf32>
      %cst_49 = arith.constant 1.45315206 : f32
      %90 = vector.broadcast %cst_49 : f32 to vector<32x32xf32>
      %91 = arith.subf %89, %90 : vector<32x32xf32>
      %92 = arith.mulf %91, %87 : vector<32x32xf32>
      %cst_50 = arith.constant 1.42141378 : f32
      %93 = vector.broadcast %cst_50 : f32 to vector<32x32xf32>
      %94 = arith.addf %92, %93 : vector<32x32xf32>
      %95 = arith.mulf %94, %87 : vector<32x32xf32>
      %cst_51 = arith.constant 0.284496725 : f32
      %96 = vector.broadcast %cst_51 : f32 to vector<32x32xf32>
      %97 = arith.subf %95, %96 : vector<32x32xf32>
      %98 = arith.mulf %97, %87 : vector<32x32xf32>
      %cst_52 = arith.constant 0.254829586 : f32
      %99 = vector.broadcast %cst_52 : f32 to vector<32x32xf32>
      %100 = arith.addf %98, %99 : vector<32x32xf32>
      %101 = arith.mulf %100, %87 : vector<32x32xf32>
      %cst_53 = arith.constant 0.000000e+00 : f32
      %102 = vector.broadcast %cst_53 : f32 to vector<32x32xf32>
      %103 = arith.subf %102, %82 : vector<32x32xf32>
      %104 = arith.mulf %103, %82 : vector<32x32xf32>
      %105 = math.exp %104 : vector<32x32xf32>
      %106 = arith.mulf %101, %105 : vector<32x32xf32>
      %cst_54 = arith.constant 1.000000e+00 : f32
      %107 = vector.broadcast %cst_54 : f32 to vector<32x32xf32>
      %108 = arith.subf %107, %106 : vector<32x32xf32>
      %109 = arith.mulf %81, %108 : vector<32x32xf32>
      %cst_55 = arith.constant 5.000000e-01 : f32
      %110 = vector.broadcast %cst_55 : f32 to vector<32x32xf32>
      %111 = arith.mulf %110, %74 : vector<32x32xf32>
      %cst_56 = arith.constant 1.000000e+00 : f32
      %112 = vector.broadcast %cst_56 : f32 to vector<32x32xf32>
      %113 = arith.addf %112, %109 : vector<32x32xf32>
      %114 = arith.mulf %111, %113 : vector<32x32xf32>
      %c0_57 = arith.constant 0 : index
      %c0_58 = arith.constant 0 : index
      %115 = vector.load %arg6[%c0_57, %c0_58] : memref<32x32xbf16, #tpu.memory_space<vmem>>, vector<32x32xbf16>
      %c0_59 = arith.constant 0 : index
      %c0_60 = arith.constant 0 : index
      %116 = vector.load %arg7[%c0_59, %c0_60] : memref<1x32xf32, #tpu.memory_space<vmem>>, vector<1x32xf32>
      %117 = arith.truncf %114 : vector<32x32xf32> to vector<32x32xbf16>
      %cst_61 = arith.constant dense<0.000000e+00> : vector<32x32xf32>
      %118 = tpu.matmul %117, %115, %cst_61 {dimension_numbers = #tpu.dot_dimension_numbers<[1], [0], [0], [1], [0, 0, 1, 1], [], []>} : vector<32x32xbf16>, vector<32x32xbf16>, vector<32x32xf32> -> vector<32x32xf32>
      %119 = vector.broadcast %116 : vector<1x32xf32> to vector<32x32xf32>
      %120 = arith.addf %118, %119 : vector<32x32xf32>
      %cst_62 = arith.constant 0.707106769 : f32
      %121 = vector.broadcast %cst_62 : f32 to vector<32x32xf32>
      %122 = arith.mulf %120, %121 : vector<32x32xf32>
      %cst_63 = arith.constant 0.000000e+00 : f32
      %123 = vector.broadcast %cst_63 : f32 to vector<32x32xf32>
      %124 = arith.cmpf oge, %122, %123 : vector<32x32xf32>
      %cst_64 = arith.constant 1.000000e+00 : f32
      %cst_65 = arith.constant -1.000000e+00 : f32
      %125 = vector.broadcast %cst_64 : f32 to vector<32x32xf32>
      %126 = vector.broadcast %cst_65 : f32 to vector<32x32xf32>
      %127 = arith.select %124, %125, %126 : vector<32x32xi1>, vector<32x32xf32>
      %128 = math.absf %122 : vector<32x32xf32>
      %cst_66 = arith.constant 0.327591091 : f32
      %129 = vector.broadcast %cst_66 : f32 to vector<32x32xf32>
      %130 = arith.mulf %129, %128 : vector<32x32xf32>
      %cst_67 = arith.constant 1.000000e+00 : f32
      %131 = vector.broadcast %cst_67 : f32 to vector<32x32xf32>
      %132 = arith.addf %131, %130 : vector<32x32xf32>
      %133 = tpu.reciprocal %132 {approx = true} : vector<32x32xf32> -> vector<32x32xf32>
      %cst_68 = arith.constant 1.06140542 : f32
      %134 = vector.broadcast %cst_68 : f32 to vector<32x32xf32>
      %135 = arith.mulf %134, %133 : vector<32x32xf32>
      %cst_69 = arith.constant 1.45315206 : f32
      %136 = vector.broadcast %cst_69 : f32 to vector<32x32xf32>
      %137 = arith.subf %135, %136 : vector<32x32xf32>
      %138 = arith.mulf %137, %133 : vector<32x32xf32>
      %cst_70 = arith.constant 1.42141378 : f32
      %139 = vector.broadcast %cst_70 : f32 to vector<32x32xf32>
      %140 = arith.addf %138, %139 : vector<32x32xf32>
      %141 = arith.mulf %140, %133 : vector<32x32xf32>
      %cst_71 = arith.constant 0.284496725 : f32
      %142 = vector.broadcast %cst_71 : f32 to vector<32x32xf32>
      %143 = arith.subf %141, %142 : vector<32x32xf32>
      %144 = arith.mulf %143, %133 : vector<32x32xf32>
      %cst_72 = arith.constant 0.254829586 : f32
      %145 = vector.broadcast %cst_72 : f32 to vector<32x32xf32>
      %146 = arith.addf %144, %145 : vector<32x32xf32>
      %147 = arith.mulf %146, %133 : vector<32x32xf32>
      %cst_73 = arith.constant 0.000000e+00 : f32
      %148 = vector.broadcast %cst_73 : f32 to vector<32x32xf32>
      %149 = arith.subf %148, %128 : vector<32x32xf32>
      %150 = arith.mulf %149, %128 : vector<32x32xf32>
      %151 = math.exp %150 : vector<32x32xf32>
      %152 = arith.mulf %147, %151 : vector<32x32xf32>
      %cst_74 = arith.constant 1.000000e+00 : f32
      %153 = vector.broadcast %cst_74 : f32 to vector<32x32xf32>
      %154 = arith.subf %153, %152 : vector<32x32xf32>
      %155 = arith.mulf %127, %154 : vector<32x32xf32>
      %cst_75 = arith.constant 5.000000e-01 : f32
      %156 = vector.broadcast %cst_75 : f32 to vector<32x32xf32>
      %157 = arith.mulf %156, %120 : vector<32x32xf32>
      %cst_76 = arith.constant 1.000000e+00 : f32
      %158 = vector.broadcast %cst_76 : f32 to vector<32x32xf32>
      %159 = arith.addf %158, %155 : vector<32x32xf32>
      %160 = arith.mulf %157, %159 : vector<32x32xf32>
      %161 = arith.truncf %160 : vector<32x32xf32> to vector<32x32xbf16>
      %c0_77 = arith.constant 0 : index
      %162 = arith.index_cast %arg9 : i32 to index
      %c0_78 = arith.constant 0 : index
      %c0_79 = arith.constant 0 : index
      %163 = vector.load %arg8[%c0_77, %162, %c0_78, %c0_79] : memref<1x32x32x32xbf16, #tpu.memory_space<vmem>>, vector<1x1x32x32xbf16>
      %164 = vector.shape_cast %163 : vector<1x1x32x32xbf16> to vector<32x32xbf16>
      %165 = vector.shape_cast %161 : vector<32x32xbf16> to vector<1x1x32x32xbf16>
      tpu.vector_store %arg8[%c0_77, %162, %c0_78, %c0_79], %165 {strides = array<i32>} : memref<1x32x32x32xbf16, #tpu.memory_space<vmem>>, vector<1x1x32x32xbf16>,
    }
    %c32_i32_0 = arith.constant 32 : i32
    return
  }
  func.func @transform_0(%arg0: i32) -> (i32, i32, i32, i32) {
    %c0_i32 = arith.constant 0 : i32
    %c0_i32_0 = arith.constant 0 : i32
    %c0_i32_1 = arith.constant 0 : i32
    %c0_i32_2 = arith.constant 0 : i32
    return %arg0, %c0_i32, %c0_i32_0, %c0_i32_1 : i32, i32, i32, i32
  }
  func.func @transform_1(%arg0: i32) -> (i32, i32, i32) {
    %c0_i32 = arith.constant 0 : i32
    %c0_i32_0 = arith.constant 0 : i32
    %c0_i32_1 = arith.constant 0 : i32
    %c0_i32_2 = arith.constant 0 : i32
    return %c0_i32, %c0_i32_0, %c0_i32_1 : i32, i32, i32
  }
  func.func @transform_2(%arg0: i32) -> (i32, i32) {
    %c0_i32 = arith.constant 0 : i32
    %c0_i32_0 = arith.constant 0 : i32
    %c0_i32_1 = arith.constant 0 : i32
    return %c0_i32, %c0_i32_0 : i32, i32
  }
  func.func @transform_3(%arg0: i32) -> (i32, i32) {
    %c0_i32 = arith.constant 0 : i32
    %c0_i32_0 = arith.constant 0 : i32
    %c0_i32_1 = arith.constant 0 : i32
    return %c0_i32, %c0_i32_0 : i32, i32
  }
  func.func @transform_4(%arg0: i32) -> (i32, i32) {
    %c0_i32 = arith.constant 0 : i32
    %c0_i32_0 = arith.constant 0 : i32
    %c0_i32_1 = arith.constant 0 : i32
    return %c0_i32, %c0_i32_0 : i32, i32
  }
  func.func @transform_5(%arg0: i32) -> (i32, i32) {
    %c0_i32 = arith.constant 0 : i32
    %c0_i32_0 = arith.constant 0 : i32
    %c0_i32_1 = arith.constant 0 : i32
    return %c0_i32, %c0_i32_0 : i32, i32
  }
  func.func @transform_6(%arg0: i32) -> (i32, i32) {
    %c0_i32 = arith.constant 0 : i32
    %c0_i32_0 = arith.constant 0 : i32
    %c0_i32_1 = arith.constant 0 : i32
    return %c0_i32, %c0_i32_0 : i32, i32
  }
  func.func @transform_7(%arg0: i32) -> (i32, i32, i32, i32) {
    %c0_i32 = arith.constant 0 : i32
    %c0_i32_0 = arith.constant 0 : i32
    %c0_i32_1 = arith.constant 0 : i32
    %c0_i32_2 = arith.constant 0 : i32
    return %arg0, %c0_i32, %c0_i32_0, %c0_i32_1 : i32, i32, i32, i32
  }
}

module attributes {stable_mosaic.version = 11 : i64} {
  func.func @_conv_stage_kernel(%arg0: i32, %arg1: memref<1x17x17x128xbf16, #tpu.memory_space<vmem>>, %arg2: memref<4x128x16xbf16, #tpu.memory_space<vmem>>, %arg3: memref<1x16xf32, #tpu.memory_space<vmem>>, %arg4: memref<16x16xbf16, #tpu.memory_space<vmem>>, %arg5: memref<1x16xf32, #tpu.memory_space<vmem>>, %arg6: memref<16x16xbf16, #tpu.memory_space<vmem>>, %arg7: memref<1x16xf32, #tpu.memory_space<vmem>>, %arg8: memref<1x16x16x16xbf16, #tpu.memory_space<vmem>>) attributes {dimension_semantics = [#tpu.dimension_semantics<parallel>], iteration_bounds = array<i64: 2>, scalar_prefetch = 0 : i64, scratch_operands = 0 : i64, tpu.core_type = #tpu.core_type<tc>, window_params = [{transform_indices = @transform_0, window_bounds = array<i64: 1, 17, 17, 128>}, {pipeline_mode = #tpu.pipeline_mode<synchronous>, transform_indices = @transform_1, window_bounds = array<i64: 4, 128, 16>}, {pipeline_mode = #tpu.pipeline_mode<synchronous>, transform_indices = @transform_2, window_bounds = array<i64: 1, 16>}, {pipeline_mode = #tpu.pipeline_mode<synchronous>, transform_indices = @transform_3, window_bounds = array<i64: 16, 16>}, {pipeline_mode = #tpu.pipeline_mode<synchronous>, transform_indices = @transform_4, window_bounds = array<i64: 1, 16>}, {pipeline_mode = #tpu.pipeline_mode<synchronous>, transform_indices = @transform_5, window_bounds = array<i64: 16, 16>}, {pipeline_mode = #tpu.pipeline_mode<synchronous>, transform_indices = @transform_6, window_bounds = array<i64: 1, 16>}, {transform_indices = @transform_7, window_bounds = array<i64: 1, 16, 16, 16>}]} {
    %c0_i32 = arith.constant 0 : i32
    %c16_i32 = arith.constant 16 : i32
    %0 = arith.addi %c0_i32, %c16_i32 : i32
    %c1_i32 = arith.constant 1 : i32
    scf.for %arg9 = %c0_i32 to %0 step %c1_i32  : i32 {
      %c0 = arith.constant 0 : index
      %1 = arith.index_cast %arg9 : i32 to index
      %c0_1 = arith.constant 0 : index
      %c0_2 = arith.constant 0 : index
      %2 = vector.load %arg1[%c0, %1, %c0_1, %c0_2] : memref<1x17x17x128xbf16, #tpu.memory_space<vmem>>, vector<1x1x17x128xbf16>
      %3 = vector.shape_cast %2 : vector<1x1x17x128xbf16> to vector<17x128xbf16>
      %c1_i32_3 = arith.constant 1 : i32
      %4 = arith.addi %arg9, %c1_i32_3 : i32
      %c0_4 = arith.constant 0 : index
      %5 = arith.index_cast %4 : i32 to index
      %c0_5 = arith.constant 0 : index
      %c0_6 = arith.constant 0 : index
      %6 = vector.load %arg1[%c0_4, %5, %c0_5, %c0_6] : memref<1x17x17x128xbf16, #tpu.memory_space<vmem>>, vector<1x1x17x128xbf16>
      %7 = vector.shape_cast %6 : vector<1x1x17x128xbf16> to vector<17x128xbf16>
      %c0_7 = arith.constant 0 : index
      %c0_8 = arith.constant 0 : index
      %c0_9 = arith.constant 0 : index
      %8 = vector.load %arg2[%c0_7, %c0_8, %c0_9] : memref<4x128x16xbf16, #tpu.memory_space<vmem>>, vector<1x128x16xbf16>
      %9 = vector.shape_cast %8 : vector<1x128x16xbf16> to vector<128x16xbf16>
      %cst = arith.constant dense<0.000000e+00> : vector<17x16xf32>
      %10 = tpu.matmul %3, %9, %cst {dimension_numbers = #tpu.dot_dimension_numbers<[1], [0], [0], [1], [0, 0, 1, 1], [], []>} : vector<17x128xbf16>, vector<128x16xbf16>, vector<17x16xf32> -> vector<17x16xf32>
      %c2 = arith.constant 2 : index
      %c0_10 = arith.constant 0 : index
      %c0_11 = arith.constant 0 : index
      %11 = vector.load %arg2[%c2, %c0_10, %c0_11] : memref<4x128x16xbf16, #tpu.memory_space<vmem>>, vector<1x128x16xbf16>
      %12 = vector.shape_cast %11 : vector<1x128x16xbf16> to vector<128x16xbf16>
      %cst_12 = arith.constant dense<0.000000e+00> : vector<17x16xf32>
      %13 = tpu.matmul %7, %12, %cst_12 {dimension_numbers = #tpu.dot_dimension_numbers<[1], [0], [0], [1], [0, 0, 1, 1], [], []>} : vector<17x128xbf16>, vector<128x16xbf16>, vector<17x16xf32> -> vector<17x16xf32>
      %14 = arith.addf %10, %13 : vector<17x16xf32>
      %c1 = arith.constant 1 : index
      %c0_13 = arith.constant 0 : index
      %c0_14 = arith.constant 0 : index
      %15 = vector.load %arg2[%c1, %c0_13, %c0_14] : memref<4x128x16xbf16, #tpu.memory_space<vmem>>, vector<1x128x16xbf16>
      %16 = vector.shape_cast %15 : vector<1x128x16xbf16> to vector<128x16xbf16>
      %cst_15 = arith.constant dense<0.000000e+00> : vector<17x16xf32>
      %17 = tpu.matmul %3, %16, %cst_15 {dimension_numbers = #tpu.dot_dimension_numbers<[1], [0], [0], [1], [0, 0, 1, 1], [], []>} : vector<17x128xbf16>, vector<128x16xbf16>, vector<17x16xf32> -> vector<17x16xf32>
      %c3 = arith.constant 3 : index
      %c0_16 = arith.constant 0 : index
      %c0_17 = arith.constant 0 : index
      %18 = vector.load %arg2[%c3, %c0_16, %c0_17] : memref<4x128x16xbf16, #tpu.memory_space<vmem>>, vector<1x128x16xbf16>
      %19 = vector.shape_cast %18 : vector<1x128x16xbf16> to vector<128x16xbf16>
      %cst_18 = arith.constant dense<0.000000e+00> : vector<17x16xf32>
      %20 = tpu.matmul %7, %19, %cst_18 {dimension_numbers = #tpu.dot_dimension_numbers<[1], [0], [0], [1], [0, 0, 1, 1], [], []>} : vector<17x128xbf16>, vector<128x16xbf16>, vector<17x16xf32> -> vector<17x16xf32>
      %21 = arith.addf %17, %20 : vector<17x16xf32>
      %c16_i32_19 = arith.constant 16 : i32
      %22 = tpu.dynamic_rotate %21 by %c16_i32_19 dim 0 : vector<17x16xf32>, i32 -> vector<17x16xf32>
      %23 = vector.extract_strided_slice %14 {offsets = [0, 0], sizes = [16, 16], strides = [1, 1]} : vector<17x16xf32> to vector<16x16xf32>
      %24 = vector.extract_strided_slice %22 {offsets = [0, 0], sizes = [16, 16], strides = [1, 1]} : vector<17x16xf32> to vector<16x16xf32>
      %25 = arith.addf %23, %24 : vector<16x16xf32>
      %c0_20 = arith.constant 0 : index
      %c0_21 = arith.constant 0 : index
      %26 = vector.load %arg3[%c0_20, %c0_21] : memref<1x16xf32, #tpu.memory_space<vmem>>, vector<1x16xf32>
      %27 = vector.broadcast %26 : vector<1x16xf32> to vector<16x16xf32>
      %28 = arith.addf %25, %27 : vector<16x16xf32>
      %cst_22 = arith.constant 0.707106769 : f32
      %29 = vector.broadcast %cst_22 : f32 to vector<16x16xf32>
      %30 = arith.mulf %28, %29 : vector<16x16xf32>
      %cst_23 = arith.constant 0.000000e+00 : f32
      %31 = vector.broadcast %cst_23 : f32 to vector<16x16xf32>
      %32 = arith.cmpf oge, %30, %31 : vector<16x16xf32>
      %cst_24 = arith.constant 1.000000e+00 : f32
      %cst_25 = arith.constant -1.000000e+00 : f32
      %33 = vector.broadcast %cst_24 : f32 to vector<16x16xf32>
      %34 = vector.broadcast %cst_25 : f32 to vector<16x16xf32>
      %35 = arith.select %32, %33, %34 : vector<16x16xi1>, vector<16x16xf32>
      %36 = math.absf %30 : vector<16x16xf32>
      %cst_26 = arith.constant 0.327591091 : f32
      %37 = vector.broadcast %cst_26 : f32 to vector<16x16xf32>
      %38 = arith.mulf %37, %36 : vector<16x16xf32>
      %cst_27 = arith.constant 1.000000e+00 : f32
      %39 = vector.broadcast %cst_27 : f32 to vector<16x16xf32>
      %40 = arith.addf %39, %38 : vector<16x16xf32>
      %41 = tpu.reciprocal %40 {approx = true} : vector<16x16xf32> -> vector<16x16xf32>
      %cst_28 = arith.constant 1.06140542 : f32
      %42 = vector.broadcast %cst_28 : f32 to vector<16x16xf32>
      %43 = arith.mulf %42, %41 : vector<16x16xf32>
      %cst_29 = arith.constant 1.45315206 : f32
      %44 = vector.broadcast %cst_29 : f32 to vector<16x16xf32>
      %45 = arith.subf %43, %44 : vector<16x16xf32>
      %46 = arith.mulf %45, %41 : vector<16x16xf32>
      %cst_30 = arith.constant 1.42141378 : f32
      %47 = vector.broadcast %cst_30 : f32 to vector<16x16xf32>
      %48 = arith.addf %46, %47 : vector<16x16xf32>
      %49 = arith.mulf %48, %41 : vector<16x16xf32>
      %cst_31 = arith.constant 0.284496725 : f32
      %50 = vector.broadcast %cst_31 : f32 to vector<16x16xf32>
      %51 = arith.subf %49, %50 : vector<16x16xf32>
      %52 = arith.mulf %51, %41 : vector<16x16xf32>
      %cst_32 = arith.constant 0.254829586 : f32
      %53 = vector.broadcast %cst_32 : f32 to vector<16x16xf32>
      %54 = arith.addf %52, %53 : vector<16x16xf32>
      %55 = arith.mulf %54, %41 : vector<16x16xf32>
      %cst_33 = arith.constant 0.000000e+00 : f32
      %56 = vector.broadcast %cst_33 : f32 to vector<16x16xf32>
      %57 = arith.subf %56, %36 : vector<16x16xf32>
      %58 = arith.mulf %57, %36 : vector<16x16xf32>
      %59 = math.exp %58 : vector<16x16xf32>
      %60 = arith.mulf %55, %59 : vector<16x16xf32>
      %cst_34 = arith.constant 1.000000e+00 : f32
      %61 = vector.broadcast %cst_34 : f32 to vector<16x16xf32>
      %62 = arith.subf %61, %60 : vector<16x16xf32>
      %63 = arith.mulf %35, %62 : vector<16x16xf32>
      %cst_35 = arith.constant 5.000000e-01 : f32
      %64 = vector.broadcast %cst_35 : f32 to vector<16x16xf32>
      %65 = arith.mulf %64, %28 : vector<16x16xf32>
      %cst_36 = arith.constant 1.000000e+00 : f32
      %66 = vector.broadcast %cst_36 : f32 to vector<16x16xf32>
      %67 = arith.addf %66, %63 : vector<16x16xf32>
      %68 = arith.mulf %65, %67 : vector<16x16xf32>
      %c0_37 = arith.constant 0 : index
      %c0_38 = arith.constant 0 : index
      %69 = vector.load %arg4[%c0_37, %c0_38] : memref<16x16xbf16, #tpu.memory_space<vmem>>, vector<16x16xbf16>
      %c0_39 = arith.constant 0 : index
      %c0_40 = arith.constant 0 : index
      %70 = vector.load %arg5[%c0_39, %c0_40] : memref<1x16xf32, #tpu.memory_space<vmem>>, vector<1x16xf32>
      %71 = arith.truncf %68 : vector<16x16xf32> to vector<16x16xbf16>
      %cst_41 = arith.constant dense<0.000000e+00> : vector<16x16xf32>
      %72 = tpu.matmul %71, %69, %cst_41 {dimension_numbers = #tpu.dot_dimension_numbers<[1], [0], [0], [1], [0, 0, 1, 1], [], []>} : vector<16x16xbf16>, vector<16x16xbf16>, vector<16x16xf32> -> vector<16x16xf32>
      %73 = vector.broadcast %70 : vector<1x16xf32> to vector<16x16xf32>
      %74 = arith.addf %72, %73 : vector<16x16xf32>
      %cst_42 = arith.constant 0.707106769 : f32
      %75 = vector.broadcast %cst_42 : f32 to vector<16x16xf32>
      %76 = arith.mulf %74, %75 : vector<16x16xf32>
      %cst_43 = arith.constant 0.000000e+00 : f32
      %77 = vector.broadcast %cst_43 : f32 to vector<16x16xf32>
      %78 = arith.cmpf oge, %76, %77 : vector<16x16xf32>
      %cst_44 = arith.constant 1.000000e+00 : f32
      %cst_45 = arith.constant -1.000000e+00 : f32
      %79 = vector.broadcast %cst_44 : f32 to vector<16x16xf32>
      %80 = vector.broadcast %cst_45 : f32 to vector<16x16xf32>
      %81 = arith.select %78, %79, %80 : vector<16x16xi1>, vector<16x16xf32>
      %82 = math.absf %76 : vector<16x16xf32>
      %cst_46 = arith.constant 0.327591091 : f32
      %83 = vector.broadcast %cst_46 : f32 to vector<16x16xf32>
      %84 = arith.mulf %83, %82 : vector<16x16xf32>
      %cst_47 = arith.constant 1.000000e+00 : f32
      %85 = vector.broadcast %cst_47 : f32 to vector<16x16xf32>
      %86 = arith.addf %85, %84 : vector<16x16xf32>
      %87 = tpu.reciprocal %86 {approx = true} : vector<16x16xf32> -> vector<16x16xf32>
      %cst_48 = arith.constant 1.06140542 : f32
      %88 = vector.broadcast %cst_48 : f32 to vector<16x16xf32>
      %89 = arith.mulf %88, %87 : vector<16x16xf32>
      %cst_49 = arith.constant 1.45315206 : f32
      %90 = vector.broadcast %cst_49 : f32 to vector<16x16xf32>
      %91 = arith.subf %89, %90 : vector<16x16xf32>
      %92 = arith.mulf %91, %87 : vector<16x16xf32>
      %cst_50 = arith.constant 1.42141378 : f32
      %93 = vector.broadcast %cst_50 : f32 to vector<16x16xf32>
      %94 = arith.addf %92, %93 : vector<16x16xf32>
      %95 = arith.mulf %94, %87 : vector<16x16xf32>
      %cst_51 = arith.constant 0.284496725 : f32
      %96 = vector.broadcast %cst_51 : f32 to vector<16x16xf32>
      %97 = arith.subf %95, %96 : vector<16x16xf32>
      %98 = arith.mulf %97, %87 : vector<16x16xf32>
      %cst_52 = arith.constant 0.254829586 : f32
      %99 = vector.broadcast %cst_52 : f32 to vector<16x16xf32>
      %100 = arith.addf %98, %99 : vector<16x16xf32>
      %101 = arith.mulf %100, %87 : vector<16x16xf32>
      %cst_53 = arith.constant 0.000000e+00 : f32
      %102 = vector.broadcast %cst_53 : f32 to vector<16x16xf32>
      %103 = arith.subf %102, %82 : vector<16x16xf32>
      %104 = arith.mulf %103, %82 : vector<16x16xf32>
      %105 = math.exp %104 : vector<16x16xf32>
      %106 = arith.mulf %101, %105 : vector<16x16xf32>
      %cst_54 = arith.constant 1.000000e+00 : f32
      %107 = vector.broadcast %cst_54 : f32 to vector<16x16xf32>
      %108 = arith.subf %107, %106 : vector<16x16xf32>
      %109 = arith.mulf %81, %108 : vector<16x16xf32>
      %cst_55 = arith.constant 5.000000e-01 : f32
      %110 = vector.broadcast %cst_55 : f32 to vector<16x16xf32>
      %111 = arith.mulf %110, %74 : vector<16x16xf32>
      %cst_56 = arith.constant 1.000000e+00 : f32
      %112 = vector.broadcast %cst_56 : f32 to vector<16x16xf32>
      %113 = arith.addf %112, %109 : vector<16x16xf32>
      %114 = arith.mulf %111, %113 : vector<16x16xf32>
      %c0_57 = arith.constant 0 : index
      %c0_58 = arith.constant 0 : index
      %115 = vector.load %arg6[%c0_57, %c0_58] : memref<16x16xbf16, #tpu.memory_space<vmem>>, vector<16x16xbf16>
      %c0_59 = arith.constant 0 : index
      %c0_60 = arith.constant 0 : index
      %116 = vector.load %arg7[%c0_59, %c0_60] : memref<1x16xf32, #tpu.memory_space<vmem>>, vector<1x16xf32>
      %117 = arith.truncf %114 : vector<16x16xf32> to vector<16x16xbf16>
      %cst_61 = arith.constant dense<0.000000e+00> : vector<16x16xf32>
      %118 = tpu.matmul %117, %115, %cst_61 {dimension_numbers = #tpu.dot_dimension_numbers<[1], [0], [0], [1], [0, 0, 1, 1], [], []>} : vector<16x16xbf16>, vector<16x16xbf16>, vector<16x16xf32> -> vector<16x16xf32>
      %119 = vector.broadcast %116 : vector<1x16xf32> to vector<16x16xf32>
      %120 = arith.addf %118, %119 : vector<16x16xf32>
      %cst_62 = arith.constant 0.707106769 : f32
      %121 = vector.broadcast %cst_62 : f32 to vector<16x16xf32>
      %122 = arith.mulf %120, %121 : vector<16x16xf32>
      %cst_63 = arith.constant 0.000000e+00 : f32
      %123 = vector.broadcast %cst_63 : f32 to vector<16x16xf32>
      %124 = arith.cmpf oge, %122, %123 : vector<16x16xf32>
      %cst_64 = arith.constant 1.000000e+00 : f32
      %cst_65 = arith.constant -1.000000e+00 : f32
      %125 = vector.broadcast %cst_64 : f32 to vector<16x16xf32>
      %126 = vector.broadcast %cst_65 : f32 to vector<16x16xf32>
      %127 = arith.select %124, %125, %126 : vector<16x16xi1>, vector<16x16xf32>
      %128 = math.absf %122 : vector<16x16xf32>
      %cst_66 = arith.constant 0.327591091 : f32
      %129 = vector.broadcast %cst_66 : f32 to vector<16x16xf32>
      %130 = arith.mulf %129, %128 : vector<16x16xf32>
      %cst_67 = arith.constant 1.000000e+00 : f32
      %131 = vector.broadcast %cst_67 : f32 to vector<16x16xf32>
      %132 = arith.addf %131, %130 : vector<16x16xf32>
      %133 = tpu.reciprocal %132 {approx = true} : vector<16x16xf32> -> vector<16x16xf32>
      %cst_68 = arith.constant 1.06140542 : f32
      %134 = vector.broadcast %cst_68 : f32 to vector<16x16xf32>
      %135 = arith.mulf %134, %133 : vector<16x16xf32>
      %cst_69 = arith.constant 1.45315206 : f32
      %136 = vector.broadcast %cst_69 : f32 to vector<16x16xf32>
      %137 = arith.subf %135, %136 : vector<16x16xf32>
      %138 = arith.mulf %137, %133 : vector<16x16xf32>
      %cst_70 = arith.constant 1.42141378 : f32
      %139 = vector.broadcast %cst_70 : f32 to vector<16x16xf32>
      %140 = arith.addf %138, %139 : vector<16x16xf32>
      %141 = arith.mulf %140, %133 : vector<16x16xf32>
      %cst_71 = arith.constant 0.284496725 : f32
      %142 = vector.broadcast %cst_71 : f32 to vector<16x16xf32>
      %143 = arith.subf %141, %142 : vector<16x16xf32>
      %144 = arith.mulf %143, %133 : vector<16x16xf32>
      %cst_72 = arith.constant 0.254829586 : f32
      %145 = vector.broadcast %cst_72 : f32 to vector<16x16xf32>
      %146 = arith.addf %144, %145 : vector<16x16xf32>
      %147 = arith.mulf %146, %133 : vector<16x16xf32>
      %cst_73 = arith.constant 0.000000e+00 : f32
      %148 = vector.broadcast %cst_73 : f32 to vector<16x16xf32>
      %149 = arith.subf %148, %128 : vector<16x16xf32>
      %150 = arith.mulf %149, %128 : vector<16x16xf32>
      %151 = math.exp %150 : vector<16x16xf32>
      %152 = arith.mulf %147, %151 : vector<16x16xf32>
      %cst_74 = arith.constant 1.000000e+00 : f32
      %153 = vector.broadcast %cst_74 : f32 to vector<16x16xf32>
      %154 = arith.subf %153, %152 : vector<16x16xf32>
      %155 = arith.mulf %127, %154 : vector<16x16xf32>
      %cst_75 = arith.constant 5.000000e-01 : f32
      %156 = vector.broadcast %cst_75 : f32 to vector<16x16xf32>
      %157 = arith.mulf %156, %120 : vector<16x16xf32>
      %cst_76 = arith.constant 1.000000e+00 : f32
      %158 = vector.broadcast %cst_76 : f32 to vector<16x16xf32>
      %159 = arith.addf %158, %155 : vector<16x16xf32>
      %160 = arith.mulf %157, %159 : vector<16x16xf32>
      %161 = arith.truncf %160 : vector<16x16xf32> to vector<16x16xbf16>
      %c0_77 = arith.constant 0 : index
      %162 = arith.index_cast %arg9 : i32 to index
      %c0_78 = arith.constant 0 : index
      %c0_79 = arith.constant 0 : index
      %163 = vector.load %arg8[%c0_77, %162, %c0_78, %c0_79] : memref<1x16x16x16xbf16, #tpu.memory_space<vmem>>, vector<1x1x16x16xbf16>
      %164 = vector.shape_cast %163 : vector<1x1x16x16xbf16> to vector<16x16xbf16>
      %165 = vector.shape_cast %161 : vector<16x16xbf16> to vector<1x1x16x16xbf16>
      tpu.vector_store %arg8[%c0_77, %162, %c0_78, %c0_79], %165 {strides = array<i32>} : memref<1x16x16x16xbf16, #tpu.memory_space<vmem>>, vector<1x1x16x16xbf16>,
    }
    %c16_i32_0 = arith.constant 16 : i32
    return
  }
  func.func @transform_0(%arg0: i32) -> (i32, i32, i32, i32) {
    %c0_i32 = arith.constant 0 : i32
    %c0_i32_0 = arith.constant 0 : i32
    %c0_i32_1 = arith.constant 0 : i32
    %c0_i32_2 = arith.constant 0 : i32
    return %arg0, %c0_i32, %c0_i32_0, %c0_i32_1 : i32, i32, i32, i32
  }
  func.func @transform_1(%arg0: i32) -> (i32, i32, i32) {
    %c0_i32 = arith.constant 0 : i32
    %c0_i32_0 = arith.constant 0 : i32
    %c0_i32_1 = arith.constant 0 : i32
    %c0_i32_2 = arith.constant 0 : i32
    return %c0_i32, %c0_i32_0, %c0_i32_1 : i32, i32, i32
  }
  func.func @transform_2(%arg0: i32) -> (i32, i32) {
    %c0_i32 = arith.constant 0 : i32
    %c0_i32_0 = arith.constant 0 : i32
    %c0_i32_1 = arith.constant 0 : i32
    return %c0_i32, %c0_i32_0 : i32, i32
  }
  func.func @transform_3(%arg0: i32) -> (i32, i32) {
    %c0_i32 = arith.constant 0 : i32
    %c0_i32_0 = arith.constant 0 : i32
    %c0_i32_1 = arith.constant 0 : i32
    return %c0_i32, %c0_i32_0 : i32, i32
  }
  func.func @transform_4(%arg0: i32) -> (i32, i32) {
    %c0_i32 = arith.constant 0 : i32
    %c0_i32_0 = arith.constant 0 : i32
    %c0_i32_1 = arith.constant 0 : i32
    return %c0_i32, %c0_i32_0 : i32, i32
  }
  func.func @transform_5(%arg0: i32) -> (i32, i32) {
    %c0_i32 = arith.constant 0 : i32
    %c0_i32_0 = arith.constant 0 : i32
    %c0_i32_1 = arith.constant 0 : i32
    return %c0_i32, %c0_i32_0 : i32, i32
  }
  func.func @transform_6(%arg0: i32) -> (i32, i32) {
    %c0_i32 = arith.constant 0 : i32
    %c0_i32_0 = arith.constant 0 : i32
    %c0_i32_1 = arith.constant 0 : i32
    return %c0_i32, %c0_i32_0 : i32, i32
  }
  func.func @transform_7(%arg0: i32) -> (i32, i32, i32, i32) {
    %c0_i32 = arith.constant 0 : i32
    %c0_i32_0 = arith.constant 0 : i32
    %c0_i32_1 = arith.constant 0 : i32
    %c0_i32_2 = arith.constant 0 : i32
    return %arg0, %c0_i32, %c0_i32_0, %c0_i32_1 : i32, i32, i32, i32
  }
}

module attributes {stable_mosaic.version = 11 : i64} {
  func.func @_conv_stage_kernel(%arg0: i32, %arg1: memref<1x9x9x64xbf16, #tpu.memory_space<vmem>>, %arg2: memref<4x64x8xbf16, #tpu.memory_space<vmem>>, %arg3: memref<1x8xf32, #tpu.memory_space<vmem>>, %arg4: memref<8x8xbf16, #tpu.memory_space<vmem>>, %arg5: memref<1x8xf32, #tpu.memory_space<vmem>>, %arg6: memref<1x8x8x8xbf16, #tpu.memory_space<vmem>>) attributes {dimension_semantics = [#tpu.dimension_semantics<parallel>], iteration_bounds = array<i64: 2>, scalar_prefetch = 0 : i64, scratch_operands = 0 : i64, tpu.core_type = #tpu.core_type<tc>, window_params = [{transform_indices = @transform_0, window_bounds = array<i64: 1, 9, 9, 64>}, {pipeline_mode = #tpu.pipeline_mode<synchronous>, transform_indices = @transform_1, window_bounds = array<i64: 4, 64, 8>}, {pipeline_mode = #tpu.pipeline_mode<synchronous>, transform_indices = @transform_2, window_bounds = array<i64: 1, 8>}, {pipeline_mode = #tpu.pipeline_mode<synchronous>, transform_indices = @transform_3, window_bounds = array<i64: 8, 8>}, {pipeline_mode = #tpu.pipeline_mode<synchronous>, transform_indices = @transform_4, window_bounds = array<i64: 1, 8>}, {transform_indices = @transform_5, window_bounds = array<i64: 1, 8, 8, 8>}]} {
    %c0_i32 = arith.constant 0 : i32
    %c8_i32 = arith.constant 8 : i32
    %0 = arith.addi %c0_i32, %c8_i32 : i32
    %c1_i32 = arith.constant 1 : i32
    scf.for %arg7 = %c0_i32 to %0 step %c1_i32  : i32 {
      %c0 = arith.constant 0 : index
      %1 = arith.index_cast %arg7 : i32 to index
      %c0_1 = arith.constant 0 : index
      %c0_2 = arith.constant 0 : index
      %2 = vector.load %arg1[%c0, %1, %c0_1, %c0_2] : memref<1x9x9x64xbf16, #tpu.memory_space<vmem>>, vector<1x1x9x64xbf16>
      %3 = vector.shape_cast %2 : vector<1x1x9x64xbf16> to vector<9x64xbf16>
      %c1_i32_3 = arith.constant 1 : i32
      %4 = arith.addi %arg7, %c1_i32_3 : i32
      %c0_4 = arith.constant 0 : index
      %5 = arith.index_cast %4 : i32 to index
      %c0_5 = arith.constant 0 : index
      %c0_6 = arith.constant 0 : index
      %6 = vector.load %arg1[%c0_4, %5, %c0_5, %c0_6] : memref<1x9x9x64xbf16, #tpu.memory_space<vmem>>, vector<1x1x9x64xbf16>
      %7 = vector.shape_cast %6 : vector<1x1x9x64xbf16> to vector<9x64xbf16>
      %c0_7 = arith.constant 0 : index
      %c0_8 = arith.constant 0 : index
      %c0_9 = arith.constant 0 : index
      %8 = vector.load %arg2[%c0_7, %c0_8, %c0_9] : memref<4x64x8xbf16, #tpu.memory_space<vmem>>, vector<1x64x8xbf16>
      %9 = vector.shape_cast %8 : vector<1x64x8xbf16> to vector<64x8xbf16>
      %cst = arith.constant dense<0.000000e+00> : vector<9x8xf32>
      %10 = tpu.matmul %3, %9, %cst {dimension_numbers = #tpu.dot_dimension_numbers<[1], [0], [0], [1], [0, 0, 1, 1], [], []>} : vector<9x64xbf16>, vector<64x8xbf16>, vector<9x8xf32> -> vector<9x8xf32>
      %c2 = arith.constant 2 : index
      %c0_10 = arith.constant 0 : index
      %c0_11 = arith.constant 0 : index
      %11 = vector.load %arg2[%c2, %c0_10, %c0_11] : memref<4x64x8xbf16, #tpu.memory_space<vmem>>, vector<1x64x8xbf16>
      %12 = vector.shape_cast %11 : vector<1x64x8xbf16> to vector<64x8xbf16>
      %cst_12 = arith.constant dense<0.000000e+00> : vector<9x8xf32>
      %13 = tpu.matmul %7, %12, %cst_12 {dimension_numbers = #tpu.dot_dimension_numbers<[1], [0], [0], [1], [0, 0, 1, 1], [], []>} : vector<9x64xbf16>, vector<64x8xbf16>, vector<9x8xf32> -> vector<9x8xf32>
      %14 = arith.addf %10, %13 : vector<9x8xf32>
      %c1 = arith.constant 1 : index
      %c0_13 = arith.constant 0 : index
      %c0_14 = arith.constant 0 : index
      %15 = vector.load %arg2[%c1, %c0_13, %c0_14] : memref<4x64x8xbf16, #tpu.memory_space<vmem>>, vector<1x64x8xbf16>
      %16 = vector.shape_cast %15 : vector<1x64x8xbf16> to vector<64x8xbf16>
      %cst_15 = arith.constant dense<0.000000e+00> : vector<9x8xf32>
      %17 = tpu.matmul %3, %16, %cst_15 {dimension_numbers = #tpu.dot_dimension_numbers<[1], [0], [0], [1], [0, 0, 1, 1], [], []>} : vector<9x64xbf16>, vector<64x8xbf16>, vector<9x8xf32> -> vector<9x8xf32>
      %c3 = arith.constant 3 : index
      %c0_16 = arith.constant 0 : index
      %c0_17 = arith.constant 0 : index
      %18 = vector.load %arg2[%c3, %c0_16, %c0_17] : memref<4x64x8xbf16, #tpu.memory_space<vmem>>, vector<1x64x8xbf16>
      %19 = vector.shape_cast %18 : vector<1x64x8xbf16> to vector<64x8xbf16>
      %cst_18 = arith.constant dense<0.000000e+00> : vector<9x8xf32>
      %20 = tpu.matmul %7, %19, %cst_18 {dimension_numbers = #tpu.dot_dimension_numbers<[1], [0], [0], [1], [0, 0, 1, 1], [], []>} : vector<9x64xbf16>, vector<64x8xbf16>, vector<9x8xf32> -> vector<9x8xf32>
      %21 = arith.addf %17, %20 : vector<9x8xf32>
      %c8_i32_19 = arith.constant 8 : i32
      %22 = tpu.dynamic_rotate %21 by %c8_i32_19 dim 0 : vector<9x8xf32>, i32 -> vector<9x8xf32>
      %23 = vector.extract_strided_slice %14 {offsets = [0, 0], sizes = [8, 8], strides = [1, 1]} : vector<9x8xf32> to vector<8x8xf32>
      %24 = vector.extract_strided_slice %22 {offsets = [0, 0], sizes = [8, 8], strides = [1, 1]} : vector<9x8xf32> to vector<8x8xf32>
      %25 = arith.addf %23, %24 : vector<8x8xf32>
      %c0_20 = arith.constant 0 : index
      %c0_21 = arith.constant 0 : index
      %26 = vector.load %arg3[%c0_20, %c0_21] : memref<1x8xf32, #tpu.memory_space<vmem>>, vector<1x8xf32>
      %27 = vector.broadcast %26 : vector<1x8xf32> to vector<8x8xf32>
      %28 = arith.addf %25, %27 : vector<8x8xf32>
      %cst_22 = arith.constant 0.707106769 : f32
      %29 = vector.broadcast %cst_22 : f32 to vector<8x8xf32>
      %30 = arith.mulf %28, %29 : vector<8x8xf32>
      %cst_23 = arith.constant 0.000000e+00 : f32
      %31 = vector.broadcast %cst_23 : f32 to vector<8x8xf32>
      %32 = arith.cmpf oge, %30, %31 : vector<8x8xf32>
      %cst_24 = arith.constant 1.000000e+00 : f32
      %cst_25 = arith.constant -1.000000e+00 : f32
      %33 = vector.broadcast %cst_24 : f32 to vector<8x8xf32>
      %34 = vector.broadcast %cst_25 : f32 to vector<8x8xf32>
      %35 = arith.select %32, %33, %34 : vector<8x8xi1>, vector<8x8xf32>
      %36 = math.absf %30 : vector<8x8xf32>
      %cst_26 = arith.constant 0.327591091 : f32
      %37 = vector.broadcast %cst_26 : f32 to vector<8x8xf32>
      %38 = arith.mulf %37, %36 : vector<8x8xf32>
      %cst_27 = arith.constant 1.000000e+00 : f32
      %39 = vector.broadcast %cst_27 : f32 to vector<8x8xf32>
      %40 = arith.addf %39, %38 : vector<8x8xf32>
      %41 = tpu.reciprocal %40 {approx = true} : vector<8x8xf32> -> vector<8x8xf32>
      %cst_28 = arith.constant 1.06140542 : f32
      %42 = vector.broadcast %cst_28 : f32 to vector<8x8xf32>
      %43 = arith.mulf %42, %41 : vector<8x8xf32>
      %cst_29 = arith.constant 1.45315206 : f32
      %44 = vector.broadcast %cst_29 : f32 to vector<8x8xf32>
      %45 = arith.subf %43, %44 : vector<8x8xf32>
      %46 = arith.mulf %45, %41 : vector<8x8xf32>
      %cst_30 = arith.constant 1.42141378 : f32
      %47 = vector.broadcast %cst_30 : f32 to vector<8x8xf32>
      %48 = arith.addf %46, %47 : vector<8x8xf32>
      %49 = arith.mulf %48, %41 : vector<8x8xf32>
      %cst_31 = arith.constant 0.284496725 : f32
      %50 = vector.broadcast %cst_31 : f32 to vector<8x8xf32>
      %51 = arith.subf %49, %50 : vector<8x8xf32>
      %52 = arith.mulf %51, %41 : vector<8x8xf32>
      %cst_32 = arith.constant 0.254829586 : f32
      %53 = vector.broadcast %cst_32 : f32 to vector<8x8xf32>
      %54 = arith.addf %52, %53 : vector<8x8xf32>
      %55 = arith.mulf %54, %41 : vector<8x8xf32>
      %cst_33 = arith.constant 0.000000e+00 : f32
      %56 = vector.broadcast %cst_33 : f32 to vector<8x8xf32>
      %57 = arith.subf %56, %36 : vector<8x8xf32>
      %58 = arith.mulf %57, %36 : vector<8x8xf32>
      %59 = math.exp %58 : vector<8x8xf32>
      %60 = arith.mulf %55, %59 : vector<8x8xf32>
      %cst_34 = arith.constant 1.000000e+00 : f32
      %61 = vector.broadcast %cst_34 : f32 to vector<8x8xf32>
      %62 = arith.subf %61, %60 : vector<8x8xf32>
      %63 = arith.mulf %35, %62 : vector<8x8xf32>
      %cst_35 = arith.constant 5.000000e-01 : f32
      %64 = vector.broadcast %cst_35 : f32 to vector<8x8xf32>
      %65 = arith.mulf %64, %28 : vector<8x8xf32>
      %cst_36 = arith.constant 1.000000e+00 : f32
      %66 = vector.broadcast %cst_36 : f32 to vector<8x8xf32>
      %67 = arith.addf %66, %63 : vector<8x8xf32>
      %68 = arith.mulf %65, %67 : vector<8x8xf32>
      %c0_37 = arith.constant 0 : index
      %c0_38 = arith.constant 0 : index
      %69 = vector.load %arg4[%c0_37, %c0_38] : memref<8x8xbf16, #tpu.memory_space<vmem>>, vector<8x8xbf16>
      %c0_39 = arith.constant 0 : index
      %c0_40 = arith.constant 0 : index
      %70 = vector.load %arg5[%c0_39, %c0_40] : memref<1x8xf32, #tpu.memory_space<vmem>>, vector<1x8xf32>
      %71 = arith.truncf %68 : vector<8x8xf32> to vector<8x8xbf16>
      %cst_41 = arith.constant dense<0.000000e+00> : vector<8x8xf32>
      %72 = tpu.matmul %71, %69, %cst_41 {dimension_numbers = #tpu.dot_dimension_numbers<[1], [0], [0], [1], [0, 0, 1, 1], [], []>} : vector<8x8xbf16>, vector<8x8xbf16>, vector<8x8xf32> -> vector<8x8xf32>
      %73 = vector.broadcast %70 : vector<1x8xf32> to vector<8x8xf32>
      %74 = arith.addf %72, %73 : vector<8x8xf32>
      %cst_42 = arith.constant 0.707106769 : f32
      %75 = vector.broadcast %cst_42 : f32 to vector<8x8xf32>
      %76 = arith.mulf %74, %75 : vector<8x8xf32>
      %cst_43 = arith.constant 0.000000e+00 : f32
      %77 = vector.broadcast %cst_43 : f32 to vector<8x8xf32>
      %78 = arith.cmpf oge, %76, %77 : vector<8x8xf32>
      %cst_44 = arith.constant 1.000000e+00 : f32
      %cst_45 = arith.constant -1.000000e+00 : f32
      %79 = vector.broadcast %cst_44 : f32 to vector<8x8xf32>
      %80 = vector.broadcast %cst_45 : f32 to vector<8x8xf32>
      %81 = arith.select %78, %79, %80 : vector<8x8xi1>, vector<8x8xf32>
      %82 = math.absf %76 : vector<8x8xf32>
      %cst_46 = arith.constant 0.327591091 : f32
      %83 = vector.broadcast %cst_46 : f32 to vector<8x8xf32>
      %84 = arith.mulf %83, %82 : vector<8x8xf32>
      %cst_47 = arith.constant 1.000000e+00 : f32
      %85 = vector.broadcast %cst_47 : f32 to vector<8x8xf32>
      %86 = arith.addf %85, %84 : vector<8x8xf32>
      %87 = tpu.reciprocal %86 {approx = true} : vector<8x8xf32> -> vector<8x8xf32>
      %cst_48 = arith.constant 1.06140542 : f32
      %88 = vector.broadcast %cst_48 : f32 to vector<8x8xf32>
      %89 = arith.mulf %88, %87 : vector<8x8xf32>
      %cst_49 = arith.constant 1.45315206 : f32
      %90 = vector.broadcast %cst_49 : f32 to vector<8x8xf32>
      %91 = arith.subf %89, %90 : vector<8x8xf32>
      %92 = arith.mulf %91, %87 : vector<8x8xf32>
      %cst_50 = arith.constant 1.42141378 : f32
      %93 = vector.broadcast %cst_50 : f32 to vector<8x8xf32>
      %94 = arith.addf %92, %93 : vector<8x8xf32>
      %95 = arith.mulf %94, %87 : vector<8x8xf32>
      %cst_51 = arith.constant 0.284496725 : f32
      %96 = vector.broadcast %cst_51 : f32 to vector<8x8xf32>
      %97 = arith.subf %95, %96 : vector<8x8xf32>
      %98 = arith.mulf %97, %87 : vector<8x8xf32>
      %cst_52 = arith.constant 0.254829586 : f32
      %99 = vector.broadcast %cst_52 : f32 to vector<8x8xf32>
      %100 = arith.addf %98, %99 : vector<8x8xf32>
      %101 = arith.mulf %100, %87 : vector<8x8xf32>
      %cst_53 = arith.constant 0.000000e+00 : f32
      %102 = vector.broadcast %cst_53 : f32 to vector<8x8xf32>
      %103 = arith.subf %102, %82 : vector<8x8xf32>
      %104 = arith.mulf %103, %82 : vector<8x8xf32>
      %105 = math.exp %104 : vector<8x8xf32>
      %106 = arith.mulf %101, %105 : vector<8x8xf32>
      %cst_54 = arith.constant 1.000000e+00 : f32
      %107 = vector.broadcast %cst_54 : f32 to vector<8x8xf32>
      %108 = arith.subf %107, %106 : vector<8x8xf32>
      %109 = arith.mulf %81, %108 : vector<8x8xf32>
      %cst_55 = arith.constant 5.000000e-01 : f32
      %110 = vector.broadcast %cst_55 : f32 to vector<8x8xf32>
      %111 = arith.mulf %110, %74 : vector<8x8xf32>
      %cst_56 = arith.constant 1.000000e+00 : f32
      %112 = vector.broadcast %cst_56 : f32 to vector<8x8xf32>
      %113 = arith.addf %112, %109 : vector<8x8xf32>
      %114 = arith.mulf %111, %113 : vector<8x8xf32>
      %115 = arith.truncf %114 : vector<8x8xf32> to vector<8x8xbf16>
      %c0_57 = arith.constant 0 : index
      %116 = arith.index_cast %arg7 : i32 to index
      %c0_58 = arith.constant 0 : index
      %c0_59 = arith.constant 0 : index
      %117 = vector.load %arg6[%c0_57, %116, %c0_58, %c0_59] : memref<1x8x8x8xbf16, #tpu.memory_space<vmem>>, vector<1x1x8x8xbf16>
      %118 = vector.shape_cast %117 : vector<1x1x8x8xbf16> to vector<8x8xbf16>
      %119 = vector.shape_cast %115 : vector<8x8xbf16> to vector<1x1x8x8xbf16>
      tpu.vector_store %arg6[%c0_57, %116, %c0_58, %c0_59], %119 {strides = array<i32>} : memref<1x8x8x8xbf16, #tpu.memory_space<vmem>>, vector<1x1x8x8xbf16>,
    }
    %c8_i32_0 = arith.constant 8 : i32
    return
  }
  func.func @transform_0(%arg0: i32) -> (i32, i32, i32, i32) {
    %c0_i32 = arith.constant 0 : i32
    %c0_i32_0 = arith.constant 0 : i32
    %c0_i32_1 = arith.constant 0 : i32
    %c0_i32_2 = arith.constant 0 : i32
    return %arg0, %c0_i32, %c0_i32_0, %c0_i32_1 : i32, i32, i32, i32
  }
  func.func @transform_1(%arg0: i32) -> (i32, i32, i32) {
    %c0_i32 = arith.constant 0 : i32
    %c0_i32_0 = arith.constant 0 : i32
    %c0_i32_1 = arith.constant 0 : i32
    %c0_i32_2 = arith.constant 0 : i32
    return %c0_i32, %c0_i32_0, %c0_i32_1 : i32, i32, i32
  }
  func.func @transform_2(%arg0: i32) -> (i32, i32) {
    %c0_i32 = arith.constant 0 : i32
    %c0_i32_0 = arith.constant 0 : i32
    %c0_i32_1 = arith.constant 0 : i32
    return %c0_i32, %c0_i32_0 : i32, i32
  }
  func.func @transform_3(%arg0: i32) -> (i32, i32) {
    %c0_i32 = arith.constant 0 : i32
    %c0_i32_0 = arith.constant 0 : i32
    %c0_i32_1 = arith.constant 0 : i32
    return %c0_i32, %c0_i32_0 : i32, i32
  }
  func.func @transform_4(%arg0: i32) -> (i32, i32) {
    %c0_i32 = arith.constant 0 : i32
    %c0_i32_0 = arith.constant 0 : i32
    %c0_i32_1 = arith.constant 0 : i32
    return %c0_i32, %c0_i32_0 : i32, i32
  }
  func.func @transform_5(%arg0: i32) -> (i32, i32, i32, i32) {
    %c0_i32 = arith.constant 0 : i32
    %c0_i32_0 = arith.constant 0 : i32
    %c0_i32_1 = arith.constant 0 : i32
    %c0_i32_2 = arith.constant 0 : i32
    return %arg0, %c0_i32, %c0_i32_0, %c0_i32_1 : i32, i32, i32, i32
  }
}

module attributes {stable_mosaic.version = 11 : i64} {
  func.func @_mlp_head_kernel(%arg0: i32, %arg1: memref<2x512xbf16, #tpu.memory_space<vmem>>, %arg2: memref<512x256xbf16, #tpu.memory_space<vmem>>, %arg3: memref<1x256xf32, #tpu.memory_space<vmem>>, %arg4: memref<256x128xbf16, #tpu.memory_space<vmem>>, %arg5: memref<1x128xf32, #tpu.memory_space<vmem>>, %arg6: memref<128x64xbf16, #tpu.memory_space<vmem>>, %arg7: memref<1x64xf32, #tpu.memory_space<vmem>>, %arg8: memref<64x147xbf16, #tpu.memory_space<vmem>>, %arg9: memref<1x147xf32, #tpu.memory_space<vmem>>, %arg10: memref<2x147xf32, #tpu.memory_space<vmem>>) attributes {dimension_semantics = [#tpu.dimension_semantics<arbitrary>], iteration_bounds = array<i64: 1>, scalar_prefetch = 0 : i64, scratch_operands = 0 : i64, tpu.core_type = #tpu.core_type<tc>, window_params = [{pipeline_mode = #tpu.pipeline_mode<synchronous>, transform_indices = @transform_0, window_bounds = array<i64: 2, 512>}, {pipeline_mode = #tpu.pipeline_mode<synchronous>, transform_indices = @transform_1, window_bounds = array<i64: 512, 256>}, {pipeline_mode = #tpu.pipeline_mode<synchronous>, transform_indices = @transform_2, window_bounds = array<i64: 1, 256>}, {pipeline_mode = #tpu.pipeline_mode<synchronous>, transform_indices = @transform_3, window_bounds = array<i64: 256, 128>}, {pipeline_mode = #tpu.pipeline_mode<synchronous>, transform_indices = @transform_4, window_bounds = array<i64: 1, 128>}, {pipeline_mode = #tpu.pipeline_mode<synchronous>, transform_indices = @transform_5, window_bounds = array<i64: 128, 64>}, {pipeline_mode = #tpu.pipeline_mode<synchronous>, transform_indices = @transform_6, window_bounds = array<i64: 1, 64>}, {pipeline_mode = #tpu.pipeline_mode<synchronous>, transform_indices = @transform_7, window_bounds = array<i64: 64, 147>}, {pipeline_mode = #tpu.pipeline_mode<synchronous>, transform_indices = @transform_8, window_bounds = array<i64: 1, 147>}, {pipeline_mode = #tpu.pipeline_mode<synchronous>, transform_indices = @transform_9, window_bounds = array<i64: 2, 147>}]} {
    %c0 = arith.constant 0 : index
    %c0_0 = arith.constant 0 : index
    %0 = vector.load %arg1[%c0, %c0_0] : memref<2x512xbf16, #tpu.memory_space<vmem>>, vector<2x512xbf16>
    %c0_1 = arith.constant 0 : index
    %c0_2 = arith.constant 0 : index
    %1 = vector.load %arg2[%c0_1, %c0_2] : memref<512x256xbf16, #tpu.memory_space<vmem>>, vector<512x256xbf16>
    %c0_3 = arith.constant 0 : index
    %c0_4 = arith.constant 0 : index
    %2 = vector.load %arg3[%c0_3, %c0_4] : memref<1x256xf32, #tpu.memory_space<vmem>>, vector<1x256xf32>
    %cst = arith.constant dense<0.000000e+00> : vector<2x256xf32>
    %3 = tpu.matmul %0, %1, %cst {dimension_numbers = #tpu.dot_dimension_numbers<[1], [0], [0], [1], [0, 0, 1, 1], [], []>} : vector<2x512xbf16>, vector<512x256xbf16>, vector<2x256xf32> -> vector<2x256xf32>
    %4 = vector.broadcast %2 : vector<1x256xf32> to vector<2x256xf32>
    %5 = arith.addf %3, %4 : vector<2x256xf32>
    %cst_5 = arith.constant 0.707106769 : f32
    %6 = vector.broadcast %cst_5 : f32 to vector<2x256xf32>
    %7 = arith.mulf %5, %6 : vector<2x256xf32>
    %cst_6 = arith.constant 0.000000e+00 : f32
    %8 = vector.broadcast %cst_6 : f32 to vector<2x256xf32>
    %9 = arith.cmpf oge, %7, %8 : vector<2x256xf32>
    %cst_7 = arith.constant 1.000000e+00 : f32
    %cst_8 = arith.constant -1.000000e+00 : f32
    %10 = vector.broadcast %cst_7 : f32 to vector<2x256xf32>
    %11 = vector.broadcast %cst_8 : f32 to vector<2x256xf32>
    %12 = arith.select %9, %10, %11 : vector<2x256xi1>, vector<2x256xf32>
    %13 = math.absf %7 : vector<2x256xf32>
    %cst_9 = arith.constant 0.327591091 : f32
    %14 = vector.broadcast %cst_9 : f32 to vector<2x256xf32>
    %15 = arith.mulf %14, %13 : vector<2x256xf32>
    %cst_10 = arith.constant 1.000000e+00 : f32
    %16 = vector.broadcast %cst_10 : f32 to vector<2x256xf32>
    %17 = arith.addf %16, %15 : vector<2x256xf32>
    %18 = tpu.reciprocal %17 {approx = true} : vector<2x256xf32> -> vector<2x256xf32>
    %cst_11 = arith.constant 1.06140542 : f32
    %19 = vector.broadcast %cst_11 : f32 to vector<2x256xf32>
    %20 = arith.mulf %19, %18 : vector<2x256xf32>
    %cst_12 = arith.constant 1.45315206 : f32
    %21 = vector.broadcast %cst_12 : f32 to vector<2x256xf32>
    %22 = arith.subf %20, %21 : vector<2x256xf32>
    %23 = arith.mulf %22, %18 : vector<2x256xf32>
    %cst_13 = arith.constant 1.42141378 : f32
    %24 = vector.broadcast %cst_13 : f32 to vector<2x256xf32>
    %25 = arith.addf %23, %24 : vector<2x256xf32>
    %26 = arith.mulf %25, %18 : vector<2x256xf32>
    %cst_14 = arith.constant 0.284496725 : f32
    %27 = vector.broadcast %cst_14 : f32 to vector<2x256xf32>
    %28 = arith.subf %26, %27 : vector<2x256xf32>
    %29 = arith.mulf %28, %18 : vector<2x256xf32>
    %cst_15 = arith.constant 0.254829586 : f32
    %30 = vector.broadcast %cst_15 : f32 to vector<2x256xf32>
    %31 = arith.addf %29, %30 : vector<2x256xf32>
    %32 = arith.mulf %31, %18 : vector<2x256xf32>
    %cst_16 = arith.constant 0.000000e+00 : f32
    %33 = vector.broadcast %cst_16 : f32 to vector<2x256xf32>
    %34 = arith.subf %33, %13 : vector<2x256xf32>
    %35 = arith.mulf %34, %13 : vector<2x256xf32>
    %36 = math.exp %35 : vector<2x256xf32>
    %37 = arith.mulf %32, %36 : vector<2x256xf32>
    %cst_17 = arith.constant 1.000000e+00 : f32
    %38 = vector.broadcast %cst_17 : f32 to vector<2x256xf32>
    %39 = arith.subf %38, %37 : vector<2x256xf32>
    %40 = arith.mulf %12, %39 : vector<2x256xf32>
    %cst_18 = arith.constant 5.000000e-01 : f32
    %41 = vector.broadcast %cst_18 : f32 to vector<2x256xf32>
    %42 = arith.mulf %41, %5 : vector<2x256xf32>
    %cst_19 = arith.constant 1.000000e+00 : f32
    %43 = vector.broadcast %cst_19 : f32 to vector<2x256xf32>
    %44 = arith.addf %43, %40 : vector<2x256xf32>
    %45 = arith.mulf %42, %44 : vector<2x256xf32>
    %46 = arith.truncf %45 : vector<2x256xf32> to vector<2x256xbf16>
    %c0_20 = arith.constant 0 : index
    %c0_21 = arith.constant 0 : index
    %47 = vector.load %arg4[%c0_20, %c0_21] : memref<256x128xbf16, #tpu.memory_space<vmem>>, vector<256x128xbf16>
    %c0_22 = arith.constant 0 : index
    %c0_23 = arith.constant 0 : index
    %48 = vector.load %arg5[%c0_22, %c0_23] : memref<1x128xf32, #tpu.memory_space<vmem>>, vector<1x128xf32>
    %cst_24 = arith.constant dense<0.000000e+00> : vector<2x128xf32>
    %49 = tpu.matmul %46, %47, %cst_24 {dimension_numbers = #tpu.dot_dimension_numbers<[1], [0], [0], [1], [0, 0, 1, 1], [], []>} : vector<2x256xbf16>, vector<256x128xbf16>, vector<2x128xf32> -> vector<2x128xf32>
    %50 = vector.broadcast %48 : vector<1x128xf32> to vector<2x128xf32>
    %51 = arith.addf %49, %50 : vector<2x128xf32>
    %cst_25 = arith.constant 0.707106769 : f32
    %52 = vector.broadcast %cst_25 : f32 to vector<2x128xf32>
    %53 = arith.mulf %51, %52 : vector<2x128xf32>
    %cst_26 = arith.constant 0.000000e+00 : f32
    %54 = vector.broadcast %cst_26 : f32 to vector<2x128xf32>
    %55 = arith.cmpf oge, %53, %54 : vector<2x128xf32>
    %cst_27 = arith.constant 1.000000e+00 : f32
    %cst_28 = arith.constant -1.000000e+00 : f32
    %56 = vector.broadcast %cst_27 : f32 to vector<2x128xf32>
    %57 = vector.broadcast %cst_28 : f32 to vector<2x128xf32>
    %58 = arith.select %55, %56, %57 : vector<2x128xi1>, vector<2x128xf32>
    %59 = math.absf %53 : vector<2x128xf32>
    %cst_29 = arith.constant 0.327591091 : f32
    %60 = vector.broadcast %cst_29 : f32 to vector<2x128xf32>
    %61 = arith.mulf %60, %59 : vector<2x128xf32>
    %cst_30 = arith.constant 1.000000e+00 : f32
    %62 = vector.broadcast %cst_30 : f32 to vector<2x128xf32>
    %63 = arith.addf %62, %61 : vector<2x128xf32>
    %64 = tpu.reciprocal %63 {approx = true} : vector<2x128xf32> -> vector<2x128xf32>
    %cst_31 = arith.constant 1.06140542 : f32
    %65 = vector.broadcast %cst_31 : f32 to vector<2x128xf32>
    %66 = arith.mulf %65, %64 : vector<2x128xf32>
    %cst_32 = arith.constant 1.45315206 : f32
    %67 = vector.broadcast %cst_32 : f32 to vector<2x128xf32>
    %68 = arith.subf %66, %67 : vector<2x128xf32>
    %69 = arith.mulf %68, %64 : vector<2x128xf32>
    %cst_33 = arith.constant 1.42141378 : f32
    %70 = vector.broadcast %cst_33 : f32 to vector<2x128xf32>
    %71 = arith.addf %69, %70 : vector<2x128xf32>
    %72 = arith.mulf %71, %64 : vector<2x128xf32>
    %cst_34 = arith.constant 0.284496725 : f32
    %73 = vector.broadcast %cst_34 : f32 to vector<2x128xf32>
    %74 = arith.subf %72, %73 : vector<2x128xf32>
    %75 = arith.mulf %74, %64 : vector<2x128xf32>
    %cst_35 = arith.constant 0.254829586 : f32
    %76 = vector.broadcast %cst_35 : f32 to vector<2x128xf32>
    %77 = arith.addf %75, %76 : vector<2x128xf32>
    %78 = arith.mulf %77, %64 : vector<2x128xf32>
    %cst_36 = arith.constant 0.000000e+00 : f32
    %79 = vector.broadcast %cst_36 : f32 to vector<2x128xf32>
    %80 = arith.subf %79, %59 : vector<2x128xf32>
    %81 = arith.mulf %80, %59 : vector<2x128xf32>
    %82 = math.exp %81 : vector<2x128xf32>
    %83 = arith.mulf %78, %82 : vector<2x128xf32>
    %cst_37 = arith.constant 1.000000e+00 : f32
    %84 = vector.broadcast %cst_37 : f32 to vector<2x128xf32>
    %85 = arith.subf %84, %83 : vector<2x128xf32>
    %86 = arith.mulf %58, %85 : vector<2x128xf32>
    %cst_38 = arith.constant 5.000000e-01 : f32
    %87 = vector.broadcast %cst_38 : f32 to vector<2x128xf32>
    %88 = arith.mulf %87, %51 : vector<2x128xf32>
    %cst_39 = arith.constant 1.000000e+00 : f32
    %89 = vector.broadcast %cst_39 : f32 to vector<2x128xf32>
    %90 = arith.addf %89, %86 : vector<2x128xf32>
    %91 = arith.mulf %88, %90 : vector<2x128xf32>
    %92 = arith.truncf %91 : vector<2x128xf32> to vector<2x128xbf16>
    %c0_40 = arith.constant 0 : index
    %c0_41 = arith.constant 0 : index
    %93 = vector.load %arg6[%c0_40, %c0_41] : memref<128x64xbf16, #tpu.memory_space<vmem>>, vector<128x64xbf16>
    %c0_42 = arith.constant 0 : index
    %c0_43 = arith.constant 0 : index
    %94 = vector.load %arg7[%c0_42, %c0_43] : memref<1x64xf32, #tpu.memory_space<vmem>>, vector<1x64xf32>
    %cst_44 = arith.constant dense<0.000000e+00> : vector<2x64xf32>
    %95 = tpu.matmul %92, %93, %cst_44 {dimension_numbers = #tpu.dot_dimension_numbers<[1], [0], [0], [1], [0, 0, 1, 1], [], []>} : vector<2x128xbf16>, vector<128x64xbf16>, vector<2x64xf32> -> vector<2x64xf32>
    %96 = vector.broadcast %94 : vector<1x64xf32> to vector<2x64xf32>
    %97 = arith.addf %95, %96 : vector<2x64xf32>
    %cst_45 = arith.constant 0.707106769 : f32
    %98 = vector.broadcast %cst_45 : f32 to vector<2x64xf32>
    %99 = arith.mulf %97, %98 : vector<2x64xf32>
    %cst_46 = arith.constant 0.000000e+00 : f32
    %100 = vector.broadcast %cst_46 : f32 to vector<2x64xf32>
    %101 = arith.cmpf oge, %99, %100 : vector<2x64xf32>
    %cst_47 = arith.constant 1.000000e+00 : f32
    %cst_48 = arith.constant -1.000000e+00 : f32
    %102 = vector.broadcast %cst_47 : f32 to vector<2x64xf32>
    %103 = vector.broadcast %cst_48 : f32 to vector<2x64xf32>
    %104 = arith.select %101, %102, %103 : vector<2x64xi1>, vector<2x64xf32>
    %105 = math.absf %99 : vector<2x64xf32>
    %cst_49 = arith.constant 0.327591091 : f32
    %106 = vector.broadcast %cst_49 : f32 to vector<2x64xf32>
    %107 = arith.mulf %106, %105 : vector<2x64xf32>
    %cst_50 = arith.constant 1.000000e+00 : f32
    %108 = vector.broadcast %cst_50 : f32 to vector<2x64xf32>
    %109 = arith.addf %108, %107 : vector<2x64xf32>
    %110 = tpu.reciprocal %109 {approx = true} : vector<2x64xf32> -> vector<2x64xf32>
    %cst_51 = arith.constant 1.06140542 : f32
    %111 = vector.broadcast %cst_51 : f32 to vector<2x64xf32>
    %112 = arith.mulf %111, %110 : vector<2x64xf32>
    %cst_52 = arith.constant 1.45315206 : f32
    %113 = vector.broadcast %cst_52 : f32 to vector<2x64xf32>
    %114 = arith.subf %112, %113 : vector<2x64xf32>
    %115 = arith.mulf %114, %110 : vector<2x64xf32>
    %cst_53 = arith.constant 1.42141378 : f32
    %116 = vector.broadcast %cst_53 : f32 to vector<2x64xf32>
    %117 = arith.addf %115, %116 : vector<2x64xf32>
    %118 = arith.mulf %117, %110 : vector<2x64xf32>
    %cst_54 = arith.constant 0.284496725 : f32
    %119 = vector.broadcast %cst_54 : f32 to vector<2x64xf32>
    %120 = arith.subf %118, %119 : vector<2x64xf32>
    %121 = arith.mulf %120, %110 : vector<2x64xf32>
    %cst_55 = arith.constant 0.254829586 : f32
    %122 = vector.broadcast %cst_55 : f32 to vector<2x64xf32>
    %123 = arith.addf %121, %122 : vector<2x64xf32>
    %124 = arith.mulf %123, %110 : vector<2x64xf32>
    %cst_56 = arith.constant 0.000000e+00 : f32
    %125 = vector.broadcast %cst_56 : f32 to vector<2x64xf32>
    %126 = arith.subf %125, %105 : vector<2x64xf32>
    %127 = arith.mulf %126, %105 : vector<2x64xf32>
    %128 = math.exp %127 : vector<2x64xf32>
    %129 = arith.mulf %124, %128 : vector<2x64xf32>
    %cst_57 = arith.constant 1.000000e+00 : f32
    %130 = vector.broadcast %cst_57 : f32 to vector<2x64xf32>
    %131 = arith.subf %130, %129 : vector<2x64xf32>
    %132 = arith.mulf %104, %131 : vector<2x64xf32>
    %cst_58 = arith.constant 5.000000e-01 : f32
    %133 = vector.broadcast %cst_58 : f32 to vector<2x64xf32>
    %134 = arith.mulf %133, %97 : vector<2x64xf32>
    %cst_59 = arith.constant 1.000000e+00 : f32
    %135 = vector.broadcast %cst_59 : f32 to vector<2x64xf32>
    %136 = arith.addf %135, %132 : vector<2x64xf32>
    %137 = arith.mulf %134, %136 : vector<2x64xf32>
    %138 = arith.truncf %137 : vector<2x64xf32> to vector<2x64xbf16>
    %c0_60 = arith.constant 0 : index
    %c0_61 = arith.constant 0 : index
    %139 = vector.load %arg8[%c0_60, %c0_61] : memref<64x147xbf16, #tpu.memory_space<vmem>>, vector<64x147xbf16>
    %c0_62 = arith.constant 0 : index
    %c0_63 = arith.constant 0 : index
    %140 = vector.load %arg9[%c0_62, %c0_63] : memref<1x147xf32, #tpu.memory_space<vmem>>, vector<1x147xf32>
    %cst_64 = arith.constant dense<0.000000e+00> : vector<2x147xf32>
    %141 = tpu.matmul %138, %139, %cst_64 {dimension_numbers = #tpu.dot_dimension_numbers<[1], [0], [0], [1], [0, 0, 1, 1], [], []>} : vector<2x64xbf16>, vector<64x147xbf16>, vector<2x147xf32> -> vector<2x147xf32>
    %142 = vector.broadcast %140 : vector<1x147xf32> to vector<2x147xf32>
    %143 = arith.addf %141, %142 : vector<2x147xf32>
    %c0_65 = arith.constant 0 : index
    %c0_66 = arith.constant 0 : index
    %144 = vector.load %arg10[%c0_65, %c0_66] : memref<2x147xf32, #tpu.memory_space<vmem>>, vector<2x147xf32>
    tpu.vector_store %arg10[%c0_65, %c0_66], %143 {strides = array<i32>} : memref<2x147xf32, #tpu.memory_space<vmem>>, vector<2x147xf32>,
    return
  }
  func.func @transform_0(%arg0: i32) -> (i32, i32) {
    %c0_i32 = arith.constant 0 : i32
    %c0_i32_0 = arith.constant 0 : i32
    %c0_i32_1 = arith.constant 0 : i32
    return %c0_i32, %c0_i32_0 : i32, i32
  }
  func.func @transform_1(%arg0: i32) -> (i32, i32) {
    %c0_i32 = arith.constant 0 : i32
    %c0_i32_0 = arith.constant 0 : i32
    %c0_i32_1 = arith.constant 0 : i32
    return %c0_i32, %c0_i32_0 : i32, i32
  }
  func.func @transform_2(%arg0: i32) -> (i32, i32) {
    %c0_i32 = arith.constant 0 : i32
    %c0_i32_0 = arith.constant 0 : i32
    %c0_i32_1 = arith.constant 0 : i32
    return %c0_i32, %c0_i32_0 : i32, i32
  }
  func.func @transform_3(%arg0: i32) -> (i32, i32) {
    %c0_i32 = arith.constant 0 : i32
    %c0_i32_0 = arith.constant 0 : i32
    %c0_i32_1 = arith.constant 0 : i32
    return %c0_i32, %c0_i32_0 : i32, i32
  }
  func.func @transform_4(%arg0: i32) -> (i32, i32) {
    %c0_i32 = arith.constant 0 : i32
    %c0_i32_0 = arith.constant 0 : i32
    %c0_i32_1 = arith.constant 0 : i32
    return %c0_i32, %c0_i32_0 : i32, i32
  }
  func.func @transform_5(%arg0: i32) -> (i32, i32) {
    %c0_i32 = arith.constant 0 : i32
    %c0_i32_0 = arith.constant 0 : i32
    %c0_i32_1 = arith.constant 0 : i32
    return %c0_i32, %c0_i32_0 : i32, i32
  }
  func.func @transform_6(%arg0: i32) -> (i32, i32) {
    %c0_i32 = arith.constant 0 : i32
    %c0_i32_0 = arith.constant 0 : i32
    %c0_i32_1 = arith.constant 0 : i32
    return %c0_i32, %c0_i32_0 : i32, i32
  }
  func.func @transform_7(%arg0: i32) -> (i32, i32) {
    %c0_i32 = arith.constant 0 : i32
    %c0_i32_0 = arith.constant 0 : i32
    %c0_i32_1 = arith.constant 0 : i32
    return %c0_i32, %c0_i32_0 : i32, i32
  }
  func.func @transform_8(%arg0: i32) -> (i32, i32) {
    %c0_i32 = arith.constant 0 : i32
    %c0_i32_0 = arith.constant 0 : i32
    %c0_i32_1 = arith.constant 0 : i32
    return %c0_i32, %c0_i32_0 : i32, i32
  }
  func.func @transform_9(%arg0: i32) -> (i32, i32) {
    %c0_i32 = arith.constant 0 : i32
    %c0_i32_0 = arith.constant 0 : i32
    %c0_i32_1 = arith.constant 0 : i32
    return %c0_i32, %c0_i32_0 : i32, i32
  }
}

</mosaic_0001>

<llo_original>
// kernel: simple_cnn_forward.5
$region0: #{simple_cnn_forward.5}
  #allocation0 [shape = 'u32[]', space=smem, size = 0x4, offset = 0x4, fixed_abs, tag = 'smem constant byte address 0x4 - core index']
  #allocation1 [shape = 'u32[144,128]{1,0:T(1,128)}', space=vmem, size = 0x12000, scoped, tag = 'internal scratch']
  %s0 = inlined_call_operand.vmem [shape: bf16[2,65,65,64], index: 0, kind: input, shape index: {}]
  %s1 = inlined_call_operand.vmem [shape: bf16[4,64,64], index: 1, kind: input, shape index: {}]
  %s2 = inlined_call_operand.vmem [shape: f32[1,64], index: 2, kind: input, shape index: {}]
  %s3 = inlined_call_operand.vmem [shape: bf16[64,64], index: 3, kind: input, shape index: {}]
  %s4 = inlined_call_operand.vmem [shape: f32[1,64], index: 4, kind: input, shape index: {}]
  %s5 = inlined_call_operand.vmem [shape: bf16[2,64,64,64], index: 5, kind: output, shape index: {}]
  %s6 = sld [smem:[#allocation0]]
  $region60: #{simple_cnn_forward.5} parent=0
    _
  %s8 = ssub.s32 1, %s6
  %s9 = scalar_select 0, %s8, %s6
  loop: start=0, step=1, limit=4
  $region2: #{simple_cnn_forward.5} parent=0 // loop_pre_header
    _
  $region3: #{simple_cnn_forward.5} parent=0 // loop_header
    %s11 = sphi 0, %s15
    %p12 = scmp.ge.s32.totalorder %s11, 4
    %s21 = sphi 0, %s23
    %s24 = sphi 0, %s21
    %s25 = sphi 0, %s24
    %s41 = sphi 0, %s25
    %s45 = sphi 0, %s45
    %s47 = sphi 0, %s45
    %s48 = sphi 0, %s47
    %s62 = sphi 0, %s48
    %s66 = sphi 0, %s66
    %s68 = sphi 0, %s66
    %s69 = sphi 0, %s68
    %s83 = sphi 0, %s69
    %s87 = sphi 0, %s87
    %s89 = sphi 0, %s87
    %s90 = sphi 0, %s89
    %s104 = sphi 0, %s90
    %s108 = sphi 0, %s108
    %s110 = sphi 0, %s108
    %s111 = sphi 0, %s110
    %s125 = sphi 0, %s111
    %s131 = sphi 0, %s133
    %s134 = sphi 0, %s131
    %s135 = sphi 0, %s134
    %s151 = sphi 0, %s135
  $region4: #{simple_cnn_forward.5} parent=0 // loop_header_branch
    %14 = sbr.rel (%p12) target = $region8
  $region5: #{simple_cnn_forward.5} parent=0 // loop_body
    %s16 = ssub.s32 %s11, 1
    %s17 = ssub.s32 %s11, 2
    %s18 = sadd.s32 %s11, 1
    %s19 = ssub.s32 %s11, %s18
    %p20 = scmp.eq.s32.totalorder %s19, 0
    %s22 = sadd.s32 %s21, 1
    %s23 = scalar_select %p20, %s21, %s22
    %p26 = pneg %p20
    %p27 = scmp.eq.s32.totalorder %s11, 1
    %p28 = por %p26, %p27
    %p29 = scmp.ne.s32.totalorder %s21, %s24
    %p30 = scmp.eq.s32.totalorder %s11, 0
    %p31 = por %p29, %p30
    %p32 = scmp.ne.s32.totalorder %s21, %s24
    %p33 = scmp.eq.s32.totalorder %s16, 1
    %p34 = por %p32, %p33
    %p35 = scmp.ne.s32.totalorder %s24, %s25
    %p36 = scmp.eq.s32.totalorder %s16, 0
    %p37 = por %p35, %p36
    %p38 = scmp.ne.s32.totalorder %s24, %s25
    %p39 = scmp.eq.s32.totalorder %s17, 1
    %p40 = por %p38, %p39
    %p42 = scmp.ne.s32.totalorder %s25, %s41
    %p43 = scmp.eq.s32.totalorder %s17, 0
    %p44 = por %p42, %p43
    %s46 = sadd.s32 %s45, 1
    %p49 = scmp.eq.s32.totalorder %s11, 1
    %p50 = scmp.ne.s32.totalorder %s45, %s47
    %p51 = scmp.eq.s32.totalorder %s11, 0
    %p52 = por %p50, %p51
    %p53 = scmp.ne.s32.totalorder %s45, %s47
    %p54 = scmp.eq.s32.totalorder %s16, 1
    %p55 = por %p53, %p54
    %p56 = scmp.ne.s32.totalorder %s47, %s48
    %p57 = scmp.eq.s32.totalorder %s16, 0
    %p58 = por %p56, %p57
    %p59 = scmp.ne.s32.totalorder %s47, %s48
    %p60 = scmp.eq.s32.totalorder %s17, 1
    %p61 = por %p59, %p60
    %p63 = scmp.ne.s32.totalorder %s48, %s62
    %p64 = scmp.eq.s32.totalorder %s17, 0
    %p65 = por %p63, %p64
    %s67 = sadd.s32 %s66, 1
    %p70 = scmp.eq.s32.totalorder %s11, 1
    %p71 = scmp.ne.s32.totalorder %s66, %s68
    %p72 = scmp.eq.s32.totalorder %s11, 0
    %p73 = por %p71, %p72
    %p74 = scmp.ne.s32.totalorder %s66, %s68
    %p75 = scmp.eq.s32.totalorder %s16, 1
    %p76 = por %p74, %p75
    %p77 = scmp.ne.s32.totalorder %s68, %s69
    %p78 = scmp.eq.s32.totalorder %s16, 0
    %p79 = por %p77, %p78
    %p80 = scmp.ne.s32.totalorder %s68, %s69
    %p81 = scmp.eq.s32.totalorder %s17, 1
    %p82 = por %p80, %p81
    %p84 = scmp.ne.s32.totalorder %s69, %s83
    %p85 = scmp.eq.s32.totalorder %s17, 0
    %p86 = por %p84, %p85
    %s88 = sadd.s32 %s87, 1
    %p91 = scmp.eq.s32.totalorder %s11, 1
    %p92 = scmp.ne.s32.totalorder %s87, %s89
    %p93 = scmp.eq.s32.totalorder %s11, 0
    %p94 = por %p92, %p93
    %p95 = scmp.ne.s32.totalorder %s87, %s89
    %p96 = scmp.eq.s32.totalorder %s16, 1
    %p97 = por %p95, %p96
    %p98 = scmp.ne.s32.totalorder %s89, %s90
    %p99 = scmp.eq.s32.totalorder %s16, 0
    %p100 = por %p98, %p99
    %p101 = scmp.ne.s32.totalorder %s89, %s90
    %p102 = scmp.eq.s32.totalorder %s17, 1
    %p103 = por %p101, %p102
    %p105 = scmp.ne.s32.totalorder %s90, %s104
    %p106 = scmp.eq.s32.totalorder %s17, 0
    %p107 = por %p105, %p106
    %s109 = sadd.s32 %s108, 1
    %p112 = scmp.eq.s32.totalorder %s11, 1
    %p113 = scmp.ne.s32.totalorder %s108, %s110
    %p114 = scmp.eq.s32.totalorder %s11, 0
    %p115 = por %p113, %p114
    %p116 = scmp.ne.s32.totalorder %s108, %s110
    %p117 = scmp.eq.s32.totalorder %s16, 1
    %p118 = por %p116, %p117
    %p119 = scmp.ne.s32.totalorder %s110, %s111
    %p120 = scmp.eq.s32.totalorder %s16, 0
    %p121 = por %p119, %p120
    %p122 = scmp.ne.s32.totalorder %s110, %s111
    %p123 = scmp.eq.s32.totalorder %s17, 1
    %p124 = por %p122, %p123
    %p126 = scmp.ne.s32.totalorder %s111, %s125
    %p127 = scmp.eq.s32.totalorder %s17, 0
    %p128 = por %p126, %p127
    %s129 = ssub.s32 %s11, %s18
    %p130 = scmp.eq.s32.totalorder %s129, 0
    %s132 = sadd.s32 %s131, 1
    %s133 = scalar_select %p130, %s131, %s132
    %p136 = pneg %p130
    %p137 = scmp.eq.s32.totalorder %s11, 1
    %p138 = por %p136, %p137
    %p139 = scmp.ne.s32.totalorder %s131, %s134
    %p140 = scmp.eq.s32.totalorder %s11, 0
    %p141 = por %p139, %p140
    %p142 = scmp.ne.s32.totalorder %s131, %s134
    %p143 = scmp.eq.s32.totalorder %s16, 1
    %p144 = por %p142, %p143
    %p145 = scmp.ne.s32.totalorder %s134, %s135
    %p146 = scmp.eq.s32.totalorder %s16, 0
    %p147 = por %p145, %p146
    %p148 = scmp.ne.s32.totalorder %s134, %s135
    %p149 = scmp.eq.s32.totalorder %s17, 1
    %p150 = por %p148, %p149
    %p152 = scmp.ne.s32.totalorder %s135, %s151
    %p153 = scmp.eq.s32.totalorder %s17, 0
    %p154 = por %p152, %p153
    %p155 = scmp.le.s32.totalorder 1, %s11
    %p156 = scmp.lt.s32.totalorder %s11, 3
    %p157 = pnand %p155, %p156
    %p158 = pneg %p157
    // Predicated region
    $region9: #{simple_cnn_forward.5} parent=5 // pred_check
      _
    $region10: #{simple_cnn_forward.5} parent=5 // pred_check_branch
      %160 = sbr.rel (%p157) target = $region12
    $region11: #{simple_cnn_forward.5} parent=5 // pred_region
      %s161 = ssub.s32 %s11, 1
      // Predicated region
      $region13: #{simple_cnn_forward.5} parent=11 // pred_check
        %p162 = pneg %p58
      $region14: #{simple_cnn_forward.5} parent=11 // pred_check_branch
        %164 = sbr.rel (%p162) target = $region16
      $region15: #{simple_cnn_forward.5} parent=11 // pred_region
        _
      $region16: #{simple_cnn_forward.5} parent=11 // pred_fallthru
        _
      // Predicated region
      $region17: #{simple_cnn_forward.5} parent=11 // pred_check
        %p165 = pneg %p79
      $region18: #{simple_cnn_forward.5} parent=11 // pred_check_branch
        %167 = sbr.rel (%p165) target = $region20
      $region19: #{simple_cnn_forward.5} parent=11 // pred_region
        _
      $region20: #{simple_cnn_forward.5} parent=11 // pred_fallthru
        _
      // Predicated region
      $region21: #{simple_cnn_forward.5} parent=11 // pred_check
        %p168 = pneg %p100
      $region22: #{simple_cnn_forward.5} parent=11 // pred_check_branch
        %170 = sbr.rel (%p168) target = $region24
      $region23: #{simple_cnn_forward.5} parent=11 // pred_region
        _
      $region24: #{simple_cnn_forward.5} parent=11 // pred_fallthru
        _
      // Predicated region
      $region25: #{simple_cnn_forward.5} parent=11 // pred_check
        %p171 = pneg %p121
      $region26: #{simple_cnn_forward.5} parent=11 // pred_check_branch
        %173 = sbr.rel (%p171) target = $region28
      $region27: #{simple_cnn_forward.5} parent=11 // pred_region
        _
      $region28: #{simple_cnn_forward.5} parent=11 // pred_fallthru
        _
    $region12: #{simple_cnn_forward.5} parent=5 // pred_fallthru
      _
    %p174 = scmp.lt.s32.totalorder %s11, 2
    // Predicated region
    $region29: #{simple_cnn_forward.5} parent=5 // pred_check
      %p175 = pneg %p174
    $region30: #{simple_cnn_forward.5} parent=5 // pred_check_branch
      %177 = sbr.rel (%p175) target = $region32
    $region31: #{simple_cnn_forward.5} parent=5 // pred_region
      // Predicated region
      $region33: #{simple_cnn_forward.5} parent=31 // pred_check
        %p178 = pneg %p31
      $region34: #{simple_cnn_forward.5} parent=31 // pred_check_branch
        %180 = sbr.rel (%p178) target = $region36
      $region35: #{simple_cnn_forward.5} parent=31 // pred_region
        %p181 = scmp.lt.s32.totalorder %s11, 1
        %s182 = scalar_select %p181, %s11, 1
        %s183 = smul.addr %s182, 585
        %s184 = smul.addr %s183, 4
        %s185 = scalar_lea.vmem %s0, %s184
      $region36: #{simple_cnn_forward.5} parent=31 // pred_fallthru
        _
    $region32: #{simple_cnn_forward.5} parent=5 // pred_fallthru
      _
    %p186 = scmp.le.s32.totalorder 1, %s11
    %p187 = scmp.lt.s32.totalorder %s11, 3
    %p188 = pnand %p186, %p187
    %p189 = pneg %p188
    // Predicated region
    $region37: #{simple_cnn_forward.5} parent=5 // pred_check
      _
    $region38: #{simple_cnn_forward.5} parent=5 // pred_check_branch
      %191 = sbr.rel (%p188) target = $region40
    $region39: #{simple_cnn_forward.5} parent=5 // pred_region
      %s192 = ssub.s32 %s11, 1
      %p193 = scmp.lt.s32.totalorder %s16, 1
      %s194 = scalar_select %p193, %s16, 1
      %s195 = smul.addr %s194, 585
      %s196 = smul.addr %s195, 4
      %s197 = scalar_lea.vmem %s0, %s196
      %p198 = pneg %p37
      %p199 = pneg %p34
      %p200 = pneg %p58
      %p201 = pneg %p55
      %p202 = pneg %p79
      %p203 = pneg %p76
      %p204 = pneg %p100
      %p205 = pneg %p97
      %p206 = pneg %p121
      %p207 = pneg %p118
      %p208 = pneg %p147
      %p209 = pneg %p144
      %p210 = scmp.lt.s32.totalorder %s16, 1
      %s211 = scalar_select %p210, %s16, 1
      %s212 = smul.addr %s211, 512
      %s213 = smul.addr %s212, 4
      %s214 = scalar_lea.vmem %s5, %s213
      %p215 = scmp.lt.s32.totalorder %s16, 1
      %s216 = scalar_select %p215, %s16, 1
      %s217 = smul.addr %s216, 585
      %s218 = smul.addr %s217, 4
      %s219 = scalar_lea.vmem %s0, %s218
      %p220 = scmp.lt.s32.totalorder %s16, 1
      %s221 = scalar_select %p220, %s16, 1
      %s222 = smul.addr %s221, 512
      %s223 = smul.addr %s222, 4
      %s224 = scalar_lea.vmem %s5, %s223
      loop: start=0, step=1, limit=64
      $region41: #{simple_cnn_forward.5} parent=39 // loop_pre_header
        _
      $region42: #{simple_cnn_forward.5} parent=39 // loop_header
        %s227 = sphi 0, %s231
        %p228 = scmp.ge.s32.totalorder %s227, 64
      $region43: #{simple_cnn_forward.5} parent=39 // loop_header_branch
        %230 = sbr.rel (%p228) target = $region47
      $region44: #{simple_cnn_forward.5} parent=39 // loop_body
        %s232 = smul.u32 %s227, 9
        %s233 = smul.addr %s232, 4
        %s234 = scalar_lea.vmem %s219, %s233
        %v235 = vld [vmem:[%s234] sm:$0xf]
        %v236 = vld [vmem:[%s234 + $0x4] sm:$0xf]
        %v237 = vld [vmem:[%s234 + $0x8] sm:$0xf]
        %v238 = vld [vmem:[%s234 + $0xc] sm:$0xf]
        %v239 = vld [vmem:[%s234 + $0x10] sm:$0xf]
        %v240 = vld [vmem:[%s234 + $0x14] sm:$0xf]
        %v241 = vld [vmem:[%s234 + $0x18] sm:$0xf]
        %v242 = vld [vmem:[%s234 + $0x1c] sm:$0xf]
        %v243 = vld [vmem:[%s234 + $0x20] sm:$0x1]
        %s244 = sadd.s32 %s227, 1
        %s245 = smul.u32 %s244, 9
        %s246 = smul.addr %s245, 4
        %s247 = scalar_lea.vmem %s219, %s246
        %v248 = vld [vmem:[%s247] sm:$0xf]
        %v249 = vld [vmem:[%s247 + $0x4] sm:$0xf]
        %v250 = vld [vmem:[%s247 + $0x8] sm:$0xf]
        %v251 = vld [vmem:[%s247 + $0xc] sm:$0xf]
        %v252 = vld [vmem:[%s247 + $0x10] sm:$0xf]
        %v253 = vld [vmem:[%s247 + $0x14] sm:$0xf]
        %v254 = vld [vmem:[%s247 + $0x18] sm:$0xf]
        %v255 = vld [vmem:[%s247 + $0x1c] sm:$0xf]
        %v256 = vld [vmem:[%s247 + $0x20] sm:$0x1]
        %v257 = vld [vmem:[%s1] sm:$0xf]
        %v258 = vld [vmem:[%s1 + $0x4] sm:$0xf]
        %v259 = vld [vmem:[%s1 + $0x8] sm:$0xf]
        %v260 = vld [vmem:[%s1 + $0xc] sm:$0xf]
        %v261 = vld [vmem:[%s1 + $0x10] sm:$0xf]
        %v262 = vld [vmem:[%s1 + $0x14] sm:$0xf]
        %v263 = vld [vmem:[%s1 + $0x18] sm:$0xf]
        %v264 = vld [vmem:[%s1 + $0x1c] sm:$0xf]
        %s265 = scalar_lea.vmem %s1, 64
        %v266 = vld [vmem:[%s265] sm:$0xf]
        %v267 = vld [vmem:[%s265 + $0x4] sm:$0xf]
        %v268 = vld [vmem:[%s265 + $0x8] sm:$0xf]
        %v269 = vld [vmem:[%s265 + $0xc] sm:$0xf]
        %v270 = vld [vmem:[%s265 + $0x10] sm:$0xf]
        %v271 = vld [vmem:[%s265 + $0x14] sm:$0xf]
        %v272 = vld [vmem:[%s265 + $0x18] sm:$0xf]
        %v273 = vld [vmem:[%s265 + $0x1c] sm:$0xf]
        %v283 = vunpack.c.l.b16 %v248
        %v284 = vunpack.c.l.b16 %v249
        %v285 = vunpack.c.l.b16 %v250
        %v286 = vunpack.c.l.b16 %v251
        %v287 = vunpack.c.l.b16 %v252
        %v288 = vunpack.c.l.b16 %v253
        %v289 = vunpack.c.l.b16 %v254
        %v290 = vunpack.c.l.b16 %v255
        %v291 = vunpack.c.l.b16 %v256
        %v292 = vpack.c.b16 %v284, %v283
        %v293 = vpack.c.b16 %v286, %v285
        %v294 = vpack.c.b16 %v288, %v287
        %v295 = vpack.c.b16 %v290, %v289
        %v296 = vpack.c.b16 %v291, %v291
        %v305 = vunpack.c.l.b16 %v266
        %v306 = vunpack.c.l.b16 %v267
        %v307 = vunpack.c.l.b16 %v268
        %v308 = vunpack.c.l.b16 %v269
        %v309 = vunpack.c.l.b16 %v270
        %v310 = vunpack.c.l.b16 %v271
        %v311 = vunpack.c.l.b16 %v272
        %v312 = vunpack.c.l.b16 %v273
        %v313 = vpack.c.b16 %v306, %v305
        %v314 = vpack.c.b16 %v308, %v307
        %v315 = vpack.c.b16 %v310, %v309
        %v316 = vpack.c.b16 %v312, %v311
        %vm321 = vcmask 523264
        %v323 = vsel %vm321, %v292, 0
        %v326 = vsel %vm321, %v293, 0
        %v329 = vsel %vm321, %v294, 0
        %v332 = vsel %vm321, %v295, 0
        %v335 = vsel %vm321, %v296, 0
        %337 = vmatprep.subr.bf16.mxu0 0
        %338 = vmatpush1.bf16.msra.mxu0 0
        %339 = vmatprep.subr.bf16.mxu0 0
        %340 = vmatpush1.bf16.msra.mxu0 0
        %341 = vmatprep.subr.bf16.mxu0 0
        %342 = vmatpush1.bf16.msra.mxu0 0
        %343 = vmatprep.subr.bf16.mxu0 0
        %344 = vmatpush1.bf16.msra.mxu0 0
        %345 = vmatprep.subr.bf16.mxu0 0
        %346 = vmatpush1.bf16.msra.mxu0 %v316
        %347 = vmatprep.subr.bf16.mxu0 0
        %348 = vmatpush1.bf16.msra.mxu0 %v315
        %349 = vmatprep.subr.bf16.mxu0 0
        %350 = vmatpush1.bf16.msra.mxu0 %v314
        %351 = vmatprep.subr.bf16.mxu0 0
        %352 = vmatpush1.bf16.msra.mxu0 %v313
        %353 = vmatprep.subr.bf16.mxu0 0
        %354 = vmatpush2.bf16.msra.mxu0 0
        %355 = vmatprep.subr.bf16.mxu0 0
        %356 = vmatpush2.bf16.msra.mxu0 0
        %357 = vmatprep.subr.bf16.mxu0 0
        %358 = vmatpush2.bf16.msra.mxu0 0
        %359 = vmatprep.subr.bf16.mxu0 0
        %360 = vmatpush2.bf16.msra.mxu0 0
        %361 = vmatprep.subr.bf16.mxu0 0
        %362 = vmatpush2.bf16.msra.mxu0 0
        %363 = vmatprep.subr.bf16.mxu0 0
        %364 = vmatpush2.bf16.msra.mxu0 0
        %365 = vmatprep.subr.bf16.mxu0 0
        %366 = vmatpush2.bf16.msra.mxu0 0
        %367 = vmatprep.subr.bf16.mxu0 0
        %368 = vmatpush2.bf16.msra.mxu0 0
        %369 = vmatprep.mubr.bf16.mxu0 0
        %370 = vmatmul.mubr.bf16.gmra.mxu0 %v323
        %v371 = vpop.f32.mrf.mxu0
        %v372 = vadd.f32 0.0, %v371
        %v373 = vpop.f32.mrf.mxu0
        %v374 = vpop.f32.mrf.mxu0
        %v375 = vadd.f32 0.0, %v374
        %v376 = vpop.f32.mrf.mxu0
        %377 = vmatprep.mubr.bf16.mxu0 0
        %378 = vmatmul.mubr.bf16.gmra.mxu0 %v326
        %v379 = vpop.f32.mrf.mxu0
        %v380 = vadd.f32 0.0, %v379
        %v381 = vpop.f32.mrf.mxu0
        %v382 = vpop.f32.mrf.mxu0
        %v383 = vadd.f32 0.0, %v382
        %v384 = vpop.f32.mrf.mxu0
        %385 = vmatprep.mubr.bf16.mxu0 0
        %386 = vmatmul.mubr.bf16.gmra.mxu0 %v329
        %v387 = vpop.f32.mrf.mxu0
        %v388 = vadd.f32 0.0, %v387
        %v389 = vpop.f32.mrf.mxu0
        %v390 = vpop.f32.mrf.mxu0
        %v391 = vadd.f32 0.0, %v390
        %v392 = vpop.f32.mrf.mxu0
        %393 = vmatprep.mubr.bf16.mxu0 0
        %394 = vmatmul.mubr.bf16.gmra.mxu0 %v332
        %v395 = vpop.f32.mrf.mxu0
        %v396 = vadd.f32 0.0, %v395
        %v397 = vpop.f32.mrf.mxu0
        %v398 = vpop.f32.mrf.mxu0
        %v399 = vadd.f32 0.0, %v398
        %v400 = vpop.f32.mrf.mxu0
        %401 = vmatprep.mubr.bf16.mxu0 0
        %402 = vmatmul.mubr.bf16.gmra.mxu0 %v335
        %v403 = vpop.f32.mrf.mxu0
        %v404 = vpop.f32.mrf.mxu0
        %v405 = vpop.f32.mrf.mxu0
        %v406 = vpop.f32.mrf.mxu0
        %407 = vdwg.mxu0
        %v417 = vunpack.c.l.b16 %v235
        %v418 = vunpack.c.l.b16 %v236
        %v419 = vunpack.c.l.b16 %v237
        %v420 = vunpack.c.l.b16 %v238
        %v421 = vunpack.c.l.b16 %v239
        %v422 = vunpack.c.l.b16 %v240
        %v423 = vunpack.c.l.b16 %v241
        %v424 = vunpack.c.l.b16 %v242
        %v425 = vunpack.c.l.b16 %v243
        %v426 = vpack.c.b16 %v418, %v417
        %v427 = vpack.c.b16 %v420, %v419
        %v428 = vpack.c.b16 %v422, %v421
        %v429 = vpack.c.b16 %v424, %v423
        %v430 = vpack.c.b16 %v425, %v425
        %v439 = vunpack.c.l.b16 %v257
        %v440 = vunpack.c.l.b16 %v258
        %v441 = vunpack.c.l.b16 %v259
        %v442 = vunpack.c.l.b16 %v260
        %v443 = vunpack.c.l.b16 %v261
        %v444 = vunpack.c.l.b16 %v262
        %v445 = vunpack.c.l.b16 %v263
        %v446 = vunpack.c.l.b16 %v264
        %v447 = vpack.c.b16 %v440, %v439
        %v448 = vpack.c.b16 %v442, %v441
        %v449 = vpack.c.b16 %v444, %v443
        %v450 = vpack.c.b16 %v446, %v445
        %v456 = vsel %vm321, %v426, 0
        %v459 = vsel %vm321, %v427, 0
        %v462 = vsel %vm321, %v428, 0
        %v465 = vsel %vm321, %v429, 0
        %v468 = vsel %vm321, %v430, 0
        %470 = vmatprep.subr.bf16.mxu0 0
        %471 = vmatpush1.bf16.msra.mxu0 0
        %472 = vmatprep.subr.bf16.mxu0 0
        %473 = vmatpush1.bf16.msra.mxu0 0
        %474 = vmatprep.subr.bf16.mxu0 0
        %475 = vmatpush1.bf16.msra.mxu0 0
        %476 = vmatprep.subr.bf16.mxu0 0
        %477 = vmatpush1.bf16.msra.mxu0 0
        %478 = vmatprep.subr.bf16.mxu0 0
        %479 = vmatpush1.bf16.msra.mxu0 %v450
        %480 = vmatprep.subr.bf16.mxu0 0
        %481 = vmatpush1.bf16.msra.mxu0 %v449
        %482 = vmatprep.subr.bf16.mxu0 0
        %483 = vmatpush1.bf16.msra.mxu0 %v448
        %484 = vmatprep.subr.bf16.mxu0 0
        %485 = vmatpush1.bf16.msra.mxu0 %v447
        %486 = vmatprep.subr.bf16.mxu0 0
        %487 = vmatpush2.bf16.msra.mxu0 0
        %488 = vmatprep.subr.bf16.mxu0 0
        %489 = vmatpush2.bf16.msra.mxu0 0
        %490 = vmatprep.subr.bf16.mxu0 0
        %491 = vmatpush2.bf16.msra.mxu0 0
        %492 = vmatprep.subr.bf16.mxu0 0
        %493 = vmatpush2.bf16.msra.mxu0 0
        %494 = vmatprep.subr.bf16.mxu0 0
        %495 = vmatpush2.bf16.msra.mxu0 0
        %496 = vmatprep.subr.bf16.mxu0 0
        %497 = vmatpush2.bf16.msra.mxu0 0
        %498 = vmatprep.subr.bf16.mxu0 0
        %499 = vmatpush2.bf16.msra.mxu0 0
        %500 = vmatprep.subr.bf16.mxu0 0
        %501 = vmatpush2.bf16.msra.mxu0 0
        %502 = vmatprep.mubr.bf16.mxu0 0
        %503 = vmatmul.mubr.bf16.gmra.mxu0 %v456
        %v504 = vpop.f32.mrf.mxu0
        %v505 = vadd.f32 %v372, %v504
        %v506 = vpop.f32.mrf.mxu0
        %v507 = vpop.f32.mrf.mxu0
        %v508 = vadd.f32 %v375, %v507
        %v509 = vpop.f32.mrf.mxu0
        %510 = vmatprep.mubr.bf16.mxu0 0
        %511 = vmatmul.mubr.bf16.gmra.mxu0 %v459
        %v512 = vpop.f32.mrf.mxu0
        %v513 = vadd.f32 %v380, %v512
        %v514 = vpop.f32.mrf.mxu0
        %v515 = vpop.f32.mrf.mxu0
        %v516 = vadd.f32 %v383, %v515
        %v517 = vpop.f32.mrf.mxu0
        %518 = vmatprep.mubr.bf16.mxu0 0
        %519 = vmatmul.mubr.bf16.gmra.mxu0 %v462
        %v520 = vpop.f32.mrf.mxu0
        %v521 = vadd.f32 %v388, %v520
        %v522 = vpop.f32.mrf.mxu0
        %v523 = vpop.f32.mrf.mxu0
        %v524 = vadd.f32 %v391, %v523
        %v525 = vpop.f32.mrf.mxu0
        %526 = vmatprep.mubr.bf16.mxu0 0
        %527 = vmatmul.mubr.bf16.gmra.mxu0 %v465
        %v528 = vpop.f32.mrf.mxu0
        %v529 = vadd.f32 %v396, %v528
        %v530 = vpop.f32.mrf.mxu0
        %v531 = vpop.f32.mrf.mxu0
        %v532 = vadd.f32 %v399, %v531
        %v533 = vpop.f32.mrf.mxu0
        %534 = vmatprep.mubr.bf16.mxu0 0
        %535 = vmatmul.mubr.bf16.gmra.mxu0 %v468
        %v536 = vpop.f32.mrf.mxu0
        %v537 = vpop.f32.mrf.mxu0
        %v538 = vpop.f32.mrf.mxu0
        %v539 = vpop.f32.mrf.mxu0
        %540 = vdwg.mxu0
        %s541 = scalar_lea.vmem %s1, 32
        %v542 = vld [vmem:[%s541] sm:$0xf]
        %v543 = vld [vmem:[%s541 + $0x4] sm:$0xf]
        %v544 = vld [vmem:[%s541 + $0x8] sm:$0xf]
        %v545 = vld [vmem:[%s541 + $0xc] sm:$0xf]
        %v546 = vld [vmem:[%s541 + $0x10] sm:$0xf]
        %v547 = vld [vmem:[%s541 + $0x14] sm:$0xf]
        %v548 = vld [vmem:[%s541 + $0x18] sm:$0xf]
        %v549 = vld [vmem:[%s541 + $0x1c] sm:$0xf]
        %s550 = scalar_lea.vmem %s1, 96
        %v551 = vld [vmem:[%s550] sm:$0xf]
        %v552 = vld [vmem:[%s550 + $0x4] sm:$0xf]
        %v553 = vld [vmem:[%s550 + $0x8] sm:$0xf]
        %v554 = vld [vmem:[%s550 + $0xc] sm:$0xf]
        %v555 = vld [vmem:[%s550 + $0x10] sm:$0xf]
        %v556 = vld [vmem:[%s550 + $0x14] sm:$0xf]
        %v557 = vld [vmem:[%s550 + $0x18] sm:$0xf]
        %v558 = vld [vmem:[%s550 + $0x1c] sm:$0xf]
        %v567 = vunpack.c.l.b16 %v551
        %v568 = vunpack.c.l.b16 %v552
        %v569 = vunpack.c.l.b16 %v553
        %v570 = vunpack.c.l.b16 %v554
        %v571 = vunpack.c.l.b16 %v555
        %v572 = vunpack.c.l.b16 %v556
        %v573 = vunpack.c.l.b16 %v557
        %v574 = vunpack.c.l.b16 %v558
        %v575 = vpack.c.b16 %v568, %v567
        %v576 = vpack.c.b16 %v570, %v569
        %v577 = vpack.c.b16 %v572, %v571
        %v578 = vpack.c.b16 %v574, %v573
        %583 = vmatprep.subr.bf16.mxu0 0
        %584 = vmatpush1.bf16.msra.mxu0 0
        %585 = vmatprep.subr.bf16.mxu0 0
        %586 = vmatpush1.bf16.msra.mxu0 0
        %587 = vmatprep.subr.bf16.mxu0 0
        %588 = vmatpush1.bf16.msra.mxu0 0
        %589 = vmatprep.subr.bf16.mxu0 0
        %590 = vmatpush1.bf16.msra.mxu0 0
        %591 = vmatprep.subr.bf16.mxu0 0
        %592 = vmatpush1.bf16.msra.mxu0 %v578
        %593 = vmatprep.subr.bf16.mxu0 0
        %594 = vmatpush1.bf16.msra.mxu0 %v577
        %595 = vmatprep.subr.bf16.mxu0 0
        %596 = vmatpush1.bf16.msra.mxu0 %v576
        %597 = vmatprep.subr.bf16.mxu0 0
        %598 = vmatpush1.bf16.msra.mxu0 %v575
        %599 = vmatprep.subr.bf16.mxu0 0
        %600 = vmatpush2.bf16.msra.mxu0 0
        %601 = vmatprep.subr.bf16.mxu0 0
        %602 = vmatpush2.bf16.msra.mxu0 0
        %603 = vmatprep.subr.bf16.mxu0 0
        %604 = vmatpush2.bf16.msra.mxu0 0
        %605 = vmatprep.subr.bf16.mxu0 0
        %606 = vmatpush2.bf16.msra.mxu0 0
        %607 = vmatprep.subr.bf16.mxu0 0
        %608 = vmatpush2.bf16.msra.mxu0 0
        %609 = vmatprep.subr.bf16.mxu0 0
        %610 = vmatpush2.bf16.msra.mxu0 0
        %611 = vmatprep.subr.bf16.mxu0 0
        %612 = vmatpush2.bf16.msra.mxu0 0
        %613 = vmatprep.subr.bf16.mxu0 0
        %614 = vmatpush2.bf16.msra.mxu0 0
        %615 = vmatprep.mubr.bf16.mxu0 0
        %616 = vmatmul.mubr.bf16.gmra.mxu0 %v323
        %v617 = vpop.f32.mrf.mxu0
        %v618 = vadd.f32 0.0, %v617
        %v619 = vpop.f32.mrf.mxu0
        %v620 = vpop.f32.mrf.mxu0
        %v621 = vadd.f32 0.0, %v620
        %v622 = vpop.f32.mrf.mxu0
        %623 = vmatprep.mubr.bf16.mxu0 0
        %624 = vmatmul.mubr.bf16.gmra.mxu0 %v326
        %v625 = vpop.f32.mrf.mxu0
        %v626 = vadd.f32 0.0, %v625
        %v627 = vpop.f32.mrf.mxu0
        %v628 = vpop.f32.mrf.mxu0
        %v629 = vadd.f32 0.0, %v628
        %v630 = vpop.f32.mrf.mxu0
        %631 = vmatprep.mubr.bf16.mxu0 0
        %632 = vmatmul.mubr.bf16.gmra.mxu0 %v329
        %v633 = vpop.f32.mrf.mxu0
        %v634 = vadd.f32 0.0, %v633
        %v635 = vpop.f32.mrf.mxu0
        %v636 = vpop.f32.mrf.mxu0
        %v637 = vadd.f32 0.0, %v636
        %v638 = vpop.f32.mrf.mxu0
        %639 = vmatprep.mubr.bf16.mxu0 0
        %640 = vmatmul.mubr.bf16.gmra.mxu0 %v332
        %v641 = vpop.f32.mrf.mxu0
        %v642 = vadd.f32 0.0, %v641
        %v643 = vpop.f32.mrf.mxu0
        %v644 = vpop.f32.mrf.mxu0
        %v645 = vadd.f32 0.0, %v644
        %v646 = vpop.f32.mrf.mxu0
        %647 = vmatprep.mubr.bf16.mxu0 0
        %648 = vmatmul.mubr.bf16.gmra.mxu0 %v335
        %v649 = vpop.f32.mrf.mxu0
        %v650 = vadd.f32 0.0, %v649
        %v651 = vpop.f32.mrf.mxu0
        %v652 = vpop.f32.mrf.mxu0
        %v653 = vpop.f32.mrf.mxu0
        %654 = vdwg.mxu0
        %v663 = vunpack.c.l.b16 %v542
        %v664 = vunpack.c.l.b16 %v543
        %v665 = vunpack.c.l.b16 %v544
        %v666 = vunpack.c.l.b16 %v545
        %v667 = vunpack.c.l.b16 %v546
        %v668 = vunpack.c.l.b16 %v547
        %v669 = vunpack.c.l.b16 %v548
        %v670 = vunpack.c.l.b16 %v549
        %v671 = vpack.c.b16 %v664, %v663
        %v672 = vpack.c.b16 %v666, %v665
        %v673 = vpack.c.b16 %v668, %v667
        %v674 = vpack.c.b16 %v670, %v669
        %679 = vmatprep.subr.bf16.mxu0 0
        %680 = vmatpush1.bf16.msra.mxu0 0
        %681 = vmatprep.subr.bf16.mxu0 0
        %682 = vmatpush1.bf16.msra.mxu0 0
        %683 = vmatprep.subr.bf16.mxu0 0
        %684 = vmatpush1.bf16.msra.mxu0 0
        %685 = vmatprep.subr.bf16.mxu0 0
        %686 = vmatpush1.bf16.msra.mxu0 0
        %687 = vmatprep.subr.bf16.mxu0 0
        %688 = vmatpush1.bf16.msra.mxu0 %v674
        %689 = vmatprep.subr.bf16.mxu0 0
        %690 = vmatpush1.bf16.msra.mxu0 %v673
        %691 = vmatprep.subr.bf16.mxu0 0
        %692 = vmatpush1.bf16.msra.mxu0 %v672
        %693 = vmatprep.subr.bf16.mxu0 0
        %694 = vmatpush1.bf16.msra.mxu0 %v671
        %695 = vmatprep.subr.bf16.mxu0 0
        %696 = vmatpush2.bf16.msra.mxu0 0
        %697 = vmatprep.subr.bf16.mxu0 0
        %698 = vmatpush2.bf16.msra.mxu0 0
        %699 = vmatprep.subr.bf16.mxu0 0
        %700 = vmatpush2.bf16.msra.mxu0 0
        %701 = vmatprep.subr.bf16.mxu0 0
        %702 = vmatpush2.bf16.msra.mxu0 0
        %703 = vmatprep.subr.bf16.mxu0 0
        %704 = vmatpush2.bf16.msra.mxu0 0
        %705 = vmatprep.subr.bf16.mxu0 0
        %706 = vmatpush2.bf16.msra.mxu0 0
        %707 = vmatprep.subr.bf16.mxu0 0
        %708 = vmatpush2.bf16.msra.mxu0 0
        %709 = vmatprep.subr.bf16.mxu0 0
        %710 = vmatpush2.bf16.msra.mxu0 0
        %711 = vmatprep.mubr.bf16.mxu0 0
        %712 = vmatmul.mubr.bf16.gmra.mxu0 %v456
        %v713 = vpop.f32.mrf.mxu0
        %v714 = vadd.f32 %v618, %v713
        %v715 = vpop.f32.mrf.mxu0
        %v716 = vpop.f32.mrf.mxu0
        %v717 = vadd.f32 %v621, %v716
        %v718 = vpop.f32.mrf.mxu0
        %719 = vmatprep.mubr.bf16.mxu0 0
        %720 = vmatmul.mubr.bf16.gmra.mxu0 %v459
        %v721 = vpop.f32.mrf.mxu0
        %v722 = vadd.f32 %v626, %v721
        %v723 = vpop.f32.mrf.mxu0
        %v724 = vpop.f32.mrf.mxu0
        %v725 = vadd.f32 %v629, %v724
        %v726 = vpop.f32.mrf.mxu0
        %727 = vmatprep.mubr.bf16.mxu0 0
        %728 = vmatmul.mubr.bf16.gmra.mxu0 %v462
        %v729 = vpop.f32.mrf.mxu0
        %v730 = vadd.f32 %v634, %v729
        %v731 = vpop.f32.mrf.mxu0
        %v732 = vpop.f32.mrf.mxu0
        %v733 = vadd.f32 %v637, %v732
        %v734 = vpop.f32.mrf.mxu0
        %735 = vmatprep.mubr.bf16.mxu0 0
        %736 = vmatmul.mubr.bf16.gmra.mxu0 %v465
        %v737 = vpop.f32.mrf.mxu0
        %v738 = vadd.f32 %v642, %v737
        %v739 = vpop.f32.mrf.mxu0
        %v740 = vpop.f32.mrf.mxu0
        %v741 = vadd.f32 %v645, %v740
        %v742 = vpop.f32.mrf.mxu0
        %743 = vmatprep.mubr.bf16.mxu0 0
        %744 = vmatmul.mubr.bf16.gmra.mxu0 %v468
        %v745 = vpop.f32.mrf.mxu0
        %v746 = vadd.f32 %v650, %v745
        %v747 = vpop.f32.mrf.mxu0
        %v748 = vpop.f32.mrf.mxu0
        %v749 = vpop.f32.mrf.mxu0
        %750 = vdwg.mxu0
        %vm751 = vcmask 1047553
        %v752 = vrot.slane %v714, 7
        %v753 = vsel %vm751, %v752, %v746
        %vm763 = vcmask 1046528
        %v764 = vrot.slane %v714, 1
        %v765 = vrot.slane %v717, 1
        %v766 = vsel %vm763, %v764, %v765
        %v767 = vrot.slane %v722, 1
        %v768 = vsel %vm763, %v765, %v767
        %v769 = vrot.slane %v725, 1
        %v770 = vsel %vm763, %v767, %v769
        %v771 = vrot.slane %v730, 1
        %v772 = vsel %vm763, %v769, %v771
        %v773 = vrot.slane %v733, 1
        %v774 = vsel %vm763, %v771, %v773
        %v775 = vrot.slane %v738, 1
        %v776 = vsel %vm763, %v773, %v775
        %v777 = vrot.slane %v741, 1
        %v778 = vsel %vm763, %v775, %v777
        %v779 = vrot.slane %v753, 1
        %v780 = vsel %vm763, %v777, %v779
        %v789 = vadd.f32 %v505, %v766
        %v790 = vadd.f32 %v508, %v768
        %v791 = vadd.f32 %v513, %v770
        %v792 = vadd.f32 %v516, %v772
        %v793 = vadd.f32 %v521, %v774
        %v794 = vadd.f32 %v524, %v776
        %v795 = vadd.f32 %v529, %v778
        %v796 = vadd.f32 %v532, %v780
        %v797 = vld [vmem:[%s2] sm:$0x1]
        %v799 = vlaneseq
        %v800 = vshrl.u32 %v799, 7
        %v801 = vsub.s32 0, %v800
        %v802 = vrot.slane %v797, %v801
        %v804 = vadd.f32 %v789, %v802
        %v805 = vadd.f32 %v790, %v802
        %v806 = vadd.f32 %v791, %v802
        %v807 = vadd.f32 %v792, %v802
        %v808 = vadd.f32 %v793, %v802
        %v809 = vadd.f32 %v794, %v802
        %v810 = vadd.f32 %v795, %v802
        %v811 = vadd.f32 %v796, %v802
        %v812 = vmul.f32 %v804, 0.70710677
        %v813 = vmul.f32 %v805, 0.70710677
        %v814 = vmul.f32 %v806, 0.70710677
        %v815 = vmul.f32 %v807, 0.70710677
        %v816 = vmul.f32 %v808, 0.70710677
        %v817 = vmul.f32 %v809, 0.70710677
        %v818 = vmul.f32 %v810, 0.70710677
        %v819 = vmul.f32 %v811, 0.70710677
        %vm820 = vcmp.ge.f32.partialorder %v812, 0.0
        %vm821 = vcmp.ge.f32.partialorder %v813, 0.0
        %vm822 = vcmp.ge.f32.partialorder %v814, 0.0
        %vm823 = vcmp.ge.f32.partialorder %v815, 0.0
        %vm824 = vcmp.ge.f32.partialorder %v816, 0.0
        %vm825 = vcmp.ge.f32.partialorder %v817, 0.0
        %vm826 = vcmp.ge.f32.partialorder %v818, 0.0
        %vm827 = vcmp.ge.f32.partialorder %v819, 0.0
        %v828 = vsel %vm820, 1.0, -1.0
        %v829 = vsel %vm821, 1.0, -1.0
        %v830 = vsel %vm822, 1.0, -1.0
        %v831 = vsel %vm823, 1.0, -1.0
        %v832 = vsel %vm824, 1.0, -1.0
        %v833 = vsel %vm825, 1.0, -1.0
        %v834 = vsel %vm826, 1.0, -1.0
        %v835 = vsel %vm827, 1.0, -1.0
        %v836 = vand.u32 2147483647, %v812
        %v837 = vand.u32 2147483647, %v813
        %v838 = vand.u32 2147483647, %v814
        %v839 = vand.u32 2147483647, %v815
        %v840 = vand.u32 2147483647, %v816
        %v841 = vand.u32 2147483647, %v817
        %v842 = vand.u32 2147483647, %v818
        %v843 = vand.u32 2147483647, %v819
        %v844 = vmul.f32 %v836, 0.3275911
        %v845 = vmul.f32 %v837, 0.3275911
        %v846 = vmul.f32 %v838, 0.3275911
        %v847 = vmul.f32 %v839, 0.3275911
        %v848 = vmul.f32 %v840, 0.3275911
        %v849 = vmul.f32 %v841, 0.3275911
        %v850 = vmul.f32 %v842, 0.3275911
        %v851 = vmul.f32 %v843, 0.3275911
        %v852 = vadd.f32 %v844, 1.0
        %v853 = vadd.f32 %v845, 1.0
        %v854 = vadd.f32 %v846, 1.0
        %v855 = vadd.f32 %v847, 1.0
        %v856 = vadd.f32 %v848, 1.0
        %v857 = vadd.f32 %v849, 1.0
        %v858 = vadd.f32 %v850, 1.0
        %v859 = vadd.f32 %v851, 1.0
        %v860 = vrcp.pop %v852
        %v861 = vrcp.pop %v853
        %v862 = vrcp.pop %v854
        %v863 = vrcp.pop %v855
        %v864 = vrcp.pop %v856
        %v865 = vrcp.pop %v857
        %v866 = vrcp.pop %v858
        %v867 = vrcp.pop %v859
        %v868 = vmul.f32 %v860, 1.0614054
        %v869 = vmul.f32 %v861, 1.0614054
        %v870 = vmul.f32 %v862, 1.0614054
        %v871 = vmul.f32 %v863, 1.0614054
        %v872 = vmul.f32 %v864, 1.0614054
        %v873 = vmul.f32 %v865, 1.0614054
        %v874 = vmul.f32 %v866, 1.0614054
        %v875 = vmul.f32 %v867, 1.0614054
        %v876 = vsub.f32 %v868, 1.4531521
        %v877 = vsub.f32 %v869, 1.4531521
        %v878 = vsub.f32 %v870, 1.4531521
        %v879 = vsub.f32 %v871, 1.4531521
        %v880 = vsub.f32 %v872, 1.4531521
        %v881 = vsub.f32 %v873, 1.4531521
        %v882 = vsub.f32 %v874, 1.4531521
        %v883 = vsub.f32 %v875, 1.4531521
        %v884 = vmul.f32 %v876, %v860
        %v885 = vmul.f32 %v877, %v861
        %v886 = vmul.f32 %v878, %v862
        %v887 = vmul.f32 %v879, %v863
        %v888 = vmul.f32 %v880, %v864
        %v889 = vmul.f32 %v881, %v865
        %v890 = vmul.f32 %v882, %v866
        %v891 = vmul.f32 %v883, %v867
        %v892 = vadd.f32 %v884, 1.4214138
        %v893 = vadd.f32 %v885, 1.4214138
        %v894 = vadd.f32 %v886, 1.4214138
        %v895 = vadd.f32 %v887, 1.4214138
        %v896 = vadd.f32 %v888, 1.4214138
        %v897 = vadd.f32 %v889, 1.4214138
        %v898 = vadd.f32 %v890, 1.4214138
        %v899 = vadd.f32 %v891, 1.4214138
        %v900 = vmul.f32 %v892, %v860
        %v901 = vmul.f32 %v893, %v861
        %v902 = vmul.f32 %v894, %v862
        %v903 = vmul.f32 %v895, %v863
        %v904 = vmul.f32 %v896, %v864
        %v905 = vmul.f32 %v897, %v865
        %v906 = vmul.f32 %v898, %v866
        %v907 = vmul.f32 %v899, %v867
        %v908 = vsub.f32 %v900, 0.28449672
        %v909 = vsub.f32 %v901, 0.28449672
        %v910 = vsub.f32 %v902, 0.28449672
        %v911 = vsub.f32 %v903, 0.28449672
        %v912 = vsub.f32 %v904, 0.28449672
        %v913 = vsub.f32 %v905, 0.28449672
        %v914 = vsub.f32 %v906, 0.28449672
        %v915 = vsub.f32 %v907, 0.28449672
        %v916 = vmul.f32 %v908, %v860
        %v917 = vmul.f32 %v909, %v861
        %v918 = vmul.f32 %v910, %v862
        %v919 = vmul.f32 %v911, %v863
        %v920 = vmul.f32 %v912, %v864
        %v921 = vmul.f32 %v913, %v865
        %v922 = vmul.f32 %v914, %v866
        %v923 = vmul.f32 %v915, %v867
        %v924 = vadd.f32 %v916, 0.2548296
        %v925 = vadd.f32 %v917, 0.2548296
        %v926 = vadd.f32 %v918, 0.2548296
        %v927 = vadd.f32 %v919, 0.2548296
        %v928 = vadd.f32 %v920, 0.2548296
        %v929 = vadd.f32 %v921, 0.2548296
        %v930 = vadd.f32 %v922, 0.2548296
        %v931 = vadd.f32 %v923, 0.2548296
        %v932 = vmul.f32 %v924, %v860
        %v933 = vmul.f32 %v925, %v861
        %v934 = vmul.f32 %v926, %v862
        %v935 = vmul.f32 %v927, %v863
        %v936 = vmul.f32 %v928, %v864
        %v937 = vmul.f32 %v929, %v865
        %v938 = vmul.f32 %v930, %v866
        %v939 = vmul.f32 %v931, %v867
        %v940 = vsub.f32 0.0, %v836
        %v941 = vsub.f32 0.0, %v837
        %v942 = vsub.f32 0.0, %v838
        %v943 = vsub.f32 0.0, %v839
        %v944 = vsub.f32 0.0, %v840
        %v945 = vsub.f32 0.0, %v841
        %v946 = vsub.f32 0.0, %v842
        %v947 = vsub.f32 0.0, %v843
        %v948 = vmul.f32 %v940, %v836
        %v949 = vmul.f32 %v941, %v837
        %v950 = vmul.f32 %v942, %v838
        %v951 = vmul.f32 %v943, %v839
        %v952 = vmul.f32 %v944, %v840
        %v953 = vmul.f32 %v945, %v841
        %v954 = vmul.f32 %v946, %v842
        %v955 = vmul.f32 %v947, %v843
        %v956 = vmul.f32 %v948, 1.442695
        %v957 = vpow.pop %v956
        %v958 = vmul.f32 %v949, 1.442695
        %v959 = vpow.pop %v958
        %v960 = vmul.f32 %v950, 1.442695
        %v961 = vpow.pop %v960
        %v962 = vmul.f32 %v951, 1.442695
        %v963 = vpow.pop %v962
        %v964 = vmul.f32 %v952, 1.442695
        %v965 = vpow.pop %v964
        %v966 = vmul.f32 %v953, 1.442695
        %v967 = vpow.pop %v966
        %v968 = vmul.f32 %v954, 1.442695
        %v969 = vpow.pop %v968
        %v970 = vmul.f32 %v955, 1.442695
        %v971 = vpow.pop %v970
        %v972 = vmul.f32 %v932, %v957
        %v973 = vmul.f32 %v933, %v959
        %v974 = vmul.f32 %v934, %v961
        %v975 = vmul.f32 %v935, %v963
        %v976 = vmul.f32 %v936, %v965
        %v977 = vmul.f32 %v937, %v967
        %v978 = vmul.f32 %v938, %v969
        %v979 = vmul.f32 %v939, %v971
        %v980 = vsub.f32 1.0, %v972
        %v981 = vsub.f32 1.0, %v973
        %v982 = vsub.f32 1.0, %v974
        %v983 = vsub.f32 1.0, %v975
        %v984 = vsub.f32 1.0, %v976
        %v985 = vsub.f32 1.0, %v977
        %v986 = vsub.f32 1.0, %v978
        %v987 = vsub.f32 1.0, %v979
        %v988 = vmul.f32 %v828, %v980
        %v989 = vmul.f32 %v829, %v981
        %v990 = vmul.f32 %v830, %v982
        %v991 = vmul.f32 %v831, %v983
        %v992 = vmul.f32 %v832, %v984
        %v993 = vmul.f32 %v833, %v985
        %v994 = vmul.f32 %v834, %v986
        %v995 = vmul.f32 %v835, %v987
        %v996 = vmul.f32 %v804, 0.5
        %v997 = vmul.f32 %v805, 0.5
        %v998 = vmul.f32 %v806, 0.5
        %v999 = vmul.f32 %v807, 0.5
        %v1000 = vmul.f32 %v808, 0.5
        %v1001 = vmul.f32 %v809, 0.5
        %v1002 = vmul.f32 %v810, 0.5
        %v1003 = vmul.f32 %v811, 0.5
        %v1004 = vadd.f32 %v988, 1.0
        %v1005 = vadd.f32 %v989, 1.0
        %v1006 = vadd.f32 %v990, 1.0
        %v1007 = vadd.f32 %v991, 1.0
        %v1008 = vadd.f32 %v992, 1.0
        %v1009 = vadd.f32 %v993, 1.0
        %v1010 = vadd.f32 %v994, 1.0
        %v1011 = vadd.f32 %v995, 1.0
        %v1012 = vmul.f32 %v996, %v1004
        %v1013 = vmul.f32 %v997, %v1005
        %v1014 = vmul.f32 %v998, %v1006
        %v1015 = vmul.f32 %v999, %v1007
        %v1016 = vmul.f32 %v1000, %v1008
        %v1017 = vmul.f32 %v1001, %v1009
        %v1018 = vmul.f32 %v1002, %v1010
        %v1019 = vmul.f32 %v1003, %v1011
        %v1020 = vld [vmem:[%s3] sm:$0xf]
        %v1021 = vld [vmem:[%s3 + $0x4] sm:$0xf]
        %v1022 = vld [vmem:[%s3 + $0x8] sm:$0xf]
        %v1023 = vld [vmem:[%s3 + $0xc] sm:$0xf]
        %v1024 = vld [vmem:[%s3 + $0x10] sm:$0xf]
        %v1025 = vld [vmem:[%s3 + $0x14] sm:$0xf]
        %v1026 = vld [vmem:[%s3 + $0x18] sm:$0xf]
        %v1027 = vld [vmem:[%s3 + $0x1c] sm:$0xf]
        %v1028 = vld [vmem:[%s4] sm:$0x1]
        %v1029 = vpack.c.bf16 %v1013, %v1012
        %v1030 = vpack.c.bf16 %v1015, %v1014
        %v1031 = vpack.c.bf16 %v1017, %v1016
        %v1032 = vpack.c.bf16 %v1019, %v1018
        %v1034 = vlaneseq
        %v1035 = vshrl.u32 %v1034, 7
        %v1036 = vsub.s32 0, %v1035
        %v1037 = vrot.slane %v1028, %v1036
        %v1047 = vunpack.c.l.b16 %v1020
        %v1048 = vunpack.c.l.b16 %v1021
        %v1049 = vunpack.c.l.b16 %v1022
        %v1050 = vunpack.c.l.b16 %v1023
        %v1051 = vunpack.c.l.b16 %v1024
        %v1052 = vunpack.c.l.b16 %v1025
        %v1053 = vunpack.c.l.b16 %v1026
        %v1054 = vunpack.c.l.b16 %v1027
        %v1055 = vpack.c.b16 %v1048, %v1047
        %v1056 = vpack.c.b16 %v1050, %v1049
        %v1057 = vpack.c.b16 %v1052, %v1051
        %v1058 = vpack.c.b16 %v1054, %v1053
        %v1064 = vsel %vm321, %v1029, 0
        %v1067 = vsel %vm321, %v1030, 0
        %v1070 = vsel %vm321, %v1031, 0
        %v1073 = vsel %vm321, %v1032, 0
        %1075 = vmatprep.subr.bf16.mxu0 0
        %1076 = vmatpush1.bf16.msra.mxu0 0
        %1077 = vmatprep.subr.bf16.mxu0 0
        %1078 = vmatpush1.bf16.msra.mxu0 0
        %1079 = vmatprep.subr.bf16.mxu0 0
        %1080 = vmatpush1.bf16.msra.mxu0 0
        %1081 = vmatprep.subr.bf16.mxu0 0
        %1082 = vmatpush1.bf16.msra.mxu0 0
        %1083 = vmatprep.subr.bf16.mxu0 0
        %1084 = vmatpush1.bf16.msra.mxu0 %v1058
        %1085 = vmatprep.subr.bf16.mxu0 0
        %1086 = vmatpush1.bf16.msra.mxu0 %v1057
        %1087 = vmatprep.subr.bf16.mxu0 0
        %1088 = vmatpush1.bf16.msra.mxu0 %v1056
        %1089 = vmatprep.subr.bf16.mxu0 0
        %1090 = vmatpush1.bf16.msra.mxu0 %v1055
        %1091 = vmatprep.subr.bf16.mxu0 0
        %1092 = vmatpush2.bf16.msra.mxu0 0
        %1093 = vmatprep.subr.bf16.mxu0 0
        %1094 = vmatpush2.bf16.msra.mxu0 0
        %1095 = vmatprep.subr.bf16.mxu0 0
        %1096 = vmatpush2.bf16.msra.mxu0 0
        %1097 = vmatprep.subr.bf16.mxu0 0
        %1098 = vmatpush2.bf16.msra.mxu0 0
        %1099 = vmatprep.subr.bf16.mxu0 0
        %1100 = vmatpush2.bf16.msra.mxu0 0
        %1101 = vmatprep.subr.bf16.mxu0 0
        %1102 = vmatpush2.bf16.msra.mxu0 0
        %1103 = vmatprep.subr.bf16.mxu0 0
        %1104 = vmatpush2.bf16.msra.mxu0 0
        %1105 = vmatprep.subr.bf16.mxu0 0
        %1106 = vmatpush2.bf16.msra.mxu0 0
        %1107 = vmatprep.mubr.bf16.mxu0 0
        %1108 = vmatmul.mubr.bf16.gmra.mxu0 %v1064
        %v1109 = vpop.f32.mrf.mxu0
        %v1110 = vadd.f32 %v1037, %v1109
        %v1111 = vpop.f32.mrf.mxu0
        %v1112 = vpop.f32.mrf.mxu0
        %v1113 = vadd.f32 %v1037, %v1112
        %v1114 = vpop.f32.mrf.mxu0
        %1115 = vmatprep.mubr.bf16.mxu0 0
        %1116 = vmatmul.mubr.bf16.gmra.mxu0 %v1067
        %v1117 = vpop.f32.mrf.mxu0
        %v1118 = vadd.f32 %v1037, %v1117
        %v1119 = vpop.f32.mrf.mxu0
        %v1120 = vpop.f32.mrf.mxu0
        %v1121 = vadd.f32 %v1037, %v1120
        %v1122 = vpop.f32.mrf.mxu0
        %1123 = vmatprep.mubr.bf16.mxu0 0
        %1124 = vmatmul.mubr.bf16.gmra.mxu0 %v1070
        %v1125 = vpop.f32.mrf.mxu0
        %v1126 = vadd.f32 %v1037, %v1125
        %v1127 = vpop.f32.mrf.mxu0
        %v1128 = vpop.f32.mrf.mxu0
        %v1129 = vadd.f32 %v1037, %v1128
        %v1130 = vpop.f32.mrf.mxu0
        %1131 = vmatprep.mubr.bf16.mxu0 0
        %1132 = vmatmul.mubr.bf16.gmra.mxu0 %v1073
        %v1133 = vpop.f32.mrf.mxu0
        %v1134 = vadd.f32 %v1037, %v1133
        %v1135 = vpop.f32.mrf.mxu0
        %v1136 = vpop.f32.mrf.mxu0
        %v1137 = vadd.f32 %v1037, %v1136
        %v1138 = vpop.f32.mrf.mxu0
        %1139 = vdwg.mxu0
        %v1140 = vmul.f32 %v1110, 0.70710677
        %v1141 = vmul.f32 %v1113, 0.70710677
        %v1142 = vmul.f32 %v1118, 0.70710677
        %v1143 = vmul.f32 %v1121, 0.70710677
        %v1144 = vmul.f32 %v1126, 0.70710677
        %v1145 = vmul.f32 %v1129, 0.70710677
        %v1146 = vmul.f32 %v1134, 0.70710677
        %v1147 = vmul.f32 %v1137, 0.70710677
        %vm1148 = vcmp.ge.f32.partialorder %v1140, 0.0
        %vm1149 = vcmp.ge.f32.partialorder %v1141, 0.0
        %vm1150 = vcmp.ge.f32.partialorder %v1142, 0.0
        %vm1151 = vcmp.ge.f32.partialorder %v1143, 0.0
        %vm1152 = vcmp.ge.f32.partialorder %v1144, 0.0
        %vm1153 = vcmp.ge.f32.partialorder %v1145, 0.0
        %vm1154 = vcmp.ge.f32.partialorder %v1146, 0.0
        %vm1155 = vcmp.ge.f32.partialorder %v1147, 0.0
        %v1156 = vsel %vm1148, 1.0, -1.0
        %v1157 = vsel %vm1149, 1.0, -1.0
        %v1158 = vsel %vm1150, 1.0, -1.0
        %v1159 = vsel %vm1151, 1.0, -1.0
        %v1160 = vsel %vm1152, 1.0, -1.0
        %v1161 = vsel %vm1153, 1.0, -1.0
        %v1162 = vsel %vm1154, 1.0, -1.0
        %v1163 = vsel %vm1155, 1.0, -1.0
        %v1164 = vand.u32 2147483647, %v1140
        %v1165 = vand.u32 2147483647, %v1141
        %v1166 = vand.u32 2147483647, %v1142
        %v1167 = vand.u32 2147483647, %v1143
        %v1168 = vand.u32 2147483647, %v1144
        %v1169 = vand.u32 2147483647, %v1145
        %v1170 = vand.u32 2147483647, %v1146
        %v1171 = vand.u32 2147483647, %v1147
        %v1172 = vmul.f32 %v1164, 0.3275911
        %v1173 = vmul.f32 %v1165, 0.3275911
        %v1174 = vmul.f32 %v1166, 0.3275911
        %v1175 = vmul.f32 %v1167, 0.3275911
        %v1176 = vmul.f32 %v1168, 0.3275911
        %v1177 = vmul.f32 %v1169, 0.3275911
        %v1178 = vmul.f32 %v1170, 0.3275911
        %v1179 = vmul.f32 %v1171, 0.3275911
        %v1180 = vadd.f32 %v1172, 1.0
        %v1181 = vadd.f32 %v1173, 1.0
        %v1182 = vadd.f32 %v1174, 1.0
        %v1183 = vadd.f32 %v1175, 1.0
        %v1184 = vadd.f32 %v1176, 1.0
        %v1185 = vadd.f32 %v1177, 1.0
        %v1186 = vadd.f32 %v1178, 1.0
        %v1187 = vadd.f32 %v1179, 1.0
        %v1188 = vrcp.pop %v1180
        %v1189 = vrcp.pop %v1181
        %v1190 = vrcp.pop %v1182
        %v1191 = vrcp.pop %v1183
        %v1192 = vrcp.pop %v1184
        %v1193 = vrcp.pop %v1185
        %v1194 = vrcp.pop %v1186
        %v1195 = vrcp.pop %v1187
        %v1196 = vmul.f32 %v1188, 1.0614054
        %v1197 = vmul.f32 %v1189, 1.0614054
        %v1198 = vmul.f32 %v1190, 1.0614054
        %v1199 = vmul.f32 %v1191, 1.0614054
        %v1200 = vmul.f32 %v1192, 1.0614054
        %v1201 = vmul.f32 %v1193, 1.0614054
        %v1202 = vmul.f32 %v1194, 1.0614054
        %v1203 = vmul.f32 %v1195, 1.0614054
        %v1204 = vsub.f32 %v1196, 1.4531521
        %v1205 = vsub.f32 %v1197, 1.4531521
        %v1206 = vsub.f32 %v1198, 1.4531521
        %v1207 = vsub.f32 %v1199, 1.4531521
        %v1208 = vsub.f32 %v1200, 1.4531521
        %v1209 = vsub.f32 %v1201, 1.4531521
        %v1210 = vsub.f32 %v1202, 1.4531521
        %v1211 = vsub.f32 %v1203, 1.4531521
        %v1212 = vmul.f32 %v1204, %v1188
        %v1213 = vmul.f32 %v1205, %v1189
        %v1214 = vmul.f32 %v1206, %v1190
        %v1215 = vmul.f32 %v1207, %v1191
        %v1216 = vmul.f32 %v1208, %v1192
        %v1217 = vmul.f32 %v1209, %v1193
        %v1218 = vmul.f32 %v1210, %v1194
        %v1219 = vmul.f32 %v1211, %v1195
        %v1220 = vadd.f32 %v1212, 1.4214138
        %v1221 = vadd.f32 %v1213, 1.4214138
        %v1222 = vadd.f32 %v1214, 1.4214138
        %v1223 = vadd.f32 %v1215, 1.4214138
        %v1224 = vadd.f32 %v1216, 1.4214138
        %v1225 = vadd.f32 %v1217, 1.4214138
        %v1226 = vadd.f32 %v1218, 1.4214138
        %v1227 = vadd.f32 %v1219, 1.4214138
        %v1228 = vmul.f32 %v1220, %v1188
        %v1229 = vmul.f32 %v1221, %v1189
        %v1230 = vmul.f32 %v1222, %v1190
        %v1231 = vmul.f32 %v1223, %v1191
        %v1232 = vmul.f32 %v1224, %v1192
        %v1233 = vmul.f32 %v1225, %v1193
        %v1234 = vmul.f32 %v1226, %v1194
        %v1235 = vmul.f32 %v1227, %v1195
        %v1236 = vsub.f32 %v1228, 0.28449672
        %v1237 = vsub.f32 %v1229, 0.28449672
        %v1238 = vsub.f32 %v1230, 0.28449672
        %v1239 = vsub.f32 %v1231, 0.28449672
        %v1240 = vsub.f32 %v1232, 0.28449672
        %v1241 = vsub.f32 %v1233, 0.28449672
        %v1242 = vsub.f32 %v1234, 0.28449672
        %v1243 = vsub.f32 %v1235, 0.28449672
        %v1244 = vmul.f32 %v1236, %v1188
        %v1245 = vmul.f32 %v1237, %v1189
        %v1246 = vmul.f32 %v1238, %v1190
        %v1247 = vmul.f32 %v1239, %v1191
        %v1248 = vmul.f32 %v1240, %v1192
        %v1249 = vmul.f32 %v1241, %v1193
        %v1250 = vmul.f32 %v1242, %v1194
        %v1251 = vmul.f32 %v1243, %v1195
        %v1252 = vadd.f32 %v1244, 0.2548296
        %v1253 = vadd.f32 %v1245, 0.2548296
        %v1254 = vadd.f32 %v1246, 0.2548296
        %v1255 = vadd.f32 %v1247, 0.2548296
        %v1256 = vadd.f32 %v1248, 0.2548296
        %v1257 = vadd.f32 %v1249, 0.2548296
        %v1258 = vadd.f32 %v1250, 0.2548296
        %v1259 = vadd.f32 %v1251, 0.2548296
        %v1260 = vmul.f32 %v1252, %v1188
        %v1261 = vmul.f32 %v1253, %v1189
        %v1262 = vmul.f32 %v1254, %v1190
        %v1263 = vmul.f32 %v1255, %v1191
        %v1264 = vmul.f32 %v1256, %v1192
        %v1265 = vmul.f32 %v1257, %v1193
        %v1266 = vmul.f32 %v1258, %v1194
        %v1267 = vmul.f32 %v1259, %v1195
        %v1268 = vsub.f32 0.0, %v1164
        %v1269 = vsub.f32 0.0, %v1165
        %v1270 = vsub.f32 0.0, %v1166
        %v1271 = vsub.f32 0.0, %v1167
        %v1272 = vsub.f32 0.0, %v1168
        %v1273 = vsub.f32 0.0, %v1169
        %v1274 = vsub.f32 0.0, %v1170
        %v1275 = vsub.f32 0.0, %v1171
        %v1276 = vmul.f32 %v1268, %v1164
        %v1277 = vmul.f32 %v1269, %v1165
        %v1278 = vmul.f32 %v1270, %v1166
        %v1279 = vmul.f32 %v1271, %v1167
        %v1280 = vmul.f32 %v1272, %v1168
        %v1281 = vmul.f32 %v1273, %v1169
        %v1282 = vmul.f32 %v1274, %v1170
        %v1283 = vmul.f32 %v1275, %v1171
        %v1284 = vmul.f32 %v1276, 1.442695
        %v1285 = vpow.pop %v1284
        %v1286 = vmul.f32 %v1277, 1.442695
        %v1287 = vpow.pop %v1286
        %v1288 = vmul.f32 %v1278, 1.442695
        %v1289 = vpow.pop %v1288
        %v1290 = vmul.f32 %v1279, 1.442695
        %v1291 = vpow.pop %v1290
        %v1292 = vmul.f32 %v1280, 1.442695
        %v1293 = vpow.pop %v1292
        %v1294 = vmul.f32 %v1281, 1.442695
        %v1295 = vpow.pop %v1294
        %v1296 = vmul.f32 %v1282, 1.442695
        %v1297 = vpow.pop %v1296
        %v1298 = vmul.f32 %v1283, 1.442695
        %v1299 = vpow.pop %v1298
        %v1300 = vmul.f32 %v1260, %v1285
        %v1301 = vmul.f32 %v1261, %v1287
        %v1302 = vmul.f32 %v1262, %v1289
        %v1303 = vmul.f32 %v1263, %v1291
        %v1304 = vmul.f32 %v1264, %v1293
        %v1305 = vmul.f32 %v1265, %v1295
        %v1306 = vmul.f32 %v1266, %v1297
        %v1307 = vmul.f32 %v1267, %v1299
        %v1308 = vsub.f32 1.0, %v1300
        %v1309 = vsub.f32 1.0, %v1301
        %v1310 = vsub.f32 1.0, %v1302
        %v1311 = vsub.f32 1.0, %v1303
        %v1312 = vsub.f32 1.0, %v1304
        %v1313 = vsub.f32 1.0, %v1305
        %v1314 = vsub.f32 1.0, %v1306
        %v1315 = vsub.f32 1.0, %v1307
        %v1316 = vmul.f32 %v1156, %v1308
        %v1317 = vmul.f32 %v1157, %v1309
        %v1318 = vmul.f32 %v1158, %v1310
        %v1319 = vmul.f32 %v1159, %v1311
        %v1320 = vmul.f32 %v1160, %v1312
        %v1321 = vmul.f32 %v1161, %v1313
        %v1322 = vmul.f32 %v1162, %v1314
        %v1323 = vmul.f32 %v1163, %v1315
        %v1324 = vmul.f32 %v1110, 0.5
        %v1325 = vmul.f32 %v1113, 0.5
        %v1326 = vmul.f32 %v1118, 0.5
        %v1327 = vmul.f32 %v1121, 0.5
        %v1328 = vmul.f32 %v1126, 0.5
        %v1329 = vmul.f32 %v1129, 0.5
        %v1330 = vmul.f32 %v1134, 0.5
        %v1331 = vmul.f32 %v1137, 0.5
        %v1332 = vadd.f32 %v1316, 1.0
        %v1333 = vadd.f32 %v1317, 1.0
        %v1334 = vadd.f32 %v1318, 1.0
        %v1335 = vadd.f32 %v1319, 1.0
        %v1336 = vadd.f32 %v1320, 1.0
        %v1337 = vadd.f32 %v1321, 1.0
        %v1338 = vadd.f32 %v1322, 1.0
        %v1339 = vadd.f32 %v1323, 1.0
        %v1340 = vmul.f32 %v1324, %v1332
        %v1341 = vmul.f32 %v1325, %v1333
        %v1342 = vmul.f32 %v1326, %v1334
        %v1343 = vmul.f32 %v1327, %v1335
        %v1344 = vmul.f32 %v1328, %v1336
        %v1345 = vmul.f32 %v1329, %v1337
        %v1346 = vmul.f32 %v1330, %v1338
        %v1347 = vmul.f32 %v1331, %v1339
        %v1348 = vpack.c.bf16 %v1341, %v1340
        %v1349 = vpack.c.bf16 %v1343, %v1342
        %v1350 = vpack.c.bf16 %v1345, %v1344
        %v1351 = vpack.c.bf16 %v1347, %v1346
        %v1356 = vunpack.c.l.b16 %v1348
        %v1357 = vunpack.c.h.b16 %v1348
        %v1358 = vunpack.c.l.b16 %v1349
        %v1359 = vunpack.c.h.b16 %v1349
        %v1360 = vunpack.c.l.b16 %v1350
        %v1361 = vunpack.c.h.b16 %v1350
        %v1362 = vunpack.c.l.b16 %v1351
        %v1363 = vunpack.c.h.b16 %v1351
        %v1364 = vpack.c.b16 %v1356, %v1356
        %v1365 = vpack.c.b16 %v1357, %v1357
        %v1366 = vpack.c.b16 %v1358, %v1358
        %v1367 = vpack.c.b16 %v1359, %v1359
        %v1368 = vpack.c.b16 %v1360, %v1360
        %v1369 = vpack.c.b16 %v1361, %v1361
        %v1370 = vpack.c.b16 %v1362, %v1362
        %v1371 = vpack.c.b16 %v1363, %v1363
        %s1380 = smul.u32 %s227, 8
        %s1381 = smul.addr %s1380, 4
        %s1382 = scalar_lea.vmem %s224, %s1381
        %vm1383 = vcmask 519168
        %1384 = vst.msk [vmem:[%s1382] sm:$0xf] %vm1383, %v1364
        %1385 = vst.msk [vmem:[%s1382 + $0x4] sm:$0xf] %vm1383, %v1365
        %1386 = vst.msk [vmem:[%s1382 + $0x8] sm:$0xf] %vm1383, %v1366
        %1387 = vst.msk [vmem:[%s1382 + $0xc] sm:$0xf] %vm1383, %v1367
        %1388 = vst.msk [vmem:[%s1382 + $0x10] sm:$0xf] %vm1383, %v1368
        %1389 = vst.msk [vmem:[%s1382 + $0x14] sm:$0xf] %vm1383, %v1369
        %1390 = vst.msk [vmem:[%s1382 + $0x18] sm:$0xf] %vm1383, %v1370
        %1391 = vst.msk [vmem:[%s1382 + $0x1c] sm:$0xf] %vm1383, %v1371
      $region45: #{simple_cnn_forward.5} parent=39 // loop_footer
        %s231 = sadd.s32 1, %s227
      $region46: #{simple_cnn_forward.5} parent=39 // loop_footer_branch
        %226 = sbr.rel target = $region42
      $region47: #{simple_cnn_forward.5} parent=39 // loop_exit
        _
      %p1392 = scmp.lt.s32.totalorder %s16, 1
      %s1393 = scalar_select %p1392, %s16, 1
      %s1394 = smul.addr %s1393, 512
      %s1395 = smul.addr %s1394, 4
      %s1396 = scalar_lea.vmem %s5, %s1395
      // Predicated region
      $region48: #{simple_cnn_forward.5} parent=39 // pred_check
        %p1397 = pneg %p144
      $region49: #{simple_cnn_forward.5} parent=39 // pred_check_branch
        %1399 = sbr.rel (%p1397) target = $region51
      $region50: #{simple_cnn_forward.5} parent=39 // pred_region
        _
      $region51: #{simple_cnn_forward.5} parent=39 // pred_fallthru
        _
    $region40: #{simple_cnn_forward.5} parent=5 // pred_fallthru
      _
    %p1400 = scmp.le.s32.totalorder 2, %s11
    // Predicated region
    $region52: #{simple_cnn_forward.5} parent=5 // pred_check
      %p1401 = pneg %p1400
    $region53: #{simple_cnn_forward.5} parent=5 // pred_check_branch
      %1403 = sbr.rel (%p1401) target = $region55
    $region54: #{simple_cnn_forward.5} parent=5 // pred_region
      %s1404 = ssub.s32 %s11, 2
      // Predicated region
      $region56: #{simple_cnn_forward.5} parent=54 // pred_check
        %p1405 = pneg %p150
      $region57: #{simple_cnn_forward.5} parent=54 // pred_check_branch
        %1407 = sbr.rel (%p1405) target = $region59
      $region58: #{simple_cnn_forward.5} parent=54 // pred_region
        %p1408 = scmp.lt.s32.totalorder %s17, 1
        %s1409 = scalar_select %p1408, %s17, 1
        %s1410 = smul.addr %s1409, 512
        %s1411 = smul.addr %s1410, 4
        %s1412 = scalar_lea.vmem %s5, %s1411
      $region59: #{simple_cnn_forward.5} parent=54 // pred_fallthru
        _
    $region55: #{simple_cnn_forward.5} parent=5 // pred_fallthru
      _
  $region6: #{simple_cnn_forward.5} parent=0 // loop_footer
    %s15 = sadd.s32 1, %s11
  $region7: #{simple_cnn_forward.5} parent=0 // loop_footer_branch
    %10 = sbr.rel target = $region3
  $region8: #{simple_cnn_forward.5} parent=0 // loop_exit
    _

// kernel: simple_cnn_forward.6
$region0: #{simple_cnn_forward.6}
  #allocation0 [shape = 'u32[]', space=smem, size = 0x4, offset = 0x4, fixed_abs, tag = 'smem constant byte address 0x4 - core index']
  #allocation1 [shape = 'u32[144,128]{1,0:T(1,128)}', space=vmem, size = 0x12000, scoped, tag = 'internal scratch']
  %s0 = inlined_call_operand.vmem [shape: bf16[2,33,33,256], index: 0, kind: input, shape index: {}]
  %s1 = inlined_call_operand.vmem [shape: bf16[4,256,32], index: 1, kind: input, shape index: {}]
  %s2 = inlined_call_operand.vmem [shape: f32[1,32], index: 2, kind: input, shape index: {}]
  %s3 = inlined_call_operand.vmem [shape: bf16[32,32], index: 3, kind: input, shape index: {}]
  %s4 = inlined_call_operand.vmem [shape: f32[1,32], index: 4, kind: input, shape index: {}]
  %s5 = inlined_call_operand.vmem [shape: bf16[32,32], index: 5, kind: input, shape index: {}]
  %s6 = inlined_call_operand.vmem [shape: f32[1,32], index: 6, kind: input, shape index: {}]
  %s7 = inlined_call_operand.vmem [shape: bf16[2,32,32,32], index: 7, kind: output, shape index: {}]
  %s8 = sld [smem:[#allocation0]]
  $region68: #{simple_cnn_forward.6} parent=0
    _
  %s10 = ssub.s32 1, %s8
  %s11 = scalar_select 0, %s10, %s8
  loop: start=0, step=1, limit=4
  $region2: #{simple_cnn_forward.6} parent=0 // loop_pre_header
    _
  $region3: #{simple_cnn_forward.6} parent=0 // loop_header
    %s13 = sphi 0, %s17
    %p14 = scmp.ge.s32.totalorder %s13, 4
    %s23 = sphi 0, %s25
    %s26 = sphi 0, %s23
    %s27 = sphi 0, %s26
    %s43 = sphi 0, %s27
    %s47 = sphi 0, %s47
    %s49 = sphi 0, %s47
    %s50 = sphi 0, %s49
    %s64 = sphi 0, %s50
    %s68 = sphi 0, %s68
    %s70 = sphi 0, %s68
    %s71 = sphi 0, %s70
    %s85 = sphi 0, %s71
    %s89 = sphi 0, %s89
    %s91 = sphi 0, %s89
    %s92 = sphi 0, %s91
    %s106 = sphi 0, %s92
    %s110 = sphi 0, %s110
    %s112 = sphi 0, %s110
    %s113 = sphi 0, %s112
    %s127 = sphi 0, %s113
    %s131 = sphi 0, %s131
    %s133 = sphi 0, %s131
    %s134 = sphi 0, %s133
    %s148 = sphi 0, %s134
    %s152 = sphi 0, %s152
    %s154 = sphi 0, %s152
    %s155 = sphi 0, %s154
    %s169 = sphi 0, %s155
    %s175 = sphi 0, %s177
    %s178 = sphi 0, %s175
    %s179 = sphi 0, %s178
    %s195 = sphi 0, %s179
  $region4: #{simple_cnn_forward.6} parent=0 // loop_header_branch
    %16 = sbr.rel (%p14) target = $region8
  $region5: #{simple_cnn_forward.6} parent=0 // loop_body
    %s18 = ssub.s32 %s13, 1
    %s19 = ssub.s32 %s13, 2
    %s20 = sadd.s32 %s13, 1
    %s21 = ssub.s32 %s13, %s20
    %p22 = scmp.eq.s32.totalorder %s21, 0
    %s24 = sadd.s32 %s23, 1
    %s25 = scalar_select %p22, %s23, %s24
    %p28 = pneg %p22
    %p29 = scmp.eq.s32.totalorder %s13, 1
    %p30 = por %p28, %p29
    %p31 = scmp.ne.s32.totalorder %s23, %s26
    %p32 = scmp.eq.s32.totalorder %s13, 0
    %p33 = por %p31, %p32
    %p34 = scmp.ne.s32.totalorder %s23, %s26
    %p35 = scmp.eq.s32.totalorder %s18, 1
    %p36 = por %p34, %p35
    %p37 = scmp.ne.s32.totalorder %s26, %s27
    %p38 = scmp.eq.s32.totalorder %s18, 0
    %p39 = por %p37, %p38
    %p40 = scmp.ne.s32.totalorder %s26, %s27
    %p41 = scmp.eq.s32.totalorder %s19, 1
    %p42 = por %p40, %p41
    %p44 = scmp.ne.s32.totalorder %s27, %s43
    %p45 = scmp.eq.s32.totalorder %s19, 0
    %p46 = por %p44, %p45
    %s48 = sadd.s32 %s47, 1
    %p51 = scmp.eq.s32.totalorder %s13, 1
    %p52 = scmp.ne.s32.totalorder %s47, %s49
    %p53 = scmp.eq.s32.totalorder %s13, 0
    %p54 = por %p52, %p53
    %p55 = scmp.ne.s32.totalorder %s47, %s49
    %p56 = scmp.eq.s32.totalorder %s18, 1
    %p57 = por %p55, %p56
    %p58 = scmp.ne.s32.totalorder %s49, %s50
    %p59 = scmp.eq.s32.totalorder %s18, 0
    %p60 = por %p58, %p59
    %p61 = scmp.ne.s32.totalorder %s49, %s50
    %p62 = scmp.eq.s32.totalorder %s19, 1
    %p63 = por %p61, %p62
    %p65 = scmp.ne.s32.totalorder %s50, %s64
    %p66 = scmp.eq.s32.totalorder %s19, 0
    %p67 = por %p65, %p66
    %s69 = sadd.s32 %s68, 1
    %p72 = scmp.eq.s32.totalorder %s13, 1
    %p73 = scmp.ne.s32.totalorder %s68, %s70
    %p74 = scmp.eq.s32.totalorder %s13, 0
    %p75 = por %p73, %p74
    %p76 = scmp.ne.s32.totalorder %s68, %s70
    %p77 = scmp.eq.s32.totalorder %s18, 1
    %p78 = por %p76, %p77
    %p79 = scmp.ne.s32.totalorder %s70, %s71
    %p80 = scmp.eq.s32.totalorder %s18, 0
    %p81 = por %p79, %p80
    %p82 = scmp.ne.s32.totalorder %s70, %s71
    %p83 = scmp.eq.s32.totalorder %s19, 1
    %p84 = por %p82, %p83
    %p86 = scmp.ne.s32.totalorder %s71, %s85
    %p87 = scmp.eq.s32.totalorder %s19, 0
    %p88 = por %p86, %p87
    %s90 = sadd.s32 %s89, 1
    %p93 = scmp.eq.s32.totalorder %s13, 1
    %p94 = scmp.ne.s32.totalorder %s89, %s91
    %p95 = scmp.eq.s32.totalorder %s13, 0
    %p96 = por %p94, %p95
    %p97 = scmp.ne.s32.totalorder %s89, %s91
    %p98 = scmp.eq.s32.totalorder %s18, 1
    %p99 = por %p97, %p98
    %p100 = scmp.ne.s32.totalorder %s91, %s92
    %p101 = scmp.eq.s32.totalorder %s18, 0
    %p102 = por %p100, %p101
    %p103 = scmp.ne.s32.totalorder %s91, %s92
    %p104 = scmp.eq.s32.totalorder %s19, 1
    %p105 = por %p103, %p104
    %p107 = scmp.ne.s32.totalorder %s92, %s106
    %p108 = scmp.eq.s32.totalorder %s19, 0
    %p109 = por %p107, %p108
    %s111 = sadd.s32 %s110, 1
    %p114 = scmp.eq.s32.totalorder %s13, 1
    %p115 = scmp.ne.s32.totalorder %s110, %s112
    %p116 = scmp.eq.s32.totalorder %s13, 0
    %p117 = por %p115, %p116
    %p118 = scmp.ne.s32.totalorder %s110, %s112
    %p119 = scmp.eq.s32.totalorder %s18, 1
    %p120 = por %p118, %p119
    %p121 = scmp.ne.s32.totalorder %s112, %s113
    %p122 = scmp.eq.s32.totalorder %s18, 0
    %p123 = por %p121, %p122
    %p124 = scmp.ne.s32.totalorder %s112, %s113
    %p125 = scmp.eq.s32.totalorder %s19, 1
    %p126 = por %p124, %p125
    %p128 = scmp.ne.s32.totalorder %s113, %s127
    %p129 = scmp.eq.s32.totalorder %s19, 0
    %p130 = por %p128, %p129
    %s132 = sadd.s32 %s131, 1
    %p135 = scmp.eq.s32.totalorder %s13, 1
    %p136 = scmp.ne.s32.totalorder %s131, %s133
    %p137 = scmp.eq.s32.totalorder %s13, 0
    %p138 = por %p136, %p137
    %p139 = scmp.ne.s32.totalorder %s131, %s133
    %p140 = scmp.eq.s32.totalorder %s18, 1
    %p141 = por %p139, %p140
    %p142 = scmp.ne.s32.totalorder %s133, %s134
    %p143 = scmp.eq.s32.totalorder %s18, 0
    %p144 = por %p142, %p143
    %p145 = scmp.ne.s32.totalorder %s133, %s134
    %p146 = scmp.eq.s32.totalorder %s19, 1
    %p147 = por %p145, %p146
    %p149 = scmp.ne.s32.totalorder %s134, %s148
    %p150 = scmp.eq.s32.totalorder %s19, 0
    %p151 = por %p149, %p150
    %s153 = sadd.s32 %s152, 1
    %p156 = scmp.eq.s32.totalorder %s13, 1
    %p157 = scmp.ne.s32.totalorder %s152, %s154
    %p158 = scmp.eq.s32.totalorder %s13, 0
    %p159 = por %p157, %p158
    %p160 = scmp.ne.s32.totalorder %s152, %s154
    %p161 = scmp.eq.s32.totalorder %s18, 1
    %p162 = por %p160, %p161
    %p163 = scmp.ne.s32.totalorder %s154, %s155
    %p164 = scmp.eq.s32.totalorder %s18, 0
    %p165 = por %p163, %p164
    %p166 = scmp.ne.s32.totalorder %s154, %s155
    %p167 = scmp.eq.s32.totalorder %s19, 1
    %p168 = por %p166, %p167
    %p170 = scmp.ne.s32.totalorder %s155, %s169
    %p171 = scmp.eq.s32.totalorder %s19, 0
    %p172 = por %p170, %p171
    %s173 = ssub.s32 %s13, %s20
    %p174 = scmp.eq.s32.totalorder %s173, 0
    %s176 = sadd.s32 %s175, 1
    %s177 = scalar_select %p174, %s175, %s176
    %p180 = pneg %p174
    %p181 = scmp.eq.s32.totalorder %s13, 1
    %p182 = por %p180, %p181
    %p183 = scmp.ne.s32.totalorder %s175, %s178
    %p184 = scmp.eq.s32.totalorder %s13, 0
    %p185 = por %p183, %p184
    %p186 = scmp.ne.s32.totalorder %s175, %s178
    %p187 = scmp.eq.s32.totalorder %s18, 1
    %p188 = por %p186, %p187
    %p189 = scmp.ne.s32.totalorder %s178, %s179
    %p190 = scmp.eq.s32.totalorder %s18, 0
    %p191 = por %p189, %p190
    %p192 = scmp.ne.s32.totalorder %s178, %s179
    %p193 = scmp.eq.s32.totalorder %s19, 1
    %p194 = por %p192, %p193
    %p196 = scmp.ne.s32.totalorder %s179, %s195
    %p197 = scmp.eq.s32.totalorder %s19, 0
    %p198 = por %p196, %p197
    %p199 = scmp.le.s32.totalorder 1, %s13
    %p200 = scmp.lt.s32.totalorder %s13, 3
    %p201 = pnand %p199, %p200
    %p202 = pneg %p201
    // Predicated region
    $region9: #{simple_cnn_forward.6} parent=5 // pred_check
      _
    $region10: #{simple_cnn_forward.6} parent=5 // pred_check_branch
      %204 = sbr.rel (%p201) target = $region12
    $region11: #{simple_cnn_forward.6} parent=5 // pred_region
      %s205 = ssub.s32 %s13, 1
      // Predicated region
      $region13: #{simple_cnn_forward.6} parent=11 // pred_check
        %p206 = pneg %p60
      $region14: #{simple_cnn_forward.6} parent=11 // pred_check_branch
        %208 = sbr.rel (%p206) target = $region16
      $region15: #{simple_cnn_forward.6} parent=11 // pred_region
        _
      $region16: #{simple_cnn_forward.6} parent=11 // pred_fallthru
        _
      // Predicated region
      $region17: #{simple_cnn_forward.6} parent=11 // pred_check
        %p209 = pneg %p81
      $region18: #{simple_cnn_forward.6} parent=11 // pred_check_branch
        %211 = sbr.rel (%p209) target = $region20
      $region19: #{simple_cnn_forward.6} parent=11 // pred_region
        _
      $region20: #{simple_cnn_forward.6} parent=11 // pred_fallthru
        _
      // Predicated region
      $region21: #{simple_cnn_forward.6} parent=11 // pred_check
        %p212 = pneg %p102
      $region22: #{simple_cnn_forward.6} parent=11 // pred_check_branch
        %214 = sbr.rel (%p212) target = $region24
      $region23: #{simple_cnn_forward.6} parent=11 // pred_region
        _
      $region24: #{simple_cnn_forward.6} parent=11 // pred_fallthru
        _
      // Predicated region
      $region25: #{simple_cnn_forward.6} parent=11 // pred_check
        %p215 = pneg %p123
      $region26: #{simple_cnn_forward.6} parent=11 // pred_check_branch
        %217 = sbr.rel (%p215) target = $region28
      $region27: #{simple_cnn_forward.6} parent=11 // pred_region
        _
      $region28: #{simple_cnn_forward.6} parent=11 // pred_fallthru
        _
      // Predicated region
      $region29: #{simple_cnn_forward.6} parent=11 // pred_check
        %p218 = pneg %p144
      $region30: #{simple_cnn_forward.6} parent=11 // pred_check_branch
        %220 = sbr.rel (%p218) target = $region32
      $region31: #{simple_cnn_forward.6} parent=11 // pred_region
        _
      $region32: #{simple_cnn_forward.6} parent=11 // pred_fallthru
        _
      // Predicated region
      $region33: #{simple_cnn_forward.6} parent=11 // pred_check
        %p221 = pneg %p165
      $region34: #{simple_cnn_forward.6} parent=11 // pred_check_branch
        %223 = sbr.rel (%p221) target = $region36
      $region35: #{simple_cnn_forward.6} parent=11 // pred_region
        _
      $region36: #{simple_cnn_forward.6} parent=11 // pred_fallthru
        _
    $region12: #{simple_cnn_forward.6} parent=5 // pred_fallthru
      _
    %p224 = scmp.lt.s32.totalorder %s13, 2
    // Predicated region
    $region37: #{simple_cnn_forward.6} parent=5 // pred_check
      %p225 = pneg %p224
    $region38: #{simple_cnn_forward.6} parent=5 // pred_check_branch
      %227 = sbr.rel (%p225) target = $region40
    $region39: #{simple_cnn_forward.6} parent=5 // pred_region
      // Predicated region
      $region41: #{simple_cnn_forward.6} parent=39 // pred_check
        %p228 = pneg %p33
      $region42: #{simple_cnn_forward.6} parent=39 // pred_check_branch
        %230 = sbr.rel (%p228) target = $region44
      $region43: #{simple_cnn_forward.6} parent=39 // pred_region
        %p231 = scmp.lt.s32.totalorder %s13, 1
        %s232 = scalar_select %p231, %s13, 1
        %s233 = smul.addr %s232, 330
        %s234 = smul.addr %s233, 4
        %s235 = scalar_lea.vmem %s0, %s234
      $region44: #{simple_cnn_forward.6} parent=39 // pred_fallthru
        _
    $region40: #{simple_cnn_forward.6} parent=5 // pred_fallthru
      _
    %p236 = scmp.le.s32.totalorder 1, %s13
    %p237 = scmp.lt.s32.totalorder %s13, 3
    %p238 = pnand %p236, %p237
    %p239 = pneg %p238
    // Predicated region
    $region45: #{simple_cnn_forward.6} parent=5 // pred_check
      _
    $region46: #{simple_cnn_forward.6} parent=5 // pred_check_branch
      %241 = sbr.rel (%p238) target = $region48
    $region47: #{simple_cnn_forward.6} parent=5 // pred_region
      %s242 = ssub.s32 %s13, 1
      %p243 = scmp.lt.s32.totalorder %s18, 1
      %s244 = scalar_select %p243, %s18, 1
      %s245 = smul.addr %s244, 330
      %s246 = smul.addr %s245, 4
      %s247 = scalar_lea.vmem %s0, %s246
      %p248 = pneg %p39
      %p249 = pneg %p36
      %p250 = pneg %p60
      %p251 = pneg %p57
      %p252 = pneg %p81
      %p253 = pneg %p78
      %p254 = pneg %p102
      %p255 = pneg %p99
      %p256 = pneg %p123
      %p257 = pneg %p120
      %p258 = pneg %p144
      %p259 = pneg %p141
      %p260 = pneg %p165
      %p261 = pneg %p162
      %p262 = pneg %p191
      %p263 = pneg %p188
      %p264 = scmp.lt.s32.totalorder %s18, 1
      %s265 = scalar_select %p264, %s18, 1
      %s266 = smul.addr %s265, 128
      %s267 = smul.addr %s266, 4
      %s268 = scalar_lea.vmem %s7, %s267
      %p269 = scmp.lt.s32.totalorder %s18, 1
      %s270 = scalar_select %p269, %s18, 1
      %s271 = smul.addr %s270, 330
      %s272 = smul.addr %s271, 4
      %s273 = scalar_lea.vmem %s0, %s272
      %p274 = scmp.lt.s32.totalorder %s18, 1
      %s275 = scalar_select %p274, %s18, 1
      %s276 = smul.addr %s275, 128
      %s277 = smul.addr %s276, 4
      %s278 = scalar_lea.vmem %s7, %s277
      loop: start=0, step=1, limit=32
      $region49: #{simple_cnn_forward.6} parent=47 // loop_pre_header
        _
      $region50: #{simple_cnn_forward.6} parent=47 // loop_header
        %s281 = sphi 0, %s285
        %p282 = scmp.ge.s32.totalorder %s281, 32
      $region51: #{simple_cnn_forward.6} parent=47 // loop_header_branch
        %284 = sbr.rel (%p282) target = $region55
      $region52: #{simple_cnn_forward.6} parent=47 // loop_body
        %s286 = smul.u32 %s281, 10
        %s287 = smul.addr %s286, 4
        %s288 = scalar_lea.vmem %s273, %s287
        %v289 = vld [vmem:[%s288] sm:$0xff]
        %v290 = vld [vmem:[%s288 + $0x8] sm:$0xff]
        %v291 = vld [vmem:[%s288 + $0x10] sm:$0xff]
        %v292 = vld [vmem:[%s288 + $0x18] sm:$0xff]
        %v293 = vld [vmem:[%s288 + $0x20] sm:$0x11]
        %s294 = sadd.s32 %s281, 1
        %s295 = smul.u32 %s294, 10
        %s296 = smul.addr %s295, 4
        %s297 = scalar_lea.vmem %s273, %s296
        %v298 = vld [vmem:[%s297] sm:$0xff]
        %v299 = vld [vmem:[%s297 + $0x8] sm:$0xff]
        %v300 = vld [vmem:[%s297 + $0x10] sm:$0xff]
        %v301 = vld [vmem:[%s297 + $0x18] sm:$0xff]
        %v302 = vld [vmem:[%s297 + $0x20] sm:$0x11]
        %v303 = vld [vmem:[%s1] sm:$0xf]
        %v304 = vld [vmem:[%s1 + $0x4] sm:$0xf]
        %v305 = vld [vmem:[%s1 + $0x8] sm:$0xf]
        %v306 = vld [vmem:[%s1 + $0xc] sm:$0xf]
        %v307 = vld [vmem:[%s1 + $0x10] sm:$0xf]
        %v308 = vld [vmem:[%s1 + $0x14] sm:$0xf]
        %v309 = vld [vmem:[%s1 + $0x18] sm:$0xf]
        %v310 = vld [vmem:[%s1 + $0x1c] sm:$0xf]
        %v311 = vld [vmem:[%s1 + $0x20] sm:$0xf]
        %v312 = vld [vmem:[%s1 + $0x24] sm:$0xf]
        %v313 = vld [vmem:[%s1 + $0x28] sm:$0xf]
        %v314 = vld [vmem:[%s1 + $0x2c] sm:$0xf]
        %v315 = vld [vmem:[%s1 + $0x30] sm:$0xf]
        %v316 = vld [vmem:[%s1 + $0x34] sm:$0xf]
        %v317 = vld [vmem:[%s1 + $0x38] sm:$0xf]
        %v318 = vld [vmem:[%s1 + $0x3c] sm:$0xf]
        %v319 = vld [vmem:[%s1 + $0x40] sm:$0xf]
        %v320 = vld [vmem:[%s1 + $0x44] sm:$0xf]
        %v321 = vld [vmem:[%s1 + $0x48] sm:$0xf]
        %v322 = vld [vmem:[%s1 + $0x4c] sm:$0xf]
        %v323 = vld [vmem:[%s1 + $0x50] sm:$0xf]
        %v324 = vld [vmem:[%s1 + $0x54] sm:$0xf]
        %v325 = vld [vmem:[%s1 + $0x58] sm:$0xf]
        %v326 = vld [vmem:[%s1 + $0x5c] sm:$0xf]
        %v327 = vld [vmem:[%s1 + $0x60] sm:$0xf]
        %v328 = vld [vmem:[%s1 + $0x64] sm:$0xf]
        %v329 = vld [vmem:[%s1 + $0x68] sm:$0xf]
        %v330 = vld [vmem:[%s1 + $0x6c] sm:$0xf]
        %v331 = vld [vmem:[%s1 + $0x70] sm:$0xf]
        %v332 = vld [vmem:[%s1 + $0x74] sm:$0xf]
        %v333 = vld [vmem:[%s1 + $0x78] sm:$0xf]
        %v334 = vld [vmem:[%s1 + $0x7c] sm:$0xf]
        %s335 = scalar_lea.vmem %s1, 256
        %v336 = vld [vmem:[%s335] sm:$0xf]
        %v337 = vld [vmem:[%s335 + $0x4] sm:$0xf]
        %v338 = vld [vmem:[%s335 + $0x8] sm:$0xf]
        %v339 = vld [vmem:[%s335 + $0xc] sm:$0xf]
        %v340 = vld [vmem:[%s335 + $0x10] sm:$0xf]
        %v341 = vld [vmem:[%s335 + $0x14] sm:$0xf]
        %v342 = vld [vmem:[%s335 + $0x18] sm:$0xf]
        %v343 = vld [vmem:[%s335 + $0x1c] sm:$0xf]
        %v344 = vld [vmem:[%s335 + $0x20] sm:$0xf]
        %v345 = vld [vmem:[%s335 + $0x24] sm:$0xf]
        %v346 = vld [vmem:[%s335 + $0x28] sm:$0xf]
        %v347 = vld [vmem:[%s335 + $0x2c] sm:$0xf]
        %v348 = vld [vmem:[%s335 + $0x30] sm:$0xf]
        %v349 = vld [vmem:[%s335 + $0x34] sm:$0xf]
        %v350 = vld [vmem:[%s335 + $0x38] sm:$0xf]
        %v351 = vld [vmem:[%s335 + $0x3c] sm:$0xf]
        %v352 = vld [vmem:[%s335 + $0x40] sm:$0xf]
        %v353 = vld [vmem:[%s335 + $0x44] sm:$0xf]
        %v354 = vld [vmem:[%s335 + $0x48] sm:$0xf]
        %v355 = vld [vmem:[%s335 + $0x4c] sm:$0xf]
        %v356 = vld [vmem:[%s335 + $0x50] sm:$0xf]
        %v357 = vld [vmem:[%s335 + $0x54] sm:$0xf]
        %v358 = vld [vmem:[%s335 + $0x58] sm:$0xf]
        %v359 = vld [vmem:[%s335 + $0x5c] sm:$0xf]
        %v360 = vld [vmem:[%s335 + $0x60] sm:$0xf]
        %v361 = vld [vmem:[%s335 + $0x64] sm:$0xf]
        %v362 = vld [vmem:[%s335 + $0x68] sm:$0xf]
        %v363 = vld [vmem:[%s335 + $0x6c] sm:$0xf]
        %v364 = vld [vmem:[%s335 + $0x70] sm:$0xf]
        %v365 = vld [vmem:[%s335 + $0x74] sm:$0xf]
        %v366 = vld [vmem:[%s335 + $0x78] sm:$0xf]
        %v367 = vld [vmem:[%s335 + $0x7c] sm:$0xf]
        %v373 = vunpack.c.l.b16 %v298
        %v374 = vunpack.c.h.b16 %v298
        %v375 = vunpack.c.l.b16 %v299
        %v376 = vunpack.c.h.b16 %v299
        %v377 = vunpack.c.l.b16 %v300
        %v378 = vunpack.c.h.b16 %v300
        %v379 = vunpack.c.l.b16 %v301
        %v380 = vunpack.c.h.b16 %v301
        %v381 = vunpack.c.l.b16 %v302
        %v382 = vunpack.c.h.b16 %v302
        %v383 = vpack.c.b16 %v375, %v373
        %v384 = vpack.c.b16 %v376, %v374
        %v385 = vpack.c.b16 %v379, %v377
        %v386 = vpack.c.b16 %v380, %v378
        %v387 = vpack.c.b16 %v381, %v381
        %v388 = vpack.c.b16 %v382, %v382
        %v427 = vunpack.c.l.b16 %v336
        %v428 = vunpack.c.l.b16 %v337
        %v429 = vunpack.c.l.b16 %v338
        %v430 = vunpack.c.l.b16 %v339
        %v431 = vunpack.c.l.b16 %v340
        %v432 = vunpack.c.l.b16 %v341
        %v433 = vunpack.c.l.b16 %v342
        %v434 = vunpack.c.l.b16 %v343
        %v435 = vunpack.c.l.b16 %v344
        %v436 = vunpack.c.l.b16 %v345
        %v437 = vunpack.c.l.b16 %v346
        %v438 = vunpack.c.l.b16 %v347
        %v439 = vunpack.c.l.b16 %v348
        %v440 = vunpack.c.l.b16 %v349
        %v441 = vunpack.c.l.b16 %v350
        %v442 = vunpack.c.l.b16 %v351
        %v443 = vunpack.c.l.b16 %v352
        %v444 = vunpack.c.l.b16 %v353
        %v445 = vunpack.c.l.b16 %v354
        %v446 = vunpack.c.l.b16 %v355
        %v447 = vunpack.c.l.b16 %v356
        %v448 = vunpack.c.l.b16 %v357
        %v449 = vunpack.c.l.b16 %v358
        %v450 = vunpack.c.l.b16 %v359
        %v451 = vunpack.c.l.b16 %v360
        %v452 = vunpack.c.l.b16 %v361
        %v453 = vunpack.c.l.b16 %v362
        %v454 = vunpack.c.l.b16 %v363
        %v455 = vunpack.c.l.b16 %v364
        %v456 = vunpack.c.l.b16 %v365
        %v457 = vunpack.c.l.b16 %v366
        %v458 = vunpack.c.l.b16 %v367
        %v459 = vpack.c.b16 %v428, %v427
        %v460 = vpack.c.b16 %v430, %v429
        %v461 = vpack.c.b16 %v432, %v431
        %v462 = vpack.c.b16 %v434, %v433
        %v463 = vpack.c.b16 %v436, %v435
        %v464 = vpack.c.b16 %v438, %v437
        %v465 = vpack.c.b16 %v440, %v439
        %v466 = vpack.c.b16 %v442, %v441
        %v467 = vpack.c.b16 %v444, %v443
        %v468 = vpack.c.b16 %v446, %v445
        %v469 = vpack.c.b16 %v448, %v447
        %v470 = vpack.c.b16 %v450, %v449
        %v471 = vpack.c.b16 %v452, %v451
        %v472 = vpack.c.b16 %v454, %v453
        %v473 = vpack.c.b16 %v456, %v455
        %v474 = vpack.c.b16 %v458, %v457
        %491 = vmatprep.subr.bf16.mxu0 0
        %492 = vmatpush1.bf16.msra.mxu0 %v466
        %493 = vmatprep.subr.bf16.mxu0 0
        %494 = vmatpush1.bf16.msra.mxu0 %v465
        %495 = vmatprep.subr.bf16.mxu0 0
        %496 = vmatpush1.bf16.msra.mxu0 %v464
        %497 = vmatprep.subr.bf16.mxu0 0
        %498 = vmatpush1.bf16.msra.mxu0 %v463
        %499 = vmatprep.subr.bf16.mxu0 0
        %500 = vmatpush1.bf16.msra.mxu0 %v462
        %501 = vmatprep.subr.bf16.mxu0 0
        %502 = vmatpush1.bf16.msra.mxu0 %v461
        %503 = vmatprep.subr.bf16.mxu0 0
        %504 = vmatpush1.bf16.msra.mxu0 %v460
        %505 = vmatprep.subr.bf16.mxu0 0
        %506 = vmatpush1.bf16.msra.mxu0 %v459
        %507 = vmatprep.subr.bf16.mxu0 0
        %508 = vmatpush2.bf16.msra.mxu0 %v474
        %509 = vmatprep.subr.bf16.mxu0 0
        %510 = vmatpush2.bf16.msra.mxu0 %v473
        %511 = vmatprep.subr.bf16.mxu0 0
        %512 = vmatpush2.bf16.msra.mxu0 %v472
        %513 = vmatprep.subr.bf16.mxu0 0
        %514 = vmatpush2.bf16.msra.mxu0 %v471
        %515 = vmatprep.subr.bf16.mxu0 0
        %516 = vmatpush2.bf16.msra.mxu0 %v470
        %517 = vmatprep.subr.bf16.mxu0 0
        %518 = vmatpush2.bf16.msra.mxu0 %v469
        %519 = vmatprep.subr.bf16.mxu0 0
        %520 = vmatpush2.bf16.msra.mxu0 %v468
        %521 = vmatprep.subr.bf16.mxu0 0
        %522 = vmatpush2.bf16.msra.mxu0 %v467
        %523 = vmatprep.mubr.bf16.mxu0 %v384
        %524 = vmatmul.mubr.bf16.gmra.mxu0 %v383
        %v525 = vpop.f32.mrf.mxu0
        %v526 = vadd.f32 0.0, %v525
        %v527 = vpop.f32.mrf.mxu0
        %v528 = vpop.f32.mrf.mxu0
        %v529 = vadd.f32 0.0, %v528
        %v530 = vpop.f32.mrf.mxu0
        %531 = vmatprep.mubr.bf16.mxu0 %v386
        %532 = vmatmul.mubr.bf16.gmra.mxu0 %v385
        %v533 = vpop.f32.mrf.mxu0
        %v534 = vadd.f32 0.0, %v533
        %v535 = vpop.f32.mrf.mxu0
        %v536 = vpop.f32.mrf.mxu0
        %v537 = vadd.f32 0.0, %v536
        %v538 = vpop.f32.mrf.mxu0
        %539 = vmatprep.mubr.bf16.mxu0 %v388
        %540 = vmatmul.mubr.bf16.gmra.mxu0 %v387
        %v541 = vpop.f32.mrf.mxu0
        %v542 = vpop.f32.mrf.mxu0
        %v543 = vpop.f32.mrf.mxu0
        %v544 = vpop.f32.mrf.mxu0
        %545 = vdwg.mxu0
        %v551 = vunpack.c.l.b16 %v289
        %v552 = vunpack.c.h.b16 %v289
        %v553 = vunpack.c.l.b16 %v290
        %v554 = vunpack.c.h.b16 %v290
        %v555 = vunpack.c.l.b16 %v291
        %v556 = vunpack.c.h.b16 %v291
        %v557 = vunpack.c.l.b16 %v292
        %v558 = vunpack.c.h.b16 %v292
        %v559 = vunpack.c.l.b16 %v293
        %v560 = vunpack.c.h.b16 %v293
        %v561 = vpack.c.b16 %v553, %v551
        %v562 = vpack.c.b16 %v554, %v552
        %v563 = vpack.c.b16 %v557, %v555
        %v564 = vpack.c.b16 %v558, %v556
        %v565 = vpack.c.b16 %v559, %v559
        %v566 = vpack.c.b16 %v560, %v560
        %v605 = vunpack.c.l.b16 %v303
        %v606 = vunpack.c.l.b16 %v304
        %v607 = vunpack.c.l.b16 %v305
        %v608 = vunpack.c.l.b16 %v306
        %v609 = vunpack.c.l.b16 %v307
        %v610 = vunpack.c.l.b16 %v308
        %v611 = vunpack.c.l.b16 %v309
        %v612 = vunpack.c.l.b16 %v310
        %v613 = vunpack.c.l.b16 %v311
        %v614 = vunpack.c.l.b16 %v312
        %v615 = vunpack.c.l.b16 %v313
        %v616 = vunpack.c.l.b16 %v314
        %v617 = vunpack.c.l.b16 %v315
        %v618 = vunpack.c.l.b16 %v316
        %v619 = vunpack.c.l.b16 %v317
        %v620 = vunpack.c.l.b16 %v318
        %v621 = vunpack.c.l.b16 %v319
        %v622 = vunpack.c.l.b16 %v320
        %v623 = vunpack.c.l.b16 %v321
        %v624 = vunpack.c.l.b16 %v322
        %v625 = vunpack.c.l.b16 %v323
        %v626 = vunpack.c.l.b16 %v324
        %v627 = vunpack.c.l.b16 %v325
        %v628 = vunpack.c.l.b16 %v326
        %v629 = vunpack.c.l.b16 %v327
        %v630 = vunpack.c.l.b16 %v328
        %v631 = vunpack.c.l.b16 %v329
        %v632 = vunpack.c.l.b16 %v330
        %v633 = vunpack.c.l.b16 %v331
        %v634 = vunpack.c.l.b16 %v332
        %v635 = vunpack.c.l.b16 %v333
        %v636 = vunpack.c.l.b16 %v334
        %v637 = vpack.c.b16 %v606, %v605
        %v638 = vpack.c.b16 %v608, %v607
        %v639 = vpack.c.b16 %v610, %v609
        %v640 = vpack.c.b16 %v612, %v611
        %v641 = vpack.c.b16 %v614, %v613
        %v642 = vpack.c.b16 %v616, %v615
        %v643 = vpack.c.b16 %v618, %v617
        %v644 = vpack.c.b16 %v620, %v619
        %v645 = vpack.c.b16 %v622, %v621
        %v646 = vpack.c.b16 %v624, %v623
        %v647 = vpack.c.b16 %v626, %v625
        %v648 = vpack.c.b16 %v628, %v627
        %v649 = vpack.c.b16 %v630, %v629
        %v650 = vpack.c.b16 %v632, %v631
        %v651 = vpack.c.b16 %v634, %v633
        %v652 = vpack.c.b16 %v636, %v635
        %669 = vmatprep.subr.bf16.mxu0 0
        %670 = vmatpush1.bf16.msra.mxu0 %v644
        %671 = vmatprep.subr.bf16.mxu0 0
        %672 = vmatpush1.bf16.msra.mxu0 %v643
        %673 = vmatprep.subr.bf16.mxu0 0
        %674 = vmatpush1.bf16.msra.mxu0 %v642
        %675 = vmatprep.subr.bf16.mxu0 0
        %676 = vmatpush1.bf16.msra.mxu0 %v641
        %677 = vmatprep.subr.bf16.mxu0 0
        %678 = vmatpush1.bf16.msra.mxu0 %v640
        %679 = vmatprep.subr.bf16.mxu0 0
        %680 = vmatpush1.bf16.msra.mxu0 %v639
        %681 = vmatprep.subr.bf16.mxu0 0
        %682 = vmatpush1.bf16.msra.mxu0 %v638
        %683 = vmatprep.subr.bf16.mxu0 0
        %684 = vmatpush1.bf16.msra.mxu0 %v637
        %685 = vmatprep.subr.bf16.mxu0 0
        %686 = vmatpush2.bf16.msra.mxu0 %v652
        %687 = vmatprep.subr.bf16.mxu0 0
        %688 = vmatpush2.bf16.msra.mxu0 %v651
        %689 = vmatprep.subr.bf16.mxu0 0
        %690 = vmatpush2.bf16.msra.mxu0 %v650
        %691 = vmatprep.subr.bf16.mxu0 0
        %692 = vmatpush2.bf16.msra.mxu0 %v649
        %693 = vmatprep.subr.bf16.mxu0 0
        %694 = vmatpush2.bf16.msra.mxu0 %v648
        %695 = vmatprep.subr.bf16.mxu0 0
        %696 = vmatpush2.bf16.msra.mxu0 %v647
        %697 = vmatprep.subr.bf16.mxu0 0
        %698 = vmatpush2.bf16.msra.mxu0 %v646
        %699 = vmatprep.subr.bf16.mxu0 0
        %700 = vmatpush2.bf16.msra.mxu0 %v645
        %701 = vmatprep.mubr.bf16.mxu0 %v562
        %702 = vmatmul.mubr.bf16.gmra.mxu0 %v561
        %v703 = vpop.f32.mrf.mxu0
        %v704 = vadd.f32 %v526, %v703
        %v705 = vpop.f32.mrf.mxu0
        %v706 = vpop.f32.mrf.mxu0
        %v707 = vadd.f32 %v529, %v706
        %v708 = vpop.f32.mrf.mxu0
        %709 = vmatprep.mubr.bf16.mxu0 %v564
        %710 = vmatmul.mubr.bf16.gmra.mxu0 %v563
        %v711 = vpop.f32.mrf.mxu0
        %v712 = vadd.f32 %v534, %v711
        %v713 = vpop.f32.mrf.mxu0
        %v714 = vpop.f32.mrf.mxu0
        %v715 = vadd.f32 %v537, %v714
        %v716 = vpop.f32.mrf.mxu0
        %717 = vmatprep.mubr.bf16.mxu0 %v566
        %718 = vmatmul.mubr.bf16.gmra.mxu0 %v565
        %v719 = vpop.f32.mrf.mxu0
        %v720 = vpop.f32.mrf.mxu0
        %v721 = vpop.f32.mrf.mxu0
        %v722 = vpop.f32.mrf.mxu0
        %723 = vdwg.mxu0
        %s724 = scalar_lea.vmem %s1, 128
        %v725 = vld [vmem:[%s724] sm:$0xf]
        %v726 = vld [vmem:[%s724 + $0x4] sm:$0xf]
        %v727 = vld [vmem:[%s724 + $0x8] sm:$0xf]
        %v728 = vld [vmem:[%s724 + $0xc] sm:$0xf]
        %v729 = vld [vmem:[%s724 + $0x10] sm:$0xf]
        %v730 = vld [vmem:[%s724 + $0x14] sm:$0xf]
        %v731 = vld [vmem:[%s724 + $0x18] sm:$0xf]
        %v732 = vld [vmem:[%s724 + $0x1c] sm:$0xf]
        %v733 = vld [vmem:[%s724 + $0x20] sm:$0xf]
        %v734 = vld [vmem:[%s724 + $0x24] sm:$0xf]
        %v735 = vld [vmem:[%s724 + $0x28] sm:$0xf]
        %v736 = vld [vmem:[%s724 + $0x2c] sm:$0xf]
        %v737 = vld [vmem:[%s724 + $0x30] sm:$0xf]
        %v738 = vld [vmem:[%s724 + $0x34] sm:$0xf]
        %v739 = vld [vmem:[%s724 + $0x38] sm:$0xf]
        %v740 = vld [vmem:[%s724 + $0x3c] sm:$0xf]
        %v741 = vld [vmem:[%s724 + $0x40] sm:$0xf]
        %v742 = vld [vmem:[%s724 + $0x44] sm:$0xf]
        %v743 = vld [vmem:[%s724 + $0x48] sm:$0xf]
        %v744 = vld [vmem:[%s724 + $0x4c] sm:$0xf]
        %v745 = vld [vmem:[%s724 + $0x50] sm:$0xf]
        %v746 = vld [vmem:[%s724 + $0x54] sm:$0xf]
        %v747 = vld [vmem:[%s724 + $0x58] sm:$0xf]
        %v748 = vld [vmem:[%s724 + $0x5c] sm:$0xf]
        %v749 = vld [vmem:[%s724 + $0x60] sm:$0xf]
        %v750 = vld [vmem:[%s724 + $0x64] sm:$0xf]
        %v751 = vld [vmem:[%s724 + $0x68] sm:$0xf]
        %v752 = vld [vmem:[%s724 + $0x6c] sm:$0xf]
        %v753 = vld [vmem:[%s724 + $0x70] sm:$0xf]
        %v754 = vld [vmem:[%s724 + $0x74] sm:$0xf]
        %v755 = vld [vmem:[%s724 + $0x78] sm:$0xf]
        %v756 = vld [vmem:[%s724 + $0x7c] sm:$0xf]
        %s757 = scalar_lea.vmem %s1, 384
        %v758 = vld [vmem:[%s757] sm:$0xf]
        %v759 = vld [vmem:[%s757 + $0x4] sm:$0xf]
        %v760 = vld [vmem:[%s757 + $0x8] sm:$0xf]
        %v761 = vld [vmem:[%s757 + $0xc] sm:$0xf]
        %v762 = vld [vmem:[%s757 + $0x10] sm:$0xf]
        %v763 = vld [vmem:[%s757 + $0x14] sm:$0xf]
        %v764 = vld [vmem:[%s757 + $0x18] sm:$0xf]
        %v765 = vld [vmem:[%s757 + $0x1c] sm:$0xf]
        %v766 = vld [vmem:[%s757 + $0x20] sm:$0xf]
        %v767 = vld [vmem:[%s757 + $0x24] sm:$0xf]
        %v768 = vld [vmem:[%s757 + $0x28] sm:$0xf]
        %v769 = vld [vmem:[%s757 + $0x2c] sm:$0xf]
        %v770 = vld [vmem:[%s757 + $0x30] sm:$0xf]
        %v771 = vld [vmem:[%s757 + $0x34] sm:$0xf]
        %v772 = vld [vmem:[%s757 + $0x38] sm:$0xf]
        %v773 = vld [vmem:[%s757 + $0x3c] sm:$0xf]
        %v774 = vld [vmem:[%s757 + $0x40] sm:$0xf]
        %v775 = vld [vmem:[%s757 + $0x44] sm:$0xf]
        %v776 = vld [vmem:[%s757 + $0x48] sm:$0xf]
        %v777 = vld [vmem:[%s757 + $0x4c] sm:$0xf]
        %v778 = vld [vmem:[%s757 + $0x50] sm:$0xf]
        %v779 = vld [vmem:[%s757 + $0x54] sm:$0xf]
        %v780 = vld [vmem:[%s757 + $0x58] sm:$0xf]
        %v781 = vld [vmem:[%s757 + $0x5c] sm:$0xf]
        %v782 = vld [vmem:[%s757 + $0x60] sm:$0xf]
        %v783 = vld [vmem:[%s757 + $0x64] sm:$0xf]
        %v784 = vld [vmem:[%s757 + $0x68] sm:$0xf]
        %v785 = vld [vmem:[%s757 + $0x6c] sm:$0xf]
        %v786 = vld [vmem:[%s757 + $0x70] sm:$0xf]
        %v787 = vld [vmem:[%s757 + $0x74] sm:$0xf]
        %v788 = vld [vmem:[%s757 + $0x78] sm:$0xf]
        %v789 = vld [vmem:[%s757 + $0x7c] sm:$0xf]
        %v822 = vunpack.c.l.b16 %v758
        %v823 = vunpack.c.l.b16 %v759
        %v824 = vunpack.c.l.b16 %v760
        %v825 = vunpack.c.l.b16 %v761
        %v826 = vunpack.c.l.b16 %v762
        %v827 = vunpack.c.l.b16 %v763
        %v828 = vunpack.c.l.b16 %v764
        %v829 = vunpack.c.l.b16 %v765
        %v830 = vunpack.c.l.b16 %v766
        %v831 = vunpack.c.l.b16 %v767
        %v832 = vunpack.c.l.b16 %v768
        %v833 = vunpack.c.l.b16 %v769
        %v834 = vunpack.c.l.b16 %v770
        %v835 = vunpack.c.l.b16 %v771
        %v836 = vunpack.c.l.b16 %v772
        %v837 = vunpack.c.l.b16 %v773
        %v838 = vunpack.c.l.b16 %v774
        %v839 = vunpack.c.l.b16 %v775
        %v840 = vunpack.c.l.b16 %v776
        %v841 = vunpack.c.l.b16 %v777
        %v842 = vunpack.c.l.b16 %v778
        %v843 = vunpack.c.l.b16 %v779
        %v844 = vunpack.c.l.b16 %v780
        %v845 = vunpack.c.l.b16 %v781
        %v846 = vunpack.c.l.b16 %v782
        %v847 = vunpack.c.l.b16 %v783
        %v848 = vunpack.c.l.b16 %v784
        %v849 = vunpack.c.l.b16 %v785
        %v850 = vunpack.c.l.b16 %v786
        %v851 = vunpack.c.l.b16 %v787
        %v852 = vunpack.c.l.b16 %v788
        %v853 = vunpack.c.l.b16 %v789
        %v854 = vpack.c.b16 %v823, %v822
        %v855 = vpack.c.b16 %v825, %v824
        %v856 = vpack.c.b16 %v827, %v826
        %v857 = vpack.c.b16 %v829, %v828
        %v858 = vpack.c.b16 %v831, %v830
        %v859 = vpack.c.b16 %v833, %v832
        %v860 = vpack.c.b16 %v835, %v834
        %v861 = vpack.c.b16 %v837, %v836
        %v862 = vpack.c.b16 %v839, %v838
        %v863 = vpack.c.b16 %v841, %v840
        %v864 = vpack.c.b16 %v843, %v842
        %v865 = vpack.c.b16 %v845, %v844
        %v866 = vpack.c.b16 %v847, %v846
        %v867 = vpack.c.b16 %v849, %v848
        %v868 = vpack.c.b16 %v851, %v850
        %v869 = vpack.c.b16 %v853, %v852
        %886 = vmatprep.subr.bf16.mxu0 0
        %887 = vmatpush1.bf16.msra.mxu0 %v861
        %888 = vmatprep.subr.bf16.mxu0 0
        %889 = vmatpush1.bf16.msra.mxu0 %v860
        %890 = vmatprep.subr.bf16.mxu0 0
        %891 = vmatpush1.bf16.msra.mxu0 %v859
        %892 = vmatprep.subr.bf16.mxu0 0
        %893 = vmatpush1.bf16.msra.mxu0 %v858
        %894 = vmatprep.subr.bf16.mxu0 0
        %895 = vmatpush1.bf16.msra.mxu0 %v857
        %896 = vmatprep.subr.bf16.mxu0 0
        %897 = vmatpush1.bf16.msra.mxu0 %v856
        %898 = vmatprep.subr.bf16.mxu0 0
        %899 = vmatpush1.bf16.msra.mxu0 %v855
        %900 = vmatprep.subr.bf16.mxu0 0
        %901 = vmatpush1.bf16.msra.mxu0 %v854
        %902 = vmatprep.subr.bf16.mxu0 0
        %903 = vmatpush2.bf16.msra.mxu0 %v869
        %904 = vmatprep.subr.bf16.mxu0 0
        %905 = vmatpush2.bf16.msra.mxu0 %v868
        %906 = vmatprep.subr.bf16.mxu0 0
        %907 = vmatpush2.bf16.msra.mxu0 %v867
        %908 = vmatprep.subr.bf16.mxu0 0
        %909 = vmatpush2.bf16.msra.mxu0 %v866
        %910 = vmatprep.subr.bf16.mxu0 0
        %911 = vmatpush2.bf16.msra.mxu0 %v865
        %912 = vmatprep.subr.bf16.mxu0 0
        %913 = vmatpush2.bf16.msra.mxu0 %v864
        %914 = vmatprep.subr.bf16.mxu0 0
        %915 = vmatpush2.bf16.msra.mxu0 %v863
        %916 = vmatprep.subr.bf16.mxu0 0
        %917 = vmatpush2.bf16.msra.mxu0 %v862
        %918 = vmatprep.mubr.bf16.mxu0 %v384
        %919 = vmatmul.mubr.bf16.gmra.mxu0 %v383
        %v920 = vpop.f32.mrf.mxu0
        %v921 = vadd.f32 0.0, %v920
        %v922 = vpop.f32.mrf.mxu0
        %v923 = vpop.f32.mrf.mxu0
        %v924 = vadd.f32 0.0, %v923
        %v925 = vpop.f32.mrf.mxu0
        %926 = vmatprep.mubr.bf16.mxu0 %v386
        %927 = vmatmul.mubr.bf16.gmra.mxu0 %v385
        %v928 = vpop.f32.mrf.mxu0
        %v929 = vadd.f32 0.0, %v928
        %v930 = vpop.f32.mrf.mxu0
        %v931 = vpop.f32.mrf.mxu0
        %v932 = vadd.f32 0.0, %v931
        %v933 = vpop.f32.mrf.mxu0
        %934 = vmatprep.mubr.bf16.mxu0 %v388
        %935 = vmatmul.mubr.bf16.gmra.mxu0 %v387
        %v936 = vpop.f32.mrf.mxu0
        %v937 = vadd.f32 0.0, %v936
        %v938 = vpop.f32.mrf.mxu0
        %v939 = vpop.f32.mrf.mxu0
        %v940 = vpop.f32.mrf.mxu0
        %941 = vdwg.mxu0
        %v974 = vunpack.c.l.b16 %v725
        %v975 = vunpack.c.l.b16 %v726
        %v976 = vunpack.c.l.b16 %v727
        %v977 = vunpack.c.l.b16 %v728
        %v978 = vunpack.c.l.b16 %v729
        %v979 = vunpack.c.l.b16 %v730
        %v980 = vunpack.c.l.b16 %v731
        %v981 = vunpack.c.l.b16 %v732
        %v982 = vunpack.c.l.b16 %v733
        %v983 = vunpack.c.l.b16 %v734
        %v984 = vunpack.c.l.b16 %v735
        %v985 = vunpack.c.l.b16 %v736
        %v986 = vunpack.c.l.b16 %v737
        %v987 = vunpack.c.l.b16 %v738
        %v988 = vunpack.c.l.b16 %v739
        %v989 = vunpack.c.l.b16 %v740
        %v990 = vunpack.c.l.b16 %v741
        %v991 = vunpack.c.l.b16 %v742
        %v992 = vunpack.c.l.b16 %v743
        %v993 = vunpack.c.l.b16 %v744
        %v994 = vunpack.c.l.b16 %v745
        %v995 = vunpack.c.l.b16 %v746
        %v996 = vunpack.c.l.b16 %v747
        %v997 = vunpack.c.l.b16 %v748
        %v998 = vunpack.c.l.b16 %v749
        %v999 = vunpack.c.l.b16 %v750
        %v1000 = vunpack.c.l.b16 %v751
        %v1001 = vunpack.c.l.b16 %v752
        %v1002 = vunpack.c.l.b16 %v753
        %v1003 = vunpack.c.l.b16 %v754
        %v1004 = vunpack.c.l.b16 %v755
        %v1005 = vunpack.c.l.b16 %v756
        %v1006 = vpack.c.b16 %v975, %v974
        %v1007 = vpack.c.b16 %v977, %v976
        %v1008 = vpack.c.b16 %v979, %v978
        %v1009 = vpack.c.b16 %v981, %v980
        %v1010 = vpack.c.b16 %v983, %v982
        %v1011 = vpack.c.b16 %v985, %v984
        %v1012 = vpack.c.b16 %v987, %v986
        %v1013 = vpack.c.b16 %v989, %v988
        %v1014 = vpack.c.b16 %v991, %v990
        %v1015 = vpack.c.b16 %v993, %v992
        %v1016 = vpack.c.b16 %v995, %v994
        %v1017 = vpack.c.b16 %v997, %v996
        %v1018 = vpack.c.b16 %v999, %v998
        %v1019 = vpack.c.b16 %v1001, %v1000
        %v1020 = vpack.c.b16 %v1003, %v1002
        %v1021 = vpack.c.b16 %v1005, %v1004
        %1038 = vmatprep.subr.bf16.mxu0 0
        %1039 = vmatpush1.bf16.msra.mxu0 %v1013
        %1040 = vmatprep.subr.bf16.mxu0 0
        %1041 = vmatpush1.bf16.msra.mxu0 %v1012
        %1042 = vmatprep.subr.bf16.mxu0 0
        %1043 = vmatpush1.bf16.msra.mxu0 %v1011
        %1044 = vmatprep.subr.bf16.mxu0 0
        %1045 = vmatpush1.bf16.msra.mxu0 %v1010
        %1046 = vmatprep.subr.bf16.mxu0 0
        %1047 = vmatpush1.bf16.msra.mxu0 %v1009
        %1048 = vmatprep.subr.bf16.mxu0 0
        %1049 = vmatpush1.bf16.msra.mxu0 %v1008
        %1050 = vmatprep.subr.bf16.mxu0 0
        %1051 = vmatpush1.bf16.msra.mxu0 %v1007
        %1052 = vmatprep.subr.bf16.mxu0 0
        %1053 = vmatpush1.bf16.msra.mxu0 %v1006
        %1054 = vmatprep.subr.bf16.mxu0 0
        %1055 = vmatpush2.bf16.msra.mxu0 %v1021
        %1056 = vmatprep.subr.bf16.mxu0 0
        %1057 = vmatpush2.bf16.msra.mxu0 %v1020
        %1058 = vmatprep.subr.bf16.mxu0 0
        %1059 = vmatpush2.bf16.msra.mxu0 %v1019
        %1060 = vmatprep.subr.bf16.mxu0 0
        %1061 = vmatpush2.bf16.msra.mxu0 %v1018
        %1062 = vmatprep.subr.bf16.mxu0 0
        %1063 = vmatpush2.bf16.msra.mxu0 %v1017
        %1064 = vmatprep.subr.bf16.mxu0 0
        %1065 = vmatpush2.bf16.msra.mxu0 %v1016
        %1066 = vmatprep.subr.bf16.mxu0 0
        %1067 = vmatpush2.bf16.msra.mxu0 %v1015
        %1068 = vmatprep.subr.bf16.mxu0 0
        %1069 = vmatpush2.bf16.msra.mxu0 %v1014
        %1070 = vmatprep.mubr.bf16.mxu0 %v562
        %1071 = vmatmul.mubr.bf16.gmra.mxu0 %v561
        %v1072 = vpop.f32.mrf.mxu0
        %v1073 = vadd.f32 %v921, %v1072
        %v1074 = vpop.f32.mrf.mxu0
        %v1075 = vpop.f32.mrf.mxu0
        %v1076 = vadd.f32 %v924, %v1075
        %v1077 = vpop.f32.mrf.mxu0
        %1078 = vmatprep.mubr.bf16.mxu0 %v564
        %1079 = vmatmul.mubr.bf16.gmra.mxu0 %v563
        %v1080 = vpop.f32.mrf.mxu0
        %v1081 = vadd.f32 %v929, %v1080
        %v1082 = vpop.f32.mrf.mxu0
        %v1083 = vpop.f32.mrf.mxu0
        %v1084 = vadd.f32 %v932, %v1083
        %v1085 = vpop.f32.mrf.mxu0
        %1086 = vmatprep.mubr.bf16.mxu0 %v566
        %1087 = vmatmul.mubr.bf16.gmra.mxu0 %v565
        %v1088 = vpop.f32.mrf.mxu0
        %v1089 = vadd.f32 %v937, %v1088
        %v1090 = vpop.f32.mrf.mxu0
        %v1091 = vpop.f32.mrf.mxu0
        %v1092 = vpop.f32.mrf.mxu0
        %1093 = vdwg.mxu0
        %vm1094 = vcmask 1047553
        %v1095 = vrot.slane %v1073, 7
        %v1096 = vsel %vm1094, %v1095, %v1089
        %vm1102 = vcmask 1046528
        %v1103 = vrot.slane %v1073, 1
        %v1104 = vrot.slane %v1076, 1
        %v1105 = vsel %vm1102, %v1103, %v1104
        %v1106 = vrot.slane %v1081, 1
        %v1107 = vsel %vm1102, %v1104, %v1106
        %v1108 = vrot.slane %v1084, 1
        %v1109 = vsel %vm1102, %v1106, %v1108
        %v1110 = vrot.slane %v1096, 1
        %v1111 = vsel %vm1102, %v1108, %v1110
        %v1116 = vadd.f32 %v704, %v1105
        %v1117 = vadd.f32 %v707, %v1107
        %v1118 = vadd.f32 %v712, %v1109
        %v1119 = vadd.f32 %v715, %v1111
        %v1120 = vld [vmem:[%s2] sm:$0x1]
        %v1122 = vlaneseq
        %v1123 = vshrl.u32 %v1122, 7
        %v1124 = vsub.s32 0, %v1123
        %v1125 = vrot.slane %v1120, %v1124
        %v1127 = vadd.f32 %v1116, %v1125
        %v1128 = vadd.f32 %v1117, %v1125
        %v1129 = vadd.f32 %v1118, %v1125
        %v1130 = vadd.f32 %v1119, %v1125
        %v1131 = vmul.f32 %v1127, 0.70710677
        %v1132 = vmul.f32 %v1128, 0.70710677
        %v1133 = vmul.f32 %v1129, 0.70710677
        %v1134 = vmul.f32 %v1130, 0.70710677
        %vm1135 = vcmp.ge.f32.partialorder %v1131, 0.0
        %vm1136 = vcmp.ge.f32.partialorder %v1132, 0.0
        %vm1137 = vcmp.ge.f32.partialorder %v1133, 0.0
        %vm1138 = vcmp.ge.f32.partialorder %v1134, 0.0
        %v1139 = vsel %vm1135, 1.0, -1.0
        %v1140 = vsel %vm1136, 1.0, -1.0
        %v1141 = vsel %vm1137, 1.0, -1.0
        %v1142 = vsel %vm1138, 1.0, -1.0
        %v1143 = vand.u32 2147483647, %v1131
        %v1144 = vand.u32 2147483647, %v1132
        %v1145 = vand.u32 2147483647, %v1133
        %v1146 = vand.u32 2147483647, %v1134
        %v1147 = vmul.f32 %v1143, 0.3275911
        %v1148 = vmul.f32 %v1144, 0.3275911
        %v1149 = vmul.f32 %v1145, 0.3275911
        %v1150 = vmul.f32 %v1146, 0.3275911
        %v1151 = vadd.f32 %v1147, 1.0
        %v1152 = vadd.f32 %v1148, 1.0
        %v1153 = vadd.f32 %v1149, 1.0
        %v1154 = vadd.f32 %v1150, 1.0
        %v1155 = vrcp.pop %v1151
        %v1156 = vrcp.pop %v1152
        %v1157 = vrcp.pop %v1153
        %v1158 = vrcp.pop %v1154
        %v1159 = vmul.f32 %v1155, 1.0614054
        %v1160 = vmul.f32 %v1156, 1.0614054
        %v1161 = vmul.f32 %v1157, 1.0614054
        %v1162 = vmul.f32 %v1158, 1.0614054
        %v1163 = vsub.f32 %v1159, 1.4531521
        %v1164 = vsub.f32 %v1160, 1.4531521
        %v1165 = vsub.f32 %v1161, 1.4531521
        %v1166 = vsub.f32 %v1162, 1.4531521
        %v1167 = vmul.f32 %v1163, %v1155
        %v1168 = vmul.f32 %v1164, %v1156
        %v1169 = vmul.f32 %v1165, %v1157
        %v1170 = vmul.f32 %v1166, %v1158
        %v1171 = vadd.f32 %v1167, 1.4214138
        %v1172 = vadd.f32 %v1168, 1.4214138
        %v1173 = vadd.f32 %v1169, 1.4214138
        %v1174 = vadd.f32 %v1170, 1.4214138
        %v1175 = vmul.f32 %v1171, %v1155
        %v1176 = vmul.f32 %v1172, %v1156
        %v1177 = vmul.f32 %v1173, %v1157
        %v1178 = vmul.f32 %v1174, %v1158
        %v1179 = vsub.f32 %v1175, 0.28449672
        %v1180 = vsub.f32 %v1176, 0.28449672
        %v1181 = vsub.f32 %v1177, 0.28449672
        %v1182 = vsub.f32 %v1178, 0.28449672
        %v1183 = vmul.f32 %v1179, %v1155
        %v1184 = vmul.f32 %v1180, %v1156
        %v1185 = vmul.f32 %v1181, %v1157
        %v1186 = vmul.f32 %v1182, %v1158
        %v1187 = vadd.f32 %v1183, 0.2548296
        %v1188 = vadd.f32 %v1184, 0.2548296
        %v1189 = vadd.f32 %v1185, 0.2548296
        %v1190 = vadd.f32 %v1186, 0.2548296
        %v1191 = vmul.f32 %v1187, %v1155
        %v1192 = vmul.f32 %v1188, %v1156
        %v1193 = vmul.f32 %v1189, %v1157
        %v1194 = vmul.f32 %v1190, %v1158
        %v1195 = vsub.f32 0.0, %v1143
        %v1196 = vsub.f32 0.0, %v1144
        %v1197 = vsub.f32 0.0, %v1145
        %v1198 = vsub.f32 0.0, %v1146
        %v1199 = vmul.f32 %v1195, %v1143
        %v1200 = vmul.f32 %v1196, %v1144
        %v1201 = vmul.f32 %v1197, %v1145
        %v1202 = vmul.f32 %v1198, %v1146
        %v1203 = vmul.f32 %v1199, 1.442695
        %v1204 = vpow.pop %v1203
        %v1205 = vmul.f32 %v1200, 1.442695
        %v1206 = vpow.pop %v1205
        %v1207 = vmul.f32 %v1201, 1.442695
        %v1208 = vpow.pop %v1207
        %v1209 = vmul.f32 %v1202, 1.442695
        %v1210 = vpow.pop %v1209
        %v1211 = vmul.f32 %v1191, %v1204
        %v1212 = vmul.f32 %v1192, %v1206
        %v1213 = vmul.f32 %v1193, %v1208
        %v1214 = vmul.f32 %v1194, %v1210
        %v1215 = vsub.f32 1.0, %v1211
        %v1216 = vsub.f32 1.0, %v1212
        %v1217 = vsub.f32 1.0, %v1213
        %v1218 = vsub.f32 1.0, %v1214
        %v1219 = vmul.f32 %v1139, %v1215
        %v1220 = vmul.f32 %v1140, %v1216
        %v1221 = vmul.f32 %v1141, %v1217
        %v1222 = vmul.f32 %v1142, %v1218
        %v1223 = vmul.f32 %v1127, 0.5
        %v1224 = vmul.f32 %v1128, 0.5
        %v1225 = vmul.f32 %v1129, 0.5
        %v1226 = vmul.f32 %v1130, 0.5
        %v1227 = vadd.f32 %v1219, 1.0
        %v1228 = vadd.f32 %v1220, 1.0
        %v1229 = vadd.f32 %v1221, 1.0
        %v1230 = vadd.f32 %v1222, 1.0
        %v1231 = vmul.f32 %v1223, %v1227
        %v1232 = vmul.f32 %v1224, %v1228
        %v1233 = vmul.f32 %v1225, %v1229
        %v1234 = vmul.f32 %v1226, %v1230
        %v1235 = vld [vmem:[%s3] sm:$0xf]
        %v1236 = vld [vmem:[%s3 + $0x4] sm:$0xf]
        %v1237 = vld [vmem:[%s3 + $0x8] sm:$0xf]
        %v1238 = vld [vmem:[%s3 + $0xc] sm:$0xf]
        %v1239 = vld [vmem:[%s4] sm:$0x1]
        %v1240 = vpack.c.bf16 %v1232, %v1231
        %v1241 = vpack.c.bf16 %v1234, %v1233
        %v1243 = vlaneseq
        %v1244 = vshrl.u32 %v1243, 7
        %v1245 = vsub.s32 0, %v1244
        %v1246 = vrot.slane %v1239, %v1245
        %v1252 = vunpack.c.l.b16 %v1235
        %v1253 = vunpack.c.l.b16 %v1236
        %v1254 = vunpack.c.l.b16 %v1237
        %v1255 = vunpack.c.l.b16 %v1238
        %v1256 = vpack.c.b16 %v1253, %v1252
        %v1257 = vpack.c.b16 %v1255, %v1254
        %vm1260 = vcmask 261120
        %v1262 = vsel %vm1260, %v1240, 0
        %v1265 = vsel %vm1260, %v1241, 0
        %1267 = vmatprep.subr.bf16.mxu0 0
        %1268 = vmatpush1.bf16.msra.mxu0 0
        %1269 = vmatprep.subr.bf16.mxu0 0
        %1270 = vmatpush1.bf16.msra.mxu0 0
        %1271 = vmatprep.subr.bf16.mxu0 0
        %1272 = vmatpush1.bf16.msra.mxu0 0
        %1273 = vmatprep.subr.bf16.mxu0 0
        %1274 = vmatpush1.bf16.msra.mxu0 0
        %1275 = vmatprep.subr.bf16.mxu0 0
        %1276 = vmatpush1.bf16.msra.mxu0 0
        %1277 = vmatprep.subr.bf16.mxu0 0
        %1278 = vmatpush1.bf16.msra.mxu0 0
        %1279 = vmatprep.subr.bf16.mxu0 0
        %1280 = vmatpush1.bf16.msra.mxu0 %v1257
        %1281 = vmatprep.subr.bf16.mxu0 0
        %1282 = vmatpush1.bf16.msra.mxu0 %v1256
        %1283 = vmatprep.subr.bf16.mxu0 0
        %1284 = vmatpush2.bf16.msra.mxu0 0
        %1285 = vmatprep.subr.bf16.mxu0 0
        %1286 = vmatpush2.bf16.msra.mxu0 0
        %1287 = vmatprep.subr.bf16.mxu0 0
        %1288 = vmatpush2.bf16.msra.mxu0 0
        %1289 = vmatprep.subr.bf16.mxu0 0
        %1290 = vmatpush2.bf16.msra.mxu0 0
        %1291 = vmatprep.subr.bf16.mxu0 0
        %1292 = vmatpush2.bf16.msra.mxu0 0
        %1293 = vmatprep.subr.bf16.mxu0 0
        %1294 = vmatpush2.bf16.msra.mxu0 0
        %1295 = vmatprep.subr.bf16.mxu0 0
        %1296 = vmatpush2.bf16.msra.mxu0 0
        %1297 = vmatprep.subr.bf16.mxu0 0
        %1298 = vmatpush2.bf16.msra.mxu0 0
        %1299 = vmatprep.mubr.bf16.mxu0 0
        %1300 = vmatmul.mubr.bf16.gmra.mxu0 %v1262
        %v1301 = vpop.f32.mrf.mxu0
        %v1302 = vadd.f32 %v1246, %v1301
        %v1303 = vpop.f32.mrf.mxu0
        %v1304 = vpop.f32.mrf.mxu0
        %v1305 = vadd.f32 %v1246, %v1304
        %v1306 = vpop.f32.mrf.mxu0
        %1307 = vmatprep.mubr.bf16.mxu0 0
        %1308 = vmatmul.mubr.bf16.gmra.mxu0 %v1265
        %v1309 = vpop.f32.mrf.mxu0
        %v1310 = vadd.f32 %v1246, %v1309
        %v1311 = vpop.f32.mrf.mxu0
        %v1312 = vpop.f32.mrf.mxu0
        %v1313 = vadd.f32 %v1246, %v1312
        %v1314 = vpop.f32.mrf.mxu0
        %1315 = vdwg.mxu0
        %v1316 = vmul.f32 %v1302, 0.70710677
        %v1317 = vmul.f32 %v1305, 0.70710677
        %v1318 = vmul.f32 %v1310, 0.70710677
        %v1319 = vmul.f32 %v1313, 0.70710677
        %vm1320 = vcmp.ge.f32.partialorder %v1316, 0.0
        %vm1321 = vcmp.ge.f32.partialorder %v1317, 0.0
        %vm1322 = vcmp.ge.f32.partialorder %v1318, 0.0
        %vm1323 = vcmp.ge.f32.partialorder %v1319, 0.0
        %v1324 = vsel %vm1320, 1.0, -1.0
        %v1325 = vsel %vm1321, 1.0, -1.0
        %v1326 = vsel %vm1322, 1.0, -1.0
        %v1327 = vsel %vm1323, 1.0, -1.0
        %v1328 = vand.u32 2147483647, %v1316
        %v1329 = vand.u32 2147483647, %v1317
        %v1330 = vand.u32 2147483647, %v1318
        %v1331 = vand.u32 2147483647, %v1319
        %v1332 = vmul.f32 %v1328, 0.3275911
        %v1333 = vmul.f32 %v1329, 0.3275911
        %v1334 = vmul.f32 %v1330, 0.3275911
        %v1335 = vmul.f32 %v1331, 0.3275911
        %v1336 = vadd.f32 %v1332, 1.0
        %v1337 = vadd.f32 %v1333, 1.0
        %v1338 = vadd.f32 %v1334, 1.0
        %v1339 = vadd.f32 %v1335, 1.0
        %v1340 = vrcp.pop %v1336
        %v1341 = vrcp.pop %v1337
        %v1342 = vrcp.pop %v1338
        %v1343 = vrcp.pop %v1339
        %v1344 = vmul.f32 %v1340, 1.0614054
        %v1345 = vmul.f32 %v1341, 1.0614054
        %v1346 = vmul.f32 %v1342, 1.0614054
        %v1347 = vmul.f32 %v1343, 1.0614054
        %v1348 = vsub.f32 %v1344, 1.4531521
        %v1349 = vsub.f32 %v1345, 1.4531521
        %v1350 = vsub.f32 %v1346, 1.4531521
        %v1351 = vsub.f32 %v1347, 1.4531521
        %v1352 = vmul.f32 %v1348, %v1340
        %v1353 = vmul.f32 %v1349, %v1341
        %v1354 = vmul.f32 %v1350, %v1342
        %v1355 = vmul.f32 %v1351, %v1343
        %v1356 = vadd.f32 %v1352, 1.4214138
        %v1357 = vadd.f32 %v1353, 1.4214138
        %v1358 = vadd.f32 %v1354, 1.4214138
        %v1359 = vadd.f32 %v1355, 1.4214138
        %v1360 = vmul.f32 %v1356, %v1340
        %v1361 = vmul.f32 %v1357, %v1341
        %v1362 = vmul.f32 %v1358, %v1342
        %v1363 = vmul.f32 %v1359, %v1343
        %v1364 = vsub.f32 %v1360, 0.28449672
        %v1365 = vsub.f32 %v1361, 0.28449672
        %v1366 = vsub.f32 %v1362, 0.28449672
        %v1367 = vsub.f32 %v1363, 0.28449672
        %v1368 = vmul.f32 %v1364, %v1340
        %v1369 = vmul.f32 %v1365, %v1341
        %v1370 = vmul.f32 %v1366, %v1342
        %v1371 = vmul.f32 %v1367, %v1343
        %v1372 = vadd.f32 %v1368, 0.2548296
        %v1373 = vadd.f32 %v1369, 0.2548296
        %v1374 = vadd.f32 %v1370, 0.2548296
        %v1375 = vadd.f32 %v1371, 0.2548296
        %v1376 = vmul.f32 %v1372, %v1340
        %v1377 = vmul.f32 %v1373, %v1341
        %v1378 = vmul.f32 %v1374, %v1342
        %v1379 = vmul.f32 %v1375, %v1343
        %v1380 = vsub.f32 0.0, %v1328
        %v1381 = vsub.f32 0.0, %v1329
        %v1382 = vsub.f32 0.0, %v1330
        %v1383 = vsub.f32 0.0, %v1331
        %v1384 = vmul.f32 %v1380, %v1328
        %v1385 = vmul.f32 %v1381, %v1329
        %v1386 = vmul.f32 %v1382, %v1330
        %v1387 = vmul.f32 %v1383, %v1331
        %v1388 = vmul.f32 %v1384, 1.442695
        %v1389 = vpow.pop %v1388
        %v1390 = vmul.f32 %v1385, 1.442695
        %v1391 = vpow.pop %v1390
        %v1392 = vmul.f32 %v1386, 1.442695
        %v1393 = vpow.pop %v1392
        %v1394 = vmul.f32 %v1387, 1.442695
        %v1395 = vpow.pop %v1394
        %v1396 = vmul.f32 %v1376, %v1389
        %v1397 = vmul.f32 %v1377, %v1391
        %v1398 = vmul.f32 %v1378, %v1393
        %v1399 = vmul.f32 %v1379, %v1395
        %v1400 = vsub.f32 1.0, %v1396
        %v1401 = vsub.f32 1.0, %v1397
        %v1402 = vsub.f32 1.0, %v1398
        %v1403 = vsub.f32 1.0, %v1399
        %v1404 = vmul.f32 %v1324, %v1400
        %v1405 = vmul.f32 %v1325, %v1401
        %v1406 = vmul.f32 %v1326, %v1402
        %v1407 = vmul.f32 %v1327, %v1403
        %v1408 = vmul.f32 %v1302, 0.5
        %v1409 = vmul.f32 %v1305, 0.5
        %v1410 = vmul.f32 %v1310, 0.5
        %v1411 = vmul.f32 %v1313, 0.5
        %v1412 = vadd.f32 %v1404, 1.0
        %v1413 = vadd.f32 %v1405, 1.0
        %v1414 = vadd.f32 %v1406, 1.0
        %v1415 = vadd.f32 %v1407, 1.0
        %v1416 = vmul.f32 %v1408, %v1412
        %v1417 = vmul.f32 %v1409, %v1413
        %v1418 = vmul.f32 %v1410, %v1414
        %v1419 = vmul.f32 %v1411, %v1415
        %v1420 = vld [vmem:[%s5] sm:$0xf]
        %v1421 = vld [vmem:[%s5 + $0x4] sm:$0xf]
        %v1422 = vld [vmem:[%s5 + $0x8] sm:$0xf]
        %v1423 = vld [vmem:[%s5 + $0xc] sm:$0xf]
        %v1424 = vld [vmem:[%s6] sm:$0x1]
        %v1425 = vpack.c.bf16 %v1417, %v1416
        %v1426 = vpack.c.bf16 %v1419, %v1418
        %v1428 = vlaneseq
        %v1429 = vshrl.u32 %v1428, 7
        %v1430 = vsub.s32 0, %v1429
        %v1431 = vrot.slane %v1424, %v1430
        %v1437 = vunpack.c.l.b16 %v1420
        %v1438 = vunpack.c.l.b16 %v1421
        %v1439 = vunpack.c.l.b16 %v1422
        %v1440 = vunpack.c.l.b16 %v1423
        %v1441 = vpack.c.b16 %v1438, %v1437
        %v1442 = vpack.c.b16 %v1440, %v1439
        %v1446 = vsel %vm1260, %v1425, 0
        %v1449 = vsel %vm1260, %v1426, 0
        %1451 = vmatprep.subr.bf16.mxu0 0
        %1452 = vmatpush1.bf16.msra.mxu0 0
        %1453 = vmatprep.subr.bf16.mxu0 0
        %1454 = vmatpush1.bf16.msra.mxu0 0
        %1455 = vmatprep.subr.bf16.mxu0 0
        %1456 = vmatpush1.bf16.msra.mxu0 0
        %1457 = vmatprep.subr.bf16.mxu0 0
        %1458 = vmatpush1.bf16.msra.mxu0 0
        %1459 = vmatprep.subr.bf16.mxu0 0
        %1460 = vmatpush1.bf16.msra.mxu0 0
        %1461 = vmatprep.subr.bf16.mxu0 0
        %1462 = vmatpush1.bf16.msra.mxu0 0
        %1463 = vmatprep.subr.bf16.mxu0 0
        %1464 = vmatpush1.bf16.msra.mxu0 %v1442
        %1465 = vmatprep.subr.bf16.mxu0 0
        %1466 = vmatpush1.bf16.msra.mxu0 %v1441
        %1467 = vmatprep.subr.bf16.mxu0 0
        %1468 = vmatpush2.bf16.msra.mxu0 0
        %1469 = vmatprep.subr.bf16.mxu0 0
        %1470 = vmatpush2.bf16.msra.mxu0 0
        %1471 = vmatprep.subr.bf16.mxu0 0
        %1472 = vmatpush2.bf16.msra.mxu0 0
        %1473 = vmatprep.subr.bf16.mxu0 0
        %1474 = vmatpush2.bf16.msra.mxu0 0
        %1475 = vmatprep.subr.bf16.mxu0 0
        %1476 = vmatpush2.bf16.msra.mxu0 0
        %1477 = vmatprep.subr.bf16.mxu0 0
        %1478 = vmatpush2.bf16.msra.mxu0 0
        %1479 = vmatprep.subr.bf16.mxu0 0
        %1480 = vmatpush2.bf16.msra.mxu0 0
        %1481 = vmatprep.subr.bf16.mxu0 0
        %1482 = vmatpush2.bf16.msra.mxu0 0
        %1483 = vmatprep.mubr.bf16.mxu0 0
        %1484 = vmatmul.mubr.bf16.gmra.mxu0 %v1446
        %v1485 = vpop.f32.mrf.mxu0
        %v1486 = vadd.f32 %v1431, %v1485
        %v1487 = vpop.f32.mrf.mxu0
        %v1488 = vpop.f32.mrf.mxu0
        %v1489 = vadd.f32 %v1431, %v1488
        %v1490 = vpop.f32.mrf.mxu0
        %1491 = vmatprep.mubr.bf16.mxu0 0
        %1492 = vmatmul.mubr.bf16.gmra.mxu0 %v1449
        %v1493 = vpop.f32.mrf.mxu0
        %v1494 = vadd.f32 %v1431, %v1493
        %v1495 = vpop.f32.mrf.mxu0
        %v1496 = vpop.f32.mrf.mxu0
        %v1497 = vadd.f32 %v1431, %v1496
        %v1498 = vpop.f32.mrf.mxu0
        %1499 = vdwg.mxu0
        %v1500 = vmul.f32 %v1486, 0.70710677
        %v1501 = vmul.f32 %v1489, 0.70710677
        %v1502 = vmul.f32 %v1494, 0.70710677
        %v1503 = vmul.f32 %v1497, 0.70710677
        %vm1504 = vcmp.ge.f32.partialorder %v1500, 0.0
        %vm1505 = vcmp.ge.f32.partialorder %v1501, 0.0
        %vm1506 = vcmp.ge.f32.partialorder %v1502, 0.0
        %vm1507 = vcmp.ge.f32.partialorder %v1503, 0.0
        %v1508 = vsel %vm1504, 1.0, -1.0
        %v1509 = vsel %vm1505, 1.0, -1.0
        %v1510 = vsel %vm1506, 1.0, -1.0
        %v1511 = vsel %vm1507, 1.0, -1.0
        %v1512 = vand.u32 2147483647, %v1500
        %v1513 = vand.u32 2147483647, %v1501
        %v1514 = vand.u32 2147483647, %v1502
        %v1515 = vand.u32 2147483647, %v1503
        %v1516 = vmul.f32 %v1512, 0.3275911
        %v1517 = vmul.f32 %v1513, 0.3275911
        %v1518 = vmul.f32 %v1514, 0.3275911
        %v1519 = vmul.f32 %v1515, 0.3275911
        %v1520 = vadd.f32 %v1516, 1.0
        %v1521 = vadd.f32 %v1517, 1.0
        %v1522 = vadd.f32 %v1518, 1.0
        %v1523 = vadd.f32 %v1519, 1.0
        %v1524 = vrcp.pop %v1520
        %v1525 = vrcp.pop %v1521
        %v1526 = vrcp.pop %v1522
        %v1527 = vrcp.pop %v1523
        %v1528 = vmul.f32 %v1524, 1.0614054
        %v1529 = vmul.f32 %v1525, 1.0614054
        %v1530 = vmul.f32 %v1526, 1.0614054
        %v1531 = vmul.f32 %v1527, 1.0614054
        %v1532 = vsub.f32 %v1528, 1.4531521
        %v1533 = vsub.f32 %v1529, 1.4531521
        %v1534 = vsub.f32 %v1530, 1.4531521
        %v1535 = vsub.f32 %v1531, 1.4531521
        %v1536 = vmul.f32 %v1532, %v1524
        %v1537 = vmul.f32 %v1533, %v1525
        %v1538 = vmul.f32 %v1534, %v1526
        %v1539 = vmul.f32 %v1535, %v1527
        %v1540 = vadd.f32 %v1536, 1.4214138
        %v1541 = vadd.f32 %v1537, 1.4214138
        %v1542 = vadd.f32 %v1538, 1.4214138
        %v1543 = vadd.f32 %v1539, 1.4214138
        %v1544 = vmul.f32 %v1540, %v1524
        %v1545 = vmul.f32 %v1541, %v1525
        %v1546 = vmul.f32 %v1542, %v1526
        %v1547 = vmul.f32 %v1543, %v1527
        %v1548 = vsub.f32 %v1544, 0.28449672
        %v1549 = vsub.f32 %v1545, 0.28449672
        %v1550 = vsub.f32 %v1546, 0.28449672
        %v1551 = vsub.f32 %v1547, 0.28449672
        %v1552 = vmul.f32 %v1548, %v1524
        %v1553 = vmul.f32 %v1549, %v1525
        %v1554 = vmul.f32 %v1550, %v1526
        %v1555 = vmul.f32 %v1551, %v1527
        %v1556 = vadd.f32 %v1552, 0.2548296
        %v1557 = vadd.f32 %v1553, 0.2548296
        %v1558 = vadd.f32 %v1554, 0.2548296
        %v1559 = vadd.f32 %v1555, 0.2548296
        %v1560 = vmul.f32 %v1556, %v1524
        %v1561 = vmul.f32 %v1557, %v1525
        %v1562 = vmul.f32 %v1558, %v1526
        %v1563 = vmul.f32 %v1559, %v1527
        %v1564 = vsub.f32 0.0, %v1512
        %v1565 = vsub.f32 0.0, %v1513
        %v1566 = vsub.f32 0.0, %v1514
        %v1567 = vsub.f32 0.0, %v1515
        %v1568 = vmul.f32 %v1564, %v1512
        %v1569 = vmul.f32 %v1565, %v1513
        %v1570 = vmul.f32 %v1566, %v1514
        %v1571 = vmul.f32 %v1567, %v1515
        %v1572 = vmul.f32 %v1568, 1.442695
        %v1573 = vpow.pop %v1572
        %v1574 = vmul.f32 %v1569, 1.442695
        %v1575 = vpow.pop %v1574
        %v1576 = vmul.f32 %v1570, 1.442695
        %v1577 = vpow.pop %v1576
        %v1578 = vmul.f32 %v1571, 1.442695
        %v1579 = vpow.pop %v1578
        %v1580 = vmul.f32 %v1560, %v1573
        %v1581 = vmul.f32 %v1561, %v1575
        %v1582 = vmul.f32 %v1562, %v1577
        %v1583 = vmul.f32 %v1563, %v1579
        %v1584 = vsub.f32 1.0, %v1580
        %v1585 = vsub.f32 1.0, %v1581
        %v1586 = vsub.f32 1.0, %v1582
        %v1587 = vsub.f32 1.0, %v1583
        %v1588 = vmul.f32 %v1508, %v1584
        %v1589 = vmul.f32 %v1509, %v1585
        %v1590 = vmul.f32 %v1510, %v1586
        %v1591 = vmul.f32 %v1511, %v1587
        %v1592 = vmul.f32 %v1486, 0.5
        %v1593 = vmul.f32 %v1489, 0.5
        %v1594 = vmul.f32 %v1494, 0.5
        %v1595 = vmul.f32 %v1497, 0.5
        %v1596 = vadd.f32 %v1588, 1.0
        %v1597 = vadd.f32 %v1589, 1.0
        %v1598 = vadd.f32 %v1590, 1.0
        %v1599 = vadd.f32 %v1591, 1.0
        %v1600 = vmul.f32 %v1592, %v1596
        %v1601 = vmul.f32 %v1593, %v1597
        %v1602 = vmul.f32 %v1594, %v1598
        %v1603 = vmul.f32 %v1595, %v1599
        %v1604 = vpack.c.bf16 %v1601, %v1600
        %v1605 = vpack.c.bf16 %v1603, %v1602
        %v1608 = vunpack.c.l.b16 %v1604
        %v1609 = vunpack.c.h.b16 %v1604
        %v1610 = vunpack.c.l.b16 %v1605
        %v1611 = vunpack.c.h.b16 %v1605
        %v1612 = vpack.c.b16 %v1608, %v1608
        %v1613 = vpack.c.b16 %v1609, %v1609
        %v1614 = vpack.c.b16 %v1610, %v1610
        %v1615 = vpack.c.b16 %v1611, %v1611
        %s1620 = smul.u32 %s281, 4
        %s1621 = smul.addr %s1620, 4
        %s1622 = scalar_lea.vmem %s278, %s1621
        %vm1623 = vcmask 257024
        %1624 = vst.msk [vmem:[%s1622] sm:$0xf] %vm1623, %v1612
        %1625 = vst.msk [vmem:[%s1622 + $0x4] sm:$0xf] %vm1623, %v1613
        %1626 = vst.msk [vmem:[%s1622 + $0x8] sm:$0xf] %vm1623, %v1614
        %1627 = vst.msk [vmem:[%s1622 + $0xc] sm:$0xf] %vm1623, %v1615
      $region53: #{simple_cnn_forward.6} parent=47 // loop_footer
        %s285 = sadd.s32 1, %s281
      $region54: #{simple_cnn_forward.6} parent=47 // loop_footer_branch
        %280 = sbr.rel target = $region50
      $region55: #{simple_cnn_forward.6} parent=47 // loop_exit
        _
      %p1628 = scmp.lt.s32.totalorder %s18, 1
      %s1629 = scalar_select %p1628, %s18, 1
      %s1630 = smul.addr %s1629, 128
      %s1631 = smul.addr %s1630, 4
      %s1632 = scalar_lea.vmem %s7, %s1631
      // Predicated region
      $region56: #{simple_cnn_forward.6} parent=47 // pred_check
        %p1633 = pneg %p188
      $region57: #{simple_cnn_forward.6} parent=47 // pred_check_branch
        %1635 = sbr.rel (%p1633) target = $region59
      $region58: #{simple_cnn_forward.6} parent=47 // pred_region
        _
      $region59: #{simple_cnn_forward.6} parent=47 // pred_fallthru
        _
    $region48: #{simple_cnn_forward.6} parent=5 // pred_fallthru
      _
    %p1636 = scmp.le.s32.totalorder 2, %s13
    // Predicated region
    $region60: #{simple_cnn_forward.6} parent=5 // pred_check
      %p1637 = pneg %p1636
    $region61: #{simple_cnn_forward.6} parent=5 // pred_check_branch
      %1639 = sbr.rel (%p1637) target = $region63
    $region62: #{simple_cnn_forward.6} parent=5 // pred_region
      %s1640 = ssub.s32 %s13, 2
      // Predicated region
      $region64: #{simple_cnn_forward.6} parent=62 // pred_check
        %p1641 = pneg %p194
      $region65: #{simple_cnn_forward.6} parent=62 // pred_check_branch
        %1643 = sbr.rel (%p1641) target = $region67
      $region66: #{simple_cnn_forward.6} parent=62 // pred_region
        %p1644 = scmp.lt.s32.totalorder %s19, 1
        %s1645 = scalar_select %p1644, %s19, 1
        %s1646 = smul.addr %s1645, 128
        %s1647 = smul.addr %s1646, 4
        %s1648 = scalar_lea.vmem %s7, %s1647
      $region67: #{simple_cnn_forward.6} parent=62 // pred_fallthru
        _
    $region63: #{simple_cnn_forward.6} parent=5 // pred_fallthru
      _
  $region6: #{simple_cnn_forward.6} parent=0 // loop_footer
    %s17 = sadd.s32 1, %s13
  $region7: #{simple_cnn_forward.6} parent=0 // loop_footer_branch
    %12 = sbr.rel target = $region3
  $region8: #{simple_cnn_forward.6} parent=0 // loop_exit
    _

// kernel: simple_cnn_forward.7
$region0: #{simple_cnn_forward.7}
  #allocation0 [shape = 'u32[]', space=smem, size = 0x4, offset = 0x4, fixed_abs, tag = 'smem constant byte address 0x4 - core index']
  #allocation1 [shape = 'u32[144,128]{1,0:T(1,128)}', space=vmem, size = 0x12000, scoped, tag = 'internal scratch']
  %s0 = inlined_call_operand.vmem [shape: bf16[2,17,17,128], index: 0, kind: input, shape index: {}]
  %s1 = inlined_call_operand.vmem [shape: bf16[4,128,16], index: 1, kind: input, shape index: {}]
  %s2 = inlined_call_operand.vmem [shape: f32[1,16], index: 2, kind: input, shape index: {}]
  %s3 = inlined_call_operand.vmem [shape: bf16[16,16], index: 3, kind: input, shape index: {}]
  %s4 = inlined_call_operand.vmem [shape: f32[1,16], index: 4, kind: input, shape index: {}]
  %s5 = inlined_call_operand.vmem [shape: bf16[16,16], index: 5, kind: input, shape index: {}]
  %s6 = inlined_call_operand.vmem [shape: f32[1,16], index: 6, kind: input, shape index: {}]
  %s7 = inlined_call_operand.vmem [shape: bf16[2,16,16,16], index: 7, kind: output, shape index: {}]
  %s8 = sld [smem:[#allocation0]]
  $region68: #{simple_cnn_forward.7} parent=0
    _
  %s10 = ssub.s32 1, %s8
  %s11 = scalar_select 0, %s10, %s8
  loop: start=0, step=1, limit=4
  $region2: #{simple_cnn_forward.7} parent=0 // loop_pre_header
    _
  $region3: #{simple_cnn_forward.7} parent=0 // loop_header
    %s13 = sphi 0, %s17
    %p14 = scmp.ge.s32.totalorder %s13, 4
    %s23 = sphi 0, %s25
    %s26 = sphi 0, %s23
    %s27 = sphi 0, %s26
    %s43 = sphi 0, %s27
    %s47 = sphi 0, %s47
    %s49 = sphi 0, %s47
    %s50 = sphi 0, %s49
    %s64 = sphi 0, %s50
    %s68 = sphi 0, %s68
    %s70 = sphi 0, %s68
    %s71 = sphi 0, %s70
    %s85 = sphi 0, %s71
    %s89 = sphi 0, %s89
    %s91 = sphi 0, %s89
    %s92 = sphi 0, %s91
    %s106 = sphi 0, %s92
    %s110 = sphi 0, %s110
    %s112 = sphi 0, %s110
    %s113 = sphi 0, %s112
    %s127 = sphi 0, %s113
    %s131 = sphi 0, %s131
    %s133 = sphi 0, %s131
    %s134 = sphi 0, %s133
    %s148 = sphi 0, %s134
    %s152 = sphi 0, %s152
    %s154 = sphi 0, %s152
    %s155 = sphi 0, %s154
    %s169 = sphi 0, %s155
    %s175 = sphi 0, %s177
    %s178 = sphi 0, %s175
    %s179 = sphi 0, %s178
    %s195 = sphi 0, %s179
  $region4: #{simple_cnn_forward.7} parent=0 // loop_header_branch
    %16 = sbr.rel (%p14) target = $region8
  $region5: #{simple_cnn_forward.7} parent=0 // loop_body
    %s18 = ssub.s32 %s13, 1
    %s19 = ssub.s32 %s13, 2
    %s20 = sadd.s32 %s13, 1
    %s21 = ssub.s32 %s13, %s20
    %p22 = scmp.eq.s32.totalorder %s21, 0
    %s24 = sadd.s32 %s23, 1
    %s25 = scalar_select %p22, %s23, %s24
    %p28 = pneg %p22
    %p29 = scmp.eq.s32.totalorder %s13, 1
    %p30 = por %p28, %p29
    %p31 = scmp.ne.s32.totalorder %s23, %s26
    %p32 = scmp.eq.s32.totalorder %s13, 0
    %p33 = por %p31, %p32
    %p34 = scmp.ne.s32.totalorder %s23, %s26
    %p35 = scmp.eq.s32.totalorder %s18, 1
    %p36 = por %p34, %p35
    %p37 = scmp.ne.s32.totalorder %s26, %s27
    %p38 = scmp.eq.s32.totalorder %s18, 0
    %p39 = por %p37, %p38
    %p40 = scmp.ne.s32.totalorder %s26, %s27
    %p41 = scmp.eq.s32.totalorder %s19, 1
    %p42 = por %p40, %p41
    %p44 = scmp.ne.s32.totalorder %s27, %s43
    %p45 = scmp.eq.s32.totalorder %s19, 0
    %p46 = por %p44, %p45
    %s48 = sadd.s32 %s47, 1
    %p51 = scmp.eq.s32.totalorder %s13, 1
    %p52 = scmp.ne.s32.totalorder %s47, %s49
    %p53 = scmp.eq.s32.totalorder %s13, 0
    %p54 = por %p52, %p53
    %p55 = scmp.ne.s32.totalorder %s47, %s49
    %p56 = scmp.eq.s32.totalorder %s18, 1
    %p57 = por %p55, %p56
    %p58 = scmp.ne.s32.totalorder %s49, %s50
    %p59 = scmp.eq.s32.totalorder %s18, 0
    %p60 = por %p58, %p59
    %p61 = scmp.ne.s32.totalorder %s49, %s50
    %p62 = scmp.eq.s32.totalorder %s19, 1
    %p63 = por %p61, %p62
    %p65 = scmp.ne.s32.totalorder %s50, %s64
    %p66 = scmp.eq.s32.totalorder %s19, 0
    %p67 = por %p65, %p66
    %s69 = sadd.s32 %s68, 1
    %p72 = scmp.eq.s32.totalorder %s13, 1
    %p73 = scmp.ne.s32.totalorder %s68, %s70
    %p74 = scmp.eq.s32.totalorder %s13, 0
    %p75 = por %p73, %p74
    %p76 = scmp.ne.s32.totalorder %s68, %s70
    %p77 = scmp.eq.s32.totalorder %s18, 1
    %p78 = por %p76, %p77
    %p79 = scmp.ne.s32.totalorder %s70, %s71
    %p80 = scmp.eq.s32.totalorder %s18, 0
    %p81 = por %p79, %p80
    %p82 = scmp.ne.s32.totalorder %s70, %s71
    %p83 = scmp.eq.s32.totalorder %s19, 1
    %p84 = por %p82, %p83
    %p86 = scmp.ne.s32.totalorder %s71, %s85
    %p87 = scmp.eq.s32.totalorder %s19, 0
    %p88 = por %p86, %p87
    %s90 = sadd.s32 %s89, 1
    %p93 = scmp.eq.s32.totalorder %s13, 1
    %p94 = scmp.ne.s32.totalorder %s89, %s91
    %p95 = scmp.eq.s32.totalorder %s13, 0
    %p96 = por %p94, %p95
    %p97 = scmp.ne.s32.totalorder %s89, %s91
    %p98 = scmp.eq.s32.totalorder %s18, 1
    %p99 = por %p97, %p98
    %p100 = scmp.ne.s32.totalorder %s91, %s92
    %p101 = scmp.eq.s32.totalorder %s18, 0
    %p102 = por %p100, %p101
    %p103 = scmp.ne.s32.totalorder %s91, %s92
    %p104 = scmp.eq.s32.totalorder %s19, 1
    %p105 = por %p103, %p104
    %p107 = scmp.ne.s32.totalorder %s92, %s106
    %p108 = scmp.eq.s32.totalorder %s19, 0
    %p109 = por %p107, %p108
    %s111 = sadd.s32 %s110, 1
    %p114 = scmp.eq.s32.totalorder %s13, 1
    %p115 = scmp.ne.s32.totalorder %s110, %s112
    %p116 = scmp.eq.s32.totalorder %s13, 0
    %p117 = por %p115, %p116
    %p118 = scmp.ne.s32.totalorder %s110, %s112
    %p119 = scmp.eq.s32.totalorder %s18, 1
    %p120 = por %p118, %p119
    %p121 = scmp.ne.s32.totalorder %s112, %s113
    %p122 = scmp.eq.s32.totalorder %s18, 0
    %p123 = por %p121, %p122
    %p124 = scmp.ne.s32.totalorder %s112, %s113
    %p125 = scmp.eq.s32.totalorder %s19, 1
    %p126 = por %p124, %p125
    %p128 = scmp.ne.s32.totalorder %s113, %s127
    %p129 = scmp.eq.s32.totalorder %s19, 0
    %p130 = por %p128, %p129
    %s132 = sadd.s32 %s131, 1
    %p135 = scmp.eq.s32.totalorder %s13, 1
    %p136 = scmp.ne.s32.totalorder %s131, %s133
    %p137 = scmp.eq.s32.totalorder %s13, 0
    %p138 = por %p136, %p137
    %p139 = scmp.ne.s32.totalorder %s131, %s133
    %p140 = scmp.eq.s32.totalorder %s18, 1
    %p141 = por %p139, %p140
    %p142 = scmp.ne.s32.totalorder %s133, %s134
    %p143 = scmp.eq.s32.totalorder %s18, 0
    %p144 = por %p142, %p143
    %p145 = scmp.ne.s32.totalorder %s133, %s134
    %p146 = scmp.eq.s32.totalorder %s19, 1
    %p147 = por %p145, %p146
    %p149 = scmp.ne.s32.totalorder %s134, %s148
    %p150 = scmp.eq.s32.totalorder %s19, 0
    %p151 = por %p149, %p150
    %s153 = sadd.s32 %s152, 1
    %p156 = scmp.eq.s32.totalorder %s13, 1
    %p157 = scmp.ne.s32.totalorder %s152, %s154
    %p158 = scmp.eq.s32.totalorder %s13, 0
    %p159 = por %p157, %p158
    %p160 = scmp.ne.s32.totalorder %s152, %s154
    %p161 = scmp.eq.s32.totalorder %s18, 1
    %p162 = por %p160, %p161
    %p163 = scmp.ne.s32.totalorder %s154, %s155
    %p164 = scmp.eq.s32.totalorder %s18, 0
    %p165 = por %p163, %p164
    %p166 = scmp.ne.s32.totalorder %s154, %s155
    %p167 = scmp.eq.s32.totalorder %s19, 1
    %p168 = por %p166, %p167
    %p170 = scmp.ne.s32.totalorder %s155, %s169
    %p171 = scmp.eq.s32.totalorder %s19, 0
    %p172 = por %p170, %p171
    %s173 = ssub.s32 %s13, %s20
    %p174 = scmp.eq.s32.totalorder %s173, 0
    %s176 = sadd.s32 %s175, 1
    %s177 = scalar_select %p174, %s175, %s176
    %p180 = pneg %p174
    %p181 = scmp.eq.s32.totalorder %s13, 1
    %p182 = por %p180, %p181
    %p183 = scmp.ne.s32.totalorder %s175, %s178
    %p184 = scmp.eq.s32.totalorder %s13, 0
    %p185 = por %p183, %p184
    %p186 = scmp.ne.s32.totalorder %s175, %s178
    %p187 = scmp.eq.s32.totalorder %s18, 1
    %p188 = por %p186, %p187
    %p189 = scmp.ne.s32.totalorder %s178, %s179
    %p190 = scmp.eq.s32.totalorder %s18, 0
    %p191 = por %p189, %p190
    %p192 = scmp.ne.s32.totalorder %s178, %s179
    %p193 = scmp.eq.s32.totalorder %s19, 1
    %p194 = por %p192, %p193
    %p196 = scmp.ne.s32.totalorder %s179, %s195
    %p197 = scmp.eq.s32.totalorder %s19, 0
    %p198 = por %p196, %p197
    %p199 = scmp.le.s32.totalorder 1, %s13
    %p200 = scmp.lt.s32.totalorder %s13, 3
    %p201 = pnand %p199, %p200
    %p202 = pneg %p201
    // Predicated region
    $region9: #{simple_cnn_forward.7} parent=5 // pred_check
      _
    $region10: #{simple_cnn_forward.7} parent=5 // pred_check_branch
      %204 = sbr.rel (%p201) target = $region12
    $region11: #{simple_cnn_forward.7} parent=5 // pred_region
      %s205 = ssub.s32 %s13, 1
      // Predicated region
      $region13: #{simple_cnn_forward.7} parent=11 // pred_check
        %p206 = pneg %p60
      $region14: #{simple_cnn_forward.7} parent=11 // pred_check_branch
        %208 = sbr.rel (%p206) target = $region16
      $region15: #{simple_cnn_forward.7} parent=11 // pred_region
        _
      $region16: #{simple_cnn_forward.7} parent=11 // pred_fallthru
        _
      // Predicated region
      $region17: #{simple_cnn_forward.7} parent=11 // pred_check
        %p209 = pneg %p81
      $region18: #{simple_cnn_forward.7} parent=11 // pred_check_branch
        %211 = sbr.rel (%p209) target = $region20
      $region19: #{simple_cnn_forward.7} parent=11 // pred_region
        _
      $region20: #{simple_cnn_forward.7} parent=11 // pred_fallthru
        _
      // Predicated region
      $region21: #{simple_cnn_forward.7} parent=11 // pred_check
        %p212 = pneg %p102
      $region22: #{simple_cnn_forward.7} parent=11 // pred_check_branch
        %214 = sbr.rel (%p212) target = $region24
      $region23: #{simple_cnn_forward.7} parent=11 // pred_region
        _
      $region24: #{simple_cnn_forward.7} parent=11 // pred_fallthru
        _
      // Predicated region
      $region25: #{simple_cnn_forward.7} parent=11 // pred_check
        %p215 = pneg %p123
      $region26: #{simple_cnn_forward.7} parent=11 // pred_check_branch
        %217 = sbr.rel (%p215) target = $region28
      $region27: #{simple_cnn_forward.7} parent=11 // pred_region
        _
      $region28: #{simple_cnn_forward.7} parent=11 // pred_fallthru
        _
      // Predicated region
      $region29: #{simple_cnn_forward.7} parent=11 // pred_check
        %p218 = pneg %p144
      $region30: #{simple_cnn_forward.7} parent=11 // pred_check_branch
        %220 = sbr.rel (%p218) target = $region32
      $region31: #{simple_cnn_forward.7} parent=11 // pred_region
        _
      $region32: #{simple_cnn_forward.7} parent=11 // pred_fallthru
        _
      // Predicated region
      $region33: #{simple_cnn_forward.7} parent=11 // pred_check
        %p221 = pneg %p165
      $region34: #{simple_cnn_forward.7} parent=11 // pred_check_branch
        %223 = sbr.rel (%p221) target = $region36
      $region35: #{simple_cnn_forward.7} parent=11 // pred_region
        _
      $region36: #{simple_cnn_forward.7} parent=11 // pred_fallthru
        _
    $region12: #{simple_cnn_forward.7} parent=5 // pred_fallthru
      _
    %p224 = scmp.lt.s32.totalorder %s13, 2
    // Predicated region
    $region37: #{simple_cnn_forward.7} parent=5 // pred_check
      %p225 = pneg %p224
    $region38: #{simple_cnn_forward.7} parent=5 // pred_check_branch
      %227 = sbr.rel (%p225) target = $region40
    $region39: #{simple_cnn_forward.7} parent=5 // pred_region
      // Predicated region
      $region41: #{simple_cnn_forward.7} parent=39 // pred_check
        %p228 = pneg %p33
      $region42: #{simple_cnn_forward.7} parent=39 // pred_check_branch
        %230 = sbr.rel (%p228) target = $region44
      $region43: #{simple_cnn_forward.7} parent=39 // pred_region
        %p231 = scmp.lt.s32.totalorder %s13, 1
        %s232 = scalar_select %p231, %s13, 1
        %s233 = smul.addr %s232, 51
        %s234 = smul.addr %s233, 4
        %s235 = scalar_lea.vmem %s0, %s234
      $region44: #{simple_cnn_forward.7} parent=39 // pred_fallthru
        _
    $region40: #{simple_cnn_forward.7} parent=5 // pred_fallthru
      _
    %p236 = scmp.le.s32.totalorder 1, %s13
    %p237 = scmp.lt.s32.totalorder %s13, 3
    %p238 = pnand %p236, %p237
    %p239 = pneg %p238
    // Predicated region
    $region45: #{simple_cnn_forward.7} parent=5 // pred_check
      _
    $region46: #{simple_cnn_forward.7} parent=5 // pred_check_branch
      %241 = sbr.rel (%p238) target = $region48
    $region47: #{simple_cnn_forward.7} parent=5 // pred_region
      %s242 = ssub.s32 %s13, 1
      %p243 = scmp.lt.s32.totalorder %s18, 1
      %s244 = scalar_select %p243, %s18, 1
      %s245 = smul.addr %s244, 51
      %s246 = smul.addr %s245, 4
      %s247 = scalar_lea.vmem %s0, %s246
      %p248 = pneg %p39
      %p249 = pneg %p36
      %p250 = pneg %p60
      %p251 = pneg %p57
      %p252 = pneg %p81
      %p253 = pneg %p78
      %p254 = pneg %p102
      %p255 = pneg %p99
      %p256 = pneg %p123
      %p257 = pneg %p120
      %p258 = pneg %p144
      %p259 = pneg %p141
      %p260 = pneg %p165
      %p261 = pneg %p162
      %p262 = pneg %p191
      %p263 = pneg %p188
      %p264 = scmp.lt.s32.totalorder %s18, 1
      %s265 = scalar_select %p264, %s18, 1
      %s266 = smul.addr %s265, 32
      %s267 = smul.addr %s266, 4
      %s268 = scalar_lea.vmem %s7, %s267
      %p269 = scmp.lt.s32.totalorder %s18, 1
      %s270 = scalar_select %p269, %s18, 1
      %s271 = smul.addr %s270, 51
      %s272 = smul.addr %s271, 4
      %s273 = scalar_lea.vmem %s0, %s272
      %p274 = scmp.lt.s32.totalorder %s18, 1
      %s275 = scalar_select %p274, %s18, 1
      %s276 = smul.addr %s275, 32
      %s277 = smul.addr %s276, 4
      %s278 = scalar_lea.vmem %s7, %s277
      loop: start=0, step=1, limit=16
      $region49: #{simple_cnn_forward.7} parent=47 // loop_pre_header
        _
      $region50: #{simple_cnn_forward.7} parent=47 // loop_header
        %s281 = sphi 0, %s285
        %p282 = scmp.ge.s32.totalorder %s281, 16
      $region51: #{simple_cnn_forward.7} parent=47 // loop_header_branch
        %284 = sbr.rel (%p282) target = $region55
      $region52: #{simple_cnn_forward.7} parent=47 // loop_body
        %s286 = smul.u32 %s281, 3
        %s287 = smul.addr %s286, 4
        %s288 = scalar_lea.vmem %s273, %s287
        %v289 = vld [vmem:[%s288] sm:$0xf]
        %v290 = vld [vmem:[%s288 + $0x4] sm:$0xf]
        %v291 = vld [vmem:[%s288 + $0x8] sm:$0x1]
        %s292 = sadd.s32 %s281, 1
        %s293 = smul.u32 %s292, 3
        %s294 = smul.addr %s293, 4
        %s295 = scalar_lea.vmem %s273, %s294
        %v296 = vld [vmem:[%s295] sm:$0xf]
        %v297 = vld [vmem:[%s295 + $0x4] sm:$0xf]
        %v298 = vld [vmem:[%s295 + $0x8] sm:$0x1]
        %v299 = vld [vmem:[%s1] sm:$0xf]
        %v300 = vld [vmem:[%s1 + $0x4] sm:$0xf]
        %v301 = vld [vmem:[%s1 + $0x8] sm:$0xf]
        %v302 = vld [vmem:[%s1 + $0xc] sm:$0xf]
        %v303 = vld [vmem:[%s1 + $0x10] sm:$0xf]
        %v304 = vld [vmem:[%s1 + $0x14] sm:$0xf]
        %v305 = vld [vmem:[%s1 + $0x18] sm:$0xf]
        %v306 = vld [vmem:[%s1 + $0x1c] sm:$0xf]
        %v307 = vld [vmem:[%s1 + $0x20] sm:$0xf]
        %v308 = vld [vmem:[%s1 + $0x24] sm:$0xf]
        %v309 = vld [vmem:[%s1 + $0x28] sm:$0xf]
        %v310 = vld [vmem:[%s1 + $0x2c] sm:$0xf]
        %v311 = vld [vmem:[%s1 + $0x30] sm:$0xf]
        %v312 = vld [vmem:[%s1 + $0x34] sm:$0xf]
        %v313 = vld [vmem:[%s1 + $0x38] sm:$0xf]
        %v314 = vld [vmem:[%s1 + $0x3c] sm:$0xf]
        %s315 = scalar_lea.vmem %s1, 128
        %v316 = vld [vmem:[%s315] sm:$0xf]
        %v317 = vld [vmem:[%s315 + $0x4] sm:$0xf]
        %v318 = vld [vmem:[%s315 + $0x8] sm:$0xf]
        %v319 = vld [vmem:[%s315 + $0xc] sm:$0xf]
        %v320 = vld [vmem:[%s315 + $0x10] sm:$0xf]
        %v321 = vld [vmem:[%s315 + $0x14] sm:$0xf]
        %v322 = vld [vmem:[%s315 + $0x18] sm:$0xf]
        %v323 = vld [vmem:[%s315 + $0x1c] sm:$0xf]
        %v324 = vld [vmem:[%s315 + $0x20] sm:$0xf]
        %v325 = vld [vmem:[%s315 + $0x24] sm:$0xf]
        %v326 = vld [vmem:[%s315 + $0x28] sm:$0xf]
        %v327 = vld [vmem:[%s315 + $0x2c] sm:$0xf]
        %v328 = vld [vmem:[%s315 + $0x30] sm:$0xf]
        %v329 = vld [vmem:[%s315 + $0x34] sm:$0xf]
        %v330 = vld [vmem:[%s315 + $0x38] sm:$0xf]
        %v331 = vld [vmem:[%s315 + $0x3c] sm:$0xf]
        %v335 = vunpack.c.l.b16 %v296
        %v336 = vunpack.c.l.b16 %v297
        %v337 = vunpack.c.l.b16 %v298
        %v338 = vpack.c.b16 %v336, %v335
        %v339 = vpack.c.b16 %v337, %v337
        %v358 = vunpack.c.l.b16 %v316
        %v359 = vunpack.c.l.b16 %v317
        %v360 = vunpack.c.l.b16 %v318
        %v361 = vunpack.c.l.b16 %v319
        %v362 = vunpack.c.l.b16 %v320
        %v363 = vunpack.c.l.b16 %v321
        %v364 = vunpack.c.l.b16 %v322
        %v365 = vunpack.c.l.b16 %v323
        %v366 = vunpack.c.l.b16 %v324
        %v367 = vunpack.c.l.b16 %v325
        %v368 = vunpack.c.l.b16 %v326
        %v369 = vunpack.c.l.b16 %v327
        %v370 = vunpack.c.l.b16 %v328
        %v371 = vunpack.c.l.b16 %v329
        %v372 = vunpack.c.l.b16 %v330
        %v373 = vunpack.c.l.b16 %v331
        %v374 = vpack.c.b16 %v359, %v358
        %v375 = vpack.c.b16 %v361, %v360
        %v376 = vpack.c.b16 %v363, %v362
        %v377 = vpack.c.b16 %v365, %v364
        %v378 = vpack.c.b16 %v367, %v366
        %v379 = vpack.c.b16 %v369, %v368
        %v380 = vpack.c.b16 %v371, %v370
        %v381 = vpack.c.b16 %v373, %v372
        %390 = vmatprep.subr.bf16.mxu0 0
        %391 = vmatpush1.bf16.msra.mxu0 %v381
        %392 = vmatprep.subr.bf16.mxu0 0
        %393 = vmatpush1.bf16.msra.mxu0 %v380
        %394 = vmatprep.subr.bf16.mxu0 0
        %395 = vmatpush1.bf16.msra.mxu0 %v379
        %396 = vmatprep.subr.bf16.mxu0 0
        %397 = vmatpush1.bf16.msra.mxu0 %v378
        %398 = vmatprep.subr.bf16.mxu0 0
        %399 = vmatpush1.bf16.msra.mxu0 %v377
        %400 = vmatprep.subr.bf16.mxu0 0
        %401 = vmatpush1.bf16.msra.mxu0 %v376
        %402 = vmatprep.subr.bf16.mxu0 0
        %403 = vmatpush1.bf16.msra.mxu0 %v375
        %404 = vmatprep.subr.bf16.mxu0 0
        %405 = vmatpush1.bf16.msra.mxu0 %v374
        %406 = vmatprep.subr.bf16.mxu0 0
        %407 = vmatpush2.bf16.msra.mxu0 0
        %408 = vmatprep.subr.bf16.mxu0 0
        %409 = vmatpush2.bf16.msra.mxu0 0
        %410 = vmatprep.subr.bf16.mxu0 0
        %411 = vmatpush2.bf16.msra.mxu0 0
        %412 = vmatprep.subr.bf16.mxu0 0
        %413 = vmatpush2.bf16.msra.mxu0 0
        %414 = vmatprep.subr.bf16.mxu0 0
        %415 = vmatpush2.bf16.msra.mxu0 0
        %416 = vmatprep.subr.bf16.mxu0 0
        %417 = vmatpush2.bf16.msra.mxu0 0
        %418 = vmatprep.subr.bf16.mxu0 0
        %419 = vmatpush2.bf16.msra.mxu0 0
        %420 = vmatprep.subr.bf16.mxu0 0
        %421 = vmatpush2.bf16.msra.mxu0 0
        %422 = vmatprep.mubr.bf16.mxu0 0
        %423 = vmatmul.mubr.bf16.gmra.mxu0 %v338
        %v424 = vpop.f32.mrf.mxu0
        %v425 = vadd.f32 0.0, %v424
        %v426 = vpop.f32.mrf.mxu0
        %v427 = vpop.f32.mrf.mxu0
        %v428 = vadd.f32 0.0, %v427
        %v429 = vpop.f32.mrf.mxu0
        %430 = vmatprep.mubr.bf16.mxu0 0
        %431 = vmatmul.mubr.bf16.gmra.mxu0 %v339
        %v432 = vpop.f32.mrf.mxu0
        %v433 = vpop.f32.mrf.mxu0
        %v434 = vpop.f32.mrf.mxu0
        %v435 = vpop.f32.mrf.mxu0
        %436 = vdwg.mxu0
        %v440 = vunpack.c.l.b16 %v289
        %v441 = vunpack.c.l.b16 %v290
        %v442 = vunpack.c.l.b16 %v291
        %v443 = vpack.c.b16 %v441, %v440
        %v444 = vpack.c.b16 %v442, %v442
        %v463 = vunpack.c.l.b16 %v299
        %v464 = vunpack.c.l.b16 %v300
        %v465 = vunpack.c.l.b16 %v301
        %v466 = vunpack.c.l.b16 %v302
        %v467 = vunpack.c.l.b16 %v303
        %v468 = vunpack.c.l.b16 %v304
        %v469 = vunpack.c.l.b16 %v305
        %v470 = vunpack.c.l.b16 %v306
        %v471 = vunpack.c.l.b16 %v307
        %v472 = vunpack.c.l.b16 %v308
        %v473 = vunpack.c.l.b16 %v309
        %v474 = vunpack.c.l.b16 %v310
        %v475 = vunpack.c.l.b16 %v311
        %v476 = vunpack.c.l.b16 %v312
        %v477 = vunpack.c.l.b16 %v313
        %v478 = vunpack.c.l.b16 %v314
        %v479 = vpack.c.b16 %v464, %v463
        %v480 = vpack.c.b16 %v466, %v465
        %v481 = vpack.c.b16 %v468, %v467
        %v482 = vpack.c.b16 %v470, %v469
        %v483 = vpack.c.b16 %v472, %v471
        %v484 = vpack.c.b16 %v474, %v473
        %v485 = vpack.c.b16 %v476, %v475
        %v486 = vpack.c.b16 %v478, %v477
        %495 = vmatprep.subr.bf16.mxu0 0
        %496 = vmatpush1.bf16.msra.mxu0 %v486
        %497 = vmatprep.subr.bf16.mxu0 0
        %498 = vmatpush1.bf16.msra.mxu0 %v485
        %499 = vmatprep.subr.bf16.mxu0 0
        %500 = vmatpush1.bf16.msra.mxu0 %v484
        %501 = vmatprep.subr.bf16.mxu0 0
        %502 = vmatpush1.bf16.msra.mxu0 %v483
        %503 = vmatprep.subr.bf16.mxu0 0
        %504 = vmatpush1.bf16.msra.mxu0 %v482
        %505 = vmatprep.subr.bf16.mxu0 0
        %506 = vmatpush1.bf16.msra.mxu0 %v481
        %507 = vmatprep.subr.bf16.mxu0 0
        %508 = vmatpush1.bf16.msra.mxu0 %v480
        %509 = vmatprep.subr.bf16.mxu0 0
        %510 = vmatpush1.bf16.msra.mxu0 %v479
        %511 = vmatprep.subr.bf16.mxu0 0
        %512 = vmatpush2.bf16.msra.mxu0 0
        %513 = vmatprep.subr.bf16.mxu0 0
        %514 = vmatpush2.bf16.msra.mxu0 0
        %515 = vmatprep.subr.bf16.mxu0 0
        %516 = vmatpush2.bf16.msra.mxu0 0
        %517 = vmatprep.subr.bf16.mxu0 0
        %518 = vmatpush2.bf16.msra.mxu0 0
        %519 = vmatprep.subr.bf16.mxu0 0
        %520 = vmatpush2.bf16.msra.mxu0 0
        %521 = vmatprep.subr.bf16.mxu0 0
        %522 = vmatpush2.bf16.msra.mxu0 0
        %523 = vmatprep.subr.bf16.mxu0 0
        %524 = vmatpush2.bf16.msra.mxu0 0
        %525 = vmatprep.subr.bf16.mxu0 0
        %526 = vmatpush2.bf16.msra.mxu0 0
        %527 = vmatprep.mubr.bf16.mxu0 0
        %528 = vmatmul.mubr.bf16.gmra.mxu0 %v443
        %v529 = vpop.f32.mrf.mxu0
        %v530 = vadd.f32 %v425, %v529
        %v531 = vpop.f32.mrf.mxu0
        %v532 = vpop.f32.mrf.mxu0
        %v533 = vadd.f32 %v428, %v532
        %v534 = vpop.f32.mrf.mxu0
        %535 = vmatprep.mubr.bf16.mxu0 0
        %536 = vmatmul.mubr.bf16.gmra.mxu0 %v444
        %v537 = vpop.f32.mrf.mxu0
        %v538 = vpop.f32.mrf.mxu0
        %v539 = vpop.f32.mrf.mxu0
        %v540 = vpop.f32.mrf.mxu0
        %541 = vdwg.mxu0
        %s542 = scalar_lea.vmem %s1, 64
        %v543 = vld [vmem:[%s542] sm:$0xf]
        %v544 = vld [vmem:[%s542 + $0x4] sm:$0xf]
        %v545 = vld [vmem:[%s542 + $0x8] sm:$0xf]
        %v546 = vld [vmem:[%s542 + $0xc] sm:$0xf]
        %v547 = vld [vmem:[%s542 + $0x10] sm:$0xf]
        %v548 = vld [vmem:[%s542 + $0x14] sm:$0xf]
        %v549 = vld [vmem:[%s542 + $0x18] sm:$0xf]
        %v550 = vld [vmem:[%s542 + $0x1c] sm:$0xf]
        %v551 = vld [vmem:[%s542 + $0x20] sm:$0xf]
        %v552 = vld [vmem:[%s542 + $0x24] sm:$0xf]
        %v553 = vld [vmem:[%s542 + $0x28] sm:$0xf]
        %v554 = vld [vmem:[%s542 + $0x2c] sm:$0xf]
        %v555 = vld [vmem:[%s542 + $0x30] sm:$0xf]
        %v556 = vld [vmem:[%s542 + $0x34] sm:$0xf]
        %v557 = vld [vmem:[%s542 + $0x38] sm:$0xf]
        %v558 = vld [vmem:[%s542 + $0x3c] sm:$0xf]
        %s559 = scalar_lea.vmem %s1, 192
        %v560 = vld [vmem:[%s559] sm:$0xf]
        %v561 = vld [vmem:[%s559 + $0x4] sm:$0xf]
        %v562 = vld [vmem:[%s559 + $0x8] sm:$0xf]
        %v563 = vld [vmem:[%s559 + $0xc] sm:$0xf]
        %v564 = vld [vmem:[%s559 + $0x10] sm:$0xf]
        %v565 = vld [vmem:[%s559 + $0x14] sm:$0xf]
        %v566 = vld [vmem:[%s559 + $0x18] sm:$0xf]
        %v567 = vld [vmem:[%s559 + $0x1c] sm:$0xf]
        %v568 = vld [vmem:[%s559 + $0x20] sm:$0xf]
        %v569 = vld [vmem:[%s559 + $0x24] sm:$0xf]
        %v570 = vld [vmem:[%s559 + $0x28] sm:$0xf]
        %v571 = vld [vmem:[%s559 + $0x2c] sm:$0xf]
        %v572 = vld [vmem:[%s559 + $0x30] sm:$0xf]
        %v573 = vld [vmem:[%s559 + $0x34] sm:$0xf]
        %v574 = vld [vmem:[%s559 + $0x38] sm:$0xf]
        %v575 = vld [vmem:[%s559 + $0x3c] sm:$0xf]
        %v592 = vunpack.c.l.b16 %v560
        %v593 = vunpack.c.l.b16 %v561
        %v594 = vunpack.c.l.b16 %v562
        %v595 = vunpack.c.l.b16 %v563
        %v596 = vunpack.c.l.b16 %v564
        %v597 = vunpack.c.l.b16 %v565
        %v598 = vunpack.c.l.b16 %v566
        %v599 = vunpack.c.l.b16 %v567
        %v600 = vunpack.c.l.b16 %v568
        %v601 = vunpack.c.l.b16 %v569
        %v602 = vunpack.c.l.b16 %v570
        %v603 = vunpack.c.l.b16 %v571
        %v604 = vunpack.c.l.b16 %v572
        %v605 = vunpack.c.l.b16 %v573
        %v606 = vunpack.c.l.b16 %v574
        %v607 = vunpack.c.l.b16 %v575
        %v608 = vpack.c.b16 %v593, %v592
        %v609 = vpack.c.b16 %v595, %v594
        %v610 = vpack.c.b16 %v597, %v596
        %v611 = vpack.c.b16 %v599, %v598
        %v612 = vpack.c.b16 %v601, %v600
        %v613 = vpack.c.b16 %v603, %v602
        %v614 = vpack.c.b16 %v605, %v604
        %v615 = vpack.c.b16 %v607, %v606
        %624 = vmatprep.subr.bf16.mxu0 0
        %625 = vmatpush1.bf16.msra.mxu0 %v615
        %626 = vmatprep.subr.bf16.mxu0 0
        %627 = vmatpush1.bf16.msra.mxu0 %v614
        %628 = vmatprep.subr.bf16.mxu0 0
        %629 = vmatpush1.bf16.msra.mxu0 %v613
        %630 = vmatprep.subr.bf16.mxu0 0
        %631 = vmatpush1.bf16.msra.mxu0 %v612
        %632 = vmatprep.subr.bf16.mxu0 0
        %633 = vmatpush1.bf16.msra.mxu0 %v611
        %634 = vmatprep.subr.bf16.mxu0 0
        %635 = vmatpush1.bf16.msra.mxu0 %v610
        %636 = vmatprep.subr.bf16.mxu0 0
        %637 = vmatpush1.bf16.msra.mxu0 %v609
        %638 = vmatprep.subr.bf16.mxu0 0
        %639 = vmatpush1.bf16.msra.mxu0 %v608
        %640 = vmatprep.subr.bf16.mxu0 0
        %641 = vmatpush2.bf16.msra.mxu0 0
        %642 = vmatprep.subr.bf16.mxu0 0
        %643 = vmatpush2.bf16.msra.mxu0 0
        %644 = vmatprep.subr.bf16.mxu0 0
        %645 = vmatpush2.bf16.msra.mxu0 0
        %646 = vmatprep.subr.bf16.mxu0 0
        %647 = vmatpush2.bf16.msra.mxu0 0
        %648 = vmatprep.subr.bf16.mxu0 0
        %649 = vmatpush2.bf16.msra.mxu0 0
        %650 = vmatprep.subr.bf16.mxu0 0
        %651 = vmatpush2.bf16.msra.mxu0 0
        %652 = vmatprep.subr.bf16.mxu0 0
        %653 = vmatpush2.bf16.msra.mxu0 0
        %654 = vmatprep.subr.bf16.mxu0 0
        %655 = vmatpush2.bf16.msra.mxu0 0
        %656 = vmatprep.mubr.bf16.mxu0 0
        %657 = vmatmul.mubr.bf16.gmra.mxu0 %v338
        %v658 = vpop.f32.mrf.mxu0
        %v659 = vadd.f32 0.0, %v658
        %v660 = vpop.f32.mrf.mxu0
        %v661 = vpop.f32.mrf.mxu0
        %v662 = vadd.f32 0.0, %v661
        %v663 = vpop.f32.mrf.mxu0
        %664 = vmatprep.mubr.bf16.mxu0 0
        %665 = vmatmul.mubr.bf16.gmra.mxu0 %v339
        %v666 = vpop.f32.mrf.mxu0
        %v667 = vadd.f32 0.0, %v666
        %v668 = vpop.f32.mrf.mxu0
        %v669 = vpop.f32.mrf.mxu0
        %v670 = vpop.f32.mrf.mxu0
        %671 = vdwg.mxu0
        %v688 = vunpack.c.l.b16 %v543
        %v689 = vunpack.c.l.b16 %v544
        %v690 = vunpack.c.l.b16 %v545
        %v691 = vunpack.c.l.b16 %v546
        %v692 = vunpack.c.l.b16 %v547
        %v693 = vunpack.c.l.b16 %v548
        %v694 = vunpack.c.l.b16 %v549
        %v695 = vunpack.c.l.b16 %v550
        %v696 = vunpack.c.l.b16 %v551
        %v697 = vunpack.c.l.b16 %v552
        %v698 = vunpack.c.l.b16 %v553
        %v699 = vunpack.c.l.b16 %v554
        %v700 = vunpack.c.l.b16 %v555
        %v701 = vunpack.c.l.b16 %v556
        %v702 = vunpack.c.l.b16 %v557
        %v703 = vunpack.c.l.b16 %v558
        %v704 = vpack.c.b16 %v689, %v688
        %v705 = vpack.c.b16 %v691, %v690
        %v706 = vpack.c.b16 %v693, %v692
        %v707 = vpack.c.b16 %v695, %v694
        %v708 = vpack.c.b16 %v697, %v696
        %v709 = vpack.c.b16 %v699, %v698
        %v710 = vpack.c.b16 %v701, %v700
        %v711 = vpack.c.b16 %v703, %v702
        %720 = vmatprep.subr.bf16.mxu0 0
        %721 = vmatpush1.bf16.msra.mxu0 %v711
        %722 = vmatprep.subr.bf16.mxu0 0
        %723 = vmatpush1.bf16.msra.mxu0 %v710
        %724 = vmatprep.subr.bf16.mxu0 0
        %725 = vmatpush1.bf16.msra.mxu0 %v709
        %726 = vmatprep.subr.bf16.mxu0 0
        %727 = vmatpush1.bf16.msra.mxu0 %v708
        %728 = vmatprep.subr.bf16.mxu0 0
        %729 = vmatpush1.bf16.msra.mxu0 %v707
        %730 = vmatprep.subr.bf16.mxu0 0
        %731 = vmatpush1.bf16.msra.mxu0 %v706
        %732 = vmatprep.subr.bf16.mxu0 0
        %733 = vmatpush1.bf16.msra.mxu0 %v705
        %734 = vmatprep.subr.bf16.mxu0 0
        %735 = vmatpush1.bf16.msra.mxu0 %v704
        %736 = vmatprep.subr.bf16.mxu0 0
        %737 = vmatpush2.bf16.msra.mxu0 0
        %738 = vmatprep.subr.bf16.mxu0 0
        %739 = vmatpush2.bf16.msra.mxu0 0
        %740 = vmatprep.subr.bf16.mxu0 0
        %741 = vmatpush2.bf16.msra.mxu0 0
        %742 = vmatprep.subr.bf16.mxu0 0
        %743 = vmatpush2.bf16.msra.mxu0 0
        %744 = vmatprep.subr.bf16.mxu0 0
        %745 = vmatpush2.bf16.msra.mxu0 0
        %746 = vmatprep.subr.bf16.mxu0 0
        %747 = vmatpush2.bf16.msra.mxu0 0
        %748 = vmatprep.subr.bf16.mxu0 0
        %749 = vmatpush2.bf16.msra.mxu0 0
        %750 = vmatprep.subr.bf16.mxu0 0
        %751 = vmatpush2.bf16.msra.mxu0 0
        %752 = vmatprep.mubr.bf16.mxu0 0
        %753 = vmatmul.mubr.bf16.gmra.mxu0 %v443
        %v754 = vpop.f32.mrf.mxu0
        %v755 = vadd.f32 %v659, %v754
        %v756 = vpop.f32.mrf.mxu0
        %v757 = vpop.f32.mrf.mxu0
        %v758 = vadd.f32 %v662, %v757
        %v759 = vpop.f32.mrf.mxu0
        %760 = vmatprep.mubr.bf16.mxu0 0
        %761 = vmatmul.mubr.bf16.gmra.mxu0 %v444
        %v762 = vpop.f32.mrf.mxu0
        %v763 = vadd.f32 %v667, %v762
        %v764 = vpop.f32.mrf.mxu0
        %v765 = vpop.f32.mrf.mxu0
        %v766 = vpop.f32.mrf.mxu0
        %767 = vdwg.mxu0
        %vm768 = vcmask 1047553
        %v769 = vrot.slane %v755, 7
        %v770 = vsel %vm768, %v769, %v763
        %vm774 = vcmask 1046528
        %v775 = vrot.slane %v755, 1
        %v776 = vrot.slane %v758, 1
        %v777 = vsel %vm774, %v775, %v776
        %v778 = vrot.slane %v770, 1
        %v779 = vsel %vm774, %v776, %v778
        %v782 = vadd.f32 %v530, %v777
        %v783 = vadd.f32 %v533, %v779
        %v784 = vld [vmem:[%s2] sm:$0x1]
        %v786 = vlaneseq
        %v787 = vshrl.u32 %v786, 7
        %v788 = vsub.s32 0, %v787
        %v789 = vrot.slane %v784, %v788
        %v791 = vadd.f32 %v782, %v789
        %v792 = vadd.f32 %v783, %v789
        %v793 = vmul.f32 %v791, 0.70710677
        %v794 = vmul.f32 %v792, 0.70710677
        %vm795 = vcmp.ge.f32.partialorder %v793, 0.0
        %vm796 = vcmp.ge.f32.partialorder %v794, 0.0
        %v797 = vsel %vm795, 1.0, -1.0
        %v798 = vsel %vm796, 1.0, -1.0
        %v799 = vand.u32 2147483647, %v793
        %v800 = vand.u32 2147483647, %v794
        %v801 = vmul.f32 %v799, 0.3275911
        %v802 = vmul.f32 %v800, 0.3275911
        %v803 = vadd.f32 %v801, 1.0
        %v804 = vadd.f32 %v802, 1.0
        %v805 = vrcp.pop %v803
        %v806 = vrcp.pop %v804
        %v807 = vmul.f32 %v805, 1.0614054
        %v808 = vmul.f32 %v806, 1.0614054
        %v809 = vsub.f32 %v807, 1.4531521
        %v810 = vsub.f32 %v808, 1.4531521
        %v811 = vmul.f32 %v809, %v805
        %v812 = vmul.f32 %v810, %v806
        %v813 = vadd.f32 %v811, 1.4214138
        %v814 = vadd.f32 %v812, 1.4214138
        %v815 = vmul.f32 %v813, %v805
        %v816 = vmul.f32 %v814, %v806
        %v817 = vsub.f32 %v815, 0.28449672
        %v818 = vsub.f32 %v816, 0.28449672
        %v819 = vmul.f32 %v817, %v805
        %v820 = vmul.f32 %v818, %v806
        %v821 = vadd.f32 %v819, 0.2548296
        %v822 = vadd.f32 %v820, 0.2548296
        %v823 = vmul.f32 %v821, %v805
        %v824 = vmul.f32 %v822, %v806
        %v825 = vsub.f32 0.0, %v799
        %v826 = vsub.f32 0.0, %v800
        %v827 = vmul.f32 %v825, %v799
        %v828 = vmul.f32 %v826, %v800
        %v829 = vmul.f32 %v827, 1.442695
        %v830 = vpow.pop %v829
        %v831 = vmul.f32 %v828, 1.442695
        %v832 = vpow.pop %v831
        %v833 = vmul.f32 %v823, %v830
        %v834 = vmul.f32 %v824, %v832
        %v835 = vsub.f32 1.0, %v833
        %v836 = vsub.f32 1.0, %v834
        %v837 = vmul.f32 %v797, %v835
        %v838 = vmul.f32 %v798, %v836
        %v839 = vmul.f32 %v791, 0.5
        %v840 = vmul.f32 %v792, 0.5
        %v841 = vadd.f32 %v837, 1.0
        %v842 = vadd.f32 %v838, 1.0
        %v843 = vmul.f32 %v839, %v841
        %v844 = vmul.f32 %v840, %v842
        %v845 = vld [vmem:[%s3] sm:$0xf]
        %v846 = vld [vmem:[%s3 + $0x4] sm:$0xf]
        %v847 = vld [vmem:[%s4] sm:$0x1]
        %v848 = vpack.c.bf16 %v844, %v843
        %v850 = vlaneseq
        %v851 = vshrl.u32 %v850, 7
        %v852 = vsub.s32 0, %v851
        %v853 = vrot.slane %v847, %v852
        %v857 = vunpack.c.l.b16 %v845
        %v858 = vunpack.c.l.b16 %v846
        %v859 = vpack.c.b16 %v858, %v857
        %vm861 = vcmask 130048
        %v863 = vsel %vm861, %v848, 0
        %865 = vmatprep.subr.bf16.mxu0 0
        %866 = vmatpush1.bf16.msra.mxu0 0
        %867 = vmatprep.subr.bf16.mxu0 0
        %868 = vmatpush1.bf16.msra.mxu0 0
        %869 = vmatprep.subr.bf16.mxu0 0
        %870 = vmatpush1.bf16.msra.mxu0 0
        %871 = vmatprep.subr.bf16.mxu0 0
        %872 = vmatpush1.bf16.msra.mxu0 0
        %873 = vmatprep.subr.bf16.mxu0 0
        %874 = vmatpush1.bf16.msra.mxu0 0
        %875 = vmatprep.subr.bf16.mxu0 0
        %876 = vmatpush1.bf16.msra.mxu0 0
        %877 = vmatprep.subr.bf16.mxu0 0
        %878 = vmatpush1.bf16.msra.mxu0 0
        %879 = vmatprep.subr.bf16.mxu0 0
        %880 = vmatpush1.bf16.msra.mxu0 %v859
        %881 = vmatprep.subr.bf16.mxu0 0
        %882 = vmatpush2.bf16.msra.mxu0 0
        %883 = vmatprep.subr.bf16.mxu0 0
        %884 = vmatpush2.bf16.msra.mxu0 0
        %885 = vmatprep.subr.bf16.mxu0 0
        %886 = vmatpush2.bf16.msra.mxu0 0
        %887 = vmatprep.subr.bf16.mxu0 0
        %888 = vmatpush2.bf16.msra.mxu0 0
        %889 = vmatprep.subr.bf16.mxu0 0
        %890 = vmatpush2.bf16.msra.mxu0 0
        %891 = vmatprep.subr.bf16.mxu0 0
        %892 = vmatpush2.bf16.msra.mxu0 0
        %893 = vmatprep.subr.bf16.mxu0 0
        %894 = vmatpush2.bf16.msra.mxu0 0
        %895 = vmatprep.subr.bf16.mxu0 0
        %896 = vmatpush2.bf16.msra.mxu0 0
        %897 = vmatprep.mubr.bf16.mxu0 0
        %898 = vmatmul.mubr.bf16.gmra.mxu0 %v863
        %v899 = vpop.f32.mrf.mxu0
        %v900 = vadd.f32 %v853, %v899
        %v901 = vpop.f32.mrf.mxu0
        %v902 = vpop.f32.mrf.mxu0
        %v903 = vadd.f32 %v853, %v902
        %v904 = vpop.f32.mrf.mxu0
        %905 = vdwg.mxu0
        %v906 = vmul.f32 %v900, 0.70710677
        %v907 = vmul.f32 %v903, 0.70710677
        %vm908 = vcmp.ge.f32.partialorder %v906, 0.0
        %vm909 = vcmp.ge.f32.partialorder %v907, 0.0
        %v910 = vsel %vm908, 1.0, -1.0
        %v911 = vsel %vm909, 1.0, -1.0
        %v912 = vand.u32 2147483647, %v906
        %v913 = vand.u32 2147483647, %v907
        %v914 = vmul.f32 %v912, 0.3275911
        %v915 = vmul.f32 %v913, 0.3275911
        %v916 = vadd.f32 %v914, 1.0
        %v917 = vadd.f32 %v915, 1.0
        %v918 = vrcp.pop %v916
        %v919 = vrcp.pop %v917
        %v920 = vmul.f32 %v918, 1.0614054
        %v921 = vmul.f32 %v919, 1.0614054
        %v922 = vsub.f32 %v920, 1.4531521
        %v923 = vsub.f32 %v921, 1.4531521
        %v924 = vmul.f32 %v922, %v918
        %v925 = vmul.f32 %v923, %v919
        %v926 = vadd.f32 %v924, 1.4214138
        %v927 = vadd.f32 %v925, 1.4214138
        %v928 = vmul.f32 %v926, %v918
        %v929 = vmul.f32 %v927, %v919
        %v930 = vsub.f32 %v928, 0.28449672
        %v931 = vsub.f32 %v929, 0.28449672
        %v932 = vmul.f32 %v930, %v918
        %v933 = vmul.f32 %v931, %v919
        %v934 = vadd.f32 %v932, 0.2548296
        %v935 = vadd.f32 %v933, 0.2548296
        %v936 = vmul.f32 %v934, %v918
        %v937 = vmul.f32 %v935, %v919
        %v938 = vsub.f32 0.0, %v912
        %v939 = vsub.f32 0.0, %v913
        %v940 = vmul.f32 %v938, %v912
        %v941 = vmul.f32 %v939, %v913
        %v942 = vmul.f32 %v940, 1.442695
        %v943 = vpow.pop %v942
        %v944 = vmul.f32 %v941, 1.442695
        %v945 = vpow.pop %v944
        %v946 = vmul.f32 %v936, %v943
        %v947 = vmul.f32 %v937, %v945
        %v948 = vsub.f32 1.0, %v946
        %v949 = vsub.f32 1.0, %v947
        %v950 = vmul.f32 %v910, %v948
        %v951 = vmul.f32 %v911, %v949
        %v952 = vmul.f32 %v900, 0.5
        %v953 = vmul.f32 %v903, 0.5
        %v954 = vadd.f32 %v950, 1.0
        %v955 = vadd.f32 %v951, 1.0
        %v956 = vmul.f32 %v952, %v954
        %v957 = vmul.f32 %v953, %v955
        %v958 = vld [vmem:[%s5] sm:$0xf]
        %v959 = vld [vmem:[%s5 + $0x4] sm:$0xf]
        %v960 = vld [vmem:[%s6] sm:$0x1]
        %v961 = vpack.c.bf16 %v957, %v956
        %v963 = vlaneseq
        %v964 = vshrl.u32 %v963, 7
        %v965 = vsub.s32 0, %v964
        %v966 = vrot.slane %v960, %v965
        %v970 = vunpack.c.l.b16 %v958
        %v971 = vunpack.c.l.b16 %v959
        %v972 = vpack.c.b16 %v971, %v970
        %v975 = vsel %vm861, %v961, 0
        %977 = vmatprep.subr.bf16.mxu0 0
        %978 = vmatpush1.bf16.msra.mxu0 0
        %979 = vmatprep.subr.bf16.mxu0 0
        %980 = vmatpush1.bf16.msra.mxu0 0
        %981 = vmatprep.subr.bf16.mxu0 0
        %982 = vmatpush1.bf16.msra.mxu0 0
        %983 = vmatprep.subr.bf16.mxu0 0
        %984 = vmatpush1.bf16.msra.mxu0 0
        %985 = vmatprep.subr.bf16.mxu0 0
        %986 = vmatpush1.bf16.msra.mxu0 0
        %987 = vmatprep.subr.bf16.mxu0 0
        %988 = vmatpush1.bf16.msra.mxu0 0
        %989 = vmatprep.subr.bf16.mxu0 0
        %990 = vmatpush1.bf16.msra.mxu0 0
        %991 = vmatprep.subr.bf16.mxu0 0
        %992 = vmatpush1.bf16.msra.mxu0 %v972
        %993 = vmatprep.subr.bf16.mxu0 0
        %994 = vmatpush2.bf16.msra.mxu0 0
        %995 = vmatprep.subr.bf16.mxu0 0
        %996 = vmatpush2.bf16.msra.mxu0 0
        %997 = vmatprep.subr.bf16.mxu0 0
        %998 = vmatpush2.bf16.msra.mxu0 0
        %999 = vmatprep.subr.bf16.mxu0 0
        %1000 = vmatpush2.bf16.msra.mxu0 0
        %1001 = vmatprep.subr.bf16.mxu0 0
        %1002 = vmatpush2.bf16.msra.mxu0 0
        %1003 = vmatprep.subr.bf16.mxu0 0
        %1004 = vmatpush2.bf16.msra.mxu0 0
        %1005 = vmatprep.subr.bf16.mxu0 0
        %1006 = vmatpush2.bf16.msra.mxu0 0
        %1007 = vmatprep.subr.bf16.mxu0 0
        %1008 = vmatpush2.bf16.msra.mxu0 0
        %1009 = vmatprep.mubr.bf16.mxu0 0
        %1010 = vmatmul.mubr.bf16.gmra.mxu0 %v975
        %v1011 = vpop.f32.mrf.mxu0
        %v1012 = vadd.f32 %v966, %v1011
        %v1013 = vpop.f32.mrf.mxu0
        %v1014 = vpop.f32.mrf.mxu0
        %v1015 = vadd.f32 %v966, %v1014
        %v1016 = vpop.f32.mrf.mxu0
        %1017 = vdwg.mxu0
        %v1018 = vmul.f32 %v1012, 0.70710677
        %v1019 = vmul.f32 %v1015, 0.70710677
        %vm1020 = vcmp.ge.f32.partialorder %v1018, 0.0
        %vm1021 = vcmp.ge.f32.partialorder %v1019, 0.0
        %v1022 = vsel %vm1020, 1.0, -1.0
        %v1023 = vsel %vm1021, 1.0, -1.0
        %v1024 = vand.u32 2147483647, %v1018
        %v1025 = vand.u32 2147483647, %v1019
        %v1026 = vmul.f32 %v1024, 0.3275911
        %v1027 = vmul.f32 %v1025, 0.3275911
        %v1028 = vadd.f32 %v1026, 1.0
        %v1029 = vadd.f32 %v1027, 1.0
        %v1030 = vrcp.pop %v1028
        %v1031 = vrcp.pop %v1029
        %v1032 = vmul.f32 %v1030, 1.0614054
        %v1033 = vmul.f32 %v1031, 1.0614054
        %v1034 = vsub.f32 %v1032, 1.4531521
        %v1035 = vsub.f32 %v1033, 1.4531521
        %v1036 = vmul.f32 %v1034, %v1030
        %v1037 = vmul.f32 %v1035, %v1031
        %v1038 = vadd.f32 %v1036, 1.4214138
        %v1039 = vadd.f32 %v1037, 1.4214138
        %v1040 = vmul.f32 %v1038, %v1030
        %v1041 = vmul.f32 %v1039, %v1031
        %v1042 = vsub.f32 %v1040, 0.28449672
        %v1043 = vsub.f32 %v1041, 0.28449672
        %v1044 = vmul.f32 %v1042, %v1030
        %v1045 = vmul.f32 %v1043, %v1031
        %v1046 = vadd.f32 %v1044, 0.2548296
        %v1047 = vadd.f32 %v1045, 0.2548296
        %v1048 = vmul.f32 %v1046, %v1030
        %v1049 = vmul.f32 %v1047, %v1031
        %v1050 = vsub.f32 0.0, %v1024
        %v1051 = vsub.f32 0.0, %v1025
        %v1052 = vmul.f32 %v1050, %v1024
        %v1053 = vmul.f32 %v1051, %v1025
        %v1054 = vmul.f32 %v1052, 1.442695
        %v1055 = vpow.pop %v1054
        %v1056 = vmul.f32 %v1053, 1.442695
        %v1057 = vpow.pop %v1056
        %v1058 = vmul.f32 %v1048, %v1055
        %v1059 = vmul.f32 %v1049, %v1057
        %v1060 = vsub.f32 1.0, %v1058
        %v1061 = vsub.f32 1.0, %v1059
        %v1062 = vmul.f32 %v1022, %v1060
        %v1063 = vmul.f32 %v1023, %v1061
        %v1064 = vmul.f32 %v1012, 0.5
        %v1065 = vmul.f32 %v1015, 0.5
        %v1066 = vadd.f32 %v1062, 1.0
        %v1067 = vadd.f32 %v1063, 1.0
        %v1068 = vmul.f32 %v1064, %v1066
        %v1069 = vmul.f32 %v1065, %v1067
        %v1070 = vpack.c.bf16 %v1069, %v1068
        %v1072 = vunpack.c.l.b16 %v1070
        %v1073 = vunpack.c.h.b16 %v1070
        %v1074 = vpack.c.b16 %v1072, %v1072
        %v1075 = vpack.c.b16 %v1073, %v1073
        %s1078 = smul.u32 %s281, 2
        %s1079 = smul.addr %s1078, 4
        %s1080 = scalar_lea.vmem %s278, %s1079
        %vm1081 = vcmask 125952
        %1082 = vst.msk [vmem:[%s1080] sm:$0xf] %vm1081, %v1074
        %1083 = vst.msk [vmem:[%s1080 + $0x4] sm:$0xf] %vm1081, %v1075
      $region53: #{simple_cnn_forward.7} parent=47 // loop_footer
        %s285 = sadd.s32 1, %s281
      $region54: #{simple_cnn_forward.7} parent=47 // loop_footer_branch
        %280 = sbr.rel target = $region50
      $region55: #{simple_cnn_forward.7} parent=47 // loop_exit
        _
      %p1084 = scmp.lt.s32.totalorder %s18, 1
      %s1085 = scalar_select %p1084, %s18, 1
      %s1086 = smul.addr %s1085, 32
      %s1087 = smul.addr %s1086, 4
      %s1088 = scalar_lea.vmem %s7, %s1087
      // Predicated region
      $region56: #{simple_cnn_forward.7} parent=47 // pred_check
        %p1089 = pneg %p188
      $region57: #{simple_cnn_forward.7} parent=47 // pred_check_branch
        %1091 = sbr.rel (%p1089) target = $region59
      $region58: #{simple_cnn_forward.7} parent=47 // pred_region
        _
      $region59: #{simple_cnn_forward.7} parent=47 // pred_fallthru
        _
    $region48: #{simple_cnn_forward.7} parent=5 // pred_fallthru
      _
    %p1092 = scmp.le.s32.totalorder 2, %s13
    // Predicated region
    $region60: #{simple_cnn_forward.7} parent=5 // pred_check
      %p1093 = pneg %p1092
    $region61: #{simple_cnn_forward.7} parent=5 // pred_check_branch
      %1095 = sbr.rel (%p1093) target = $region63
    $region62: #{simple_cnn_forward.7} parent=5 // pred_region
      %s1096 = ssub.s32 %s13, 2
      // Predicated region
      $region64: #{simple_cnn_forward.7} parent=62 // pred_check
        %p1097 = pneg %p194
      $region65: #{simple_cnn_forward.7} parent=62 // pred_check_branch
        %1099 = sbr.rel (%p1097) target = $region67
      $region66: #{simple_cnn_forward.7} parent=62 // pred_region
        %p1100 = scmp.lt.s32.totalorder %s19, 1
        %s1101 = scalar_select %p1100, %s19, 1
        %s1102 = smul.addr %s1101, 32
        %s1103 = smul.addr %s1102, 4
        %s1104 = scalar_lea.vmem %s7, %s1103
      $region67: #{simple_cnn_forward.7} parent=62 // pred_fallthru
        _
    $region63: #{simple_cnn_forward.7} parent=5 // pred_fallthru
      _
  $region6: #{simple_cnn_forward.7} parent=0 // loop_footer
    %s17 = sadd.s32 1, %s13
  $region7: #{simple_cnn_forward.7} parent=0 // loop_footer_branch
    %12 = sbr.rel target = $region3
  $region8: #{simple_cnn_forward.7} parent=0 // loop_exit
    _

// kernel: simple_cnn_forward.8
$region0: #{simple_cnn_forward.8}
  #allocation0 [shape = 'u32[]', space=smem, size = 0x4, offset = 0x4, fixed_abs, tag = 'smem constant byte address 0x4 - core index']
  #allocation1 [shape = 'u32[144,128]{1,0:T(1,128)}', space=vmem, size = 0x12000, scoped, tag = 'internal scratch']
  %s0 = inlined_call_operand.vmem [shape: bf16[2,9,9,64], index: 0, kind: input, shape index: {}]
  %s1 = inlined_call_operand.vmem [shape: bf16[4,64,8], index: 1, kind: input, shape index: {}]
  %s2 = inlined_call_operand.vmem [shape: f32[1,8], index: 2, kind: input, shape index: {}]
  %s3 = inlined_call_operand.vmem [shape: bf16[8,8], index: 3, kind: input, shape index: {}]
  %s4 = inlined_call_operand.vmem [shape: f32[1,8], index: 4, kind: input, shape index: {}]
  %s5 = inlined_call_operand.vmem [shape: bf16[2,8,8,8], index: 5, kind: output, shape index: {}]
  %s6 = sld [smem:[#allocation0]]
  $region60: #{simple_cnn_forward.8} parent=0
    _
  %s8 = ssub.s32 1, %s6
  %s9 = scalar_select 0, %s8, %s6
  loop: start=0, step=1, limit=4
  $region2: #{simple_cnn_forward.8} parent=0 // loop_pre_header
    _
  $region3: #{simple_cnn_forward.8} parent=0 // loop_header
    %s11 = sphi 0, %s15
    %p12 = scmp.ge.s32.totalorder %s11, 4
    %s21 = sphi 0, %s23
    %s24 = sphi 0, %s21
    %s25 = sphi 0, %s24
    %s41 = sphi 0, %s25
    %s45 = sphi 0, %s45
    %s47 = sphi 0, %s45
    %s48 = sphi 0, %s47
    %s62 = sphi 0, %s48
    %s66 = sphi 0, %s66
    %s68 = sphi 0, %s66
    %s69 = sphi 0, %s68
    %s83 = sphi 0, %s69
    %s87 = sphi 0, %s87
    %s89 = sphi 0, %s87
    %s90 = sphi 0, %s89
    %s104 = sphi 0, %s90
    %s108 = sphi 0, %s108
    %s110 = sphi 0, %s108
    %s111 = sphi 0, %s110
    %s125 = sphi 0, %s111
    %s131 = sphi 0, %s133
    %s134 = sphi 0, %s131
    %s135 = sphi 0, %s134
    %s151 = sphi 0, %s135
  $region4: #{simple_cnn_forward.8} parent=0 // loop_header_branch
    %14 = sbr.rel (%p12) target = $region8
  $region5: #{simple_cnn_forward.8} parent=0 // loop_body
    %s16 = ssub.s32 %s11, 1
    %s17 = ssub.s32 %s11, 2
    %s18 = sadd.s32 %s11, 1
    %s19 = ssub.s32 %s11, %s18
    %p20 = scmp.eq.s32.totalorder %s19, 0
    %s22 = sadd.s32 %s21, 1
    %s23 = scalar_select %p20, %s21, %s22
    %p26 = pneg %p20
    %p27 = scmp.eq.s32.totalorder %s11, 1
    %p28 = por %p26, %p27
    %p29 = scmp.ne.s32.totalorder %s21, %s24
    %p30 = scmp.eq.s32.totalorder %s11, 0
    %p31 = por %p29, %p30
    %p32 = scmp.ne.s32.totalorder %s21, %s24
    %p33 = scmp.eq.s32.totalorder %s16, 1
    %p34 = por %p32, %p33
    %p35 = scmp.ne.s32.totalorder %s24, %s25
    %p36 = scmp.eq.s32.totalorder %s16, 0
    %p37 = por %p35, %p36
    %p38 = scmp.ne.s32.totalorder %s24, %s25
    %p39 = scmp.eq.s32.totalorder %s17, 1
    %p40 = por %p38, %p39
    %p42 = scmp.ne.s32.totalorder %s25, %s41
    %p43 = scmp.eq.s32.totalorder %s17, 0
    %p44 = por %p42, %p43
    %s46 = sadd.s32 %s45, 1
    %p49 = scmp.eq.s32.totalorder %s11, 1
    %p50 = scmp.ne.s32.totalorder %s45, %s47
    %p51 = scmp.eq.s32.totalorder %s11, 0
    %p52 = por %p50, %p51
    %p53 = scmp.ne.s32.totalorder %s45, %s47
    %p54 = scmp.eq.s32.totalorder %s16, 1
    %p55 = por %p53, %p54
    %p56 = scmp.ne.s32.totalorder %s47, %s48
    %p57 = scmp.eq.s32.totalorder %s16, 0
    %p58 = por %p56, %p57
    %p59 = scmp.ne.s32.totalorder %s47, %s48
    %p60 = scmp.eq.s32.totalorder %s17, 1
    %p61 = por %p59, %p60
    %p63 = scmp.ne.s32.totalorder %s48, %s62
    %p64 = scmp.eq.s32.totalorder %s17, 0
    %p65 = por %p63, %p64
    %s67 = sadd.s32 %s66, 1
    %p70 = scmp.eq.s32.totalorder %s11, 1
    %p71 = scmp.ne.s32.totalorder %s66, %s68
    %p72 = scmp.eq.s32.totalorder %s11, 0
    %p73 = por %p71, %p72
    %p74 = scmp.ne.s32.totalorder %s66, %s68
    %p75 = scmp.eq.s32.totalorder %s16, 1
    %p76 = por %p74, %p75
    %p77 = scmp.ne.s32.totalorder %s68, %s69
    %p78 = scmp.eq.s32.totalorder %s16, 0
    %p79 = por %p77, %p78
    %p80 = scmp.ne.s32.totalorder %s68, %s69
    %p81 = scmp.eq.s32.totalorder %s17, 1
    %p82 = por %p80, %p81
    %p84 = scmp.ne.s32.totalorder %s69, %s83
    %p85 = scmp.eq.s32.totalorder %s17, 0
    %p86 = por %p84, %p85
    %s88 = sadd.s32 %s87, 1
    %p91 = scmp.eq.s32.totalorder %s11, 1
    %p92 = scmp.ne.s32.totalorder %s87, %s89
    %p93 = scmp.eq.s32.totalorder %s11, 0
    %p94 = por %p92, %p93
    %p95 = scmp.ne.s32.totalorder %s87, %s89
    %p96 = scmp.eq.s32.totalorder %s16, 1
    %p97 = por %p95, %p96
    %p98 = scmp.ne.s32.totalorder %s89, %s90
    %p99 = scmp.eq.s32.totalorder %s16, 0
    %p100 = por %p98, %p99
    %p101 = scmp.ne.s32.totalorder %s89, %s90
    %p102 = scmp.eq.s32.totalorder %s17, 1
    %p103 = por %p101, %p102
    %p105 = scmp.ne.s32.totalorder %s90, %s104
    %p106 = scmp.eq.s32.totalorder %s17, 0
    %p107 = por %p105, %p106
    %s109 = sadd.s32 %s108, 1
    %p112 = scmp.eq.s32.totalorder %s11, 1
    %p113 = scmp.ne.s32.totalorder %s108, %s110
    %p114 = scmp.eq.s32.totalorder %s11, 0
    %p115 = por %p113, %p114
    %p116 = scmp.ne.s32.totalorder %s108, %s110
    %p117 = scmp.eq.s32.totalorder %s16, 1
    %p118 = por %p116, %p117
    %p119 = scmp.ne.s32.totalorder %s110, %s111
    %p120 = scmp.eq.s32.totalorder %s16, 0
    %p121 = por %p119, %p120
    %p122 = scmp.ne.s32.totalorder %s110, %s111
    %p123 = scmp.eq.s32.totalorder %s17, 1
    %p124 = por %p122, %p123
    %p126 = scmp.ne.s32.totalorder %s111, %s125
    %p127 = scmp.eq.s32.totalorder %s17, 0
    %p128 = por %p126, %p127
    %s129 = ssub.s32 %s11, %s18
    %p130 = scmp.eq.s32.totalorder %s129, 0
    %s132 = sadd.s32 %s131, 1
    %s133 = scalar_select %p130, %s131, %s132
    %p136 = pneg %p130
    %p137 = scmp.eq.s32.totalorder %s11, 1
    %p138 = por %p136, %p137
    %p139 = scmp.ne.s32.totalorder %s131, %s134
    %p140 = scmp.eq.s32.totalorder %s11, 0
    %p141 = por %p139, %p140
    %p142 = scmp.ne.s32.totalorder %s131, %s134
    %p143 = scmp.eq.s32.totalorder %s16, 1
    %p144 = por %p142, %p143
    %p145 = scmp.ne.s32.totalorder %s134, %s135
    %p146 = scmp.eq.s32.totalorder %s16, 0
    %p147 = por %p145, %p146
    %p148 = scmp.ne.s32.totalorder %s134, %s135
    %p149 = scmp.eq.s32.totalorder %s17, 1
    %p150 = por %p148, %p149
    %p152 = scmp.ne.s32.totalorder %s135, %s151
    %p153 = scmp.eq.s32.totalorder %s17, 0
    %p154 = por %p152, %p153
    %p155 = scmp.le.s32.totalorder 1, %s11
    %p156 = scmp.lt.s32.totalorder %s11, 3
    %p157 = pnand %p155, %p156
    %p158 = pneg %p157
    // Predicated region
    $region9: #{simple_cnn_forward.8} parent=5 // pred_check
      _
    $region10: #{simple_cnn_forward.8} parent=5 // pred_check_branch
      %160 = sbr.rel (%p157) target = $region12
    $region11: #{simple_cnn_forward.8} parent=5 // pred_region
      %s161 = ssub.s32 %s11, 1
      // Predicated region
      $region13: #{simple_cnn_forward.8} parent=11 // pred_check
        %p162 = pneg %p58
      $region14: #{simple_cnn_forward.8} parent=11 // pred_check_branch
        %164 = sbr.rel (%p162) target = $region16
      $region15: #{simple_cnn_forward.8} parent=11 // pred_region
        _
      $region16: #{simple_cnn_forward.8} parent=11 // pred_fallthru
        _
      // Predicated region
      $region17: #{simple_cnn_forward.8} parent=11 // pred_check
        %p165 = pneg %p79
      $region18: #{simple_cnn_forward.8} parent=11 // pred_check_branch
        %167 = sbr.rel (%p165) target = $region20
      $region19: #{simple_cnn_forward.8} parent=11 // pred_region
        _
      $region20: #{simple_cnn_forward.8} parent=11 // pred_fallthru
        _
      // Predicated region
      $region21: #{simple_cnn_forward.8} parent=11 // pred_check
        %p168 = pneg %p100
      $region22: #{simple_cnn_forward.8} parent=11 // pred_check_branch
        %170 = sbr.rel (%p168) target = $region24
      $region23: #{simple_cnn_forward.8} parent=11 // pred_region
        _
      $region24: #{simple_cnn_forward.8} parent=11 // pred_fallthru
        _
      // Predicated region
      $region25: #{simple_cnn_forward.8} parent=11 // pred_check
        %p171 = pneg %p121
      $region26: #{simple_cnn_forward.8} parent=11 // pred_check_branch
        %173 = sbr.rel (%p171) target = $region28
      $region27: #{simple_cnn_forward.8} parent=11 // pred_region
        _
      $region28: #{simple_cnn_forward.8} parent=11 // pred_fallthru
        _
    $region12: #{simple_cnn_forward.8} parent=5 // pred_fallthru
      _
    %p174 = scmp.lt.s32.totalorder %s11, 2
    // Predicated region
    $region29: #{simple_cnn_forward.8} parent=5 // pred_check
      %p175 = pneg %p174
    $region30: #{simple_cnn_forward.8} parent=5 // pred_check_branch
      %177 = sbr.rel (%p175) target = $region32
    $region31: #{simple_cnn_forward.8} parent=5 // pred_region
      // Predicated region
      $region33: #{simple_cnn_forward.8} parent=31 // pred_check
        %p178 = pneg %p31
      $region34: #{simple_cnn_forward.8} parent=31 // pred_check_branch
        %180 = sbr.rel (%p178) target = $region36
      $region35: #{simple_cnn_forward.8} parent=31 // pred_region
        %p181 = scmp.lt.s32.totalorder %s11, 1
        %s182 = scalar_select %p181, %s11, 1
        %s183 = smul.addr %s182, 18
        %s184 = smul.addr %s183, 4
        %s185 = scalar_lea.vmem %s0, %s184
      $region36: #{simple_cnn_forward.8} parent=31 // pred_fallthru
        _
    $region32: #{simple_cnn_forward.8} parent=5 // pred_fallthru
      _
    %p186 = scmp.le.s32.totalorder 1, %s11
    %p187 = scmp.lt.s32.totalorder %s11, 3
    %p188 = pnand %p186, %p187
    %p189 = pneg %p188
    // Predicated region
    $region37: #{simple_cnn_forward.8} parent=5 // pred_check
      _
    $region38: #{simple_cnn_forward.8} parent=5 // pred_check_branch
      %191 = sbr.rel (%p188) target = $region40
    $region39: #{simple_cnn_forward.8} parent=5 // pred_region
      %s192 = ssub.s32 %s11, 1
      %p193 = scmp.lt.s32.totalorder %s16, 1
      %s194 = scalar_select %p193, %s16, 1
      %s195 = smul.addr %s194, 18
      %s196 = smul.addr %s195, 4
      %s197 = scalar_lea.vmem %s0, %s196
      %p198 = pneg %p37
      %p199 = pneg %p34
      %p200 = pneg %p58
      %p201 = pneg %p55
      %p202 = pneg %p79
      %p203 = pneg %p76
      %p204 = pneg %p100
      %p205 = pneg %p97
      %p206 = pneg %p121
      %p207 = pneg %p118
      %p208 = pneg %p147
      %p209 = pneg %p144
      %p210 = scmp.lt.s32.totalorder %s16, 1
      %s211 = scalar_select %p210, %s16, 1
      %s212 = smul.addr %s211, 8
      %s213 = smul.addr %s212, 4
      %s214 = scalar_lea.vmem %s5, %s213
      %p215 = scmp.lt.s32.totalorder %s16, 1
      %s216 = scalar_select %p215, %s16, 1
      %s217 = smul.addr %s216, 18
      %s218 = smul.addr %s217, 4
      %s219 = scalar_lea.vmem %s0, %s218
      %p220 = scmp.lt.s32.totalorder %s16, 1
      %s221 = scalar_select %p220, %s16, 1
      %s222 = smul.addr %s221, 8
      %s223 = smul.addr %s222, 4
      %s224 = scalar_lea.vmem %s5, %s223
      loop: start=0, step=1, limit=8
      $region41: #{simple_cnn_forward.8} parent=39 // loop_pre_header
        _
      $region42: #{simple_cnn_forward.8} parent=39 // loop_header
        %s227 = sphi 0, %s231
        %p228 = scmp.ge.s32.totalorder %s227, 8
      $region43: #{simple_cnn_forward.8} parent=39 // loop_header_branch
        %230 = sbr.rel (%p228) target = $region47
      $region44: #{simple_cnn_forward.8} parent=39 // loop_body
        %s232 = smul.u32 %s227, 2
        %s233 = smul.addr %s232, 4
        %s234 = scalar_lea.vmem %s219, %s233
        %v235 = vld [vmem:[%s234] sm:$0xf]
        %v236 = vld [vmem:[%s234 + $0x4] sm:$0x1]
        %s237 = sadd.s32 %s227, 1
        %s238 = smul.u32 %s237, 2
        %s239 = smul.addr %s238, 4
        %s240 = scalar_lea.vmem %s219, %s239
        %v241 = vld [vmem:[%s240] sm:$0xf]
        %v242 = vld [vmem:[%s240 + $0x4] sm:$0x1]
        %v243 = vld [vmem:[%s1] sm:$0xf]
        %v244 = vld [vmem:[%s1 + $0x4] sm:$0xf]
        %v245 = vld [vmem:[%s1 + $0x8] sm:$0xf]
        %v246 = vld [vmem:[%s1 + $0xc] sm:$0xf]
        %v247 = vld [vmem:[%s1 + $0x10] sm:$0xf]
        %v248 = vld [vmem:[%s1 + $0x14] sm:$0xf]
        %v249 = vld [vmem:[%s1 + $0x18] sm:$0xf]
        %v250 = vld [vmem:[%s1 + $0x1c] sm:$0xf]
        %s251 = scalar_lea.vmem %s1, 64
        %v252 = vld [vmem:[%s251] sm:$0xf]
        %v253 = vld [vmem:[%s251 + $0x4] sm:$0xf]
        %v254 = vld [vmem:[%s251 + $0x8] sm:$0xf]
        %v255 = vld [vmem:[%s251 + $0xc] sm:$0xf]
        %v256 = vld [vmem:[%s251 + $0x10] sm:$0xf]
        %v257 = vld [vmem:[%s251 + $0x14] sm:$0xf]
        %v258 = vld [vmem:[%s251 + $0x18] sm:$0xf]
        %v259 = vld [vmem:[%s251 + $0x1c] sm:$0xf]
        %v262 = vunpack.c.l.b16 %v241
        %v263 = vunpack.c.l.b16 %v242
        %v264 = vpack.c.b16 %v263, %v262
        %v273 = vunpack.c.l.b16 %v252
        %v274 = vunpack.c.l.b16 %v253
        %v275 = vunpack.c.l.b16 %v254
        %v276 = vunpack.c.l.b16 %v255
        %v277 = vunpack.c.l.b16 %v256
        %v278 = vunpack.c.l.b16 %v257
        %v279 = vunpack.c.l.b16 %v258
        %v280 = vunpack.c.l.b16 %v259
        %v281 = vpack.c.b16 %v274, %v273
        %v282 = vpack.c.b16 %v276, %v275
        %v283 = vpack.c.b16 %v278, %v277
        %v284 = vpack.c.b16 %v280, %v279
        %vm289 = vcmask 523264
        %v291 = vsel %vm289, %v264, 0
        %293 = vmatprep.subr.bf16.mxu0 0
        %294 = vmatpush1.bf16.msra.mxu0 0
        %295 = vmatprep.subr.bf16.mxu0 0
        %296 = vmatpush1.bf16.msra.mxu0 0
        %297 = vmatprep.subr.bf16.mxu0 0
        %298 = vmatpush1.bf16.msra.mxu0 0
        %299 = vmatprep.subr.bf16.mxu0 0
        %300 = vmatpush1.bf16.msra.mxu0 0
        %301 = vmatprep.subr.bf16.mxu0 0
        %302 = vmatpush1.bf16.msra.mxu0 %v284
        %303 = vmatprep.subr.bf16.mxu0 0
        %304 = vmatpush1.bf16.msra.mxu0 %v283
        %305 = vmatprep.subr.bf16.mxu0 0
        %306 = vmatpush1.bf16.msra.mxu0 %v282
        %307 = vmatprep.subr.bf16.mxu0 0
        %308 = vmatpush1.bf16.msra.mxu0 %v281
        %309 = vmatprep.subr.bf16.mxu0 0
        %310 = vmatpush2.bf16.msra.mxu0 0
        %311 = vmatprep.subr.bf16.mxu0 0
        %312 = vmatpush2.bf16.msra.mxu0 0
        %313 = vmatprep.subr.bf16.mxu0 0
        %314 = vmatpush2.bf16.msra.mxu0 0
        %315 = vmatprep.subr.bf16.mxu0 0
        %316 = vmatpush2.bf16.msra.mxu0 0
        %317 = vmatprep.subr.bf16.mxu0 0
        %318 = vmatpush2.bf16.msra.mxu0 0
        %319 = vmatprep.subr.bf16.mxu0 0
        %320 = vmatpush2.bf16.msra.mxu0 0
        %321 = vmatprep.subr.bf16.mxu0 0
        %322 = vmatpush2.bf16.msra.mxu0 0
        %323 = vmatprep.subr.bf16.mxu0 0
        %324 = vmatpush2.bf16.msra.mxu0 0
        %325 = vmatprep.mubr.bf16.mxu0 0
        %326 = vmatmul.mubr.bf16.gmra.mxu0 %v291
        %v327 = vpop.f32.mrf.mxu0
        %v328 = vadd.f32 0.0, %v327
        %v329 = vpop.f32.mrf.mxu0
        %v330 = vpop.f32.mrf.mxu0
        %v331 = vpop.f32.mrf.mxu0
        %332 = vdwg.mxu0
        %v335 = vunpack.c.l.b16 %v235
        %v336 = vunpack.c.l.b16 %v236
        %v337 = vpack.c.b16 %v336, %v335
        %v346 = vunpack.c.l.b16 %v243
        %v347 = vunpack.c.l.b16 %v244
        %v348 = vunpack.c.l.b16 %v245
        %v349 = vunpack.c.l.b16 %v246
        %v350 = vunpack.c.l.b16 %v247
        %v351 = vunpack.c.l.b16 %v248
        %v352 = vunpack.c.l.b16 %v249
        %v353 = vunpack.c.l.b16 %v250
        %v354 = vpack.c.b16 %v347, %v346
        %v355 = vpack.c.b16 %v349, %v348
        %v356 = vpack.c.b16 %v351, %v350
        %v357 = vpack.c.b16 %v353, %v352
        %v363 = vsel %vm289, %v337, 0
        %365 = vmatprep.subr.bf16.mxu0 0
        %366 = vmatpush1.bf16.msra.mxu0 0
        %367 = vmatprep.subr.bf16.mxu0 0
        %368 = vmatpush1.bf16.msra.mxu0 0
        %369 = vmatprep.subr.bf16.mxu0 0
        %370 = vmatpush1.bf16.msra.mxu0 0
        %371 = vmatprep.subr.bf16.mxu0 0
        %372 = vmatpush1.bf16.msra.mxu0 0
        %373 = vmatprep.subr.bf16.mxu0 0
        %374 = vmatpush1.bf16.msra.mxu0 %v357
        %375 = vmatprep.subr.bf16.mxu0 0
        %376 = vmatpush1.bf16.msra.mxu0 %v356
        %377 = vmatprep.subr.bf16.mxu0 0
        %378 = vmatpush1.bf16.msra.mxu0 %v355
        %379 = vmatprep.subr.bf16.mxu0 0
        %380 = vmatpush1.bf16.msra.mxu0 %v354
        %381 = vmatprep.subr.bf16.mxu0 0
        %382 = vmatpush2.bf16.msra.mxu0 0
        %383 = vmatprep.subr.bf16.mxu0 0
        %384 = vmatpush2.bf16.msra.mxu0 0
        %385 = vmatprep.subr.bf16.mxu0 0
        %386 = vmatpush2.bf16.msra.mxu0 0
        %387 = vmatprep.subr.bf16.mxu0 0
        %388 = vmatpush2.bf16.msra.mxu0 0
        %389 = vmatprep.subr.bf16.mxu0 0
        %390 = vmatpush2.bf16.msra.mxu0 0
        %391 = vmatprep.subr.bf16.mxu0 0
        %392 = vmatpush2.bf16.msra.mxu0 0
        %393 = vmatprep.subr.bf16.mxu0 0
        %394 = vmatpush2.bf16.msra.mxu0 0
        %395 = vmatprep.subr.bf16.mxu0 0
        %396 = vmatpush2.bf16.msra.mxu0 0
        %397 = vmatprep.mubr.bf16.mxu0 0
        %398 = vmatmul.mubr.bf16.gmra.mxu0 %v363
        %v399 = vpop.f32.mrf.mxu0
        %v400 = vadd.f32 %v328, %v399
        %v401 = vpop.f32.mrf.mxu0
        %v402 = vpop.f32.mrf.mxu0
        %v403 = vpop.f32.mrf.mxu0
        %404 = vdwg.mxu0
        %s405 = scalar_lea.vmem %s1, 32
        %v406 = vld [vmem:[%s405] sm:$0xf]
        %v407 = vld [vmem:[%s405 + $0x4] sm:$0xf]
        %v408 = vld [vmem:[%s405 + $0x8] sm:$0xf]
        %v409 = vld [vmem:[%s405 + $0xc] sm:$0xf]
        %v410 = vld [vmem:[%s405 + $0x10] sm:$0xf]
        %v411 = vld [vmem:[%s405 + $0x14] sm:$0xf]
        %v412 = vld [vmem:[%s405 + $0x18] sm:$0xf]
        %v413 = vld [vmem:[%s405 + $0x1c] sm:$0xf]
        %s414 = scalar_lea.vmem %s1, 96
        %v415 = vld [vmem:[%s414] sm:$0xf]
        %v416 = vld [vmem:[%s414 + $0x4] sm:$0xf]
        %v417 = vld [vmem:[%s414 + $0x8] sm:$0xf]
        %v418 = vld [vmem:[%s414 + $0xc] sm:$0xf]
        %v419 = vld [vmem:[%s414 + $0x10] sm:$0xf]
        %v420 = vld [vmem:[%s414 + $0x14] sm:$0xf]
        %v421 = vld [vmem:[%s414 + $0x18] sm:$0xf]
        %v422 = vld [vmem:[%s414 + $0x1c] sm:$0xf]
        %v431 = vunpack.c.l.b16 %v415
        %v432 = vunpack.c.l.b16 %v416
        %v433 = vunpack.c.l.b16 %v417
        %v434 = vunpack.c.l.b16 %v418
        %v435 = vunpack.c.l.b16 %v419
        %v436 = vunpack.c.l.b16 %v420
        %v437 = vunpack.c.l.b16 %v421
        %v438 = vunpack.c.l.b16 %v422
        %v439 = vpack.c.b16 %v432, %v431
        %v440 = vpack.c.b16 %v434, %v433
        %v441 = vpack.c.b16 %v436, %v435
        %v442 = vpack.c.b16 %v438, %v437
        %447 = vmatprep.subr.bf16.mxu0 0
        %448 = vmatpush1.bf16.msra.mxu0 0
        %449 = vmatprep.subr.bf16.mxu0 0
        %450 = vmatpush1.bf16.msra.mxu0 0
        %451 = vmatprep.subr.bf16.mxu0 0
        %452 = vmatpush1.bf16.msra.mxu0 0
        %453 = vmatprep.subr.bf16.mxu0 0
        %454 = vmatpush1.bf16.msra.mxu0 0
        %455 = vmatprep.subr.bf16.mxu0 0
        %456 = vmatpush1.bf16.msra.mxu0 %v442
        %457 = vmatprep.subr.bf16.mxu0 0
        %458 = vmatpush1.bf16.msra.mxu0 %v441
        %459 = vmatprep.subr.bf16.mxu0 0
        %460 = vmatpush1.bf16.msra.mxu0 %v440
        %461 = vmatprep.subr.bf16.mxu0 0
        %462 = vmatpush1.bf16.msra.mxu0 %v439
        %463 = vmatprep.subr.bf16.mxu0 0
        %464 = vmatpush2.bf16.msra.mxu0 0
        %465 = vmatprep.subr.bf16.mxu0 0
        %466 = vmatpush2.bf16.msra.mxu0 0
        %467 = vmatprep.subr.bf16.mxu0 0
        %468 = vmatpush2.bf16.msra.mxu0 0
        %469 = vmatprep.subr.bf16.mxu0 0
        %470 = vmatpush2.bf16.msra.mxu0 0
        %471 = vmatprep.subr.bf16.mxu0 0
        %472 = vmatpush2.bf16.msra.mxu0 0
        %473 = vmatprep.subr.bf16.mxu0 0
        %474 = vmatpush2.bf16.msra.mxu0 0
        %475 = vmatprep.subr.bf16.mxu0 0
        %476 = vmatpush2.bf16.msra.mxu0 0
        %477 = vmatprep.subr.bf16.mxu0 0
        %478 = vmatpush2.bf16.msra.mxu0 0
        %479 = vmatprep.mubr.bf16.mxu0 0
        %480 = vmatmul.mubr.bf16.gmra.mxu0 %v291
        %v481 = vpop.f32.mrf.mxu0
        %v482 = vadd.f32 0.0, %v481
        %v483 = vpop.f32.mrf.mxu0
        %v484 = vpop.f32.mrf.mxu0
        %v485 = vadd.f32 0.0, %v484
        %v486 = vpop.f32.mrf.mxu0
        %487 = vdwg.mxu0
        %v496 = vunpack.c.l.b16 %v406
        %v497 = vunpack.c.l.b16 %v407
        %v498 = vunpack.c.l.b16 %v408
        %v499 = vunpack.c.l.b16 %v409
        %v500 = vunpack.c.l.b16 %v410
        %v501 = vunpack.c.l.b16 %v411
        %v502 = vunpack.c.l.b16 %v412
        %v503 = vunpack.c.l.b16 %v413
        %v504 = vpack.c.b16 %v497, %v496
        %v505 = vpack.c.b16 %v499, %v498
        %v506 = vpack.c.b16 %v501, %v500
        %v507 = vpack.c.b16 %v503, %v502
        %512 = vmatprep.subr.bf16.mxu0 0
        %513 = vmatpush1.bf16.msra.mxu0 0
        %514 = vmatprep.subr.bf16.mxu0 0
        %515 = vmatpush1.bf16.msra.mxu0 0
        %516 = vmatprep.subr.bf16.mxu0 0
        %517 = vmatpush1.bf16.msra.mxu0 0
        %518 = vmatprep.subr.bf16.mxu0 0
        %519 = vmatpush1.bf16.msra.mxu0 0
        %520 = vmatprep.subr.bf16.mxu0 0
        %521 = vmatpush1.bf16.msra.mxu0 %v507
        %522 = vmatprep.subr.bf16.mxu0 0
        %523 = vmatpush1.bf16.msra.mxu0 %v506
        %524 = vmatprep.subr.bf16.mxu0 0
        %525 = vmatpush1.bf16.msra.mxu0 %v505
        %526 = vmatprep.subr.bf16.mxu0 0
        %527 = vmatpush1.bf16.msra.mxu0 %v504
        %528 = vmatprep.subr.bf16.mxu0 0
        %529 = vmatpush2.bf16.msra.mxu0 0
        %530 = vmatprep.subr.bf16.mxu0 0
        %531 = vmatpush2.bf16.msra.mxu0 0
        %532 = vmatprep.subr.bf16.mxu0 0
        %533 = vmatpush2.bf16.msra.mxu0 0
        %534 = vmatprep.subr.bf16.mxu0 0
        %535 = vmatpush2.bf16.msra.mxu0 0
        %536 = vmatprep.subr.bf16.mxu0 0
        %537 = vmatpush2.bf16.msra.mxu0 0
        %538 = vmatprep.subr.bf16.mxu0 0
        %539 = vmatpush2.bf16.msra.mxu0 0
        %540 = vmatprep.subr.bf16.mxu0 0
        %541 = vmatpush2.bf16.msra.mxu0 0
        %542 = vmatprep.subr.bf16.mxu0 0
        %543 = vmatpush2.bf16.msra.mxu0 0
        %544 = vmatprep.mubr.bf16.mxu0 0
        %545 = vmatmul.mubr.bf16.gmra.mxu0 %v363
        %v546 = vpop.f32.mrf.mxu0
        %v547 = vadd.f32 %v482, %v546
        %v548 = vpop.f32.mrf.mxu0
        %v549 = vpop.f32.mrf.mxu0
        %v550 = vadd.f32 %v485, %v549
        %v551 = vpop.f32.mrf.mxu0
        %552 = vdwg.mxu0
        %vm553 = vcmask 1047553
        %v554 = vrot.slane %v547, 7
        %v555 = vsel %vm553, %v554, %v550
        %vm558 = vcmask 1046528
        %v559 = vrot.slane %v547, 1
        %v560 = vrot.slane %v555, 1
        %v561 = vsel %vm558, %v559, %v560
        %v563 = vadd.f32 %v400, %v561
        %v564 = vld [vmem:[%s2] sm:$0x1]
        %v566 = vlaneseq
        %v567 = vshrl.u32 %v566, 7
        %v568 = vsub.s32 0, %v567
        %v569 = vrot.slane %v564, %v568
        %v571 = vadd.f32 %v563, %v569
        %v572 = vmul.f32 %v571, 0.70710677
        %vm573 = vcmp.ge.f32.partialorder %v572, 0.0
        %v574 = vsel %vm573, 1.0, -1.0
        %v575 = vand.u32 2147483647, %v572
        %v576 = vmul.f32 %v575, 0.3275911
        %v577 = vadd.f32 %v576, 1.0
        %v578 = vrcp.pop %v577
        %v579 = vmul.f32 %v578, 1.0614054
        %v580 = vsub.f32 %v579, 1.4531521
        %v581 = vmul.f32 %v580, %v578
        %v582 = vadd.f32 %v581, 1.4214138
        %v583 = vmul.f32 %v582, %v578
        %v584 = vsub.f32 %v583, 0.28449672
        %v585 = vmul.f32 %v584, %v578
        %v586 = vadd.f32 %v585, 0.2548296
        %v587 = vmul.f32 %v586, %v578
        %v588 = vsub.f32 0.0, %v575
        %v589 = vmul.f32 %v588, %v575
        %v590 = vmul.f32 %v589, 1.442695
        %v591 = vpow.pop %v590
        %v592 = vmul.f32 %v587, %v591
        %v593 = vsub.f32 1.0, %v592
        %v594 = vmul.f32 %v574, %v593
        %v595 = vmul.f32 %v571, 0.5
        %v596 = vadd.f32 %v594, 1.0
        %v597 = vmul.f32 %v595, %v596
        %v598 = vld [vmem:[%s3] sm:$0xf]
        %v599 = vld [vmem:[%s4] sm:$0x1]
        %v600 = vpack.c.bf16 %v597, %v597
        %v602 = vlaneseq
        %v603 = vshrl.u32 %v602, 7
        %v604 = vsub.s32 0, %v603
        %v605 = vrot.slane %v599, %v604
        %vm607 = vcmask 64512
        %v609 = vsel %vm607, %v600, 0
        %vm611 = vcmask 1043456
        %v613 = vsel %vm611, %v598, 0
        %615 = vmatprep.subr.bf16.mxu0 0
        %616 = vmatpush1.bf16.msra.mxu0 0
        %617 = vmatprep.subr.bf16.mxu0 0
        %618 = vmatpush1.bf16.msra.mxu0 0
        %619 = vmatprep.subr.bf16.mxu0 0
        %620 = vmatpush1.bf16.msra.mxu0 0
        %621 = vmatprep.subr.bf16.mxu0 0
        %622 = vmatpush1.bf16.msra.mxu0 0
        %623 = vmatprep.subr.bf16.mxu0 0
        %624 = vmatpush1.bf16.msra.mxu0 0
        %625 = vmatprep.subr.bf16.mxu0 0
        %626 = vmatpush1.bf16.msra.mxu0 0
        %627 = vmatprep.subr.bf16.mxu0 0
        %628 = vmatpush1.bf16.msra.mxu0 0
        %629 = vmatprep.subr.bf16.mxu0 0
        %630 = vmatpush1.bf16.msra.mxu0 %v613
        %631 = vmatprep.subr.bf16.mxu0 0
        %632 = vmatpush2.bf16.msra.mxu0 0
        %633 = vmatprep.subr.bf16.mxu0 0
        %634 = vmatpush2.bf16.msra.mxu0 0
        %635 = vmatprep.subr.bf16.mxu0 0
        %636 = vmatpush2.bf16.msra.mxu0 0
        %637 = vmatprep.subr.bf16.mxu0 0
        %638 = vmatpush2.bf16.msra.mxu0 0
        %639 = vmatprep.subr.bf16.mxu0 0
        %640 = vmatpush2.bf16.msra.mxu0 0
        %641 = vmatprep.subr.bf16.mxu0 0
        %642 = vmatpush2.bf16.msra.mxu0 0
        %643 = vmatprep.subr.bf16.mxu0 0
        %644 = vmatpush2.bf16.msra.mxu0 0
        %645 = vmatprep.subr.bf16.mxu0 0
        %646 = vmatpush2.bf16.msra.mxu0 0
        %647 = vmatprep.mubr.bf16.mxu0 0
        %648 = vmatmul.mubr.bf16.gmra.mxu0 %v609
        %v649 = vpop.f32.mrf.mxu0
        %v650 = vadd.f32 %v605, %v649
        %v651 = vpop.f32.mrf.mxu0
        %v652 = vpop.f32.mrf.mxu0
        %v653 = vpop.f32.mrf.mxu0
        %654 = vdwg.mxu0
        %v655 = vmul.f32 %v650, 0.70710677
        %vm656 = vcmp.ge.f32.partialorder %v655, 0.0
        %v657 = vsel %vm656, 1.0, -1.0
        %v658 = vand.u32 2147483647, %v655
        %v659 = vmul.f32 %v658, 0.3275911
        %v660 = vadd.f32 %v659, 1.0
        %v661 = vrcp.pop %v660
        %v662 = vmul.f32 %v661, 1.0614054
        %v663 = vsub.f32 %v662, 1.4531521
        %v664 = vmul.f32 %v663, %v661
        %v665 = vadd.f32 %v664, 1.4214138
        %v666 = vmul.f32 %v665, %v661
        %v667 = vsub.f32 %v666, 0.28449672
        %v668 = vmul.f32 %v667, %v661
        %v669 = vadd.f32 %v668, 0.2548296
        %v670 = vmul.f32 %v669, %v661
        %v671 = vsub.f32 0.0, %v658
        %v672 = vmul.f32 %v671, %v658
        %v673 = vmul.f32 %v672, 1.442695
        %v674 = vpow.pop %v673
        %v675 = vmul.f32 %v670, %v674
        %v676 = vsub.f32 1.0, %v675
        %v677 = vmul.f32 %v657, %v676
        %v678 = vmul.f32 %v650, 0.5
        %v679 = vadd.f32 %v677, 1.0
        %v680 = vmul.f32 %v678, %v679
        %v681 = vpack.c.bf16 %v680, %v680
        %s682 = smul.addr %s227, 4
        %s683 = scalar_lea.vmem %s224, %s682
        %vm684 = vcmask 60416
        %685 = vst.msk [vmem:[%s683] sm:$0xf] %vm684, %v681
      $region45: #{simple_cnn_forward.8} parent=39 // loop_footer
        %s231 = sadd.s32 1, %s227
      $region46: #{simple_cnn_forward.8} parent=39 // loop_footer_branch
        %226 = sbr.rel target = $region42
      $region47: #{simple_cnn_forward.8} parent=39 // loop_exit
        _
      %p686 = scmp.lt.s32.totalorder %s16, 1
      %s687 = scalar_select %p686, %s16, 1
      %s688 = smul.addr %s687, 8
      %s689 = smul.addr %s688, 4
      %s690 = scalar_lea.vmem %s5, %s689
      // Predicated region
      $region48: #{simple_cnn_forward.8} parent=39 // pred_check
        %p691 = pneg %p144
      $region49: #{simple_cnn_forward.8} parent=39 // pred_check_branch
        %693 = sbr.rel (%p691) target = $region51
      $region50: #{simple_cnn_forward.8} parent=39 // pred_region
        _
      $region51: #{simple_cnn_forward.8} parent=39 // pred_fallthru
        _
    $region40: #{simple_cnn_forward.8} parent=5 // pred_fallthru
      _
    %p694 = scmp.le.s32.totalorder 2, %s11
    // Predicated region
    $region52: #{simple_cnn_forward.8} parent=5 // pred_check
      %p695 = pneg %p694
    $region53: #{simple_cnn_forward.8} parent=5 // pred_check_branch
      %697 = sbr.rel (%p695) target = $region55
    $region54: #{simple_cnn_forward.8} parent=5 // pred_region
      %s698 = ssub.s32 %s11, 2
      // Predicated region
      $region56: #{simple_cnn_forward.8} parent=54 // pred_check
        %p699 = pneg %p150
      $region57: #{simple_cnn_forward.8} parent=54 // pred_check_branch
        %701 = sbr.rel (%p699) target = $region59
      $region58: #{simple_cnn_forward.8} parent=54 // pred_region
        %p702 = scmp.lt.s32.totalorder %s17, 1
        %s703 = scalar_select %p702, %s17, 1
        %s704 = smul.addr %s703, 8
        %s705 = smul.addr %s704, 4
        %s706 = scalar_lea.vmem %s5, %s705
      $region59: #{simple_cnn_forward.8} parent=54 // pred_fallthru
        _
    $region55: #{simple_cnn_forward.8} parent=5 // pred_fallthru
      _
  $region6: #{simple_cnn_forward.8} parent=0 // loop_footer
    %s15 = sadd.s32 1, %s11
  $region7: #{simple_cnn_forward.8} parent=0 // loop_footer_branch
    %10 = sbr.rel target = $region3
  $region8: #{simple_cnn_forward.8} parent=0 // loop_exit
    _

// kernel: simple_cnn_forward.9
$region0: #{simple_cnn_forward.9}
  #allocation0 [shape = 'u32[]', space=smem, size = 0x4, offset = 0x4, fixed_abs, tag = 'smem constant byte address 0x4 - core index']
  #allocation1 [shape = 'u32[144,128]{1,0:T(1,128)}', space=vmem, size = 0x12000, scoped, tag = 'internal scratch']
  %s0 = inlined_call_operand.vmem [shape: bf16[2,512], index: 0, kind: input, shape index: {}]
  %s1 = inlined_call_operand.vmem [shape: bf16[512,256], index: 1, kind: input, shape index: {}]
  %s2 = inlined_call_operand.vmem [shape: f32[1,256], index: 2, kind: input, shape index: {}]
  %s3 = inlined_call_operand.vmem [shape: bf16[256,128], index: 3, kind: input, shape index: {}]
  %s4 = inlined_call_operand.vmem [shape: f32[1,128], index: 4, kind: input, shape index: {}]
  %s5 = inlined_call_operand.vmem [shape: bf16[128,64], index: 5, kind: input, shape index: {}]
  %s6 = inlined_call_operand.vmem [shape: f32[1,64], index: 6, kind: input, shape index: {}]
  %s7 = inlined_call_operand.vmem [shape: bf16[64,147], index: 7, kind: input, shape index: {}]
  %s8 = inlined_call_operand.vmem [shape: f32[1,147], index: 8, kind: input, shape index: {}]
  %s9 = inlined_call_operand.hbm [shape: f32[2,147], index: 9, kind: output, shape index: {}]
  %s10 = sld [smem:[#allocation0]]
  $region46: #{simple_cnn_forward.9} parent=0
    _
  %s12 = ssub.s32 1, %s10
  %s13 = scalar_select 0, %s12, %s10
  $region1: #{simple_cnn_forward.9} parent=0
    #allocation2 [shape = 'u8[2048]{0}', space=vmem, size = 0x800, scoped, tag = 'output window, operand 0, single buffered']
    #allocation3 [shape = 's32[1]{0}', space=sflag, size = 0x4, scoped, tag = 'scoped memory for simple_cnn_forward.9']
    %14 = vsyncpa [#allocation3], 0
    // Predicated region
    $region2: #{simple_cnn_forward.9} parent=1 // pred_check
      _
    $region3: #{simple_cnn_forward.9} parent=1 // pred_check_branch
      %16 = sbr.rel (0) target = $region5
    $region4: #{simple_cnn_forward.9} parent=1 // pred_region
      _
    $region5: #{simple_cnn_forward.9} parent=1 // pred_fallthru
      _
    // Predicated region
    $region6: #{simple_cnn_forward.9} parent=1 // pred_check
      _
    $region7: #{simple_cnn_forward.9} parent=1 // pred_check_branch
      %18 = sbr.rel (0) target = $region9
    $region8: #{simple_cnn_forward.9} parent=1 // pred_region
      _
    $region9: #{simple_cnn_forward.9} parent=1 // pred_fallthru
      _
    // Predicated region
    $region10: #{simple_cnn_forward.9} parent=1 // pred_check
      _
    $region11: #{simple_cnn_forward.9} parent=1 // pred_check_branch
      %20 = sbr.rel (0) target = $region13
    $region12: #{simple_cnn_forward.9} parent=1 // pred_region
      _
    $region13: #{simple_cnn_forward.9} parent=1 // pred_fallthru
      _
    // Predicated region
    $region14: #{simple_cnn_forward.9} parent=1 // pred_check
      _
    $region15: #{simple_cnn_forward.9} parent=1 // pred_check_branch
      %22 = sbr.rel (0) target = $region17
    $region16: #{simple_cnn_forward.9} parent=1 // pred_region
      _
    $region17: #{simple_cnn_forward.9} parent=1 // pred_fallthru
      _
    // Predicated region
    $region18: #{simple_cnn_forward.9} parent=1 // pred_check
      _
    $region19: #{simple_cnn_forward.9} parent=1 // pred_check_branch
      %24 = sbr.rel (0) target = $region21
    $region20: #{simple_cnn_forward.9} parent=1 // pred_region
      _
    $region21: #{simple_cnn_forward.9} parent=1 // pred_fallthru
      _
    // Predicated region
    $region22: #{simple_cnn_forward.9} parent=1 // pred_check
      _
    $region23: #{simple_cnn_forward.9} parent=1 // pred_check_branch
      %26 = sbr.rel (0) target = $region25
    $region24: #{simple_cnn_forward.9} parent=1 // pred_region
      _
    $region25: #{simple_cnn_forward.9} parent=1 // pred_fallthru
      _
    // Predicated region
    $region26: #{simple_cnn_forward.9} parent=1 // pred_check
      _
    $region27: #{simple_cnn_forward.9} parent=1 // pred_check_branch
      %28 = sbr.rel (0) target = $region29
    $region28: #{simple_cnn_forward.9} parent=1 // pred_region
      _
    $region29: #{simple_cnn_forward.9} parent=1 // pred_fallthru
      _
    // Predicated region
    $region30: #{simple_cnn_forward.9} parent=1 // pred_check
      _
    $region31: #{simple_cnn_forward.9} parent=1 // pred_check_branch
      %30 = sbr.rel (0) target = $region33
    $region32: #{simple_cnn_forward.9} parent=1 // pred_region
      _
    $region33: #{simple_cnn_forward.9} parent=1 // pred_fallthru
      _
    // Predicated region
    $region34: #{simple_cnn_forward.9} parent=1 // pred_check
      _
    $region35: #{simple_cnn_forward.9} parent=1 // pred_check_branch
      %32 = sbr.rel (0) target = $region37
    $region36: #{simple_cnn_forward.9} parent=1 // pred_region
      _
    $region37: #{simple_cnn_forward.9} parent=1 // pred_fallthru
      _
    %v34 = vld [vmem:[%s0] sm:$0xf]
    %v35 = vld [vmem:[%s1] sm:$0xff]
    %v36 = vld [vmem:[%s1 + $0x8] sm:$0xff]
    %v37 = vld [vmem:[%s1 + $0x10] sm:$0xff]
    %v38 = vld [vmem:[%s1 + $0x18] sm:$0xff]
    %v39 = vld [vmem:[%s1 + $0x20] sm:$0xff]
    %v40 = vld [vmem:[%s1 + $0x28] sm:$0xff]
    %v41 = vld [vmem:[%s1 + $0x30] sm:$0xff]
    %v42 = vld [vmem:[%s1 + $0x38] sm:$0xff]
    %v43 = vld [vmem:[%s1 + $0x40] sm:$0xff]
    %v44 = vld [vmem:[%s1 + $0x48] sm:$0xff]
    %v45 = vld [vmem:[%s1 + $0x50] sm:$0xff]
    %v46 = vld [vmem:[%s1 + $0x58] sm:$0xff]
    %v47 = vld [vmem:[%s1 + $0x60] sm:$0xff]
    %v48 = vld [vmem:[%s1 + $0x68] sm:$0xff]
    %v49 = vld [vmem:[%s1 + $0x70] sm:$0xff]
    %v50 = vld [vmem:[%s1 + $0x78] sm:$0xff]
    %v51 = vld [vmem:[%s1 + $0x80] sm:$0xff]
    %v52 = vld [vmem:[%s1 + $0x88] sm:$0xff]
    %v53 = vld [vmem:[%s1 + $0x90] sm:$0xff]
    %v54 = vld [vmem:[%s1 + $0x98] sm:$0xff]
    %v55 = vld [vmem:[%s1 + $0xa0] sm:$0xff]
    %v56 = vld [vmem:[%s1 + $0xa8] sm:$0xff]
    %v57 = vld [vmem:[%s1 + $0xb0] sm:$0xff]
    %v58 = vld [vmem:[%s1 + $0xb8] sm:$0xff]
    %v59 = vld [vmem:[%s1 + $0xc0] sm:$0xff]
    %v60 = vld [vmem:[%s1 + $0xc8] sm:$0xff]
    %v61 = vld [vmem:[%s1 + $0xd0] sm:$0xff]
    %v62 = vld [vmem:[%s1 + $0xd8] sm:$0xff]
    %v63 = vld [vmem:[%s1 + $0xe0] sm:$0xff]
    %v64 = vld [vmem:[%s1 + $0xe8] sm:$0xff]
    %v65 = vld [vmem:[%s1 + $0xf0] sm:$0xff]
    %v66 = vld [vmem:[%s1 + $0xf8] sm:$0xff]
    %v67 = vld [vmem:[%s1 + $0x100] sm:$0xff]
    %v68 = vld [vmem:[%s1 + $0x108] sm:$0xff]
    %v69 = vld [vmem:[%s1 + $0x110] sm:$0xff]
    %v70 = vld [vmem:[%s1 + $0x118] sm:$0xff]
    %v71 = vld [vmem:[%s1 + $0x120] sm:$0xff]
    %v72 = vld [vmem:[%s1 + $0x128] sm:$0xff]
    %v73 = vld [vmem:[%s1 + $0x130] sm:$0xff]
    %v74 = vld [vmem:[%s1 + $0x138] sm:$0xff]
    %v75 = vld [vmem:[%s1 + $0x140] sm:$0xff]
    %v76 = vld [vmem:[%s1 + $0x148] sm:$0xff]
    %v77 = vld [vmem:[%s1 + $0x150] sm:$0xff]
    %v78 = vld [vmem:[%s1 + $0x158] sm:$0xff]
    %v79 = vld [vmem:[%s1 + $0x160] sm:$0xff]
    %v80 = vld [vmem:[%s1 + $0x168] sm:$0xff]
    %v81 = vld [vmem:[%s1 + $0x170] sm:$0xff]
    %v82 = vld [vmem:[%s1 + $0x178] sm:$0xff]
    %v83 = vld [vmem:[%s1 + $0x180] sm:$0xff]
    %v84 = vld [vmem:[%s1 + $0x188] sm:$0xff]
    %v85 = vld [vmem:[%s1 + $0x190] sm:$0xff]
    %v86 = vld [vmem:[%s1 + $0x198] sm:$0xff]
    %v87 = vld [vmem:[%s1 + $0x1a0] sm:$0xff]
    %v88 = vld [vmem:[%s1 + $0x1a8] sm:$0xff]
    %v89 = vld [vmem:[%s1 + $0x1b0] sm:$0xff]
    %v90 = vld [vmem:[%s1 + $0x1b8] sm:$0xff]
    %v91 = vld [vmem:[%s1 + $0x1c0] sm:$0xff]
    %v92 = vld [vmem:[%s1 + $0x1c8] sm:$0xff]
    %v93 = vld [vmem:[%s1 + $0x1d0] sm:$0xff]
    %v94 = vld [vmem:[%s1 + $0x1d8] sm:$0xff]
    %v95 = vld [vmem:[%s1 + $0x1e0] sm:$0xff]
    %v96 = vld [vmem:[%s1 + $0x1e8] sm:$0xff]
    %v97 = vld [vmem:[%s1 + $0x1f0] sm:$0xff]
    %v98 = vld [vmem:[%s1 + $0x1f8] sm:$0xff]
    %v99 = vld [vmem:[%s2] sm:$0x3]
    %v101 = vlaneseq
    %v102 = vshrl.u32 %v101, 7
    %v103 = vsub.s32 0, %v102
    %v104 = vrot.slane %v99, %v103
    %v105 = vlaneseq
    %v106 = vshrl.u32 %v105, 7
    %v107 = vsub.s32 1, %v106
    %v108 = vrot.slane %v99, %v107
    %v113 = vunpack.c.l.s4 1966171168
    %v114 = vunpack.c.0.s8 %v113
    %v115 = vlaneseq
    %v116 = vshrl.u32 %v115, 7
    %v117 = vsub.s32 %v114, %v116
    %v118 = vrot.slane %v34, %v117
    %v119 = vcombine.high %v118, %v118
    %v121 = vunpack.c.l.s4 1966171168
    %v122 = vunpack.c.0.s8 %v121
    %v123 = vlaneseq
    %v124 = vshrl.u32 %v123, 7
    %v125 = vsub.s32 %v122, %v124
    %v126 = vrot.slane %v118, %v125
    %v128 = vunpack.c.l.s4 1966171168
    %v129 = vunpack.c.0.s8 %v128
    %v130 = vlaneseq
    %v131 = vshrl.u32 %v130, 7
    %v132 = vsub.s32 %v129, %v131
    %v133 = vrot.slane %v119, %v132
    %v134 = vcombine.high %v126, %v126
    %v135 = vcombine.high %v133, %v133
    %v204 = vunpack.c.l.b16 %v35
    %v205 = vunpack.c.h.b16 %v35
    %v206 = vunpack.c.l.b16 %v36
    %v207 = vunpack.c.h.b16 %v36
    %v208 = vunpack.c.l.b16 %v37
    %v209 = vunpack.c.h.b16 %v37
    %v210 = vunpack.c.l.b16 %v38
    %v211 = vunpack.c.h.b16 %v38
    %v212 = vunpack.c.l.b16 %v39
    %v213 = vunpack.c.h.b16 %v39
    %v214 = vunpack.c.l.b16 %v40
    %v215 = vunpack.c.h.b16 %v40
    %v216 = vunpack.c.l.b16 %v41
    %v217 = vunpack.c.h.b16 %v41
    %v218 = vunpack.c.l.b16 %v42
    %v219 = vunpack.c.h.b16 %v42
    %v220 = vunpack.c.l.b16 %v43
    %v221 = vunpack.c.h.b16 %v43
    %v222 = vunpack.c.l.b16 %v44
    %v223 = vunpack.c.h.b16 %v44
    %v224 = vunpack.c.l.b16 %v45
    %v225 = vunpack.c.h.b16 %v45
    %v226 = vunpack.c.l.b16 %v46
    %v227 = vunpack.c.h.b16 %v46
    %v228 = vunpack.c.l.b16 %v47
    %v229 = vunpack.c.h.b16 %v47
    %v230 = vunpack.c.l.b16 %v48
    %v231 = vunpack.c.h.b16 %v48
    %v232 = vunpack.c.l.b16 %v49
    %v233 = vunpack.c.h.b16 %v49
    %v234 = vunpack.c.l.b16 %v50
    %v235 = vunpack.c.h.b16 %v50
    %v236 = vunpack.c.l.b16 %v51
    %v237 = vunpack.c.h.b16 %v51
    %v238 = vunpack.c.l.b16 %v52
    %v239 = vunpack.c.h.b16 %v52
    %v240 = vunpack.c.l.b16 %v53
    %v241 = vunpack.c.h.b16 %v53
    %v242 = vunpack.c.l.b16 %v54
    %v243 = vunpack.c.h.b16 %v54
    %v244 = vunpack.c.l.b16 %v55
    %v245 = vunpack.c.h.b16 %v55
    %v246 = vunpack.c.l.b16 %v56
    %v247 = vunpack.c.h.b16 %v56
    %v248 = vunpack.c.l.b16 %v57
    %v249 = vunpack.c.h.b16 %v57
    %v250 = vunpack.c.l.b16 %v58
    %v251 = vunpack.c.h.b16 %v58
    %v252 = vunpack.c.l.b16 %v59
    %v253 = vunpack.c.h.b16 %v59
    %v254 = vunpack.c.l.b16 %v60
    %v255 = vunpack.c.h.b16 %v60
    %v256 = vunpack.c.l.b16 %v61
    %v257 = vunpack.c.h.b16 %v61
    %v258 = vunpack.c.l.b16 %v62
    %v259 = vunpack.c.h.b16 %v62
    %v260 = vunpack.c.l.b16 %v63
    %v261 = vunpack.c.h.b16 %v63
    %v262 = vunpack.c.l.b16 %v64
    %v263 = vunpack.c.h.b16 %v64
    %v264 = vunpack.c.l.b16 %v65
    %v265 = vunpack.c.h.b16 %v65
    %v266 = vunpack.c.l.b16 %v66
    %v267 = vunpack.c.h.b16 %v66
    %v268 = vunpack.c.l.b16 %v67
    %v269 = vunpack.c.h.b16 %v67
    %v270 = vunpack.c.l.b16 %v68
    %v271 = vunpack.c.h.b16 %v68
    %v272 = vunpack.c.l.b16 %v69
    %v273 = vunpack.c.h.b16 %v69
    %v274 = vunpack.c.l.b16 %v70
    %v275 = vunpack.c.h.b16 %v70
    %v276 = vunpack.c.l.b16 %v71
    %v277 = vunpack.c.h.b16 %v71
    %v278 = vunpack.c.l.b16 %v72
    %v279 = vunpack.c.h.b16 %v72
    %v280 = vunpack.c.l.b16 %v73
    %v281 = vunpack.c.h.b16 %v73
    %v282 = vunpack.c.l.b16 %v74
    %v283 = vunpack.c.h.b16 %v74
    %v284 = vunpack.c.l.b16 %v75
    %v285 = vunpack.c.h.b16 %v75
    %v286 = vunpack.c.l.b16 %v76
    %v287 = vunpack.c.h.b16 %v76
    %v288 = vunpack.c.l.b16 %v77
    %v289 = vunpack.c.h.b16 %v77
    %v290 = vunpack.c.l.b16 %v78
    %v291 = vunpack.c.h.b16 %v78
    %v292 = vunpack.c.l.b16 %v79
    %v293 = vunpack.c.h.b16 %v79
    %v294 = vunpack.c.l.b16 %v80
    %v295 = vunpack.c.h.b16 %v80
    %v296 = vunpack.c.l.b16 %v81
    %v297 = vunpack.c.h.b16 %v81
    %v298 = vunpack.c.l.b16 %v82
    %v299 = vunpack.c.h.b16 %v82
    %v300 = vunpack.c.l.b16 %v83
    %v301 = vunpack.c.h.b16 %v83
    %v302 = vunpack.c.l.b16 %v84
    %v303 = vunpack.c.h.b16 %v84
    %v304 = vunpack.c.l.b16 %v85
    %v305 = vunpack.c.h.b16 %v85
    %v306 = vunpack.c.l.b16 %v86
    %v307 = vunpack.c.h.b16 %v86
    %v308 = vunpack.c.l.b16 %v87
    %v309 = vunpack.c.h.b16 %v87
    %v310 = vunpack.c.l.b16 %v88
    %v311 = vunpack.c.h.b16 %v88
    %v312 = vunpack.c.l.b16 %v89
    %v313 = vunpack.c.h.b16 %v89
    %v314 = vunpack.c.l.b16 %v90
    %v315 = vunpack.c.h.b16 %v90
    %v316 = vunpack.c.l.b16 %v91
    %v317 = vunpack.c.h.b16 %v91
    %v318 = vunpack.c.l.b16 %v92
    %v319 = vunpack.c.h.b16 %v92
    %v320 = vunpack.c.l.b16 %v93
    %v321 = vunpack.c.h.b16 %v93
    %v322 = vunpack.c.l.b16 %v94
    %v323 = vunpack.c.h.b16 %v94
    %v324 = vunpack.c.l.b16 %v95
    %v325 = vunpack.c.h.b16 %v95
    %v326 = vunpack.c.l.b16 %v96
    %v327 = vunpack.c.h.b16 %v96
    %v328 = vunpack.c.l.b16 %v97
    %v329 = vunpack.c.h.b16 %v97
    %v330 = vunpack.c.l.b16 %v98
    %v331 = vunpack.c.h.b16 %v98
    %v332 = vpack.c.b16 %v206, %v204
    %v333 = vpack.c.b16 %v207, %v205
    %v334 = vpack.c.b16 %v210, %v208
    %v335 = vpack.c.b16 %v211, %v209
    %v336 = vpack.c.b16 %v214, %v212
    %v337 = vpack.c.b16 %v215, %v213
    %v338 = vpack.c.b16 %v218, %v216
    %v339 = vpack.c.b16 %v219, %v217
    %v340 = vpack.c.b16 %v222, %v220
    %v341 = vpack.c.b16 %v223, %v221
    %v342 = vpack.c.b16 %v226, %v224
    %v343 = vpack.c.b16 %v227, %v225
    %v344 = vpack.c.b16 %v230, %v228
    %v345 = vpack.c.b16 %v231, %v229
    %v346 = vpack.c.b16 %v234, %v232
    %v347 = vpack.c.b16 %v235, %v233
    %v348 = vpack.c.b16 %v238, %v236
    %v349 = vpack.c.b16 %v239, %v237
    %v350 = vpack.c.b16 %v242, %v240
    %v351 = vpack.c.b16 %v243, %v241
    %v352 = vpack.c.b16 %v246, %v244
    %v353 = vpack.c.b16 %v247, %v245
    %v354 = vpack.c.b16 %v250, %v248
    %v355 = vpack.c.b16 %v251, %v249
    %v356 = vpack.c.b16 %v254, %v252
    %v357 = vpack.c.b16 %v255, %v253
    %v358 = vpack.c.b16 %v258, %v256
    %v359 = vpack.c.b16 %v259, %v257
    %v360 = vpack.c.b16 %v262, %v260
    %v361 = vpack.c.b16 %v263, %v261
    %v362 = vpack.c.b16 %v266, %v264
    %v363 = vpack.c.b16 %v267, %v265
    %v364 = vpack.c.b16 %v270, %v268
    %v365 = vpack.c.b16 %v271, %v269
    %v366 = vpack.c.b16 %v274, %v272
    %v367 = vpack.c.b16 %v275, %v273
    %v368 = vpack.c.b16 %v278, %v276
    %v369 = vpack.c.b16 %v279, %v277
    %v370 = vpack.c.b16 %v282, %v280
    %v371 = vpack.c.b16 %v283, %v281
    %v372 = vpack.c.b16 %v286, %v284
    %v373 = vpack.c.b16 %v287, %v285
    %v374 = vpack.c.b16 %v290, %v288
    %v375 = vpack.c.b16 %v291, %v289
    %v376 = vpack.c.b16 %v294, %v292
    %v377 = vpack.c.b16 %v295, %v293
    %v378 = vpack.c.b16 %v298, %v296
    %v379 = vpack.c.b16 %v299, %v297
    %v380 = vpack.c.b16 %v302, %v300
    %v381 = vpack.c.b16 %v303, %v301
    %v382 = vpack.c.b16 %v306, %v304
    %v383 = vpack.c.b16 %v307, %v305
    %v384 = vpack.c.b16 %v310, %v308
    %v385 = vpack.c.b16 %v311, %v309
    %v386 = vpack.c.b16 %v314, %v312
    %v387 = vpack.c.b16 %v315, %v313
    %v388 = vpack.c.b16 %v318, %v316
    %v389 = vpack.c.b16 %v319, %v317
    %v390 = vpack.c.b16 %v322, %v320
    %v391 = vpack.c.b16 %v323, %v321
    %v392 = vpack.c.b16 %v326, %v324
    %v393 = vpack.c.b16 %v327, %v325
    %v394 = vpack.c.b16 %v330, %v328
    %v395 = vpack.c.b16 %v331, %v329
    %460 = vmatprep.subr.bf16.mxu0 %v347
    %461 = vmatpush1.bf16.msra.mxu0 %v346
    %462 = vmatprep.subr.bf16.mxu0 %v345
    %463 = vmatpush1.bf16.msra.mxu0 %v344
    %464 = vmatprep.subr.bf16.mxu0 %v343
    %465 = vmatpush1.bf16.msra.mxu0 %v342
    %466 = vmatprep.subr.bf16.mxu0 %v341
    %467 = vmatpush1.bf16.msra.mxu0 %v340
    %468 = vmatprep.subr.bf16.mxu0 %v339
    %469 = vmatpush1.bf16.msra.mxu0 %v338
    %470 = vmatprep.subr.bf16.mxu0 %v337
    %471 = vmatpush1.bf16.msra.mxu0 %v336
    %472 = vmatprep.subr.bf16.mxu0 %v335
    %473 = vmatpush1.bf16.msra.mxu0 %v334
    %474 = vmatprep.subr.bf16.mxu0 %v333
    %475 = vmatpush1.bf16.msra.mxu0 %v332
    %476 = vmatprep.subr.bf16.mxu0 %v363
    %477 = vmatpush2.bf16.msra.mxu0 %v362
    %478 = vmatprep.subr.bf16.mxu0 %v361
    %479 = vmatpush2.bf16.msra.mxu0 %v360
    %480 = vmatprep.subr.bf16.mxu0 %v359
    %481 = vmatpush2.bf16.msra.mxu0 %v358
    %482 = vmatprep.subr.bf16.mxu0 %v357
    %483 = vmatpush2.bf16.msra.mxu0 %v356
    %484 = vmatprep.subr.bf16.mxu0 %v355
    %485 = vmatpush2.bf16.msra.mxu0 %v354
    %486 = vmatprep.subr.bf16.mxu0 %v353
    %487 = vmatpush2.bf16.msra.mxu0 %v352
    %488 = vmatprep.subr.bf16.mxu0 %v351
    %489 = vmatpush2.bf16.msra.mxu0 %v350
    %490 = vmatprep.subr.bf16.mxu0 %v349
    %491 = vmatpush2.bf16.msra.mxu0 %v348
    %492 = vmatprep.mubr.bf16.mxu0 %v133
    %493 = vmatmul.mubr.bf16.gmra.mxu0 %v126
    %v494 = vpop.f32.mrf.mxu0
    %v495 = vadd.f32 %v104, %v494
    %v496 = vpop.f32.mrf.mxu0
    %v497 = vadd.f32 %v108, %v496
    %v498 = vpop.f32.mrf.mxu0
    %v499 = vpop.f32.mrf.mxu0
    %500 = vdwg.mxu0
    %501 = vmatprep.subr.bf16.mxu0 %v379
    %502 = vmatpush1.bf16.msra.mxu0 %v378
    %503 = vmatprep.subr.bf16.mxu0 %v377
    %504 = vmatpush1.bf16.msra.mxu0 %v376
    %505 = vmatprep.subr.bf16.mxu0 %v375
    %506 = vmatpush1.bf16.msra.mxu0 %v374
    %507 = vmatprep.subr.bf16.mxu0 %v373
    %508 = vmatpush1.bf16.msra.mxu0 %v372
    %509 = vmatprep.subr.bf16.mxu0 %v371
    %510 = vmatpush1.bf16.msra.mxu0 %v370
    %511 = vmatprep.subr.bf16.mxu0 %v369
    %512 = vmatpush1.bf16.msra.mxu0 %v368
    %513 = vmatprep.subr.bf16.mxu0 %v367
    %514 = vmatpush1.bf16.msra.mxu0 %v366
    %515 = vmatprep.subr.bf16.mxu0 %v365
    %516 = vmatpush1.bf16.msra.mxu0 %v364
    %517 = vmatprep.subr.bf16.mxu0 %v395
    %518 = vmatpush2.bf16.msra.mxu0 %v394
    %519 = vmatprep.subr.bf16.mxu0 %v393
    %520 = vmatpush2.bf16.msra.mxu0 %v392
    %521 = vmatprep.subr.bf16.mxu0 %v391
    %522 = vmatpush2.bf16.msra.mxu0 %v390
    %523 = vmatprep.subr.bf16.mxu0 %v389
    %524 = vmatpush2.bf16.msra.mxu0 %v388
    %525 = vmatprep.subr.bf16.mxu0 %v387
    %526 = vmatpush2.bf16.msra.mxu0 %v386
    %527 = vmatprep.subr.bf16.mxu0 %v385
    %528 = vmatpush2.bf16.msra.mxu0 %v384
    %529 = vmatprep.subr.bf16.mxu0 %v383
    %530 = vmatpush2.bf16.msra.mxu0 %v382
    %531 = vmatprep.subr.bf16.mxu0 %v381
    %532 = vmatpush2.bf16.msra.mxu0 %v380
    %533 = vmatprep.mubr.bf16.mxu0 %v135
    %534 = vmatmul.mubr.bf16.gmra.mxu0 %v134
    %v535 = vpop.f32.mrf.mxu0
    %v536 = vadd.f32 %v495, %v535
    %v537 = vpop.f32.mrf.mxu0
    %v538 = vadd.f32 %v497, %v537
    %v539 = vpop.f32.mrf.mxu0
    %v540 = vpop.f32.mrf.mxu0
    %541 = vdwg.mxu0
    %v542 = vmul.f32 %v536, 0.70710677
    %v543 = vmul.f32 %v538, 0.70710677
    %vm544 = vcmp.ge.f32.partialorder %v542, 0.0
    %vm545 = vcmp.ge.f32.partialorder %v543, 0.0
    %v546 = vsel %vm544, 1.0, -1.0
    %v547 = vsel %vm545, 1.0, -1.0
    %v548 = vand.u32 2147483647, %v542
    %v549 = vand.u32 2147483647, %v543
    %v550 = vmul.f32 %v548, 0.3275911
    %v551 = vmul.f32 %v549, 0.3275911
    %v552 = vadd.f32 %v550, 1.0
    %v553 = vadd.f32 %v551, 1.0
    %v554 = vrcp.pop %v552
    %v555 = vrcp.pop %v553
    %v556 = vmul.f32 %v554, 1.0614054
    %v557 = vmul.f32 %v555, 1.0614054
    %v558 = vsub.f32 %v556, 1.4531521
    %v559 = vsub.f32 %v557, 1.4531521
    %v560 = vmul.f32 %v558, %v554
    %v561 = vmul.f32 %v559, %v555
    %v562 = vadd.f32 %v560, 1.4214138
    %v563 = vadd.f32 %v561, 1.4214138
    %v564 = vmul.f32 %v562, %v554
    %v565 = vmul.f32 %v563, %v555
    %v566 = vsub.f32 %v564, 0.28449672
    %v567 = vsub.f32 %v565, 0.28449672
    %v568 = vmul.f32 %v566, %v554
    %v569 = vmul.f32 %v567, %v555
    %v570 = vadd.f32 %v568, 0.2548296
    %v571 = vadd.f32 %v569, 0.2548296
    %v572 = vmul.f32 %v570, %v554
    %v573 = vmul.f32 %v571, %v555
    %v574 = vsub.f32 0.0, %v548
    %v575 = vsub.f32 0.0, %v549
    %v576 = vmul.f32 %v574, %v548
    %v577 = vmul.f32 %v575, %v549
    %v578 = vmul.f32 %v576, 1.442695
    %v579 = vpow.pop %v578
    %v580 = vmul.f32 %v577, 1.442695
    %v581 = vpow.pop %v580
    %v582 = vmul.f32 %v572, %v579
    %v583 = vmul.f32 %v573, %v581
    %v584 = vsub.f32 1.0, %v582
    %v585 = vsub.f32 1.0, %v583
    %v586 = vmul.f32 %v546, %v584
    %v587 = vmul.f32 %v547, %v585
    %v588 = vmul.f32 %v536, 0.5
    %v589 = vmul.f32 %v538, 0.5
    %v590 = vadd.f32 %v586, 1.0
    %v591 = vadd.f32 %v587, 1.0
    %v592 = vmul.f32 %v588, %v590
    %v593 = vmul.f32 %v589, %v591
    %v594 = vpack.c.bf16 %v592, %v592
    %v595 = vpack.c.bf16 %v593, %v593
    %v596 = vld [vmem:[%s3] sm:$0xf]
    %v597 = vld [vmem:[%s3 + $0x4] sm:$0xf]
    %v598 = vld [vmem:[%s3 + $0x8] sm:$0xf]
    %v599 = vld [vmem:[%s3 + $0xc] sm:$0xf]
    %v600 = vld [vmem:[%s3 + $0x10] sm:$0xf]
    %v601 = vld [vmem:[%s3 + $0x14] sm:$0xf]
    %v602 = vld [vmem:[%s3 + $0x18] sm:$0xf]
    %v603 = vld [vmem:[%s3 + $0x1c] sm:$0xf]
    %v604 = vld [vmem:[%s3 + $0x20] sm:$0xf]
    %v605 = vld [vmem:[%s3 + $0x24] sm:$0xf]
    %v606 = vld [vmem:[%s3 + $0x28] sm:$0xf]
    %v607 = vld [vmem:[%s3 + $0x2c] sm:$0xf]
    %v608 = vld [vmem:[%s3 + $0x30] sm:$0xf]
    %v609 = vld [vmem:[%s3 + $0x34] sm:$0xf]
    %v610 = vld [vmem:[%s3 + $0x38] sm:$0xf]
    %v611 = vld [vmem:[%s3 + $0x3c] sm:$0xf]
    %v612 = vld [vmem:[%s3 + $0x40] sm:$0xf]
    %v613 = vld [vmem:[%s3 + $0x44] sm:$0xf]
    %v614 = vld [vmem:[%s3 + $0x48] sm:$0xf]
    %v615 = vld [vmem:[%s3 + $0x4c] sm:$0xf]
    %v616 = vld [vmem:[%s3 + $0x50] sm:$0xf]
    %v617 = vld [vmem:[%s3 + $0x54] sm:$0xf]
    %v618 = vld [vmem:[%s3 + $0x58] sm:$0xf]
    %v619 = vld [vmem:[%s3 + $0x5c] sm:$0xf]
    %v620 = vld [vmem:[%s3 + $0x60] sm:$0xf]
    %v621 = vld [vmem:[%s3 + $0x64] sm:$0xf]
    %v622 = vld [vmem:[%s3 + $0x68] sm:$0xf]
    %v623 = vld [vmem:[%s3 + $0x6c] sm:$0xf]
    %v624 = vld [vmem:[%s3 + $0x70] sm:$0xf]
    %v625 = vld [vmem:[%s3 + $0x74] sm:$0xf]
    %v626 = vld [vmem:[%s3 + $0x78] sm:$0xf]
    %v627 = vld [vmem:[%s3 + $0x7c] sm:$0xf]
    %v628 = vld [vmem:[%s4] sm:$0x1]
    %v630 = vlaneseq
    %v631 = vshrl.u32 %v630, 7
    %v632 = vsub.s32 0, %v631
    %v633 = vrot.slane %v628, %v632
    %v667 = vunpack.c.l.b16 %v596
    %v668 = vunpack.c.l.b16 %v597
    %v669 = vunpack.c.l.b16 %v598
    %v670 = vunpack.c.l.b16 %v599
    %v671 = vunpack.c.l.b16 %v600
    %v672 = vunpack.c.l.b16 %v601
    %v673 = vunpack.c.l.b16 %v602
    %v674 = vunpack.c.l.b16 %v603
    %v675 = vunpack.c.l.b16 %v604
    %v676 = vunpack.c.l.b16 %v605
    %v677 = vunpack.c.l.b16 %v606
    %v678 = vunpack.c.l.b16 %v607
    %v679 = vunpack.c.l.b16 %v608
    %v680 = vunpack.c.l.b16 %v609
    %v681 = vunpack.c.l.b16 %v610
    %v682 = vunpack.c.l.b16 %v611
    %v683 = vunpack.c.l.b16 %v612
    %v684 = vunpack.c.l.b16 %v613
    %v685 = vunpack.c.l.b16 %v614
    %v686 = vunpack.c.l.b16 %v615
    %v687 = vunpack.c.l.b16 %v616
    %v688 = vunpack.c.l.b16 %v617
    %v689 = vunpack.c.l.b16 %v618
    %v690 = vunpack.c.l.b16 %v619
    %v691 = vunpack.c.l.b16 %v620
    %v692 = vunpack.c.l.b16 %v621
    %v693 = vunpack.c.l.b16 %v622
    %v694 = vunpack.c.l.b16 %v623
    %v695 = vunpack.c.l.b16 %v624
    %v696 = vunpack.c.l.b16 %v625
    %v697 = vunpack.c.l.b16 %v626
    %v698 = vunpack.c.l.b16 %v627
    %v699 = vpack.c.b16 %v668, %v667
    %v700 = vpack.c.b16 %v670, %v669
    %v701 = vpack.c.b16 %v672, %v671
    %v702 = vpack.c.b16 %v674, %v673
    %v703 = vpack.c.b16 %v676, %v675
    %v704 = vpack.c.b16 %v678, %v677
    %v705 = vpack.c.b16 %v680, %v679
    %v706 = vpack.c.b16 %v682, %v681
    %v707 = vpack.c.b16 %v684, %v683
    %v708 = vpack.c.b16 %v686, %v685
    %v709 = vpack.c.b16 %v688, %v687
    %v710 = vpack.c.b16 %v690, %v689
    %v711 = vpack.c.b16 %v692, %v691
    %v712 = vpack.c.b16 %v694, %v693
    %v713 = vpack.c.b16 %v696, %v695
    %v714 = vpack.c.b16 %v698, %v697
    %731 = vmatprep.subr.bf16.mxu0 0
    %732 = vmatpush1.bf16.msra.mxu0 %v706
    %733 = vmatprep.subr.bf16.mxu0 0
    %734 = vmatpush1.bf16.msra.mxu0 %v705
    %735 = vmatprep.subr.bf16.mxu0 0
    %736 = vmatpush1.bf16.msra.mxu0 %v704
    %737 = vmatprep.subr.bf16.mxu0 0
    %738 = vmatpush1.bf16.msra.mxu0 %v703
    %739 = vmatprep.subr.bf16.mxu0 0
    %740 = vmatpush1.bf16.msra.mxu0 %v702
    %741 = vmatprep.subr.bf16.mxu0 0
    %742 = vmatpush1.bf16.msra.mxu0 %v701
    %743 = vmatprep.subr.bf16.mxu0 0
    %744 = vmatpush1.bf16.msra.mxu0 %v700
    %745 = vmatprep.subr.bf16.mxu0 0
    %746 = vmatpush1.bf16.msra.mxu0 %v699
    %747 = vmatprep.subr.bf16.mxu0 0
    %748 = vmatpush2.bf16.msra.mxu0 %v714
    %749 = vmatprep.subr.bf16.mxu0 0
    %750 = vmatpush2.bf16.msra.mxu0 %v713
    %751 = vmatprep.subr.bf16.mxu0 0
    %752 = vmatpush2.bf16.msra.mxu0 %v712
    %753 = vmatprep.subr.bf16.mxu0 0
    %754 = vmatpush2.bf16.msra.mxu0 %v711
    %755 = vmatprep.subr.bf16.mxu0 0
    %756 = vmatpush2.bf16.msra.mxu0 %v710
    %757 = vmatprep.subr.bf16.mxu0 0
    %758 = vmatpush2.bf16.msra.mxu0 %v709
    %759 = vmatprep.subr.bf16.mxu0 0
    %760 = vmatpush2.bf16.msra.mxu0 %v708
    %761 = vmatprep.subr.bf16.mxu0 0
    %762 = vmatpush2.bf16.msra.mxu0 %v707
    %763 = vmatprep.mubr.bf16.mxu0 %v595
    %764 = vmatmul.mubr.bf16.gmra.mxu0 %v594
    %v765 = vpop.f32.mrf.mxu0
    %v766 = vadd.f32 %v633, %v765
    %v767 = vpop.f32.mrf.mxu0
    %v768 = vpop.f32.mrf.mxu0
    %v769 = vpop.f32.mrf.mxu0
    %770 = vdwg.mxu0
    %v771 = vmul.f32 %v766, 0.70710677
    %vm772 = vcmp.ge.f32.partialorder %v771, 0.0
    %v773 = vsel %vm772, 1.0, -1.0
    %v774 = vand.u32 2147483647, %v771
    %v775 = vmul.f32 %v774, 0.3275911
    %v776 = vadd.f32 %v775, 1.0
    %v777 = vrcp.pop %v776
    %v778 = vmul.f32 %v777, 1.0614054
    %v779 = vsub.f32 %v778, 1.4531521
    %v780 = vmul.f32 %v779, %v777
    %v781 = vadd.f32 %v780, 1.4214138
    %v782 = vmul.f32 %v781, %v777
    %v783 = vsub.f32 %v782, 0.28449672
    %v784 = vmul.f32 %v783, %v777
    %v785 = vadd.f32 %v784, 0.2548296
    %v786 = vmul.f32 %v785, %v777
    %v787 = vsub.f32 0.0, %v774
    %v788 = vmul.f32 %v787, %v774
    %v789 = vmul.f32 %v788, 1.442695
    %v790 = vpow.pop %v789
    %v791 = vmul.f32 %v786, %v790
    %v792 = vsub.f32 1.0, %v791
    %v793 = vmul.f32 %v773, %v792
    %v794 = vmul.f32 %v766, 0.5
    %v795 = vadd.f32 %v793, 1.0
    %v796 = vmul.f32 %v794, %v795
    %v797 = vpack.c.bf16 %v796, %v796
    %v798 = vld [vmem:[%s5] sm:$0xf]
    %v799 = vld [vmem:[%s5 + $0x4] sm:$0xf]
    %v800 = vld [vmem:[%s5 + $0x8] sm:$0xf]
    %v801 = vld [vmem:[%s5 + $0xc] sm:$0xf]
    %v802 = vld [vmem:[%s5 + $0x10] sm:$0xf]
    %v803 = vld [vmem:[%s5 + $0x14] sm:$0xf]
    %v804 = vld [vmem:[%s5 + $0x18] sm:$0xf]
    %v805 = vld [vmem:[%s5 + $0x1c] sm:$0xf]
    %v806 = vld [vmem:[%s5 + $0x20] sm:$0xf]
    %v807 = vld [vmem:[%s5 + $0x24] sm:$0xf]
    %v808 = vld [vmem:[%s5 + $0x28] sm:$0xf]
    %v809 = vld [vmem:[%s5 + $0x2c] sm:$0xf]
    %v810 = vld [vmem:[%s5 + $0x30] sm:$0xf]
    %v811 = vld [vmem:[%s5 + $0x34] sm:$0xf]
    %v812 = vld [vmem:[%s5 + $0x38] sm:$0xf]
    %v813 = vld [vmem:[%s5 + $0x3c] sm:$0xf]
    %v814 = vld [vmem:[%s6] sm:$0x1]
    %v816 = vlaneseq
    %v817 = vshrl.u32 %v816, 7
    %v818 = vsub.s32 0, %v817
    %v819 = vrot.slane %v814, %v818
    %v837 = vunpack.c.l.b16 %v798
    %v838 = vunpack.c.l.b16 %v799
    %v839 = vunpack.c.l.b16 %v800
    %v840 = vunpack.c.l.b16 %v801
    %v841 = vunpack.c.l.b16 %v802
    %v842 = vunpack.c.l.b16 %v803
    %v843 = vunpack.c.l.b16 %v804
    %v844 = vunpack.c.l.b16 %v805
    %v845 = vunpack.c.l.b16 %v806
    %v846 = vunpack.c.l.b16 %v807
    %v847 = vunpack.c.l.b16 %v808
    %v848 = vunpack.c.l.b16 %v809
    %v849 = vunpack.c.l.b16 %v810
    %v850 = vunpack.c.l.b16 %v811
    %v851 = vunpack.c.l.b16 %v812
    %v852 = vunpack.c.l.b16 %v813
    %v853 = vpack.c.b16 %v838, %v837
    %v854 = vpack.c.b16 %v840, %v839
    %v855 = vpack.c.b16 %v842, %v841
    %v856 = vpack.c.b16 %v844, %v843
    %v857 = vpack.c.b16 %v846, %v845
    %v858 = vpack.c.b16 %v848, %v847
    %v859 = vpack.c.b16 %v850, %v849
    %v860 = vpack.c.b16 %v852, %v851
    %869 = vmatprep.subr.bf16.mxu0 0
    %870 = vmatpush1.bf16.msra.mxu0 %v860
    %871 = vmatprep.subr.bf16.mxu0 0
    %872 = vmatpush1.bf16.msra.mxu0 %v859
    %873 = vmatprep.subr.bf16.mxu0 0
    %874 = vmatpush1.bf16.msra.mxu0 %v858
    %875 = vmatprep.subr.bf16.mxu0 0
    %876 = vmatpush1.bf16.msra.mxu0 %v857
    %877 = vmatprep.subr.bf16.mxu0 0
    %878 = vmatpush1.bf16.msra.mxu0 %v856
    %879 = vmatprep.subr.bf16.mxu0 0
    %880 = vmatpush1.bf16.msra.mxu0 %v855
    %881 = vmatprep.subr.bf16.mxu0 0
    %882 = vmatpush1.bf16.msra.mxu0 %v854
    %883 = vmatprep.subr.bf16.mxu0 0
    %884 = vmatpush1.bf16.msra.mxu0 %v853
    %885 = vmatprep.subr.bf16.mxu0 0
    %886 = vmatpush2.bf16.msra.mxu0 0
    %887 = vmatprep.subr.bf16.mxu0 0
    %888 = vmatpush2.bf16.msra.mxu0 0
    %889 = vmatprep.subr.bf16.mxu0 0
    %890 = vmatpush2.bf16.msra.mxu0 0
    %891 = vmatprep.subr.bf16.mxu0 0
    %892 = vmatpush2.bf16.msra.mxu0 0
    %893 = vmatprep.subr.bf16.mxu0 0
    %894 = vmatpush2.bf16.msra.mxu0 0
    %895 = vmatprep.subr.bf16.mxu0 0
    %896 = vmatpush2.bf16.msra.mxu0 0
    %897 = vmatprep.subr.bf16.mxu0 0
    %898 = vmatpush2.bf16.msra.mxu0 0
    %899 = vmatprep.subr.bf16.mxu0 0
    %900 = vmatpush2.bf16.msra.mxu0 0
    %901 = vmatprep.mubr.bf16.mxu0 0
    %902 = vmatmul.mubr.bf16.gmra.mxu0 %v797
    %v903 = vpop.f32.mrf.mxu0
    %v904 = vadd.f32 %v819, %v903
    %v905 = vpop.f32.mrf.mxu0
    %v906 = vpop.f32.mrf.mxu0
    %v907 = vpop.f32.mrf.mxu0
    %908 = vdwg.mxu0
    %v909 = vmul.f32 %v904, 0.70710677
    %vm910 = vcmp.ge.f32.partialorder %v909, 0.0
    %v911 = vsel %vm910, 1.0, -1.0
    %v912 = vand.u32 2147483647, %v909
    %v913 = vmul.f32 %v912, 0.3275911
    %v914 = vadd.f32 %v913, 1.0
    %v915 = vrcp.pop %v914
    %v916 = vmul.f32 %v915, 1.0614054
    %v917 = vsub.f32 %v916, 1.4531521
    %v918 = vmul.f32 %v917, %v915
    %v919 = vadd.f32 %v918, 1.4214138
    %v920 = vmul.f32 %v919, %v915
    %v921 = vsub.f32 %v920, 0.28449672
    %v922 = vmul.f32 %v921, %v915
    %v923 = vadd.f32 %v922, 0.2548296
    %v924 = vmul.f32 %v923, %v915
    %v925 = vsub.f32 0.0, %v912
    %v926 = vmul.f32 %v925, %v912
    %v927 = vmul.f32 %v926, 1.442695
    %v928 = vpow.pop %v927
    %v929 = vmul.f32 %v924, %v928
    %v930 = vsub.f32 1.0, %v929
    %v931 = vmul.f32 %v911, %v930
    %v932 = vmul.f32 %v904, 0.5
    %v933 = vadd.f32 %v931, 1.0
    %v934 = vmul.f32 %v932, %v933
    %v935 = vpack.c.bf16 %v934, %v934
    %v936 = vld [vmem:[%s7] sm:$0xff]
    %v937 = vld [vmem:[%s7 + $0x8] sm:$0xff]
    %v938 = vld [vmem:[%s7 + $0x10] sm:$0xff]
    %v939 = vld [vmem:[%s7 + $0x18] sm:$0xff]
    %v940 = vld [vmem:[%s7 + $0x20] sm:$0xff]
    %v941 = vld [vmem:[%s7 + $0x28] sm:$0xff]
    %v942 = vld [vmem:[%s7 + $0x30] sm:$0xff]
    %v943 = vld [vmem:[%s7 + $0x38] sm:$0xff]
    %v944 = vld [vmem:[%s8] sm:$0x3]
    %v946 = vlaneseq
    %v947 = vshrl.u32 %v946, 7
    %v948 = vsub.s32 0, %v947
    %v949 = vrot.slane %v944, %v948
    %v950 = vlaneseq
    %v951 = vshrl.u32 %v950, 7
    %v952 = vsub.s32 1, %v951
    %v953 = vrot.slane %v944, %v952
    %v964 = vunpack.c.l.b16 %v936
    %v965 = vunpack.c.h.b16 %v936
    %v966 = vunpack.c.l.b16 %v937
    %v967 = vunpack.c.h.b16 %v937
    %v968 = vunpack.c.l.b16 %v938
    %v969 = vunpack.c.h.b16 %v938
    %v970 = vunpack.c.l.b16 %v939
    %v971 = vunpack.c.h.b16 %v939
    %v972 = vunpack.c.l.b16 %v940
    %v973 = vunpack.c.h.b16 %v940
    %v974 = vunpack.c.l.b16 %v941
    %v975 = vunpack.c.h.b16 %v941
    %v976 = vunpack.c.l.b16 %v942
    %v977 = vunpack.c.h.b16 %v942
    %v978 = vunpack.c.l.b16 %v943
    %v979 = vunpack.c.h.b16 %v943
    %v980 = vpack.c.b16 %v966, %v964
    %v981 = vpack.c.b16 %v967, %v965
    %v982 = vpack.c.b16 %v970, %v968
    %v983 = vpack.c.b16 %v971, %v969
    %v984 = vpack.c.b16 %v974, %v972
    %v985 = vpack.c.b16 %v975, %v973
    %v986 = vpack.c.b16 %v978, %v976
    %v987 = vpack.c.b16 %v979, %v977
    %vm996 = vcmask 523264
    %v998 = vsel %vm996, %v935, 0
    %1000 = vmatprep.subr.bf16.mxu0 0
    %1001 = vmatpush1.bf16.msra.mxu0 0
    %1002 = vmatprep.subr.bf16.mxu0 0
    %1003 = vmatpush1.bf16.msra.mxu0 0
    %1004 = vmatprep.subr.bf16.mxu0 0
    %1005 = vmatpush1.bf16.msra.mxu0 0
    %1006 = vmatprep.subr.bf16.mxu0 0
    %1007 = vmatpush1.bf16.msra.mxu0 0
    %1008 = vmatprep.subr.bf16.mxu0 %v987
    %1009 = vmatpush1.bf16.msra.mxu0 %v986
    %1010 = vmatprep.subr.bf16.mxu0 %v985
    %1011 = vmatpush1.bf16.msra.mxu0 %v984
    %1012 = vmatprep.subr.bf16.mxu0 %v983
    %1013 = vmatpush1.bf16.msra.mxu0 %v982
    %1014 = vmatprep.subr.bf16.mxu0 %v981
    %1015 = vmatpush1.bf16.msra.mxu0 %v980
    %1016 = vmatprep.subr.bf16.mxu0 0
    %1017 = vmatpush2.bf16.msra.mxu0 0
    %1018 = vmatprep.subr.bf16.mxu0 0
    %1019 = vmatpush2.bf16.msra.mxu0 0
    %1020 = vmatprep.subr.bf16.mxu0 0
    %1021 = vmatpush2.bf16.msra.mxu0 0
    %1022 = vmatprep.subr.bf16.mxu0 0
    %1023 = vmatpush2.bf16.msra.mxu0 0
    %1024 = vmatprep.subr.bf16.mxu0 0
    %1025 = vmatpush2.bf16.msra.mxu0 0
    %1026 = vmatprep.subr.bf16.mxu0 0
    %1027 = vmatpush2.bf16.msra.mxu0 0
    %1028 = vmatprep.subr.bf16.mxu0 0
    %1029 = vmatpush2.bf16.msra.mxu0 0
    %1030 = vmatprep.subr.bf16.mxu0 0
    %1031 = vmatpush2.bf16.msra.mxu0 0
    %1032 = vmatprep.mubr.bf16.mxu0 0
    %1033 = vmatmul.mubr.bf16.gmra.mxu0 %v998
    %v1034 = vpop.f32.mrf.mxu0
    %v1035 = vadd.f32 %v949, %v1034
    %v1036 = vpop.f32.mrf.mxu0
    %v1037 = vadd.f32 %v953, %v1036
    %v1038 = vpop.f32.mrf.mxu0
    %v1039 = vpop.f32.mrf.mxu0
    %1040 = vdwg.mxu0
    %v1043 = vcombine.low %v1035, %v1037
    %v1045 = vunpack.c.l.s4 1983009808
    %v1046 = vunpack.c.0.s8 %v1045
    %v1047 = vlaneseq
    %v1048 = vshrl.u32 %v1047, 7
    %v1049 = vsub.s32 %v1046, %v1048
    %v1050 = vrot.slane %v1043, %v1049
    %vm1052 = vcmask 1041408
    %vm1053 = vcmask 150530
    %vm1054 = vmor %vm1053, %vm1052
    %1055 = vst.msk [vmem:[#allocation2] sm:$0xf] %vm1054, %v1050
    // Predicated region
    $region38: #{simple_cnn_forward.9} parent=1 // pred_check
      _
    $region39: #{simple_cnn_forward.9} parent=1 // pred_check_branch
      %1057 = sbr.rel (0) target = $region41
    $region40: #{simple_cnn_forward.9} parent=1 // pred_region
      %s1059 = ssub.s32 64, 64
      %1060 = vsyncadd [#allocation3], %s1059
      %s1062 = sshll.u32 [#allocation2], 4
      %s1063 = int_to_ptr.vmem [resolvable:$true] %s1062
      %1065 = dma.vmem_to_hbm [thread:$0]  %s1063, 64, %s9, [#allocation3]
    $region41: #{simple_cnn_forward.9} parent=1 // pred_fallthru
      _
    // Predicated region
    $region42: #{simple_cnn_forward.9} parent=1 // pred_check
      _
    $region43: #{simple_cnn_forward.9} parent=1 // pred_check_branch
      %1067 = sbr.rel (0) target = $region45
    $region44: #{simple_cnn_forward.9} parent=1 // pred_region
      %1068 = dma.done [#allocation3], 64
    $region45: #{simple_cnn_forward.9} parent=1 // pred_fallthru
      _
    %1069 = vsyncpa [#allocation3], 1

</llo_original>
